<compile_context>
chip_gen: v6e
topology: v6e:2x2x1
jax: 0.10.0
libtpu: 0.0.40
codegen_flags: <defaults>
</compile_context>

<pallas_src>
import functools

import jax
import jax.numpy as jnp
from jax.experimental import pallas as pl
from jax.experimental.pallas import tpu as pltpu  # noqa: F401  (kept for TPU-specific tuning hooks)


# ----------------------------------------------------------------------------
# Fused res_block kernel (everything VMEM-resident, no grid)
# ----------------------------------------------------------------------------
def _res_block_kernel(x_ref, p_ref, w1_ref, w2_ref, r_ref,
                      g1_ref, bt1_ref, g2_ref, bt2_ref, o_ref,
                      *, eps, slope):
    n = x_ref.shape[0]
    c_in = x_ref.shape[1]
    c_out = w1_ref.shape[1]

    x = x_ref[...]                                        # (N, c_in)

    def onering_conv(z, w_ref, c):
        # z[neigh].reshape(N, 7c) @ W  ==  sum_k P_k @ (z @ W[k*c:(k+1)*c])
        acc = jnp.zeros((n, c_out), jnp.float32)
        for k in range(7):                                # unrolled, static
            t = jnp.dot(z, w_ref[pl.ds(k * c, c), :],
                        preferred_element_type=jnp.float32)
            acc = acc + jnp.dot(p_ref[k], t,
                                preferred_element_type=jnp.float32)
        return acc

    def bn(y, g_ref, b_ref):
        # exact two-pass mean/var over the VMEM-resident block
        m = jnp.mean(y, axis=0, keepdims=True)
        d = y - m
        v = jnp.mean(d * d, axis=0, keepdims=True)
        scale = g_ref[...] * jax.lax.rsqrt(v + eps)       # EUP rsqrt
        return d * scale + b_ref[...]

    def lrelu(z):
        return jnp.where(z >= 0, z, slope * z)

    # conv1 => BN1 => LeakyReLU   (conv bias dropped: cancelled by BN)
    z1 = lrelu(bn(onering_conv(x, w1_ref, c_in), g1_ref, bt1_ref))
    # conv2 => BN2
    z2 = bn(onering_conv(z1, w2_ref, c_out), g2_ref, bt2_ref)
    # residual (channel duplication for first_in_block folded into R) + LReLU
    res = jnp.dot(x, r_ref[...], preferred_element_type=jnp.float32)
    o_ref[...] = lrelu(z2 + res)


def res_block_forward(params, x, neigh_orders, *, first_in_block,
                      eps=1e-5, slope=0.2):
    n, c_in = x.shape
    c_out = params["w1"].shape[1]

    # One-hot 1-ring gather operator, (7, N, N); constructor-time constant.
    p = jax.nn.one_hot(neigh_orders.reshape(n, 7).T, n, dtype=jnp.float32)

    # Residual projection: identity, or [I | I] when the block doubles channels.
    eye = jnp.eye(c_in, dtype=jnp.float32)
    r = jnp.concatenate([eye, eye], axis=1) if first_in_block else eye
    assert r.shape == (c_in, c_out)

    kernel = functools.partial(_res_block_kernel, eps=eps, slope=slope)
    return pl.pallas_call(
        kernel,
        out_shape=jax.ShapeDtypeStruct((n, c_out), jnp.float32),
        # no grid / BlockSpecs: every operand is a single whole-array VMEM block
    )(x, p,
      params["w1"], params["w2"], r,
      params["g1"].reshape(1, c_out), params["bt1"].reshape(1, c_out),
      params["g2"].reshape(1, c_out), params["bt2"].reshape(1, c_out))


# ----------------------------------------------------------------------------
# Pure-JAX reference matching the PyTorch forward (training-mode BatchNorm1d)
# ----------------------------------------------------------------------------
def ref_forward(params, x, neigh_orders, *, first_in_block,
                eps=1e-5, slope=0.2):
    n = x.shape[0]

    def conv(z, w, b):
        mat = z[neigh_orders].reshape(n, -1)
        return jnp.dot(mat, w, precision=jax.lax.Precision.HIGHEST) + b

    def bn(y, g, bt):
        m = jnp.mean(y, axis=0)
        v = jnp.mean((y - m) ** 2, axis=0)       # biased variance (BN training)
        return (y - m) / jnp.sqrt(v + eps) * g + bt

    def lrelu(z):
        return jnp.where(z >= 0, z, slope * z)

    res = x
    h = lrelu(bn(conv(x, params["w1"], params["b1"]),
                 params["g1"], params["bt1"]))
    h = bn(conv(h, params["w2"], params["b2"]),
           params["g2"], params["bt2"])
    if first_in_block:
        res = jnp.concatenate([res, res], axis=1)
    return lrelu(h + res)


if __name__ == "__main__":
    # Icosphere level-2 mesh: 162 vertices; first block of a stage doubles
    # channels (c_out = 2 * c_in) and duplicates the residual.
    n = 162
    c_in, c_out = 64, 128
    first_in_block = True

    key = jax.random.PRNGKey(0)
    ks = jax.random.split(key, 10)

    # Synthetic (shape/range-correct) 1-ring connectivity.
    neigh_orders = jax.random.randint(ks[0], (7 * n,), 0, n, dtype=jnp.int32)

    params = {
        # onering_conv_layer(c_in, c_out): nn.Linear(7*c_in, c_out)
        "w1": 0.1 * jax.random.normal(ks[1], (7 * c_in, c_out), jnp.float32),
        "b1": 0.1 * jax.random.normal(ks[2], (c_out,), jnp.float32),
        # onering_conv_layer(c_out, c_out): nn.Linear(7*c_out, c_out)
        "w2": 0.1 * jax.random.normal(ks[3], (7 * c_out, c_out), jnp.float32),
        "b2": 0.1 * jax.random.normal(ks[4], (c_out,), jnp.float32),
        # BatchNorm1d affine params
        "g1": 1.0 + 0.1 * jax.random.normal(ks[5], (c_out,), jnp.float32),
        "bt1": 0.1 * jax.random.normal(ks[6], (c_out,), jnp.float32),
        "g2": 1.0 + 0.1 * jax.random.normal(ks[7], (c_out,), jnp.float32),
        "bt2": 0.1 * jax.random.normal(ks[8], (c_out,), jnp.float32),
    }
    x = jax.random.normal(ks[9], (n, c_in), jnp.float32)

    out = res_block_forward(params, x, neigh_orders,
                            first_in_block=first_in_block)
    out = jax.block_until_ready(out)

    ref = ref_forward(params, x, neigh_orders, first_in_block=first_in_block)
    err = float(jnp.max(jnp.abs(out - ref)))
    assert out.shape == (n, c_out), out.shape
    assert err < 5e-4, f"max abs error {err}"

    print("KERNEL_OK")
</pallas_src>

<mosaic_0001>
module attributes {stable_mosaic.version = 11 : i64} {
  func.func @_res_block_kernel(%arg0: memref<162x64xf32, #tpu.memory_space<vmem>>, %arg1: memref<7x162x162xf32, #tpu.memory_space<vmem>>, %arg2: memref<448x128xf32, #tpu.memory_space<vmem>>, %arg3: memref<896x128xf32, #tpu.memory_space<vmem>>, %arg4: memref<64x128xf32, #tpu.memory_space<vmem>>, %arg5: memref<1x128xf32, #tpu.memory_space<vmem>>, %arg6: memref<1x128xf32, #tpu.memory_space<vmem>>, %arg7: memref<1x128xf32, #tpu.memory_space<vmem>>, %arg8: memref<1x128xf32, #tpu.memory_space<vmem>>, %arg9: memref<162x128xf32, #tpu.memory_space<vmem>>) attributes {dimension_semantics = [], scalar_prefetch = 0 : i64, scratch_operands = 0 : i64, tpu.core_type = #tpu.core_type<tc>} {
    %c0 = arith.constant 0 : index
    %c0_0 = arith.constant 0 : index
    %0 = vector.load %arg0[%c0, %c0_0] : memref<162x64xf32, #tpu.memory_space<vmem>>, vector<162x64xf32>
    %cst = arith.constant 0.000000e+00 : f32
    %1 = vector.broadcast %cst : f32 to vector<162x128xf32>
    %c0_1 = arith.constant 0 : index
    %c0_2 = arith.constant 0 : index
    %2 = vector.load %arg2[%c0_1, %c0_2] : memref<448x128xf32, #tpu.memory_space<vmem>>, vector<64x128xf32>
    %cst_3 = arith.constant dense<0.000000e+00> : vector<162x128xf32>
    %3 = tpu.matmul %0, %2, %cst_3 {dimension_numbers = #tpu.dot_dimension_numbers<[1], [0], [0], [1], [0, 0, 1, 1], [], []>} : vector<162x64xf32>, vector<64x128xf32>, vector<162x128xf32> -> vector<162x128xf32>
    %c0_4 = arith.constant 0 : index
    %c0_5 = arith.constant 0 : index
    %c0_6 = arith.constant 0 : index
    %4 = vector.load %arg1[%c0_4, %c0_5, %c0_6] : memref<7x162x162xf32, #tpu.memory_space<vmem>>, vector<1x162x162xf32>
    %5 = vector.shape_cast %4 : vector<1x162x162xf32> to vector<162x162xf32>
    %cst_7 = arith.constant dense<0.000000e+00> : vector<162x128xf32>
    %6 = tpu.matmul %5, %3, %cst_7 {dimension_numbers = #tpu.dot_dimension_numbers<[1], [0], [0], [1], [0, 0, 1, 1], [], []>} : vector<162x162xf32>, vector<162x128xf32>, vector<162x128xf32> -> vector<162x128xf32>
    %7 = arith.addf %1, %6 : vector<162x128xf32>
    %c64 = arith.constant 64 : index
    %c0_8 = arith.constant 0 : index
    %8 = vector.load %arg2[%c64, %c0_8] : memref<448x128xf32, #tpu.memory_space<vmem>>, vector<64x128xf32>
    %cst_9 = arith.constant dense<0.000000e+00> : vector<162x128xf32>
    %9 = tpu.matmul %0, %8, %cst_9 {dimension_numbers = #tpu.dot_dimension_numbers<[1], [0], [0], [1], [0, 0, 1, 1], [], []>} : vector<162x64xf32>, vector<64x128xf32>, vector<162x128xf32> -> vector<162x128xf32>
    %c1 = arith.constant 1 : index
    %c0_10 = arith.constant 0 : index
    %c0_11 = arith.constant 0 : index
    %10 = vector.load %arg1[%c1, %c0_10, %c0_11] : memref<7x162x162xf32, #tpu.memory_space<vmem>>, vector<1x162x162xf32>
    %11 = vector.shape_cast %10 : vector<1x162x162xf32> to vector<162x162xf32>
    %cst_12 = arith.constant dense<0.000000e+00> : vector<162x128xf32>
    %12 = tpu.matmul %11, %9, %cst_12 {dimension_numbers = #tpu.dot_dimension_numbers<[1], [0], [0], [1], [0, 0, 1, 1], [], []>} : vector<162x162xf32>, vector<162x128xf32>, vector<162x128xf32> -> vector<162x128xf32>
    %13 = arith.addf %7, %12 : vector<162x128xf32>
    %c128 = arith.constant 128 : index
    %c0_13 = arith.constant 0 : index
    %14 = vector.load %arg2[%c128, %c0_13] : memref<448x128xf32, #tpu.memory_space<vmem>>, vector<64x128xf32>
    %cst_14 = arith.constant dense<0.000000e+00> : vector<162x128xf32>
    %15 = tpu.matmul %0, %14, %cst_14 {dimension_numbers = #tpu.dot_dimension_numbers<[1], [0], [0], [1], [0, 0, 1, 1], [], []>} : vector<162x64xf32>, vector<64x128xf32>, vector<162x128xf32> -> vector<162x128xf32>
    %c2 = arith.constant 2 : index
    %c0_15 = arith.constant 0 : index
    %c0_16 = arith.constant 0 : index
    %16 = vector.load %arg1[%c2, %c0_15, %c0_16] : memref<7x162x162xf32, #tpu.memory_space<vmem>>, vector<1x162x162xf32>
    %17 = vector.shape_cast %16 : vector<1x162x162xf32> to vector<162x162xf32>
    %cst_17 = arith.constant dense<0.000000e+00> : vector<162x128xf32>
    %18 = tpu.matmul %17, %15, %cst_17 {dimension_numbers = #tpu.dot_dimension_numbers<[1], [0], [0], [1], [0, 0, 1, 1], [], []>} : vector<162x162xf32>, vector<162x128xf32>, vector<162x128xf32> -> vector<162x128xf32>
    %19 = arith.addf %13, %18 : vector<162x128xf32>
    %c192 = arith.constant 192 : index
    %c0_18 = arith.constant 0 : index
    %20 = vector.load %arg2[%c192, %c0_18] : memref<448x128xf32, #tpu.memory_space<vmem>>, vector<64x128xf32>
    %cst_19 = arith.constant dense<0.000000e+00> : vector<162x128xf32>
    %21 = tpu.matmul %0, %20, %cst_19 {dimension_numbers = #tpu.dot_dimension_numbers<[1], [0], [0], [1], [0, 0, 1, 1], [], []>} : vector<162x64xf32>, vector<64x128xf32>, vector<162x128xf32> -> vector<162x128xf32>
    %c3 = arith.constant 3 : index
    %c0_20 = arith.constant 0 : index
    %c0_21 = arith.constant 0 : index
    %22 = vector.load %arg1[%c3, %c0_20, %c0_21] : memref<7x162x162xf32, #tpu.memory_space<vmem>>, vector<1x162x162xf32>
    %23 = vector.shape_cast %22 : vector<1x162x162xf32> to vector<162x162xf32>
    %cst_22 = arith.constant dense<0.000000e+00> : vector<162x128xf32>
    %24 = tpu.matmul %23, %21, %cst_22 {dimension_numbers = #tpu.dot_dimension_numbers<[1], [0], [0], [1], [0, 0, 1, 1], [], []>} : vector<162x162xf32>, vector<162x128xf32>, vector<162x128xf32> -> vector<162x128xf32>
    %25 = arith.addf %19, %24 : vector<162x128xf32>
    %c256 = arith.constant 256 : index
    %c0_23 = arith.constant 0 : index
    %26 = vector.load %arg2[%c256, %c0_23] : memref<448x128xf32, #tpu.memory_space<vmem>>, vector<64x128xf32>
    %cst_24 = arith.constant dense<0.000000e+00> : vector<162x128xf32>
    %27 = tpu.matmul %0, %26, %cst_24 {dimension_numbers = #tpu.dot_dimension_numbers<[1], [0], [0], [1], [0, 0, 1, 1], [], []>} : vector<162x64xf32>, vector<64x128xf32>, vector<162x128xf32> -> vector<162x128xf32>
    %c4 = arith.constant 4 : index
    %c0_25 = arith.constant 0 : index
    %c0_26 = arith.constant 0 : index
    %28 = vector.load %arg1[%c4, %c0_25, %c0_26] : memref<7x162x162xf32, #tpu.memory_space<vmem>>, vector<1x162x162xf32>
    %29 = vector.shape_cast %28 : vector<1x162x162xf32> to vector<162x162xf32>
    %cst_27 = arith.constant dense<0.000000e+00> : vector<162x128xf32>
    %30 = tpu.matmul %29, %27, %cst_27 {dimension_numbers = #tpu.dot_dimension_numbers<[1], [0], [0], [1], [0, 0, 1, 1], [], []>} : vector<162x162xf32>, vector<162x128xf32>, vector<162x128xf32> -> vector<162x128xf32>
    %31 = arith.addf %25, %30 : vector<162x128xf32>
    %c320 = arith.constant 320 : index
    %c0_28 = arith.constant 0 : index
    %32 = vector.load %arg2[%c320, %c0_28] : memref<448x128xf32, #tpu.memory_space<vmem>>, vector<64x128xf32>
    %cst_29 = arith.constant dense<0.000000e+00> : vector<162x128xf32>
    %33 = tpu.matmul %0, %32, %cst_29 {dimension_numbers = #tpu.dot_dimension_numbers<[1], [0], [0], [1], [0, 0, 1, 1], [], []>} : vector<162x64xf32>, vector<64x128xf32>, vector<162x128xf32> -> vector<162x128xf32>
    %c5 = arith.constant 5 : index
    %c0_30 = arith.constant 0 : index
    %c0_31 = arith.constant 0 : index
    %34 = vector.load %arg1[%c5, %c0_30, %c0_31] : memref<7x162x162xf32, #tpu.memory_space<vmem>>, vector<1x162x162xf32>
    %35 = vector.shape_cast %34 : vector<1x162x162xf32> to vector<162x162xf32>
    %cst_32 = arith.constant dense<0.000000e+00> : vector<162x128xf32>
    %36 = tpu.matmul %35, %33, %cst_32 {dimension_numbers = #tpu.dot_dimension_numbers<[1], [0], [0], [1], [0, 0, 1, 1], [], []>} : vector<162x162xf32>, vector<162x128xf32>, vector<162x128xf32> -> vector<162x128xf32>
    %37 = arith.addf %31, %36 : vector<162x128xf32>
    %c384 = arith.constant 384 : index
    %c0_33 = arith.constant 0 : index
    %38 = vector.load %arg2[%c384, %c0_33] : memref<448x128xf32, #tpu.memory_space<vmem>>, vector<64x128xf32>
    %cst_34 = arith.constant dense<0.000000e+00> : vector<162x128xf32>
    %39 = tpu.matmul %0, %38, %cst_34 {dimension_numbers = #tpu.dot_dimension_numbers<[1], [0], [0], [1], [0, 0, 1, 1], [], []>} : vector<162x64xf32>, vector<64x128xf32>, vector<162x128xf32> -> vector<162x128xf32>
    %c6 = arith.constant 6 : index
    %c0_35 = arith.constant 0 : index
    %c0_36 = arith.constant 0 : index
    %40 = vector.load %arg1[%c6, %c0_35, %c0_36] : memref<7x162x162xf32, #tpu.memory_space<vmem>>, vector<1x162x162xf32>
    %41 = vector.shape_cast %40 : vector<1x162x162xf32> to vector<162x162xf32>
    %cst_37 = arith.constant dense<0.000000e+00> : vector<162x128xf32>
    %42 = tpu.matmul %41, %39, %cst_37 {dimension_numbers = #tpu.dot_dimension_numbers<[1], [0], [0], [1], [0, 0, 1, 1], [], []>} : vector<162x162xf32>, vector<162x128xf32>, vector<162x128xf32> -> vector<162x128xf32>
    %43 = arith.addf %37, %42 : vector<162x128xf32>
    %cst_38 = arith.constant dense<0.000000e+00> : vector<128xf32>
    %44 = vector.multi_reduction <add>, %43, %cst_38 [0] : vector<162x128xf32> to vector<128xf32>
    %45 = vector.shape_cast %44 : vector<128xf32> to vector<1x128xf32>
    %cst_39 = arith.constant 1.620000e+02 : f32
    %46 = vector.broadcast %cst_39 : f32 to vector<1x128xf32>
    %47 = arith.divf %45, %46 : vector<1x128xf32>
    %48 = vector.broadcast %47 : vector<1x128xf32> to vector<162x128xf32>
    %49 = arith.subf %43, %48 : vector<162x128xf32>
    %50 = arith.mulf %49, %49 : vector<162x128xf32>
    %cst_40 = arith.constant dense<0.000000e+00> : vector<128xf32>
    %51 = vector.multi_reduction <add>, %50, %cst_40 [0] : vector<162x128xf32> to vector<128xf32>
    %52 = vector.shape_cast %51 : vector<128xf32> to vector<1x128xf32>
    %cst_41 = arith.constant 1.620000e+02 : f32
    %53 = vector.broadcast %cst_41 : f32 to vector<1x128xf32>
    %54 = arith.divf %52, %53 : vector<1x128xf32>
    %c0_42 = arith.constant 0 : index
    %c0_43 = arith.constant 0 : index
    %55 = vector.load %arg5[%c0_42, %c0_43] : memref<1x128xf32, #tpu.memory_space<vmem>>, vector<1x128xf32>
    %cst_44 = arith.constant 9.99999974E-6 : f32
    %56 = vector.broadcast %cst_44 : f32 to vector<1x128xf32>
    %57 = arith.addf %54, %56 : vector<1x128xf32>
    %58 = math.rsqrt %57 : vector<1x128xf32>
    %59 = arith.mulf %55, %58 : vector<1x128xf32>
    %60 = vector.broadcast %59 : vector<1x128xf32> to vector<162x128xf32>
    %61 = arith.mulf %49, %60 : vector<162x128xf32>
    %c0_45 = arith.constant 0 : index
    %c0_46 = arith.constant 0 : index
    %62 = vector.load %arg6[%c0_45, %c0_46] : memref<1x128xf32, #tpu.memory_space<vmem>>, vector<1x128xf32>
    %63 = vector.broadcast %62 : vector<1x128xf32> to vector<162x128xf32>
    %64 = arith.addf %61, %63 : vector<162x128xf32>
    %cst_47 = arith.constant 0.000000e+00 : f32
    %65 = vector.broadcast %cst_47 : f32 to vector<162x128xf32>
    %66 = arith.cmpf oge, %64, %65 : vector<162x128xf32>
    %cst_48 = arith.constant 2.000000e-01 : f32
    %67 = vector.broadcast %cst_48 : f32 to vector<162x128xf32>
    %68 = arith.mulf %67, %64 : vector<162x128xf32>
    %69 = arith.select %66, %64, %68 : vector<162x128xi1>, vector<162x128xf32>
    %cst_49 = arith.constant 0.000000e+00 : f32
    %70 = vector.broadcast %cst_49 : f32 to vector<162x128xf32>
    %c0_50 = arith.constant 0 : index
    %c0_51 = arith.constant 0 : index
    %71 = vector.load %arg3[%c0_50, %c0_51] : memref<896x128xf32, #tpu.memory_space<vmem>>, vector<128x128xf32>
    %cst_52 = arith.constant dense<0.000000e+00> : vector<162x128xf32>
    %72 = tpu.matmul %69, %71, %cst_52 {dimension_numbers = #tpu.dot_dimension_numbers<[1], [0], [0], [1], [0, 0, 1, 1], [], []>} : vector<162x128xf32>, vector<128x128xf32>, vector<162x128xf32> -> vector<162x128xf32>
    %c0_53 = arith.constant 0 : index
    %c0_54 = arith.constant 0 : index
    %c0_55 = arith.constant 0 : index
    %73 = vector.load %arg1[%c0_53, %c0_54, %c0_55] : memref<7x162x162xf32, #tpu.memory_space<vmem>>, vector<1x162x162xf32>
    %74 = vector.shape_cast %73 : vector<1x162x162xf32> to vector<162x162xf32>
    %cst_56 = arith.constant dense<0.000000e+00> : vector<162x128xf32>
    %75 = tpu.matmul %74, %72, %cst_56 {dimension_numbers = #tpu.dot_dimension_numbers<[1], [0], [0], [1], [0, 0, 1, 1], [], []>} : vector<162x162xf32>, vector<162x128xf32>, vector<162x128xf32> -> vector<162x128xf32>
    %76 = arith.addf %70, %75 : vector<162x128xf32>
    %c128_57 = arith.constant 128 : index
    %c0_58 = arith.constant 0 : index
    %77 = vector.load %arg3[%c128_57, %c0_58] : memref<896x128xf32, #tpu.memory_space<vmem>>, vector<128x128xf32>
    %cst_59 = arith.constant dense<0.000000e+00> : vector<162x128xf32>
    %78 = tpu.matmul %69, %77, %cst_59 {dimension_numbers = #tpu.dot_dimension_numbers<[1], [0], [0], [1], [0, 0, 1, 1], [], []>} : vector<162x128xf32>, vector<128x128xf32>, vector<162x128xf32> -> vector<162x128xf32>
    %c1_60 = arith.constant 1 : index
    %c0_61 = arith.constant 0 : index
    %c0_62 = arith.constant 0 : index
    %79 = vector.load %arg1[%c1_60, %c0_61, %c0_62] : memref<7x162x162xf32, #tpu.memory_space<vmem>>, vector<1x162x162xf32>
    %80 = vector.shape_cast %79 : vector<1x162x162xf32> to vector<162x162xf32>
    %cst_63 = arith.constant dense<0.000000e+00> : vector<162x128xf32>
    %81 = tpu.matmul %80, %78, %cst_63 {dimension_numbers = #tpu.dot_dimension_numbers<[1], [0], [0], [1], [0, 0, 1, 1], [], []>} : vector<162x162xf32>, vector<162x128xf32>, vector<162x128xf32> -> vector<162x128xf32>
    %82 = arith.addf %76, %81 : vector<162x128xf32>
    %c256_64 = arith.constant 256 : index
    %c0_65 = arith.constant 0 : index
    %83 = vector.load %arg3[%c256_64, %c0_65] : memref<896x128xf32, #tpu.memory_space<vmem>>, vector<128x128xf32>
    %cst_66 = arith.constant dense<0.000000e+00> : vector<162x128xf32>
    %84 = tpu.matmul %69, %83, %cst_66 {dimension_numbers = #tpu.dot_dimension_numbers<[1], [0], [0], [1], [0, 0, 1, 1], [], []>} : vector<162x128xf32>, vector<128x128xf32>, vector<162x128xf32> -> vector<162x128xf32>
    %c2_67 = arith.constant 2 : index
    %c0_68 = arith.constant 0 : index
    %c0_69 = arith.constant 0 : index
    %85 = vector.load %arg1[%c2_67, %c0_68, %c0_69] : memref<7x162x162xf32, #tpu.memory_space<vmem>>, vector<1x162x162xf32>
    %86 = vector.shape_cast %85 : vector<1x162x162xf32> to vector<162x162xf32>
    %cst_70 = arith.constant dense<0.000000e+00> : vector<162x128xf32>
    %87 = tpu.matmul %86, %84, %cst_70 {dimension_numbers = #tpu.dot_dimension_numbers<[1], [0], [0], [1], [0, 0, 1, 1], [], []>} : vector<162x162xf32>, vector<162x128xf32>, vector<162x128xf32> -> vector<162x128xf32>
    %88 = arith.addf %82, %87 : vector<162x128xf32>
    %c384_71 = arith.constant 384 : index
    %c0_72 = arith.constant 0 : index
    %89 = vector.load %arg3[%c384_71, %c0_72] : memref<896x128xf32, #tpu.memory_space<vmem>>, vector<128x128xf32>
    %cst_73 = arith.constant dense<0.000000e+00> : vector<162x128xf32>
    %90 = tpu.matmul %69, %89, %cst_73 {dimension_numbers = #tpu.dot_dimension_numbers<[1], [0], [0], [1], [0, 0, 1, 1], [], []>} : vector<162x128xf32>, vector<128x128xf32>, vector<162x128xf32> -> vector<162x128xf32>
    %c3_74 = arith.constant 3 : index
    %c0_75 = arith.constant 0 : index
    %c0_76 = arith.constant 0 : index
    %91 = vector.load %arg1[%c3_74, %c0_75, %c0_76] : memref<7x162x162xf32, #tpu.memory_space<vmem>>, vector<1x162x162xf32>
    %92 = vector.shape_cast %91 : vector<1x162x162xf32> to vector<162x162xf32>
    %cst_77 = arith.constant dense<0.000000e+00> : vector<162x128xf32>
    %93 = tpu.matmul %92, %90, %cst_77 {dimension_numbers = #tpu.dot_dimension_numbers<[1], [0], [0], [1], [0, 0, 1, 1], [], []>} : vector<162x162xf32>, vector<162x128xf32>, vector<162x128xf32> -> vector<162x128xf32>
    %94 = arith.addf %88, %93 : vector<162x128xf32>
    %c512 = arith.constant 512 : index
    %c0_78 = arith.constant 0 : index
    %95 = vector.load %arg3[%c512, %c0_78] : memref<896x128xf32, #tpu.memory_space<vmem>>, vector<128x128xf32>
    %cst_79 = arith.constant dense<0.000000e+00> : vector<162x128xf32>
    %96 = tpu.matmul %69, %95, %cst_79 {dimension_numbers = #tpu.dot_dimension_numbers<[1], [0], [0], [1], [0, 0, 1, 1], [], []>} : vector<162x128xf32>, vector<128x128xf32>, vector<162x128xf32> -> vector<162x128xf32>
    %c4_80 = arith.constant 4 : index
    %c0_81 = arith.constant 0 : index
    %c0_82 = arith.constant 0 : index
    %97 = vector.load %arg1[%c4_80, %c0_81, %c0_82] : memref<7x162x162xf32, #tpu.memory_space<vmem>>, vector<1x162x162xf32>
    %98 = vector.shape_cast %97 : vector<1x162x162xf32> to vector<162x162xf32>
    %cst_83 = arith.constant dense<0.000000e+00> : vector<162x128xf32>
    %99 = tpu.matmul %98, %96, %cst_83 {dimension_numbers = #tpu.dot_dimension_numbers<[1], [0], [0], [1], [0, 0, 1, 1], [], []>} : vector<162x162xf32>, vector<162x128xf32>, vector<162x128xf32> -> vector<162x128xf32>
    %100 = arith.addf %94, %99 : vector<162x128xf32>
    %c640 = arith.constant 640 : index
    %c0_84 = arith.constant 0 : index
    %101 = vector.load %arg3[%c640, %c0_84] : memref<896x128xf32, #tpu.memory_space<vmem>>, vector<128x128xf32>
    %cst_85 = arith.constant dense<0.000000e+00> : vector<162x128xf32>
    %102 = tpu.matmul %69, %101, %cst_85 {dimension_numbers = #tpu.dot_dimension_numbers<[1], [0], [0], [1], [0, 0, 1, 1], [], []>} : vector<162x128xf32>, vector<128x128xf32>, vector<162x128xf32> -> vector<162x128xf32>
    %c5_86 = arith.constant 5 : index
    %c0_87 = arith.constant 0 : index
    %c0_88 = arith.constant 0 : index
    %103 = vector.load %arg1[%c5_86, %c0_87, %c0_88] : memref<7x162x162xf32, #tpu.memory_space<vmem>>, vector<1x162x162xf32>
    %104 = vector.shape_cast %103 : vector<1x162x162xf32> to vector<162x162xf32>
    %cst_89 = arith.constant dense<0.000000e+00> : vector<162x128xf32>
    %105 = tpu.matmul %104, %102, %cst_89 {dimension_numbers = #tpu.dot_dimension_numbers<[1], [0], [0], [1], [0, 0, 1, 1], [], []>} : vector<162x162xf32>, vector<162x128xf32>, vector<162x128xf32> -> vector<162x128xf32>
    %106 = arith.addf %100, %105 : vector<162x128xf32>
    %c768 = arith.constant 768 : index
    %c0_90 = arith.constant 0 : index
    %107 = vector.load %arg3[%c768, %c0_90] : memref<896x128xf32, #tpu.memory_space<vmem>>, vector<128x128xf32>
    %cst_91 = arith.constant dense<0.000000e+00> : vector<162x128xf32>
    %108 = tpu.matmul %69, %107, %cst_91 {dimension_numbers = #tpu.dot_dimension_numbers<[1], [0], [0], [1], [0, 0, 1, 1], [], []>} : vector<162x128xf32>, vector<128x128xf32>, vector<162x128xf32> -> vector<162x128xf32>
    %c6_92 = arith.constant 6 : index
    %c0_93 = arith.constant 0 : index
    %c0_94 = arith.constant 0 : index
    %109 = vector.load %arg1[%c6_92, %c0_93, %c0_94] : memref<7x162x162xf32, #tpu.memory_space<vmem>>, vector<1x162x162xf32>
    %110 = vector.shape_cast %109 : vector<1x162x162xf32> to vector<162x162xf32>
    %cst_95 = arith.constant dense<0.000000e+00> : vector<162x128xf32>
    %111 = tpu.matmul %110, %108, %cst_95 {dimension_numbers = #tpu.dot_dimension_numbers<[1], [0], [0], [1], [0, 0, 1, 1], [], []>} : vector<162x162xf32>, vector<162x128xf32>, vector<162x128xf32> -> vector<162x128xf32>
    %112 = arith.addf %106, %111 : vector<162x128xf32>
    %cst_96 = arith.constant dense<0.000000e+00> : vector<128xf32>
    %113 = vector.multi_reduction <add>, %112, %cst_96 [0] : vector<162x128xf32> to vector<128xf32>
    %114 = vector.shape_cast %113 : vector<128xf32> to vector<1x128xf32>
    %cst_97 = arith.constant 1.620000e+02 : f32
    %115 = vector.broadcast %cst_97 : f32 to vector<1x128xf32>
    %116 = arith.divf %114, %115 : vector<1x128xf32>
    %117 = vector.broadcast %116 : vector<1x128xf32> to vector<162x128xf32>
    %118 = arith.subf %112, %117 : vector<162x128xf32>
    %119 = arith.mulf %118, %118 : vector<162x128xf32>
    %cst_98 = arith.constant dense<0.000000e+00> : vector<128xf32>
    %120 = vector.multi_reduction <add>, %119, %cst_98 [0] : vector<162x128xf32> to vector<128xf32>
    %121 = vector.shape_cast %120 : vector<128xf32> to vector<1x128xf32>
    %cst_99 = arith.constant 1.620000e+02 : f32
    %122 = vector.broadcast %cst_99 : f32 to vector<1x128xf32>
    %123 = arith.divf %121, %122 : vector<1x128xf32>
    %c0_100 = arith.constant 0 : index
    %c0_101 = arith.constant 0 : index
    %124 = vector.load %arg7[%c0_100, %c0_101] : memref<1x128xf32, #tpu.memory_space<vmem>>, vector<1x128xf32>
    %cst_102 = arith.constant 9.99999974E-6 : f32
    %125 = vector.broadcast %cst_102 : f32 to vector<1x128xf32>
    %126 = arith.addf %123, %125 : vector<1x128xf32>
    %127 = math.rsqrt %126 : vector<1x128xf32>
    %128 = arith.mulf %124, %127 : vector<1x128xf32>
    %129 = vector.broadcast %128 : vector<1x128xf32> to vector<162x128xf32>
    %130 = arith.mulf %118, %129 : vector<162x128xf32>
    %c0_103 = arith.constant 0 : index
    %c0_104 = arith.constant 0 : index
    %131 = vector.load %arg8[%c0_103, %c0_104] : memref<1x128xf32, #tpu.memory_space<vmem>>, vector<1x128xf32>
    %132 = vector.broadcast %131 : vector<1x128xf32> to vector<162x128xf32>
    %133 = arith.addf %130, %132 : vector<162x128xf32>
    %c0_105 = arith.constant 0 : index
    %c0_106 = arith.constant 0 : index
    %134 = vector.load %arg4[%c0_105, %c0_106] : memref<64x128xf32, #tpu.memory_space<vmem>>, vector<64x128xf32>
    %cst_107 = arith.constant dense<0.000000e+00> : vector<162x128xf32>
    %135 = tpu.matmul %0, %134, %cst_107 {dimension_numbers = #tpu.dot_dimension_numbers<[1], [0], [0], [1], [0, 0, 1, 1], [], []>} : vector<162x64xf32>, vector<64x128xf32>, vector<162x128xf32> -> vector<162x128xf32>
    %136 = arith.addf %133, %135 : vector<162x128xf32>
    %cst_108 = arith.constant 0.000000e+00 : f32
    %137 = vector.broadcast %cst_108 : f32 to vector<162x128xf32>
    %138 = arith.cmpf oge, %136, %137 : vector<162x128xf32>
    %cst_109 = arith.constant 2.000000e-01 : f32
    %139 = vector.broadcast %cst_109 : f32 to vector<162x128xf32>
    %140 = arith.mulf %139, %136 : vector<162x128xf32>
    %141 = arith.select %138, %136, %140 : vector<162x128xi1>, vector<162x128xf32>
    %c0_110 = arith.constant 0 : index
    %c0_111 = arith.constant 0 : index
    %142 = vector.load %arg9[%c0_110, %c0_111] : memref<162x128xf32, #tpu.memory_space<vmem>>, vector<162x128xf32>
    tpu.vector_store %arg9[%c0_110, %c0_111], %141 {strides = array<i32>} : memref<162x128xf32, #tpu.memory_space<vmem>>, vector<162x128xf32>,
    return
  }
}

</mosaic_0001>

<llo_original>
// kernel: tpu_custom_call.1
$region0: #{tpu_custom_call.1}
  #allocation0 [shape = 'u32[]', space=smem, size = 0x4, offset = 0x4, fixed_abs, tag = 'smem constant byte address 0x4 - core index']
  #allocation1 [shape = 'u32[144,128]{1,0:T(1,128)}', space=vmem, size = 0x12000, scoped, tag = 'internal scratch']
  %s0 = inlined_call_operand.vmem [shape: f32[162,64], index: 0, kind: input, shape index: {}]
  %s1 = inlined_call_operand.hbm [shape: f32[7,162,162], index: 1, kind: input, shape index: {}]
  %s2 = inlined_call_operand.hbm [shape: f32[448,128], index: 2, kind: input, shape index: {}]
  %s3 = inlined_call_operand.hbm [shape: f32[896,128], index: 3, kind: input, shape index: {}]
  %s4 = inlined_call_operand.hbm [shape: f32[64,128], index: 4, kind: input, shape index: {}]
  %s5 = inlined_call_operand.hbm [shape: f32[1,128], index: 5, kind: input, shape index: {}]
  %s6 = inlined_call_operand.hbm [shape: f32[1,128], index: 6, kind: input, shape index: {}]
  %s7 = inlined_call_operand.hbm [shape: f32[1,128], index: 7, kind: input, shape index: {}]
  %s8 = inlined_call_operand.hbm [shape: f32[1,128], index: 8, kind: input, shape index: {}]
  %s9 = inlined_call_operand.hbm [shape: f32[162,128], index: 9, kind: output, shape index: {}]
  %s10 = sld [smem:[#allocation0]]
  $region78: #{tpu_custom_call.1} parent=0
    _
  %s12 = ssub.s32 1, %s10
  %s13 = scalar_select 0, %s12, %s10
  $region1: #{tpu_custom_call.1} parent=0
    #allocation2 [shape = 'u8[1204224]{0}', space=vmem, size = 0x126000, scoped, tag = 'input window, operand 1, single buffered']
    #allocation3 [shape = 's32[1]{0}', space=sflag, size = 0x4, scoped, tag = 'scoped memory for tpu_custom_call.1']
    #allocation4 [shape = 's32[1]{0}', space=sflag, size = 0x4, scoped, tag = 'scoped memory for tpu_custom_call.1']
    #allocation5 [shape = 'u8[229376]{0}', space=vmem, size = 0x38000, scoped, tag = 'input window, operand 2, single buffered']
    #allocation6 [shape = 's32[1]{0}', space=sflag, size = 0x4, scoped, tag = 'scoped memory for tpu_custom_call.1']
    #allocation7 [shape = 'u8[458752]{0}', space=vmem, size = 0x70000, scoped, tag = 'input window, operand 3, single buffered']
    #allocation8 [shape = 'u8[32768]{0}', space=vmem, size = 0x8000, scoped, tag = 'input window, operand 4, single buffered']
    #allocation9 [shape = 's32[1]{0}', space=sflag, size = 0x4, scoped, tag = 'scoped memory for tpu_custom_call.1']
    #allocation10 [shape = 'u8[512]{0}', space=vmem, size = 0x400, scoped, tag = 'input window, operand 5, single buffered']
    #allocation11 [shape = 'u8[512]{0}', space=vmem, size = 0x400, scoped, tag = 'input window, operand 6, single buffered']
    #allocation12 [shape = 's32[1]{0}', space=sflag, size = 0x4, scoped, tag = 'scoped memory for tpu_custom_call.1']
    #allocation13 [shape = 'u8[512]{0}', space=vmem, size = 0x400, scoped, tag = 'input window, operand 7, single buffered']
    #allocation14 [shape = 'u8[512]{0}', space=vmem, size = 0x400, scoped, tag = 'input window, operand 8, single buffered']
    #allocation15 [shape = 's32[1]{0}', space=sflag, size = 0x4, scoped, tag = 'scoped memory for tpu_custom_call.1']
    #allocation16 [shape = 'u8[86016]{0}', space=vmem, size = 0x15000, scoped, tag = 'output window, operand 0, single buffered']
    %14 = vsyncpa [#allocation3], 0
    %15 = vsyncpa [#allocation6], 0
    %16 = vsyncpa [#allocation9], 0
    %17 = vsyncpa [#allocation12], 0
    %18 = vsyncpa [#allocation15], 0
    %19 = vsyncpa [#allocation4], 0
    // Predicated region
    $region2: #{tpu_custom_call.1} parent=1 // pred_check
      _
    $region3: #{tpu_custom_call.1} parent=1 // pred_check_branch
      %21 = sbr.rel (0) target = $region5
    $region4: #{tpu_custom_call.1} parent=1 // pred_region
      _
    $region5: #{tpu_custom_call.1} parent=1 // pred_fallthru
      _
    // Predicated region
    $region6: #{tpu_custom_call.1} parent=1 // pred_check
      _
    $region7: #{tpu_custom_call.1} parent=1 // pred_check_branch
      %23 = sbr.rel (0) target = $region9
    $region8: #{tpu_custom_call.1} parent=1 // pred_region
      %s25 = ssub.s32 37632, 37632
      %26 = vsyncadd [#allocation3], %s25
      %s27 = sshll.u32 [#allocation2], 4
      %s28 = int_to_ptr.vmem [resolvable:$true] %s27
      %33 = dma.hbm_to_vmem [thread:$0]  %s1, 37632, %s28, [#allocation3], 256, 256, 16
    $region9: #{tpu_custom_call.1} parent=1 // pred_fallthru
      _
    // Predicated region
    $region10: #{tpu_custom_call.1} parent=1 // pred_check
      _
    $region11: #{tpu_custom_call.1} parent=1 // pred_check_branch
      %35 = sbr.rel (0) target = $region13
    $region12: #{tpu_custom_call.1} parent=1 // pred_region
      %s37 = ssub.s32 7168, 7168
      %38 = vsyncadd [#allocation6], %s37
      %s39 = sshll.u32 [#allocation5], 4
      %s40 = int_to_ptr.vmem [resolvable:$true] %s39
      %45 = dma.hbm_to_vmem [thread:$0]  %s2, 7168, %s40, [#allocation6], 128, 128, 8
    $region13: #{tpu_custom_call.1} parent=1 // pred_fallthru
      _
    // Predicated region
    $region14: #{tpu_custom_call.1} parent=1 // pred_check
      _
    $region15: #{tpu_custom_call.1} parent=1 // pred_check_branch
      %47 = sbr.rel (0) target = $region17
    $region16: #{tpu_custom_call.1} parent=1 // pred_region
      %s49 = ssub.s32 14336, 14336
      %50 = vsyncadd [#allocation6], %s49
      %s51 = sshll.u32 [#allocation7], 4
      %s52 = int_to_ptr.vmem [resolvable:$true] %s51
      %57 = dma.hbm_to_vmem [thread:$0]  %s3, 14336, %s52, [#allocation6], 128, 128, 8
    $region17: #{tpu_custom_call.1} parent=1 // pred_fallthru
      _
    // Predicated region
    $region18: #{tpu_custom_call.1} parent=1 // pred_check
      _
    $region19: #{tpu_custom_call.1} parent=1 // pred_check_branch
      %59 = sbr.rel (0) target = $region21
    $region20: #{tpu_custom_call.1} parent=1 // pred_region
      %s61 = ssub.s32 1024, 1024
      %62 = vsyncadd [#allocation9], %s61
      %s63 = sshll.u32 [#allocation8], 4
      %s64 = int_to_ptr.vmem [resolvable:$true] %s63
      %69 = dma.hbm_to_vmem [thread:$0]  %s4, 1024, %s64, [#allocation9], 128, 128, 8
    $region21: #{tpu_custom_call.1} parent=1 // pred_fallthru
      _
    // Predicated region
    $region22: #{tpu_custom_call.1} parent=1 // pred_check
      _
    $region23: #{tpu_custom_call.1} parent=1 // pred_check_branch
      %71 = sbr.rel (0) target = $region25
    $region24: #{tpu_custom_call.1} parent=1 // pred_region
      %s73 = ssub.s32 16, 16
      %74 = vsyncadd [#allocation9], %s73
      %s76 = sshll.u32 [#allocation10], 4
      %s77 = int_to_ptr.vmem [resolvable:$true] %s76
      %79 = dma.hbm_to_vmem [thread:$0]  %s5, 16, %s77, [#allocation9]
    $region25: #{tpu_custom_call.1} parent=1 // pred_fallthru
      _
    // Predicated region
    $region26: #{tpu_custom_call.1} parent=1 // pred_check
      _
    $region27: #{tpu_custom_call.1} parent=1 // pred_check_branch
      %81 = sbr.rel (0) target = $region29
    $region28: #{tpu_custom_call.1} parent=1 // pred_region
      %s83 = ssub.s32 16, 16
      %84 = vsyncadd [#allocation12], %s83
      %s86 = sshll.u32 [#allocation11], 4
      %s87 = int_to_ptr.vmem [resolvable:$true] %s86
      %89 = dma.hbm_to_vmem [thread:$0]  %s6, 16, %s87, [#allocation12]
    $region29: #{tpu_custom_call.1} parent=1 // pred_fallthru
      _
    // Predicated region
    $region30: #{tpu_custom_call.1} parent=1 // pred_check
      _
    $region31: #{tpu_custom_call.1} parent=1 // pred_check_branch
      %91 = sbr.rel (0) target = $region33
    $region32: #{tpu_custom_call.1} parent=1 // pred_region
      %s93 = ssub.s32 16, 16
      %94 = vsyncadd [#allocation12], %s93
      %s96 = sshll.u32 [#allocation13], 4
      %s97 = int_to_ptr.vmem [resolvable:$true] %s96
      %99 = dma.hbm_to_vmem [thread:$0]  %s7, 16, %s97, [#allocation12]
    $region33: #{tpu_custom_call.1} parent=1 // pred_fallthru
      _
    // Predicated region
    $region34: #{tpu_custom_call.1} parent=1 // pred_check
      _
    $region35: #{tpu_custom_call.1} parent=1 // pred_check_branch
      %101 = sbr.rel (0) target = $region37
    $region36: #{tpu_custom_call.1} parent=1 // pred_region
      %s103 = ssub.s32 16, 16
      %104 = vsyncadd [#allocation15], %s103
      %s106 = sshll.u32 [#allocation14], 4
      %s107 = int_to_ptr.vmem [resolvable:$true] %s106
      %109 = dma.hbm_to_vmem [thread:$0]  %s8, 16, %s107, [#allocation15]
    $region37: #{tpu_custom_call.1} parent=1 // pred_fallthru
      _
    // Predicated region
    $region38: #{tpu_custom_call.1} parent=1 // pred_check
      _
    $region39: #{tpu_custom_call.1} parent=1 // pred_check_branch
      %111 = sbr.rel (0) target = $region41
    $region40: #{tpu_custom_call.1} parent=1 // pred_region
      %112 = dma.done [#allocation3], 37632
    $region41: #{tpu_custom_call.1} parent=1 // pred_fallthru
      _
    // Predicated region
    $region42: #{tpu_custom_call.1} parent=1 // pred_check
      _
    $region43: #{tpu_custom_call.1} parent=1 // pred_check_branch
      %114 = sbr.rel (0) target = $region45
    $region44: #{tpu_custom_call.1} parent=1 // pred_region
      %115 = dma.done [#allocation6], 7168
    $region45: #{tpu_custom_call.1} parent=1 // pred_fallthru
      _
    // Predicated region
    $region46: #{tpu_custom_call.1} parent=1 // pred_check
      _
    $region47: #{tpu_custom_call.1} parent=1 // pred_check_branch
      %117 = sbr.rel (0) target = $region49
    $region48: #{tpu_custom_call.1} parent=1 // pred_region
      %118 = dma.done [#allocation6], 14336
    $region49: #{tpu_custom_call.1} parent=1 // pred_fallthru
      _
    // Predicated region
    $region50: #{tpu_custom_call.1} parent=1 // pred_check
      _
    $region51: #{tpu_custom_call.1} parent=1 // pred_check_branch
      %120 = sbr.rel (0) target = $region53
    $region52: #{tpu_custom_call.1} parent=1 // pred_region
      %121 = dma.done [#allocation9], 1024
    $region53: #{tpu_custom_call.1} parent=1 // pred_fallthru
      _
    // Predicated region
    $region54: #{tpu_custom_call.1} parent=1 // pred_check
      _
    $region55: #{tpu_custom_call.1} parent=1 // pred_check_branch
      %123 = sbr.rel (0) target = $region57
    $region56: #{tpu_custom_call.1} parent=1 // pred_region
      %124 = dma.done [#allocation9], 16
    $region57: #{tpu_custom_call.1} parent=1 // pred_fallthru
      _
    // Predicated region
    $region58: #{tpu_custom_call.1} parent=1 // pred_check
      _
    $region59: #{tpu_custom_call.1} parent=1 // pred_check_branch
      %126 = sbr.rel (0) target = $region61
    $region60: #{tpu_custom_call.1} parent=1 // pred_region
      %127 = dma.done [#allocation12], 16
    $region61: #{tpu_custom_call.1} parent=1 // pred_fallthru
      _
    // Predicated region
    $region62: #{tpu_custom_call.1} parent=1 // pred_check
      _
    $region63: #{tpu_custom_call.1} parent=1 // pred_check_branch
      %129 = sbr.rel (0) target = $region65
    $region64: #{tpu_custom_call.1} parent=1 // pred_region
      %130 = dma.done [#allocation12], 16
    $region65: #{tpu_custom_call.1} parent=1 // pred_fallthru
      _
    // Predicated region
    $region66: #{tpu_custom_call.1} parent=1 // pred_check
      _
    $region67: #{tpu_custom_call.1} parent=1 // pred_check_branch
      %132 = sbr.rel (0) target = $region69
    $region68: #{tpu_custom_call.1} parent=1 // pred_region
      %133 = dma.done [#allocation15], 16
    $region69: #{tpu_custom_call.1} parent=1 // pred_fallthru
      _
    %v134 = vld [vmem:[%s0] sm:$0xff]
    %v135 = vld [vmem:[%s0 + $0x8] sm:$0xff]
    %v136 = vld [vmem:[%s0 + $0x10] sm:$0xff]
    %v137 = vld [vmem:[%s0 + $0x18] sm:$0xff]
    %v138 = vld [vmem:[%s0 + $0x20] sm:$0xff]
    %v139 = vld [vmem:[%s0 + $0x28] sm:$0xff]
    %v140 = vld [vmem:[%s0 + $0x30] sm:$0xff]
    %v141 = vld [vmem:[%s0 + $0x38] sm:$0xff]
    %v142 = vld [vmem:[%s0 + $0x40] sm:$0xff]
    %v143 = vld [vmem:[%s0 + $0x48] sm:$0xff]
    %v144 = vld [vmem:[%s0 + $0x50] sm:$0xff]
    %v145 = vld [vmem:[%s0 + $0x58] sm:$0xff]
    %v146 = vld [vmem:[%s0 + $0x60] sm:$0xff]
    %v147 = vld [vmem:[%s0 + $0x68] sm:$0xff]
    %v148 = vld [vmem:[%s0 + $0x70] sm:$0xff]
    %v149 = vld [vmem:[%s0 + $0x78] sm:$0xff]
    %v150 = vld [vmem:[%s0 + $0x80] sm:$0xff]
    %v151 = vld [vmem:[%s0 + $0x88] sm:$0xff]
    %v152 = vld [vmem:[%s0 + $0x90] sm:$0xff]
    %v153 = vld [vmem:[%s0 + $0x98] sm:$0xff]
    %v154 = vld [vmem:[%s0 + $0xa0] sm:$0x3]
    %v155 = vld [vmem:[#allocation5] sm:$0xff]
    %v156 = vld [vmem:[#allocation5 + $0x8] sm:$0xff]
    %v157 = vld [vmem:[#allocation5 + $0x10] sm:$0xff]
    %v158 = vld [vmem:[#allocation5 + $0x18] sm:$0xff]
    %v159 = vld [vmem:[#allocation5 + $0x20] sm:$0xff]
    %v160 = vld [vmem:[#allocation5 + $0x28] sm:$0xff]
    %v161 = vld [vmem:[#allocation5 + $0x30] sm:$0xff]
    %v162 = vld [vmem:[#allocation5 + $0x38] sm:$0xff]
    %vm163 = vcmask 523264
    %v165 = vsel %vm163, %v134, 0
    %v168 = vsel %vm163, %v135, 0
    %v171 = vsel %vm163, %v136, 0
    %v174 = vsel %vm163, %v137, 0
    %v177 = vsel %vm163, %v138, 0
    %v180 = vsel %vm163, %v139, 0
    %v183 = vsel %vm163, %v140, 0
    %v186 = vsel %vm163, %v141, 0
    %v189 = vsel %vm163, %v142, 0
    %v192 = vsel %vm163, %v143, 0
    %v195 = vsel %vm163, %v144, 0
    %v198 = vsel %vm163, %v145, 0
    %v201 = vsel %vm163, %v146, 0
    %v204 = vsel %vm163, %v147, 0
    %v207 = vsel %vm163, %v148, 0
    %v210 = vsel %vm163, %v149, 0
    %v213 = vsel %vm163, %v150, 0
    %v216 = vsel %vm163, %v151, 0
    %v219 = vsel %vm163, %v152, 0
    %v222 = vsel %vm163, %v153, 0
    %v225 = vsel %vm163, %v154, 0
    %227 = vmatprep.subr.mxu0 0.0
    %228 = vmatpush1.msra.mxu0 0.0
    %229 = vmatprep.subr.mxu0 0.0
    %230 = vmatpush1.msra.mxu0 0.0
    %231 = vmatprep.subr.mxu0 0.0
    %232 = vmatpush1.msra.mxu0 0.0
    %233 = vmatprep.subr.mxu0 0.0
    %234 = vmatpush1.msra.mxu0 0.0
    %235 = vmatprep.subr.mxu0 0.0
    %236 = vmatpush1.msra.mxu0 0.0
    %237 = vmatprep.subr.mxu0 0.0
    %238 = vmatpush1.msra.mxu0 0.0
    %239 = vmatprep.subr.mxu0 0.0
    %240 = vmatpush1.msra.mxu0 0.0
    %241 = vmatprep.subr.mxu0 0.0
    %242 = vmatpush1.msra.mxu0 0.0
    %243 = vmatprep.subr.mxu0 0.0
    %244 = vmatpush1.msra.mxu0 %v162
    %245 = vmatprep.subr.mxu0 0.0
    %246 = vmatpush1.msra.mxu0 %v161
    %247 = vmatprep.subr.mxu0 0.0
    %248 = vmatpush1.msra.mxu0 %v160
    %249 = vmatprep.subr.mxu0 0.0
    %250 = vmatpush1.msra.mxu0 %v159
    %251 = vmatprep.subr.mxu0 0.0
    %252 = vmatpush1.msra.mxu0 %v158
    %253 = vmatprep.subr.mxu0 0.0
    %254 = vmatpush1.msra.mxu0 %v157
    %255 = vmatprep.subr.mxu0 0.0
    %256 = vmatpush1.msra.mxu0 %v156
    %257 = vmatprep.subr.mxu0 0.0
    %258 = vmatpush1.msra.mxu0 %v155
    %259 = vmatprep.subr.mxu0 0.0
    %260 = vmatpush2.msra.mxu0 0.0
    %261 = vmatprep.subr.mxu0 0.0
    %262 = vmatpush2.msra.mxu0 0.0
    %263 = vmatprep.subr.mxu0 0.0
    %264 = vmatpush2.msra.mxu0 0.0
    %265 = vmatprep.subr.mxu0 0.0
    %266 = vmatpush2.msra.mxu0 0.0
    %267 = vmatprep.subr.mxu0 0.0
    %268 = vmatpush2.msra.mxu0 0.0
    %269 = vmatprep.subr.mxu0 0.0
    %270 = vmatpush2.msra.mxu0 0.0
    %271 = vmatprep.subr.mxu0 0.0
    %272 = vmatpush2.msra.mxu0 0.0
    %273 = vmatprep.subr.mxu0 0.0
    %274 = vmatpush2.msra.mxu0 0.0
    %275 = vmatprep.subr.mxu0 0.0
    %276 = vmatpush2.msra.mxu0 0.0
    %277 = vmatprep.subr.mxu0 0.0
    %278 = vmatpush2.msra.mxu0 0.0
    %279 = vmatprep.subr.mxu0 0.0
    %280 = vmatpush2.msra.mxu0 0.0
    %281 = vmatprep.subr.mxu0 0.0
    %282 = vmatpush2.msra.mxu0 0.0
    %283 = vmatprep.subr.mxu0 0.0
    %284 = vmatpush2.msra.mxu0 0.0
    %285 = vmatprep.subr.mxu0 0.0
    %286 = vmatpush2.msra.mxu0 0.0
    %287 = vmatprep.subr.mxu0 0.0
    %288 = vmatpush2.msra.mxu0 0.0
    %289 = vmatprep.subr.mxu0 0.0
    %290 = vmatpush2.msra.mxu0 0.0
    %291 = vmatprep.mubr.f32.mxu0 0.0
    %292 = vmatmul.mubr.f32.gmra.mxu0 %v165
    %v293 = vpop.f32.mrf.mxu0
    %v294 = vadd.f32 0.0, %v293
    %v295 = vpop.f32.mrf.mxu0
    %296 = vmatprep.mubr.f32.mxu0 0.0
    %297 = vmatmul.mubr.f32.gmra.mxu0 %v168
    %v298 = vpop.f32.mrf.mxu0
    %v299 = vadd.f32 0.0, %v298
    %v300 = vpop.f32.mrf.mxu0
    %301 = vmatprep.mubr.f32.mxu0 0.0
    %302 = vmatmul.mubr.f32.gmra.mxu0 %v171
    %v303 = vpop.f32.mrf.mxu0
    %v304 = vadd.f32 0.0, %v303
    %v305 = vpop.f32.mrf.mxu0
    %306 = vmatprep.mubr.f32.mxu0 0.0
    %307 = vmatmul.mubr.f32.gmra.mxu0 %v174
    %v308 = vpop.f32.mrf.mxu0
    %v309 = vadd.f32 0.0, %v308
    %v310 = vpop.f32.mrf.mxu0
    %311 = vmatprep.mubr.f32.mxu0 0.0
    %312 = vmatmul.mubr.f32.gmra.mxu0 %v177
    %v313 = vpop.f32.mrf.mxu0
    %v314 = vadd.f32 0.0, %v313
    %v315 = vpop.f32.mrf.mxu0
    %316 = vmatprep.mubr.f32.mxu0 0.0
    %317 = vmatmul.mubr.f32.gmra.mxu0 %v180
    %v318 = vpop.f32.mrf.mxu0
    %v319 = vadd.f32 0.0, %v318
    %v320 = vpop.f32.mrf.mxu0
    %321 = vmatprep.mubr.f32.mxu0 0.0
    %322 = vmatmul.mubr.f32.gmra.mxu0 %v183
    %v323 = vpop.f32.mrf.mxu0
    %v324 = vadd.f32 0.0, %v323
    %v325 = vpop.f32.mrf.mxu0
    %326 = vmatprep.mubr.f32.mxu0 0.0
    %327 = vmatmul.mubr.f32.gmra.mxu0 %v186
    %v328 = vpop.f32.mrf.mxu0
    %v329 = vadd.f32 0.0, %v328
    %v330 = vpop.f32.mrf.mxu0
    %331 = vmatprep.mubr.f32.mxu0 0.0
    %332 = vmatmul.mubr.f32.gmra.mxu0 %v189
    %v333 = vpop.f32.mrf.mxu0
    %v334 = vadd.f32 0.0, %v333
    %v335 = vpop.f32.mrf.mxu0
    %336 = vmatprep.mubr.f32.mxu0 0.0
    %337 = vmatmul.mubr.f32.gmra.mxu0 %v192
    %v338 = vpop.f32.mrf.mxu0
    %v339 = vadd.f32 0.0, %v338
    %v340 = vpop.f32.mrf.mxu0
    %341 = vmatprep.mubr.f32.mxu0 0.0
    %342 = vmatmul.mubr.f32.gmra.mxu0 %v195
    %v343 = vpop.f32.mrf.mxu0
    %v344 = vadd.f32 0.0, %v343
    %v345 = vpop.f32.mrf.mxu0
    %346 = vmatprep.mubr.f32.mxu0 0.0
    %347 = vmatmul.mubr.f32.gmra.mxu0 %v198
    %v348 = vpop.f32.mrf.mxu0
    %v349 = vadd.f32 0.0, %v348
    %v350 = vpop.f32.mrf.mxu0
    %351 = vmatprep.mubr.f32.mxu0 0.0
    %352 = vmatmul.mubr.f32.gmra.mxu0 %v201
    %v353 = vpop.f32.mrf.mxu0
    %v354 = vadd.f32 0.0, %v353
    %v355 = vpop.f32.mrf.mxu0
    %356 = vmatprep.mubr.f32.mxu0 0.0
    %357 = vmatmul.mubr.f32.gmra.mxu0 %v204
    %v358 = vpop.f32.mrf.mxu0
    %v359 = vadd.f32 0.0, %v358
    %v360 = vpop.f32.mrf.mxu0
    %361 = vmatprep.mubr.f32.mxu0 0.0
    %362 = vmatmul.mubr.f32.gmra.mxu0 %v207
    %v363 = vpop.f32.mrf.mxu0
    %v364 = vadd.f32 0.0, %v363
    %v365 = vpop.f32.mrf.mxu0
    %366 = vmatprep.mubr.f32.mxu0 0.0
    %367 = vmatmul.mubr.f32.gmra.mxu0 %v210
    %v368 = vpop.f32.mrf.mxu0
    %v369 = vadd.f32 0.0, %v368
    %v370 = vpop.f32.mrf.mxu0
    %371 = vmatprep.mubr.f32.mxu0 0.0
    %372 = vmatmul.mubr.f32.gmra.mxu0 %v213
    %v373 = vpop.f32.mrf.mxu0
    %v374 = vadd.f32 0.0, %v373
    %v375 = vpop.f32.mrf.mxu0
    %376 = vmatprep.mubr.f32.mxu0 0.0
    %377 = vmatmul.mubr.f32.gmra.mxu0 %v216
    %v378 = vpop.f32.mrf.mxu0
    %v379 = vadd.f32 0.0, %v378
    %v380 = vpop.f32.mrf.mxu0
    %381 = vmatprep.mubr.f32.mxu0 0.0
    %382 = vmatmul.mubr.f32.gmra.mxu0 %v219
    %v383 = vpop.f32.mrf.mxu0
    %v384 = vadd.f32 0.0, %v383
    %v385 = vpop.f32.mrf.mxu0
    %386 = vmatprep.mubr.f32.mxu0 0.0
    %387 = vmatmul.mubr.f32.gmra.mxu0 %v222
    %v388 = vpop.f32.mrf.mxu0
    %v389 = vadd.f32 0.0, %v388
    %v390 = vpop.f32.mrf.mxu0
    %391 = vmatprep.mubr.f32.mxu0 0.0
    %392 = vmatmul.mubr.f32.gmra.mxu0 %v225
    %v393 = vpop.f32.mrf.mxu0
    %v394 = vadd.f32 0.0, %v393
    %v395 = vpop.f32.mrf.mxu0
    %396 = vdwg.mxu0
    %v397 = vld [vmem:[#allocation2] sm:$0xff]
    %v398 = vld [vmem:[#allocation2 + $0x8] sm:$0xff]
    %v399 = vld [vmem:[#allocation2 + $0x10] sm:$0xff]
    %v400 = vld [vmem:[#allocation2 + $0x18] sm:$0xff]
    %v401 = vld [vmem:[#allocation2 + $0x20] sm:$0xff]
    %v402 = vld [vmem:[#allocation2 + $0x28] sm:$0xff]
    %v403 = vld [vmem:[#allocation2 + $0x30] sm:$0xff]
    %v404 = vld [vmem:[#allocation2 + $0x38] sm:$0xff]
    %v405 = vld [vmem:[#allocation2 + $0x40] sm:$0xff]
    %v406 = vld [vmem:[#allocation2 + $0x48] sm:$0xff]
    %v407 = vld [vmem:[#allocation2 + $0x50] sm:$0xff]
    %v408 = vld [vmem:[#allocation2 + $0x58] sm:$0xff]
    %v409 = vld [vmem:[#allocation2 + $0x60] sm:$0xff]
    %v410 = vld [vmem:[#allocation2 + $0x68] sm:$0xff]
    %v411 = vld [vmem:[#allocation2 + $0x70] sm:$0xff]
    %v412 = vld [vmem:[#allocation2 + $0x78] sm:$0xff]
    %v413 = vld [vmem:[#allocation2 + $0x80] sm:$0xff]
    %v414 = vld [vmem:[#allocation2 + $0x88] sm:$0xff]
    %v415 = vld [vmem:[#allocation2 + $0x90] sm:$0xff]
    %v416 = vld [vmem:[#allocation2 + $0x98] sm:$0xff]
    %v417 = vld [vmem:[#allocation2 + $0xa0] sm:$0xff]
    %v418 = vld [vmem:[#allocation2 + $0xa8] sm:$0xff]
    %v419 = vld [vmem:[#allocation2 + $0xb0] sm:$0xff]
    %v420 = vld [vmem:[#allocation2 + $0xb8] sm:$0xff]
    %v421 = vld [vmem:[#allocation2 + $0xc0] sm:$0xff]
    %v422 = vld [vmem:[#allocation2 + $0xc8] sm:$0xff]
    %v423 = vld [vmem:[#allocation2 + $0xd0] sm:$0xff]
    %v424 = vld [vmem:[#allocation2 + $0xd8] sm:$0xff]
    %v425 = vld [vmem:[#allocation2 + $0xe0] sm:$0xff]
    %v426 = vld [vmem:[#allocation2 + $0xe8] sm:$0xff]
    %v427 = vld [vmem:[#allocation2 + $0xf0] sm:$0xff]
    %v428 = vld [vmem:[#allocation2 + $0xf8] sm:$0xff]
    %v429 = vld [vmem:[#allocation2 + $0x100] sm:$0xff]
    %v430 = vld [vmem:[#allocation2 + $0x108] sm:$0xff]
    %v431 = vld [vmem:[#allocation2 + $0x110] sm:$0xff]
    %v432 = vld [vmem:[#allocation2 + $0x118] sm:$0xff]
    %v433 = vld [vmem:[#allocation2 + $0x120] sm:$0xff]
    %v434 = vld [vmem:[#allocation2 + $0x128] sm:$0xff]
    %v435 = vld [vmem:[#allocation2 + $0x130] sm:$0xff]
    %v436 = vld [vmem:[#allocation2 + $0x138] sm:$0xff]
    %v437 = vld [vmem:[#allocation2 + $0x140] sm:$0x3]
    %v438 = vld [vmem:[#allocation2 + $0x148] sm:$0x3]
    %v439 = vld [vmem:[#allocation5 + $0x40] sm:$0xff]
    %v440 = vld [vmem:[#allocation5 + $0x48] sm:$0xff]
    %v441 = vld [vmem:[#allocation5 + $0x50] sm:$0xff]
    %v442 = vld [vmem:[#allocation5 + $0x58] sm:$0xff]
    %v443 = vld [vmem:[#allocation5 + $0x60] sm:$0xff]
    %v444 = vld [vmem:[#allocation5 + $0x68] sm:$0xff]
    %v445 = vld [vmem:[#allocation5 + $0x70] sm:$0xff]
    %v446 = vld [vmem:[#allocation5 + $0x78] sm:$0xff]
    %447 = vmatprep.subr.mxu0 0.0
    %448 = vmatpush1.msra.mxu0 0.0
    %449 = vmatprep.subr.mxu0 0.0
    %450 = vmatpush1.msra.mxu0 0.0
    %451 = vmatprep.subr.mxu0 0.0
    %452 = vmatpush1.msra.mxu0 0.0
    %453 = vmatprep.subr.mxu0 0.0
    %454 = vmatpush1.msra.mxu0 0.0
    %455 = vmatprep.subr.mxu0 0.0
    %456 = vmatpush1.msra.mxu0 0.0
    %457 = vmatprep.subr.mxu0 0.0
    %458 = vmatpush1.msra.mxu0 0.0
    %459 = vmatprep.subr.mxu0 0.0
    %460 = vmatpush1.msra.mxu0 0.0
    %461 = vmatprep.subr.mxu0 0.0
    %462 = vmatpush1.msra.mxu0 0.0
    %463 = vmatprep.subr.mxu0 0.0
    %464 = vmatpush1.msra.mxu0 %v446
    %465 = vmatprep.subr.mxu0 0.0
    %466 = vmatpush1.msra.mxu0 %v445
    %467 = vmatprep.subr.mxu0 0.0
    %468 = vmatpush1.msra.mxu0 %v444
    %469 = vmatprep.subr.mxu0 0.0
    %470 = vmatpush1.msra.mxu0 %v443
    %471 = vmatprep.subr.mxu0 0.0
    %472 = vmatpush1.msra.mxu0 %v442
    %473 = vmatprep.subr.mxu0 0.0
    %474 = vmatpush1.msra.mxu0 %v441
    %475 = vmatprep.subr.mxu0 0.0
    %476 = vmatpush1.msra.mxu0 %v440
    %477 = vmatprep.subr.mxu0 0.0
    %478 = vmatpush1.msra.mxu0 %v439
    %479 = vmatprep.subr.mxu0 0.0
    %480 = vmatpush2.msra.mxu0 0.0
    %481 = vmatprep.subr.mxu0 0.0
    %482 = vmatpush2.msra.mxu0 0.0
    %483 = vmatprep.subr.mxu0 0.0
    %484 = vmatpush2.msra.mxu0 0.0
    %485 = vmatprep.subr.mxu0 0.0
    %486 = vmatpush2.msra.mxu0 0.0
    %487 = vmatprep.subr.mxu0 0.0
    %488 = vmatpush2.msra.mxu0 0.0
    %489 = vmatprep.subr.mxu0 0.0
    %490 = vmatpush2.msra.mxu0 0.0
    %491 = vmatprep.subr.mxu0 0.0
    %492 = vmatpush2.msra.mxu0 0.0
    %493 = vmatprep.subr.mxu0 0.0
    %494 = vmatpush2.msra.mxu0 0.0
    %495 = vmatprep.subr.mxu0 0.0
    %496 = vmatpush2.msra.mxu0 0.0
    %497 = vmatprep.subr.mxu0 0.0
    %498 = vmatpush2.msra.mxu0 0.0
    %499 = vmatprep.subr.mxu0 0.0
    %500 = vmatpush2.msra.mxu0 0.0
    %501 = vmatprep.subr.mxu0 0.0
    %502 = vmatpush2.msra.mxu0 0.0
    %503 = vmatprep.subr.mxu0 0.0
    %504 = vmatpush2.msra.mxu0 0.0
    %505 = vmatprep.subr.mxu0 0.0
    %506 = vmatpush2.msra.mxu0 0.0
    %507 = vmatprep.subr.mxu0 0.0
    %508 = vmatpush2.msra.mxu0 0.0
    %509 = vmatprep.subr.mxu0 0.0
    %510 = vmatpush2.msra.mxu0 0.0
    %511 = vmatprep.mubr.f32.mxu0 0.0
    %512 = vmatmul.mubr.f32.gmra.mxu0 %v165
    %v513 = vpop.f32.mrf.mxu0
    %v514 = vadd.f32 0.0, %v513
    %v515 = vpop.f32.mrf.mxu0
    %516 = vmatprep.mubr.f32.mxu0 0.0
    %517 = vmatmul.mubr.f32.gmra.mxu0 %v168
    %v518 = vpop.f32.mrf.mxu0
    %v519 = vadd.f32 0.0, %v518
    %v520 = vpop.f32.mrf.mxu0
    %521 = vmatprep.mubr.f32.mxu0 0.0
    %522 = vmatmul.mubr.f32.gmra.mxu0 %v171
    %v523 = vpop.f32.mrf.mxu0
    %v524 = vadd.f32 0.0, %v523
    %v525 = vpop.f32.mrf.mxu0
    %526 = vmatprep.mubr.f32.mxu0 0.0
    %527 = vmatmul.mubr.f32.gmra.mxu0 %v174
    %v528 = vpop.f32.mrf.mxu0
    %v529 = vadd.f32 0.0, %v528
    %v530 = vpop.f32.mrf.mxu0
    %531 = vmatprep.mubr.f32.mxu0 0.0
    %532 = vmatmul.mubr.f32.gmra.mxu0 %v177
    %v533 = vpop.f32.mrf.mxu0
    %v534 = vadd.f32 0.0, %v533
    %v535 = vpop.f32.mrf.mxu0
    %536 = vmatprep.mubr.f32.mxu0 0.0
    %537 = vmatmul.mubr.f32.gmra.mxu0 %v180
    %v538 = vpop.f32.mrf.mxu0
    %v539 = vadd.f32 0.0, %v538
    %v540 = vpop.f32.mrf.mxu0
    %541 = vmatprep.mubr.f32.mxu0 0.0
    %542 = vmatmul.mubr.f32.gmra.mxu0 %v183
    %v543 = vpop.f32.mrf.mxu0
    %v544 = vadd.f32 0.0, %v543
    %v545 = vpop.f32.mrf.mxu0
    %546 = vmatprep.mubr.f32.mxu0 0.0
    %547 = vmatmul.mubr.f32.gmra.mxu0 %v186
    %v548 = vpop.f32.mrf.mxu0
    %v549 = vadd.f32 0.0, %v548
    %v550 = vpop.f32.mrf.mxu0
    %551 = vmatprep.mubr.f32.mxu0 0.0
    %552 = vmatmul.mubr.f32.gmra.mxu0 %v189
    %v553 = vpop.f32.mrf.mxu0
    %v554 = vadd.f32 0.0, %v553
    %v555 = vpop.f32.mrf.mxu0
    %556 = vmatprep.mubr.f32.mxu0 0.0
    %557 = vmatmul.mubr.f32.gmra.mxu0 %v192
    %v558 = vpop.f32.mrf.mxu0
    %v559 = vadd.f32 0.0, %v558
    %v560 = vpop.f32.mrf.mxu0
    %561 = vmatprep.mubr.f32.mxu0 0.0
    %562 = vmatmul.mubr.f32.gmra.mxu0 %v195
    %v563 = vpop.f32.mrf.mxu0
    %v564 = vadd.f32 0.0, %v563
    %v565 = vpop.f32.mrf.mxu0
    %566 = vmatprep.mubr.f32.mxu0 0.0
    %567 = vmatmul.mubr.f32.gmra.mxu0 %v198
    %v568 = vpop.f32.mrf.mxu0
    %v569 = vadd.f32 0.0, %v568
    %v570 = vpop.f32.mrf.mxu0
    %571 = vmatprep.mubr.f32.mxu0 0.0
    %572 = vmatmul.mubr.f32.gmra.mxu0 %v201
    %v573 = vpop.f32.mrf.mxu0
    %v574 = vadd.f32 0.0, %v573
    %v575 = vpop.f32.mrf.mxu0
    %576 = vmatprep.mubr.f32.mxu0 0.0
    %577 = vmatmul.mubr.f32.gmra.mxu0 %v204
    %v578 = vpop.f32.mrf.mxu0
    %v579 = vadd.f32 0.0, %v578
    %v580 = vpop.f32.mrf.mxu0
    %581 = vmatprep.mubr.f32.mxu0 0.0
    %582 = vmatmul.mubr.f32.gmra.mxu0 %v207
    %v583 = vpop.f32.mrf.mxu0
    %v584 = vadd.f32 0.0, %v583
    %v585 = vpop.f32.mrf.mxu0
    %586 = vmatprep.mubr.f32.mxu0 0.0
    %587 = vmatmul.mubr.f32.gmra.mxu0 %v210
    %v588 = vpop.f32.mrf.mxu0
    %v589 = vadd.f32 0.0, %v588
    %v590 = vpop.f32.mrf.mxu0
    %591 = vmatprep.mubr.f32.mxu0 0.0
    %592 = vmatmul.mubr.f32.gmra.mxu0 %v213
    %v593 = vpop.f32.mrf.mxu0
    %v594 = vadd.f32 0.0, %v593
    %v595 = vpop.f32.mrf.mxu0
    %596 = vmatprep.mubr.f32.mxu0 0.0
    %597 = vmatmul.mubr.f32.gmra.mxu0 %v216
    %v598 = vpop.f32.mrf.mxu0
    %v599 = vadd.f32 0.0, %v598
    %v600 = vpop.f32.mrf.mxu0
    %601 = vmatprep.mubr.f32.mxu0 0.0
    %602 = vmatmul.mubr.f32.gmra.mxu0 %v219
    %v603 = vpop.f32.mrf.mxu0
    %v604 = vadd.f32 0.0, %v603
    %v605 = vpop.f32.mrf.mxu0
    %606 = vmatprep.mubr.f32.mxu0 0.0
    %607 = vmatmul.mubr.f32.gmra.mxu0 %v222
    %v608 = vpop.f32.mrf.mxu0
    %v609 = vadd.f32 0.0, %v608
    %v610 = vpop.f32.mrf.mxu0
    %611 = vmatprep.mubr.f32.mxu0 0.0
    %612 = vmatmul.mubr.f32.gmra.mxu0 %v225
    %v613 = vpop.f32.mrf.mxu0
    %v614 = vadd.f32 0.0, %v613
    %v615 = vpop.f32.mrf.mxu0
    %616 = vdwg.mxu0
    %s617 = scalar_lea.vmem [#allocation2], 336
    %v618 = vld [vmem:[%s617] sm:$0xff]
    %v619 = vld [vmem:[%s617 + $0x8] sm:$0xff]
    %v620 = vld [vmem:[%s617 + $0x10] sm:$0xff]
    %v621 = vld [vmem:[%s617 + $0x18] sm:$0xff]
    %v622 = vld [vmem:[%s617 + $0x20] sm:$0xff]
    %v623 = vld [vmem:[%s617 + $0x28] sm:$0xff]
    %v624 = vld [vmem:[%s617 + $0x30] sm:$0xff]
    %v625 = vld [vmem:[%s617 + $0x38] sm:$0xff]
    %v626 = vld [vmem:[%s617 + $0x40] sm:$0xff]
    %v627 = vld [vmem:[%s617 + $0x48] sm:$0xff]
    %v628 = vld [vmem:[%s617 + $0x50] sm:$0xff]
    %v629 = vld [vmem:[%s617 + $0x58] sm:$0xff]
    %v630 = vld [vmem:[%s617 + $0x60] sm:$0xff]
    %v631 = vld [vmem:[%s617 + $0x68] sm:$0xff]
    %v632 = vld [vmem:[%s617 + $0x70] sm:$0xff]
    %v633 = vld [vmem:[%s617 + $0x78] sm:$0xff]
    %v634 = vld [vmem:[%s617 + $0x80] sm:$0xff]
    %v635 = vld [vmem:[%s617 + $0x88] sm:$0xff]
    %v636 = vld [vmem:[%s617 + $0x90] sm:$0xff]
    %v637 = vld [vmem:[%s617 + $0x98] sm:$0xff]
    %v638 = vld [vmem:[%s617 + $0xa0] sm:$0xff]
    %v639 = vld [vmem:[%s617 + $0xa8] sm:$0xff]
    %v640 = vld [vmem:[%s617 + $0xb0] sm:$0xff]
    %v641 = vld [vmem:[%s617 + $0xb8] sm:$0xff]
    %v642 = vld [vmem:[%s617 + $0xc0] sm:$0xff]
    %v643 = vld [vmem:[%s617 + $0xc8] sm:$0xff]
    %v644 = vld [vmem:[%s617 + $0xd0] sm:$0xff]
    %v645 = vld [vmem:[%s617 + $0xd8] sm:$0xff]
    %v646 = vld [vmem:[%s617 + $0xe0] sm:$0xff]
    %v647 = vld [vmem:[%s617 + $0xe8] sm:$0xff]
    %v648 = vld [vmem:[%s617 + $0xf0] sm:$0xff]
    %v649 = vld [vmem:[%s617 + $0xf8] sm:$0xff]
    %v650 = vld [vmem:[%s617 + $0x100] sm:$0xff]
    %v651 = vld [vmem:[%s617 + $0x108] sm:$0xff]
    %v652 = vld [vmem:[%s617 + $0x110] sm:$0xff]
    %v653 = vld [vmem:[%s617 + $0x118] sm:$0xff]
    %v654 = vld [vmem:[%s617 + $0x120] sm:$0xff]
    %v655 = vld [vmem:[%s617 + $0x128] sm:$0xff]
    %v656 = vld [vmem:[%s617 + $0x130] sm:$0xff]
    %v657 = vld [vmem:[%s617 + $0x138] sm:$0xff]
    %v658 = vld [vmem:[%s617 + $0x140] sm:$0x3]
    %v659 = vld [vmem:[%s617 + $0x148] sm:$0x3]
    %vm660 = vcmask 277504
    %v662 = vsel %vm660, %v619, 0
    %v665 = vsel %vm660, %v621, 0
    %v668 = vsel %vm660, %v623, 0
    %v671 = vsel %vm660, %v625, 0
    %v674 = vsel %vm660, %v627, 0
    %v677 = vsel %vm660, %v629, 0
    %v680 = vsel %vm660, %v631, 0
    %v683 = vsel %vm660, %v633, 0
    %v686 = vsel %vm660, %v635, 0
    %v689 = vsel %vm660, %v637, 0
    %v692 = vsel %vm660, %v639, 0
    %v695 = vsel %vm660, %v641, 0
    %v698 = vsel %vm660, %v643, 0
    %v701 = vsel %vm660, %v645, 0
    %v704 = vsel %vm660, %v647, 0
    %v707 = vsel %vm660, %v649, 0
    %v710 = vsel %vm660, %v651, 0
    %v713 = vsel %vm660, %v653, 0
    %v716 = vsel %vm660, %v655, 0
    %v719 = vsel %vm660, %v657, 0
    %v722 = vsel %vm660, %v659, 0
    %vm724 = vcmask 1041408
    %v726 = vsel %vm724, %v614, 0
    %728 = vmatprep.subr.mxu0 0.0
    %729 = vmatpush1.msra.mxu0 %v589
    %730 = vmatprep.subr.mxu0 0.0
    %731 = vmatpush1.msra.mxu0 %v584
    %732 = vmatprep.subr.mxu0 0.0
    %733 = vmatpush1.msra.mxu0 %v579
    %734 = vmatprep.subr.mxu0 0.0
    %735 = vmatpush1.msra.mxu0 %v574
    %736 = vmatprep.subr.mxu0 0.0
    %737 = vmatpush1.msra.mxu0 %v569
    %738 = vmatprep.subr.mxu0 0.0
    %739 = vmatpush1.msra.mxu0 %v564
    %740 = vmatprep.subr.mxu0 0.0
    %741 = vmatpush1.msra.mxu0 %v559
    %742 = vmatprep.subr.mxu0 0.0
    %743 = vmatpush1.msra.mxu0 %v554
    %744 = vmatprep.subr.mxu0 0.0
    %745 = vmatpush1.msra.mxu0 %v549
    %746 = vmatprep.subr.mxu0 0.0
    %747 = vmatpush1.msra.mxu0 %v544
    %748 = vmatprep.subr.mxu0 0.0
    %749 = vmatpush1.msra.mxu0 %v539
    %750 = vmatprep.subr.mxu0 0.0
    %751 = vmatpush1.msra.mxu0 %v534
    %752 = vmatprep.subr.mxu0 0.0
    %753 = vmatpush1.msra.mxu0 %v529
    %754 = vmatprep.subr.mxu0 0.0
    %755 = vmatpush1.msra.mxu0 %v524
    %756 = vmatprep.subr.mxu0 0.0
    %757 = vmatpush1.msra.mxu0 %v519
    %758 = vmatprep.subr.mxu0 0.0
    %759 = vmatpush1.msra.mxu0 %v514
    %760 = vmatprep.subr.mxu0 0.0
    %761 = vmatpush2.msra.mxu0 0.0
    %762 = vmatprep.subr.mxu0 0.0
    %763 = vmatpush2.msra.mxu0 0.0
    %764 = vmatprep.subr.mxu0 0.0
    %765 = vmatpush2.msra.mxu0 0.0
    %766 = vmatprep.subr.mxu0 0.0
    %767 = vmatpush2.msra.mxu0 0.0
    %768 = vmatprep.subr.mxu0 0.0
    %769 = vmatpush2.msra.mxu0 0.0
    %770 = vmatprep.subr.mxu0 0.0
    %771 = vmatpush2.msra.mxu0 0.0
    %772 = vmatprep.subr.mxu0 0.0
    %773 = vmatpush2.msra.mxu0 0.0
    %774 = vmatprep.subr.mxu0 0.0
    %775 = vmatpush2.msra.mxu0 0.0
    %776 = vmatprep.subr.mxu0 0.0
    %777 = vmatpush2.msra.mxu0 0.0
    %778 = vmatprep.subr.mxu0 0.0
    %779 = vmatpush2.msra.mxu0 0.0
    %780 = vmatprep.subr.mxu0 0.0
    %781 = vmatpush2.msra.mxu0 0.0
    %782 = vmatprep.subr.mxu0 0.0
    %783 = vmatpush2.msra.mxu0 %v726
    %784 = vmatprep.subr.mxu0 0.0
    %785 = vmatpush2.msra.mxu0 %v609
    %786 = vmatprep.subr.mxu0 0.0
    %787 = vmatpush2.msra.mxu0 %v604
    %788 = vmatprep.subr.mxu0 0.0
    %789 = vmatpush2.msra.mxu0 %v599
    %790 = vmatprep.subr.mxu0 0.0
    %791 = vmatpush2.msra.mxu0 %v594
    %792 = vmatprep.mubr.f32.mxu0 %v662
    %793 = vmatmul.mubr.f32.gmra.mxu0 %v618
    %v794 = vpop.f32.mrf.mxu0
    %v795 = vadd.f32 0.0, %v794
    %v796 = vpop.f32.mrf.mxu0
    %797 = vmatprep.mubr.f32.mxu0 %v665
    %798 = vmatmul.mubr.f32.gmra.mxu0 %v620
    %v799 = vpop.f32.mrf.mxu0
    %v800 = vadd.f32 0.0, %v799
    %v801 = vpop.f32.mrf.mxu0
    %802 = vmatprep.mubr.f32.mxu0 %v668
    %803 = vmatmul.mubr.f32.gmra.mxu0 %v622
    %v804 = vpop.f32.mrf.mxu0
    %v805 = vadd.f32 0.0, %v804
    %v806 = vpop.f32.mrf.mxu0
    %807 = vmatprep.mubr.f32.mxu0 %v671
    %808 = vmatmul.mubr.f32.gmra.mxu0 %v624
    %v809 = vpop.f32.mrf.mxu0
    %v810 = vadd.f32 0.0, %v809
    %v811 = vpop.f32.mrf.mxu0
    %812 = vmatprep.mubr.f32.mxu0 %v674
    %813 = vmatmul.mubr.f32.gmra.mxu0 %v626
    %v814 = vpop.f32.mrf.mxu0
    %v815 = vadd.f32 0.0, %v814
    %v816 = vpop.f32.mrf.mxu0
    %817 = vmatprep.mubr.f32.mxu0 %v677
    %818 = vmatmul.mubr.f32.gmra.mxu0 %v628
    %v819 = vpop.f32.mrf.mxu0
    %v820 = vadd.f32 0.0, %v819
    %v821 = vpop.f32.mrf.mxu0
    %822 = vmatprep.mubr.f32.mxu0 %v680
    %823 = vmatmul.mubr.f32.gmra.mxu0 %v630
    %v824 = vpop.f32.mrf.mxu0
    %v825 = vadd.f32 0.0, %v824
    %v826 = vpop.f32.mrf.mxu0
    %827 = vmatprep.mubr.f32.mxu0 %v683
    %828 = vmatmul.mubr.f32.gmra.mxu0 %v632
    %v829 = vpop.f32.mrf.mxu0
    %v830 = vadd.f32 0.0, %v829
    %v831 = vpop.f32.mrf.mxu0
    %832 = vmatprep.mubr.f32.mxu0 %v686
    %833 = vmatmul.mubr.f32.gmra.mxu0 %v634
    %v834 = vpop.f32.mrf.mxu0
    %v835 = vadd.f32 0.0, %v834
    %v836 = vpop.f32.mrf.mxu0
    %837 = vmatprep.mubr.f32.mxu0 %v689
    %838 = vmatmul.mubr.f32.gmra.mxu0 %v636
    %v839 = vpop.f32.mrf.mxu0
    %v840 = vadd.f32 0.0, %v839
    %v841 = vpop.f32.mrf.mxu0
    %842 = vmatprep.mubr.f32.mxu0 %v692
    %843 = vmatmul.mubr.f32.gmra.mxu0 %v638
    %v844 = vpop.f32.mrf.mxu0
    %v845 = vadd.f32 0.0, %v844
    %v846 = vpop.f32.mrf.mxu0
    %847 = vmatprep.mubr.f32.mxu0 %v695
    %848 = vmatmul.mubr.f32.gmra.mxu0 %v640
    %v849 = vpop.f32.mrf.mxu0
    %v850 = vadd.f32 0.0, %v849
    %v851 = vpop.f32.mrf.mxu0
    %852 = vmatprep.mubr.f32.mxu0 %v698
    %853 = vmatmul.mubr.f32.gmra.mxu0 %v642
    %v854 = vpop.f32.mrf.mxu0
    %v855 = vadd.f32 0.0, %v854
    %v856 = vpop.f32.mrf.mxu0
    %857 = vmatprep.mubr.f32.mxu0 %v701
    %858 = vmatmul.mubr.f32.gmra.mxu0 %v644
    %v859 = vpop.f32.mrf.mxu0
    %v860 = vadd.f32 0.0, %v859
    %v861 = vpop.f32.mrf.mxu0
    %862 = vmatprep.mubr.f32.mxu0 %v704
    %863 = vmatmul.mubr.f32.gmra.mxu0 %v646
    %v864 = vpop.f32.mrf.mxu0
    %v865 = vadd.f32 0.0, %v864
    %v866 = vpop.f32.mrf.mxu0
    %867 = vmatprep.mubr.f32.mxu0 %v707
    %868 = vmatmul.mubr.f32.gmra.mxu0 %v648
    %v869 = vpop.f32.mrf.mxu0
    %v870 = vadd.f32 0.0, %v869
    %v871 = vpop.f32.mrf.mxu0
    %872 = vmatprep.mubr.f32.mxu0 %v710
    %873 = vmatmul.mubr.f32.gmra.mxu0 %v650
    %v874 = vpop.f32.mrf.mxu0
    %v875 = vadd.f32 0.0, %v874
    %v876 = vpop.f32.mrf.mxu0
    %877 = vmatprep.mubr.f32.mxu0 %v713
    %878 = vmatmul.mubr.f32.gmra.mxu0 %v652
    %v879 = vpop.f32.mrf.mxu0
    %v880 = vadd.f32 0.0, %v879
    %v881 = vpop.f32.mrf.mxu0
    %882 = vmatprep.mubr.f32.mxu0 %v716
    %883 = vmatmul.mubr.f32.gmra.mxu0 %v654
    %v884 = vpop.f32.mrf.mxu0
    %v885 = vadd.f32 0.0, %v884
    %v886 = vpop.f32.mrf.mxu0
    %887 = vmatprep.mubr.f32.mxu0 %v719
    %888 = vmatmul.mubr.f32.gmra.mxu0 %v656
    %v889 = vpop.f32.mrf.mxu0
    %v890 = vadd.f32 0.0, %v889
    %v891 = vpop.f32.mrf.mxu0
    %892 = vmatprep.mubr.f32.mxu0 %v722
    %893 = vmatmul.mubr.f32.gmra.mxu0 %v658
    %v894 = vpop.f32.mrf.mxu0
    %v895 = vadd.f32 0.0, %v894
    %v896 = vpop.f32.mrf.mxu0
    %897 = vdwg.mxu0
    %v899 = vsel %vm660, %v398, 0
    %v902 = vsel %vm660, %v400, 0
    %v905 = vsel %vm660, %v402, 0
    %v908 = vsel %vm660, %v404, 0
    %v911 = vsel %vm660, %v406, 0
    %v914 = vsel %vm660, %v408, 0
    %v917 = vsel %vm660, %v410, 0
    %v920 = vsel %vm660, %v412, 0
    %v923 = vsel %vm660, %v414, 0
    %v926 = vsel %vm660, %v416, 0
    %v929 = vsel %vm660, %v418, 0
    %v932 = vsel %vm660, %v420, 0
    %v935 = vsel %vm660, %v422, 0
    %v938 = vsel %vm660, %v424, 0
    %v941 = vsel %vm660, %v426, 0
    %v944 = vsel %vm660, %v428, 0
    %v947 = vsel %vm660, %v430, 0
    %v950 = vsel %vm660, %v432, 0
    %v953 = vsel %vm660, %v434, 0
    %v956 = vsel %vm660, %v436, 0
    %v959 = vsel %vm660, %v438, 0
    %v962 = vsel %vm724, %v394, 0
    %964 = vmatprep.subr.mxu0 0.0
    %965 = vmatpush1.msra.mxu0 %v369
    %966 = vmatprep.subr.mxu0 0.0
    %967 = vmatpush1.msra.mxu0 %v364
    %968 = vmatprep.subr.mxu0 0.0
    %969 = vmatpush1.msra.mxu0 %v359
    %970 = vmatprep.subr.mxu0 0.0
    %971 = vmatpush1.msra.mxu0 %v354
    %972 = vmatprep.subr.mxu0 0.0
    %973 = vmatpush1.msra.mxu0 %v349
    %974 = vmatprep.subr.mxu0 0.0
    %975 = vmatpush1.msra.mxu0 %v344
    %976 = vmatprep.subr.mxu0 0.0
    %977 = vmatpush1.msra.mxu0 %v339
    %978 = vmatprep.subr.mxu0 0.0
    %979 = vmatpush1.msra.mxu0 %v334
    %980 = vmatprep.subr.mxu0 0.0
    %981 = vmatpush1.msra.mxu0 %v329
    %982 = vmatprep.subr.mxu0 0.0
    %983 = vmatpush1.msra.mxu0 %v324
    %984 = vmatprep.subr.mxu0 0.0
    %985 = vmatpush1.msra.mxu0 %v319
    %986 = vmatprep.subr.mxu0 0.0
    %987 = vmatpush1.msra.mxu0 %v314
    %988 = vmatprep.subr.mxu0 0.0
    %989 = vmatpush1.msra.mxu0 %v309
    %990 = vmatprep.subr.mxu0 0.0
    %991 = vmatpush1.msra.mxu0 %v304
    %992 = vmatprep.subr.mxu0 0.0
    %993 = vmatpush1.msra.mxu0 %v299
    %994 = vmatprep.subr.mxu0 0.0
    %995 = vmatpush1.msra.mxu0 %v294
    %996 = vmatprep.subr.mxu0 0.0
    %997 = vmatpush2.msra.mxu0 0.0
    %998 = vmatprep.subr.mxu0 0.0
    %999 = vmatpush2.msra.mxu0 0.0
    %1000 = vmatprep.subr.mxu0 0.0
    %1001 = vmatpush2.msra.mxu0 0.0
    %1002 = vmatprep.subr.mxu0 0.0
    %1003 = vmatpush2.msra.mxu0 0.0
    %1004 = vmatprep.subr.mxu0 0.0
    %1005 = vmatpush2.msra.mxu0 0.0
    %1006 = vmatprep.subr.mxu0 0.0
    %1007 = vmatpush2.msra.mxu0 0.0
    %1008 = vmatprep.subr.mxu0 0.0
    %1009 = vmatpush2.msra.mxu0 0.0
    %1010 = vmatprep.subr.mxu0 0.0
    %1011 = vmatpush2.msra.mxu0 0.0
    %1012 = vmatprep.subr.mxu0 0.0
    %1013 = vmatpush2.msra.mxu0 0.0
    %1014 = vmatprep.subr.mxu0 0.0
    %1015 = vmatpush2.msra.mxu0 0.0
    %1016 = vmatprep.subr.mxu0 0.0
    %1017 = vmatpush2.msra.mxu0 0.0
    %1018 = vmatprep.subr.mxu0 0.0
    %1019 = vmatpush2.msra.mxu0 %v962
    %1020 = vmatprep.subr.mxu0 0.0
    %1021 = vmatpush2.msra.mxu0 %v389
    %1022 = vmatprep.subr.mxu0 0.0
    %1023 = vmatpush2.msra.mxu0 %v384
    %1024 = vmatprep.subr.mxu0 0.0
    %1025 = vmatpush2.msra.mxu0 %v379
    %1026 = vmatprep.subr.mxu0 0.0
    %1027 = vmatpush2.msra.mxu0 %v374
    %1028 = vmatprep.mubr.f32.mxu0 %v899
    %1029 = vmatmul.mubr.f32.gmra.mxu0 %v397
    %v1030 = vpop.f32.mrf.mxu0
    %v1031 = vadd.f32 %v795, %v1030
    %v1032 = vpop.f32.mrf.mxu0
    %1033 = vmatprep.mubr.f32.mxu0 %v902
    %1034 = vmatmul.mubr.f32.gmra.mxu0 %v399
    %v1035 = vpop.f32.mrf.mxu0
    %v1036 = vadd.f32 %v800, %v1035
    %v1037 = vpop.f32.mrf.mxu0
    %1038 = vmatprep.mubr.f32.mxu0 %v905
    %1039 = vmatmul.mubr.f32.gmra.mxu0 %v401
    %v1040 = vpop.f32.mrf.mxu0
    %v1041 = vadd.f32 %v805, %v1040
    %v1042 = vpop.f32.mrf.mxu0
    %1043 = vmatprep.mubr.f32.mxu0 %v908
    %1044 = vmatmul.mubr.f32.gmra.mxu0 %v403
    %v1045 = vpop.f32.mrf.mxu0
    %v1046 = vadd.f32 %v810, %v1045
    %v1047 = vpop.f32.mrf.mxu0
    %1048 = vmatprep.mubr.f32.mxu0 %v911
    %1049 = vmatmul.mubr.f32.gmra.mxu0 %v405
    %v1050 = vpop.f32.mrf.mxu0
    %v1051 = vadd.f32 %v815, %v1050
    %v1052 = vpop.f32.mrf.mxu0
    %1053 = vmatprep.mubr.f32.mxu0 %v914
    %1054 = vmatmul.mubr.f32.gmra.mxu0 %v407
    %v1055 = vpop.f32.mrf.mxu0
    %v1056 = vadd.f32 %v820, %v1055
    %v1057 = vpop.f32.mrf.mxu0
    %1058 = vmatprep.mubr.f32.mxu0 %v917
    %1059 = vmatmul.mubr.f32.gmra.mxu0 %v409
    %v1060 = vpop.f32.mrf.mxu0
    %v1061 = vadd.f32 %v825, %v1060
    %v1062 = vpop.f32.mrf.mxu0
    %1063 = vmatprep.mubr.f32.mxu0 %v920
    %1064 = vmatmul.mubr.f32.gmra.mxu0 %v411
    %v1065 = vpop.f32.mrf.mxu0
    %v1066 = vadd.f32 %v830, %v1065
    %v1067 = vpop.f32.mrf.mxu0
    %1068 = vmatprep.mubr.f32.mxu0 %v923
    %1069 = vmatmul.mubr.f32.gmra.mxu0 %v413
    %v1070 = vpop.f32.mrf.mxu0
    %v1071 = vadd.f32 %v835, %v1070
    %v1072 = vpop.f32.mrf.mxu0
    %1073 = vmatprep.mubr.f32.mxu0 %v926
    %1074 = vmatmul.mubr.f32.gmra.mxu0 %v415
    %v1075 = vpop.f32.mrf.mxu0
    %v1076 = vadd.f32 %v840, %v1075
    %v1077 = vpop.f32.mrf.mxu0
    %1078 = vmatprep.mubr.f32.mxu0 %v929
    %1079 = vmatmul.mubr.f32.gmra.mxu0 %v417
    %v1080 = vpop.f32.mrf.mxu0
    %v1081 = vadd.f32 %v845, %v1080
    %v1082 = vpop.f32.mrf.mxu0
    %1083 = vmatprep.mubr.f32.mxu0 %v932
    %1084 = vmatmul.mubr.f32.gmra.mxu0 %v419
    %v1085 = vpop.f32.mrf.mxu0
    %v1086 = vadd.f32 %v850, %v1085
    %v1087 = vpop.f32.mrf.mxu0
    %1088 = vmatprep.mubr.f32.mxu0 %v935
    %1089 = vmatmul.mubr.f32.gmra.mxu0 %v421
    %v1090 = vpop.f32.mrf.mxu0
    %v1091 = vadd.f32 %v855, %v1090
    %v1092 = vpop.f32.mrf.mxu0
    %1093 = vmatprep.mubr.f32.mxu0 %v938
    %1094 = vmatmul.mubr.f32.gmra.mxu0 %v423
    %v1095 = vpop.f32.mrf.mxu0
    %v1096 = vadd.f32 %v860, %v1095
    %v1097 = vpop.f32.mrf.mxu0
    %1098 = vmatprep.mubr.f32.mxu0 %v941
    %1099 = vmatmul.mubr.f32.gmra.mxu0 %v425
    %v1100 = vpop.f32.mrf.mxu0
    %v1101 = vadd.f32 %v865, %v1100
    %v1102 = vpop.f32.mrf.mxu0
    %1103 = vmatprep.mubr.f32.mxu0 %v944
    %1104 = vmatmul.mubr.f32.gmra.mxu0 %v427
    %v1105 = vpop.f32.mrf.mxu0
    %v1106 = vadd.f32 %v870, %v1105
    %v1107 = vpop.f32.mrf.mxu0
    %1108 = vmatprep.mubr.f32.mxu0 %v947
    %1109 = vmatmul.mubr.f32.gmra.mxu0 %v429
    %v1110 = vpop.f32.mrf.mxu0
    %v1111 = vadd.f32 %v875, %v1110
    %v1112 = vpop.f32.mrf.mxu0
    %1113 = vmatprep.mubr.f32.mxu0 %v950
    %1114 = vmatmul.mubr.f32.gmra.mxu0 %v431
    %v1115 = vpop.f32.mrf.mxu0
    %v1116 = vadd.f32 %v880, %v1115
    %v1117 = vpop.f32.mrf.mxu0
    %1118 = vmatprep.mubr.f32.mxu0 %v953
    %1119 = vmatmul.mubr.f32.gmra.mxu0 %v433
    %v1120 = vpop.f32.mrf.mxu0
    %v1121 = vadd.f32 %v885, %v1120
    %v1122 = vpop.f32.mrf.mxu0
    %1123 = vmatprep.mubr.f32.mxu0 %v956
    %1124 = vmatmul.mubr.f32.gmra.mxu0 %v435
    %v1125 = vpop.f32.mrf.mxu0
    %v1126 = vadd.f32 %v890, %v1125
    %v1127 = vpop.f32.mrf.mxu0
    %1128 = vmatprep.mubr.f32.mxu0 %v959
    %1129 = vmatmul.mubr.f32.gmra.mxu0 %v437
    %v1130 = vpop.f32.mrf.mxu0
    %v1131 = vadd.f32 %v895, %v1130
    %v1132 = vpop.f32.mrf.mxu0
    %1133 = vdwg.mxu0
    %v1134 = vld [vmem:[#allocation5 + $0x80] sm:$0xff]
    %v1135 = vld [vmem:[#allocation5 + $0x88] sm:$0xff]
    %v1136 = vld [vmem:[#allocation5 + $0x90] sm:$0xff]
    %v1137 = vld [vmem:[#allocation5 + $0x98] sm:$0xff]
    %v1138 = vld [vmem:[#allocation5 + $0xa0] sm:$0xff]
    %v1139 = vld [vmem:[#allocation5 + $0xa8] sm:$0xff]
    %v1140 = vld [vmem:[#allocation5 + $0xb0] sm:$0xff]
    %v1141 = vld [vmem:[#allocation5 + $0xb8] sm:$0xff]
    %1142 = vmatprep.subr.mxu0 0.0
    %1143 = vmatpush1.msra.mxu0 0.0
    %1144 = vmatprep.subr.mxu0 0.0
    %1145 = vmatpush1.msra.mxu0 0.0
    %1146 = vmatprep.subr.mxu0 0.0
    %1147 = vmatpush1.msra.mxu0 0.0
    %1148 = vmatprep.subr.mxu0 0.0
    %1149 = vmatpush1.msra.mxu0 0.0
    %1150 = vmatprep.subr.mxu0 0.0
    %1151 = vmatpush1.msra.mxu0 0.0
    %1152 = vmatprep.subr.mxu0 0.0
    %1153 = vmatpush1.msra.mxu0 0.0
    %1154 = vmatprep.subr.mxu0 0.0
    %1155 = vmatpush1.msra.mxu0 0.0
    %1156 = vmatprep.subr.mxu0 0.0
    %1157 = vmatpush1.msra.mxu0 0.0
    %1158 = vmatprep.subr.mxu0 0.0
    %1159 = vmatpush1.msra.mxu0 %v1141
    %1160 = vmatprep.subr.mxu0 0.0
    %1161 = vmatpush1.msra.mxu0 %v1140
    %1162 = vmatprep.subr.mxu0 0.0
    %1163 = vmatpush1.msra.mxu0 %v1139
    %1164 = vmatprep.subr.mxu0 0.0
    %1165 = vmatpush1.msra.mxu0 %v1138
    %1166 = vmatprep.subr.mxu0 0.0
    %1167 = vmatpush1.msra.mxu0 %v1137
    %1168 = vmatprep.subr.mxu0 0.0
    %1169 = vmatpush1.msra.mxu0 %v1136
    %1170 = vmatprep.subr.mxu0 0.0
    %1171 = vmatpush1.msra.mxu0 %v1135
    %1172 = vmatprep.subr.mxu0 0.0
    %1173 = vmatpush1.msra.mxu0 %v1134
    %1174 = vmatprep.subr.mxu0 0.0
    %1175 = vmatpush2.msra.mxu0 0.0
    %1176 = vmatprep.subr.mxu0 0.0
    %1177 = vmatpush2.msra.mxu0 0.0
    %1178 = vmatprep.subr.mxu0 0.0
    %1179 = vmatpush2.msra.mxu0 0.0
    %1180 = vmatprep.subr.mxu0 0.0
    %1181 = vmatpush2.msra.mxu0 0.0
    %1182 = vmatprep.subr.mxu0 0.0
    %1183 = vmatpush2.msra.mxu0 0.0
    %1184 = vmatprep.subr.mxu0 0.0
    %1185 = vmatpush2.msra.mxu0 0.0
    %1186 = vmatprep.subr.mxu0 0.0
    %1187 = vmatpush2.msra.mxu0 0.0
    %1188 = vmatprep.subr.mxu0 0.0
    %1189 = vmatpush2.msra.mxu0 0.0
    %1190 = vmatprep.subr.mxu0 0.0
    %1191 = vmatpush2.msra.mxu0 0.0
    %1192 = vmatprep.subr.mxu0 0.0
    %1193 = vmatpush2.msra.mxu0 0.0
    %1194 = vmatprep.subr.mxu0 0.0
    %1195 = vmatpush2.msra.mxu0 0.0
    %1196 = vmatprep.subr.mxu0 0.0
    %1197 = vmatpush2.msra.mxu0 0.0
    %1198 = vmatprep.subr.mxu0 0.0
    %1199 = vmatpush2.msra.mxu0 0.0
    %1200 = vmatprep.subr.mxu0 0.0
    %1201 = vmatpush2.msra.mxu0 0.0
    %1202 = vmatprep.subr.mxu0 0.0
    %1203 = vmatpush2.msra.mxu0 0.0
    %1204 = vmatprep.subr.mxu0 0.0
    %1205 = vmatpush2.msra.mxu0 0.0
    %1206 = vmatprep.mubr.f32.mxu0 0.0
    %1207 = vmatmul.mubr.f32.gmra.mxu0 %v165
    %v1208 = vpop.f32.mrf.mxu0
    %v1209 = vadd.f32 0.0, %v1208
    %v1210 = vpop.f32.mrf.mxu0
    %1211 = vmatprep.mubr.f32.mxu0 0.0
    %1212 = vmatmul.mubr.f32.gmra.mxu0 %v168
    %v1213 = vpop.f32.mrf.mxu0
    %v1214 = vadd.f32 0.0, %v1213
    %v1215 = vpop.f32.mrf.mxu0
    %1216 = vmatprep.mubr.f32.mxu0 0.0
    %1217 = vmatmul.mubr.f32.gmra.mxu0 %v171
    %v1218 = vpop.f32.mrf.mxu0
    %v1219 = vadd.f32 0.0, %v1218
    %v1220 = vpop.f32.mrf.mxu0
    %1221 = vmatprep.mubr.f32.mxu0 0.0
    %1222 = vmatmul.mubr.f32.gmra.mxu0 %v174
    %v1223 = vpop.f32.mrf.mxu0
    %v1224 = vadd.f32 0.0, %v1223
    %v1225 = vpop.f32.mrf.mxu0
    %1226 = vmatprep.mubr.f32.mxu0 0.0
    %1227 = vmatmul.mubr.f32.gmra.mxu0 %v177
    %v1228 = vpop.f32.mrf.mxu0
    %v1229 = vadd.f32 0.0, %v1228
    %v1230 = vpop.f32.mrf.mxu0
    %1231 = vmatprep.mubr.f32.mxu0 0.0
    %1232 = vmatmul.mubr.f32.gmra.mxu0 %v180
    %v1233 = vpop.f32.mrf.mxu0
    %v1234 = vadd.f32 0.0, %v1233
    %v1235 = vpop.f32.mrf.mxu0
    %1236 = vmatprep.mubr.f32.mxu0 0.0
    %1237 = vmatmul.mubr.f32.gmra.mxu0 %v183
    %v1238 = vpop.f32.mrf.mxu0
    %v1239 = vadd.f32 0.0, %v1238
    %v1240 = vpop.f32.mrf.mxu0
    %1241 = vmatprep.mubr.f32.mxu0 0.0
    %1242 = vmatmul.mubr.f32.gmra.mxu0 %v186
    %v1243 = vpop.f32.mrf.mxu0
    %v1244 = vadd.f32 0.0, %v1243
    %v1245 = vpop.f32.mrf.mxu0
    %1246 = vmatprep.mubr.f32.mxu0 0.0
    %1247 = vmatmul.mubr.f32.gmra.mxu0 %v189
    %v1248 = vpop.f32.mrf.mxu0
    %v1249 = vadd.f32 0.0, %v1248
    %v1250 = vpop.f32.mrf.mxu0
    %1251 = vmatprep.mubr.f32.mxu0 0.0
    %1252 = vmatmul.mubr.f32.gmra.mxu0 %v192
    %v1253 = vpop.f32.mrf.mxu0
    %v1254 = vadd.f32 0.0, %v1253
    %v1255 = vpop.f32.mrf.mxu0
    %1256 = vmatprep.mubr.f32.mxu0 0.0
    %1257 = vmatmul.mubr.f32.gmra.mxu0 %v195
    %v1258 = vpop.f32.mrf.mxu0
    %v1259 = vadd.f32 0.0, %v1258
    %v1260 = vpop.f32.mrf.mxu0
    %1261 = vmatprep.mubr.f32.mxu0 0.0
    %1262 = vmatmul.mubr.f32.gmra.mxu0 %v198
    %v1263 = vpop.f32.mrf.mxu0
    %v1264 = vadd.f32 0.0, %v1263
    %v1265 = vpop.f32.mrf.mxu0
    %1266 = vmatprep.mubr.f32.mxu0 0.0
    %1267 = vmatmul.mubr.f32.gmra.mxu0 %v201
    %v1268 = vpop.f32.mrf.mxu0
    %v1269 = vadd.f32 0.0, %v1268
    %v1270 = vpop.f32.mrf.mxu0
    %1271 = vmatprep.mubr.f32.mxu0 0.0
    %1272 = vmatmul.mubr.f32.gmra.mxu0 %v204
    %v1273 = vpop.f32.mrf.mxu0
    %v1274 = vadd.f32 0.0, %v1273
    %v1275 = vpop.f32.mrf.mxu0
    %1276 = vmatprep.mubr.f32.mxu0 0.0
    %1277 = vmatmul.mubr.f32.gmra.mxu0 %v207
    %v1278 = vpop.f32.mrf.mxu0
    %v1279 = vadd.f32 0.0, %v1278
    %v1280 = vpop.f32.mrf.mxu0
    %1281 = vmatprep.mubr.f32.mxu0 0.0
    %1282 = vmatmul.mubr.f32.gmra.mxu0 %v210
    %v1283 = vpop.f32.mrf.mxu0
    %v1284 = vadd.f32 0.0, %v1283
    %v1285 = vpop.f32.mrf.mxu0
    %1286 = vmatprep.mubr.f32.mxu0 0.0
    %1287 = vmatmul.mubr.f32.gmra.mxu0 %v213
    %v1288 = vpop.f32.mrf.mxu0
    %v1289 = vadd.f32 0.0, %v1288
    %v1290 = vpop.f32.mrf.mxu0
    %1291 = vmatprep.mubr.f32.mxu0 0.0
    %1292 = vmatmul.mubr.f32.gmra.mxu0 %v216
    %v1293 = vpop.f32.mrf.mxu0
    %v1294 = vadd.f32 0.0, %v1293
    %v1295 = vpop.f32.mrf.mxu0
    %1296 = vmatprep.mubr.f32.mxu0 0.0
    %1297 = vmatmul.mubr.f32.gmra.mxu0 %v219
    %v1298 = vpop.f32.mrf.mxu0
    %v1299 = vadd.f32 0.0, %v1298
    %v1300 = vpop.f32.mrf.mxu0
    %1301 = vmatprep.mubr.f32.mxu0 0.0
    %1302 = vmatmul.mubr.f32.gmra.mxu0 %v222
    %v1303 = vpop.f32.mrf.mxu0
    %v1304 = vadd.f32 0.0, %v1303
    %v1305 = vpop.f32.mrf.mxu0
    %1306 = vmatprep.mubr.f32.mxu0 0.0
    %1307 = vmatmul.mubr.f32.gmra.mxu0 %v225
    %v1308 = vpop.f32.mrf.mxu0
    %v1309 = vadd.f32 0.0, %v1308
    %v1310 = vpop.f32.mrf.mxu0
    %1311 = vdwg.mxu0
    %s1312 = scalar_lea.vmem [#allocation2], 672
    %v1313 = vld [vmem:[%s1312] sm:$0xff]
    %v1314 = vld [vmem:[%s1312 + $0x8] sm:$0xff]
    %v1315 = vld [vmem:[%s1312 + $0x10] sm:$0xff]
    %v1316 = vld [vmem:[%s1312 + $0x18] sm:$0xff]
    %v1317 = vld [vmem:[%s1312 + $0x20] sm:$0xff]
    %v1318 = vld [vmem:[%s1312 + $0x28] sm:$0xff]
    %v1319 = vld [vmem:[%s1312 + $0x30] sm:$0xff]
    %v1320 = vld [vmem:[%s1312 + $0x38] sm:$0xff]
    %v1321 = vld [vmem:[%s1312 + $0x40] sm:$0xff]
    %v1322 = vld [vmem:[%s1312 + $0x48] sm:$0xff]
    %v1323 = vld [vmem:[%s1312 + $0x50] sm:$0xff]
    %v1324 = vld [vmem:[%s1312 + $0x58] sm:$0xff]
    %v1325 = vld [vmem:[%s1312 + $0x60] sm:$0xff]
    %v1326 = vld [vmem:[%s1312 + $0x68] sm:$0xff]
    %v1327 = vld [vmem:[%s1312 + $0x70] sm:$0xff]
    %v1328 = vld [vmem:[%s1312 + $0x78] sm:$0xff]
    %v1329 = vld [vmem:[%s1312 + $0x80] sm:$0xff]
    %v1330 = vld [vmem:[%s1312 + $0x88] sm:$0xff]
    %v1331 = vld [vmem:[%s1312 + $0x90] sm:$0xff]
    %v1332 = vld [vmem:[%s1312 + $0x98] sm:$0xff]
    %v1333 = vld [vmem:[%s1312 + $0xa0] sm:$0xff]
    %v1334 = vld [vmem:[%s1312 + $0xa8] sm:$0xff]
    %v1335 = vld [vmem:[%s1312 + $0xb0] sm:$0xff]
    %v1336 = vld [vmem:[%s1312 + $0xb8] sm:$0xff]
    %v1337 = vld [vmem:[%s1312 + $0xc0] sm:$0xff]
    %v1338 = vld [vmem:[%s1312 + $0xc8] sm:$0xff]
    %v1339 = vld [vmem:[%s1312 + $0xd0] sm:$0xff]
    %v1340 = vld [vmem:[%s1312 + $0xd8] sm:$0xff]
    %v1341 = vld [vmem:[%s1312 + $0xe0] sm:$0xff]
    %v1342 = vld [vmem:[%s1312 + $0xe8] sm:$0xff]
    %v1343 = vld [vmem:[%s1312 + $0xf0] sm:$0xff]
    %v1344 = vld [vmem:[%s1312 + $0xf8] sm:$0xff]
    %v1345 = vld [vmem:[%s1312 + $0x100] sm:$0xff]
    %v1346 = vld [vmem:[%s1312 + $0x108] sm:$0xff]
    %v1347 = vld [vmem:[%s1312 + $0x110] sm:$0xff]
    %v1348 = vld [vmem:[%s1312 + $0x118] sm:$0xff]
    %v1349 = vld [vmem:[%s1312 + $0x120] sm:$0xff]
    %v1350 = vld [vmem:[%s1312 + $0x128] sm:$0xff]
    %v1351 = vld [vmem:[%s1312 + $0x130] sm:$0xff]
    %v1352 = vld [vmem:[%s1312 + $0x138] sm:$0xff]
    %v1353 = vld [vmem:[%s1312 + $0x140] sm:$0x3]
    %v1354 = vld [vmem:[%s1312 + $0x148] sm:$0x3]
    %v1356 = vsel %vm660, %v1314, 0
    %v1359 = vsel %vm660, %v1316, 0
    %v1362 = vsel %vm660, %v1318, 0
    %v1365 = vsel %vm660, %v1320, 0
    %v1368 = vsel %vm660, %v1322, 0
    %v1371 = vsel %vm660, %v1324, 0
    %v1374 = vsel %vm660, %v1326, 0
    %v1377 = vsel %vm660, %v1328, 0
    %v1380 = vsel %vm660, %v1330, 0
    %v1383 = vsel %vm660, %v1332, 0
    %v1386 = vsel %vm660, %v1334, 0
    %v1389 = vsel %vm660, %v1336, 0
    %v1392 = vsel %vm660, %v1338, 0
    %v1395 = vsel %vm660, %v1340, 0
    %v1398 = vsel %vm660, %v1342, 0
    %v1401 = vsel %vm660, %v1344, 0
    %v1404 = vsel %vm660, %v1346, 0
    %v1407 = vsel %vm660, %v1348, 0
    %v1410 = vsel %vm660, %v1350, 0
    %v1413 = vsel %vm660, %v1352, 0
    %v1416 = vsel %vm660, %v1354, 0
    %v1419 = vsel %vm724, %v1309, 0
    %1421 = vmatprep.subr.mxu0 0.0
    %1422 = vmatpush1.msra.mxu0 %v1284
    %1423 = vmatprep.subr.mxu0 0.0
    %1424 = vmatpush1.msra.mxu0 %v1279
    %1425 = vmatprep.subr.mxu0 0.0
    %1426 = vmatpush1.msra.mxu0 %v1274
    %1427 = vmatprep.subr.mxu0 0.0
    %1428 = vmatpush1.msra.mxu0 %v1269
    %1429 = vmatprep.subr.mxu0 0.0
    %1430 = vmatpush1.msra.mxu0 %v1264
    %1431 = vmatprep.subr.mxu0 0.0
    %1432 = vmatpush1.msra.mxu0 %v1259
    %1433 = vmatprep.subr.mxu0 0.0
    %1434 = vmatpush1.msra.mxu0 %v1254
    %1435 = vmatprep.subr.mxu0 0.0
    %1436 = vmatpush1.msra.mxu0 %v1249
    %1437 = vmatprep.subr.mxu0 0.0
    %1438 = vmatpush1.msra.mxu0 %v1244
    %1439 = vmatprep.subr.mxu0 0.0
    %1440 = vmatpush1.msra.mxu0 %v1239
    %1441 = vmatprep.subr.mxu0 0.0
    %1442 = vmatpush1.msra.mxu0 %v1234
    %1443 = vmatprep.subr.mxu0 0.0
    %1444 = vmatpush1.msra.mxu0 %v1229
    %1445 = vmatprep.subr.mxu0 0.0
    %1446 = vmatpush1.msra.mxu0 %v1224
    %1447 = vmatprep.subr.mxu0 0.0
    %1448 = vmatpush1.msra.mxu0 %v1219
    %1449 = vmatprep.subr.mxu0 0.0
    %1450 = vmatpush1.msra.mxu0 %v1214
    %1451 = vmatprep.subr.mxu0 0.0
    %1452 = vmatpush1.msra.mxu0 %v1209
    %1453 = vmatprep.subr.mxu0 0.0
    %1454 = vmatpush2.msra.mxu0 0.0
    %1455 = vmatprep.subr.mxu0 0.0
    %1456 = vmatpush2.msra.mxu0 0.0
    %1457 = vmatprep.subr.mxu0 0.0
    %1458 = vmatpush2.msra.mxu0 0.0
    %1459 = vmatprep.subr.mxu0 0.0
    %1460 = vmatpush2.msra.mxu0 0.0
    %1461 = vmatprep.subr.mxu0 0.0
    %1462 = vmatpush2.msra.mxu0 0.0
    %1463 = vmatprep.subr.mxu0 0.0
    %1464 = vmatpush2.msra.mxu0 0.0
    %1465 = vmatprep.subr.mxu0 0.0
    %1466 = vmatpush2.msra.mxu0 0.0
    %1467 = vmatprep.subr.mxu0 0.0
    %1468 = vmatpush2.msra.mxu0 0.0
    %1469 = vmatprep.subr.mxu0 0.0
    %1470 = vmatpush2.msra.mxu0 0.0
    %1471 = vmatprep.subr.mxu0 0.0
    %1472 = vmatpush2.msra.mxu0 0.0
    %1473 = vmatprep.subr.mxu0 0.0
    %1474 = vmatpush2.msra.mxu0 0.0
    %1475 = vmatprep.subr.mxu0 0.0
    %1476 = vmatpush2.msra.mxu0 %v1419
    %1477 = vmatprep.subr.mxu0 0.0
    %1478 = vmatpush2.msra.mxu0 %v1304
    %1479 = vmatprep.subr.mxu0 0.0
    %1480 = vmatpush2.msra.mxu0 %v1299
    %1481 = vmatprep.subr.mxu0 0.0
    %1482 = vmatpush2.msra.mxu0 %v1294
    %1483 = vmatprep.subr.mxu0 0.0
    %1484 = vmatpush2.msra.mxu0 %v1289
    %1485 = vmatprep.mubr.f32.mxu0 %v1356
    %1486 = vmatmul.mubr.f32.gmra.mxu0 %v1313
    %v1487 = vpop.f32.mrf.mxu0
    %v1488 = vadd.f32 0.0, %v1487
    %v1489 = vpop.f32.mrf.mxu0
    %1490 = vmatprep.mubr.f32.mxu0 %v1359
    %1491 = vmatmul.mubr.f32.gmra.mxu0 %v1315
    %v1492 = vpop.f32.mrf.mxu0
    %v1493 = vadd.f32 0.0, %v1492
    %v1494 = vpop.f32.mrf.mxu0
    %1495 = vmatprep.mubr.f32.mxu0 %v1362
    %1496 = vmatmul.mubr.f32.gmra.mxu0 %v1317
    %v1497 = vpop.f32.mrf.mxu0
    %v1498 = vadd.f32 0.0, %v1497
    %v1499 = vpop.f32.mrf.mxu0
    %1500 = vmatprep.mubr.f32.mxu0 %v1365
    %1501 = vmatmul.mubr.f32.gmra.mxu0 %v1319
    %v1502 = vpop.f32.mrf.mxu0
    %v1503 = vadd.f32 0.0, %v1502
    %v1504 = vpop.f32.mrf.mxu0
    %1505 = vmatprep.mubr.f32.mxu0 %v1368
    %1506 = vmatmul.mubr.f32.gmra.mxu0 %v1321
    %v1507 = vpop.f32.mrf.mxu0
    %v1508 = vadd.f32 0.0, %v1507
    %v1509 = vpop.f32.mrf.mxu0
    %1510 = vmatprep.mubr.f32.mxu0 %v1371
    %1511 = vmatmul.mubr.f32.gmra.mxu0 %v1323
    %v1512 = vpop.f32.mrf.mxu0
    %v1513 = vadd.f32 0.0, %v1512
    %v1514 = vpop.f32.mrf.mxu0
    %1515 = vmatprep.mubr.f32.mxu0 %v1374
    %1516 = vmatmul.mubr.f32.gmra.mxu0 %v1325
    %v1517 = vpop.f32.mrf.mxu0
    %v1518 = vadd.f32 0.0, %v1517
    %v1519 = vpop.f32.mrf.mxu0
    %1520 = vmatprep.mubr.f32.mxu0 %v1377
    %1521 = vmatmul.mubr.f32.gmra.mxu0 %v1327
    %v1522 = vpop.f32.mrf.mxu0
    %v1523 = vadd.f32 0.0, %v1522
    %v1524 = vpop.f32.mrf.mxu0
    %1525 = vmatprep.mubr.f32.mxu0 %v1380
    %1526 = vmatmul.mubr.f32.gmra.mxu0 %v1329
    %v1527 = vpop.f32.mrf.mxu0
    %v1528 = vadd.f32 0.0, %v1527
    %v1529 = vpop.f32.mrf.mxu0
    %1530 = vmatprep.mubr.f32.mxu0 %v1383
    %1531 = vmatmul.mubr.f32.gmra.mxu0 %v1331
    %v1532 = vpop.f32.mrf.mxu0
    %v1533 = vadd.f32 0.0, %v1532
    %v1534 = vpop.f32.mrf.mxu0
    %1535 = vmatprep.mubr.f32.mxu0 %v1386
    %1536 = vmatmul.mubr.f32.gmra.mxu0 %v1333
    %v1537 = vpop.f32.mrf.mxu0
    %v1538 = vadd.f32 0.0, %v1537
    %v1539 = vpop.f32.mrf.mxu0
    %1540 = vmatprep.mubr.f32.mxu0 %v1389
    %1541 = vmatmul.mubr.f32.gmra.mxu0 %v1335
    %v1542 = vpop.f32.mrf.mxu0
    %v1543 = vadd.f32 0.0, %v1542
    %v1544 = vpop.f32.mrf.mxu0
    %1545 = vmatprep.mubr.f32.mxu0 %v1392
    %1546 = vmatmul.mubr.f32.gmra.mxu0 %v1337
    %v1547 = vpop.f32.mrf.mxu0
    %v1548 = vadd.f32 0.0, %v1547
    %v1549 = vpop.f32.mrf.mxu0
    %1550 = vmatprep.mubr.f32.mxu0 %v1395
    %1551 = vmatmul.mubr.f32.gmra.mxu0 %v1339
    %v1552 = vpop.f32.mrf.mxu0
    %v1553 = vadd.f32 0.0, %v1552
    %v1554 = vpop.f32.mrf.mxu0
    %1555 = vmatprep.mubr.f32.mxu0 %v1398
    %1556 = vmatmul.mubr.f32.gmra.mxu0 %v1341
    %v1557 = vpop.f32.mrf.mxu0
    %v1558 = vadd.f32 0.0, %v1557
    %v1559 = vpop.f32.mrf.mxu0
    %1560 = vmatprep.mubr.f32.mxu0 %v1401
    %1561 = vmatmul.mubr.f32.gmra.mxu0 %v1343
    %v1562 = vpop.f32.mrf.mxu0
    %v1563 = vadd.f32 0.0, %v1562
    %v1564 = vpop.f32.mrf.mxu0
    %1565 = vmatprep.mubr.f32.mxu0 %v1404
    %1566 = vmatmul.mubr.f32.gmra.mxu0 %v1345
    %v1567 = vpop.f32.mrf.mxu0
    %v1568 = vadd.f32 0.0, %v1567
    %v1569 = vpop.f32.mrf.mxu0
    %1570 = vmatprep.mubr.f32.mxu0 %v1407
    %1571 = vmatmul.mubr.f32.gmra.mxu0 %v1347
    %v1572 = vpop.f32.mrf.mxu0
    %v1573 = vadd.f32 0.0, %v1572
    %v1574 = vpop.f32.mrf.mxu0
    %1575 = vmatprep.mubr.f32.mxu0 %v1410
    %1576 = vmatmul.mubr.f32.gmra.mxu0 %v1349
    %v1577 = vpop.f32.mrf.mxu0
    %v1578 = vadd.f32 0.0, %v1577
    %v1579 = vpop.f32.mrf.mxu0
    %1580 = vmatprep.mubr.f32.mxu0 %v1413
    %1581 = vmatmul.mubr.f32.gmra.mxu0 %v1351
    %v1582 = vpop.f32.mrf.mxu0
    %v1583 = vadd.f32 0.0, %v1582
    %v1584 = vpop.f32.mrf.mxu0
    %1585 = vmatprep.mubr.f32.mxu0 %v1416
    %1586 = vmatmul.mubr.f32.gmra.mxu0 %v1353
    %v1587 = vpop.f32.mrf.mxu0
    %v1588 = vadd.f32 0.0, %v1587
    %v1589 = vpop.f32.mrf.mxu0
    %1590 = vdwg.mxu0
    %v1591 = vadd.f32 %v1031, %v1488
    %v1592 = vadd.f32 %v1036, %v1493
    %v1593 = vadd.f32 %v1041, %v1498
    %v1594 = vadd.f32 %v1046, %v1503
    %v1595 = vadd.f32 %v1051, %v1508
    %v1596 = vadd.f32 %v1056, %v1513
    %v1597 = vadd.f32 %v1061, %v1518
    %v1598 = vadd.f32 %v1066, %v1523
    %v1599 = vadd.f32 %v1071, %v1528
    %v1600 = vadd.f32 %v1076, %v1533
    %v1601 = vadd.f32 %v1081, %v1538
    %v1602 = vadd.f32 %v1086, %v1543
    %v1603 = vadd.f32 %v1091, %v1548
    %v1604 = vadd.f32 %v1096, %v1553
    %v1605 = vadd.f32 %v1101, %v1558
    %v1606 = vadd.f32 %v1106, %v1563
    %v1607 = vadd.f32 %v1111, %v1568
    %v1608 = vadd.f32 %v1116, %v1573
    %v1609 = vadd.f32 %v1121, %v1578
    %v1610 = vadd.f32 %v1126, %v1583
    %v1611 = vadd.f32 %v1131, %v1588
    %v1612 = vld [vmem:[#allocation5 + $0xc0] sm:$0xff]
    %v1613 = vld [vmem:[#allocation5 + $0xc8] sm:$0xff]
    %v1614 = vld [vmem:[#allocation5 + $0xd0] sm:$0xff]
    %v1615 = vld [vmem:[#allocation5 + $0xd8] sm:$0xff]
    %v1616 = vld [vmem:[#allocation5 + $0xe0] sm:$0xff]
    %v1617 = vld [vmem:[#allocation5 + $0xe8] sm:$0xff]
    %v1618 = vld [vmem:[#allocation5 + $0xf0] sm:$0xff]
    %v1619 = vld [vmem:[#allocation5 + $0xf8] sm:$0xff]
    %1620 = vmatprep.subr.mxu0 0.0
    %1621 = vmatpush1.msra.mxu0 0.0
    %1622 = vmatprep.subr.mxu0 0.0
    %1623 = vmatpush1.msra.mxu0 0.0
    %1624 = vmatprep.subr.mxu0 0.0
    %1625 = vmatpush1.msra.mxu0 0.0
    %1626 = vmatprep.subr.mxu0 0.0
    %1627 = vmatpush1.msra.mxu0 0.0
    %1628 = vmatprep.subr.mxu0 0.0
    %1629 = vmatpush1.msra.mxu0 0.0
    %1630 = vmatprep.subr.mxu0 0.0
    %1631 = vmatpush1.msra.mxu0 0.0
    %1632 = vmatprep.subr.mxu0 0.0
    %1633 = vmatpush1.msra.mxu0 0.0
    %1634 = vmatprep.subr.mxu0 0.0
    %1635 = vmatpush1.msra.mxu0 0.0
    %1636 = vmatprep.subr.mxu0 0.0
    %1637 = vmatpush1.msra.mxu0 %v1619
    %1638 = vmatprep.subr.mxu0 0.0
    %1639 = vmatpush1.msra.mxu0 %v1618
    %1640 = vmatprep.subr.mxu0 0.0
    %1641 = vmatpush1.msra.mxu0 %v1617
    %1642 = vmatprep.subr.mxu0 0.0
    %1643 = vmatpush1.msra.mxu0 %v1616
    %1644 = vmatprep.subr.mxu0 0.0
    %1645 = vmatpush1.msra.mxu0 %v1615
    %1646 = vmatprep.subr.mxu0 0.0
    %1647 = vmatpush1.msra.mxu0 %v1614
    %1648 = vmatprep.subr.mxu0 0.0
    %1649 = vmatpush1.msra.mxu0 %v1613
    %1650 = vmatprep.subr.mxu0 0.0
    %1651 = vmatpush1.msra.mxu0 %v1612
    %1652 = vmatprep.subr.mxu0 0.0
    %1653 = vmatpush2.msra.mxu0 0.0
    %1654 = vmatprep.subr.mxu0 0.0
    %1655 = vmatpush2.msra.mxu0 0.0
    %1656 = vmatprep.subr.mxu0 0.0
    %1657 = vmatpush2.msra.mxu0 0.0
    %1658 = vmatprep.subr.mxu0 0.0
    %1659 = vmatpush2.msra.mxu0 0.0
    %1660 = vmatprep.subr.mxu0 0.0
    %1661 = vmatpush2.msra.mxu0 0.0
    %1662 = vmatprep.subr.mxu0 0.0
    %1663 = vmatpush2.msra.mxu0 0.0
    %1664 = vmatprep.subr.mxu0 0.0
    %1665 = vmatpush2.msra.mxu0 0.0
    %1666 = vmatprep.subr.mxu0 0.0
    %1667 = vmatpush2.msra.mxu0 0.0
    %1668 = vmatprep.subr.mxu0 0.0
    %1669 = vmatpush2.msra.mxu0 0.0
    %1670 = vmatprep.subr.mxu0 0.0
    %1671 = vmatpush2.msra.mxu0 0.0
    %1672 = vmatprep.subr.mxu0 0.0
    %1673 = vmatpush2.msra.mxu0 0.0
    %1674 = vmatprep.subr.mxu0 0.0
    %1675 = vmatpush2.msra.mxu0 0.0
    %1676 = vmatprep.subr.mxu0 0.0
    %1677 = vmatpush2.msra.mxu0 0.0
    %1678 = vmatprep.subr.mxu0 0.0
    %1679 = vmatpush2.msra.mxu0 0.0
    %1680 = vmatprep.subr.mxu0 0.0
    %1681 = vmatpush2.msra.mxu0 0.0
    %1682 = vmatprep.subr.mxu0 0.0
    %1683 = vmatpush2.msra.mxu0 0.0
    %1684 = vmatprep.mubr.f32.mxu0 0.0
    %1685 = vmatmul.mubr.f32.gmra.mxu0 %v165
    %v1686 = vpop.f32.mrf.mxu0
    %v1687 = vadd.f32 0.0, %v1686
    %v1688 = vpop.f32.mrf.mxu0
    %1689 = vmatprep.mubr.f32.mxu0 0.0
    %1690 = vmatmul.mubr.f32.gmra.mxu0 %v168
    %v1691 = vpop.f32.mrf.mxu0
    %v1692 = vadd.f32 0.0, %v1691
    %v1693 = vpop.f32.mrf.mxu0
    %1694 = vmatprep.mubr.f32.mxu0 0.0
    %1695 = vmatmul.mubr.f32.gmra.mxu0 %v171
    %v1696 = vpop.f32.mrf.mxu0
    %v1697 = vadd.f32 0.0, %v1696
    %v1698 = vpop.f32.mrf.mxu0
    %1699 = vmatprep.mubr.f32.mxu0 0.0
    %1700 = vmatmul.mubr.f32.gmra.mxu0 %v174
    %v1701 = vpop.f32.mrf.mxu0
    %v1702 = vadd.f32 0.0, %v1701
    %v1703 = vpop.f32.mrf.mxu0
    %1704 = vmatprep.mubr.f32.mxu0 0.0
    %1705 = vmatmul.mubr.f32.gmra.mxu0 %v177
    %v1706 = vpop.f32.mrf.mxu0
    %v1707 = vadd.f32 0.0, %v1706
    %v1708 = vpop.f32.mrf.mxu0
    %1709 = vmatprep.mubr.f32.mxu0 0.0
    %1710 = vmatmul.mubr.f32.gmra.mxu0 %v180
    %v1711 = vpop.f32.mrf.mxu0
    %v1712 = vadd.f32 0.0, %v1711
    %v1713 = vpop.f32.mrf.mxu0
    %1714 = vmatprep.mubr.f32.mxu0 0.0
    %1715 = vmatmul.mubr.f32.gmra.mxu0 %v183
    %v1716 = vpop.f32.mrf.mxu0
    %v1717 = vadd.f32 0.0, %v1716
    %v1718 = vpop.f32.mrf.mxu0
    %1719 = vmatprep.mubr.f32.mxu0 0.0
    %1720 = vmatmul.mubr.f32.gmra.mxu0 %v186
    %v1721 = vpop.f32.mrf.mxu0
    %v1722 = vadd.f32 0.0, %v1721
    %v1723 = vpop.f32.mrf.mxu0
    %1724 = vmatprep.mubr.f32.mxu0 0.0
    %1725 = vmatmul.mubr.f32.gmra.mxu0 %v189
    %v1726 = vpop.f32.mrf.mxu0
    %v1727 = vadd.f32 0.0, %v1726
    %v1728 = vpop.f32.mrf.mxu0
    %1729 = vmatprep.mubr.f32.mxu0 0.0
    %1730 = vmatmul.mubr.f32.gmra.mxu0 %v192
    %v1731 = vpop.f32.mrf.mxu0
    %v1732 = vadd.f32 0.0, %v1731
    %v1733 = vpop.f32.mrf.mxu0
    %1734 = vmatprep.mubr.f32.mxu0 0.0
    %1735 = vmatmul.mubr.f32.gmra.mxu0 %v195
    %v1736 = vpop.f32.mrf.mxu0
    %v1737 = vadd.f32 0.0, %v1736
    %v1738 = vpop.f32.mrf.mxu0
    %1739 = vmatprep.mubr.f32.mxu0 0.0
    %1740 = vmatmul.mubr.f32.gmra.mxu0 %v198
    %v1741 = vpop.f32.mrf.mxu0
    %v1742 = vadd.f32 0.0, %v1741
    %v1743 = vpop.f32.mrf.mxu0
    %1744 = vmatprep.mubr.f32.mxu0 0.0
    %1745 = vmatmul.mubr.f32.gmra.mxu0 %v201
    %v1746 = vpop.f32.mrf.mxu0
    %v1747 = vadd.f32 0.0, %v1746
    %v1748 = vpop.f32.mrf.mxu0
    %1749 = vmatprep.mubr.f32.mxu0 0.0
    %1750 = vmatmul.mubr.f32.gmra.mxu0 %v204
    %v1751 = vpop.f32.mrf.mxu0
    %v1752 = vadd.f32 0.0, %v1751
    %v1753 = vpop.f32.mrf.mxu0
    %1754 = vmatprep.mubr.f32.mxu0 0.0
    %1755 = vmatmul.mubr.f32.gmra.mxu0 %v207
    %v1756 = vpop.f32.mrf.mxu0
    %v1757 = vadd.f32 0.0, %v1756
    %v1758 = vpop.f32.mrf.mxu0
    %1759 = vmatprep.mubr.f32.mxu0 0.0
    %1760 = vmatmul.mubr.f32.gmra.mxu0 %v210
    %v1761 = vpop.f32.mrf.mxu0
    %v1762 = vadd.f32 0.0, %v1761
    %v1763 = vpop.f32.mrf.mxu0
    %1764 = vmatprep.mubr.f32.mxu0 0.0
    %1765 = vmatmul.mubr.f32.gmra.mxu0 %v213
    %v1766 = vpop.f32.mrf.mxu0
    %v1767 = vadd.f32 0.0, %v1766
    %v1768 = vpop.f32.mrf.mxu0
    %1769 = vmatprep.mubr.f32.mxu0 0.0
    %1770 = vmatmul.mubr.f32.gmra.mxu0 %v216
    %v1771 = vpop.f32.mrf.mxu0
    %v1772 = vadd.f32 0.0, %v1771
    %v1773 = vpop.f32.mrf.mxu0
    %1774 = vmatprep.mubr.f32.mxu0 0.0
    %1775 = vmatmul.mubr.f32.gmra.mxu0 %v219
    %v1776 = vpop.f32.mrf.mxu0
    %v1777 = vadd.f32 0.0, %v1776
    %v1778 = vpop.f32.mrf.mxu0
    %1779 = vmatprep.mubr.f32.mxu0 0.0
    %1780 = vmatmul.mubr.f32.gmra.mxu0 %v222
    %v1781 = vpop.f32.mrf.mxu0
    %v1782 = vadd.f32 0.0, %v1781
    %v1783 = vpop.f32.mrf.mxu0
    %1784 = vmatprep.mubr.f32.mxu0 0.0
    %1785 = vmatmul.mubr.f32.gmra.mxu0 %v225
    %v1786 = vpop.f32.mrf.mxu0
    %v1787 = vadd.f32 0.0, %v1786
    %v1788 = vpop.f32.mrf.mxu0
    %1789 = vdwg.mxu0
    %s1790 = scalar_lea.vmem [#allocation2], 1008
    %v1791 = vld [vmem:[%s1790] sm:$0xff]
    %v1792 = vld [vmem:[%s1790 + $0x8] sm:$0xff]
    %v1793 = vld [vmem:[%s1790 + $0x10] sm:$0xff]
    %v1794 = vld [vmem:[%s1790 + $0x18] sm:$0xff]
    %v1795 = vld [vmem:[%s1790 + $0x20] sm:$0xff]
    %v1796 = vld [vmem:[%s1790 + $0x28] sm:$0xff]
    %v1797 = vld [vmem:[%s1790 + $0x30] sm:$0xff]
    %v1798 = vld [vmem:[%s1790 + $0x38] sm:$0xff]
    %v1799 = vld [vmem:[%s1790 + $0x40] sm:$0xff]
    %v1800 = vld [vmem:[%s1790 + $0x48] sm:$0xff]
    %v1801 = vld [vmem:[%s1790 + $0x50] sm:$0xff]
    %v1802 = vld [vmem:[%s1790 + $0x58] sm:$0xff]
    %v1803 = vld [vmem:[%s1790 + $0x60] sm:$0xff]
    %v1804 = vld [vmem:[%s1790 + $0x68] sm:$0xff]
    %v1805 = vld [vmem:[%s1790 + $0x70] sm:$0xff]
    %v1806 = vld [vmem:[%s1790 + $0x78] sm:$0xff]
    %v1807 = vld [vmem:[%s1790 + $0x80] sm:$0xff]
    %v1808 = vld [vmem:[%s1790 + $0x88] sm:$0xff]
    %v1809 = vld [vmem:[%s1790 + $0x90] sm:$0xff]
    %v1810 = vld [vmem:[%s1790 + $0x98] sm:$0xff]
    %v1811 = vld [vmem:[%s1790 + $0xa0] sm:$0xff]
    %v1812 = vld [vmem:[%s1790 + $0xa8] sm:$0xff]
    %v1813 = vld [vmem:[%s1790 + $0xb0] sm:$0xff]
    %v1814 = vld [vmem:[%s1790 + $0xb8] sm:$0xff]
    %v1815 = vld [vmem:[%s1790 + $0xc0] sm:$0xff]
    %v1816 = vld [vmem:[%s1790 + $0xc8] sm:$0xff]
    %v1817 = vld [vmem:[%s1790 + $0xd0] sm:$0xff]
    %v1818 = vld [vmem:[%s1790 + $0xd8] sm:$0xff]
    %v1819 = vld [vmem:[%s1790 + $0xe0] sm:$0xff]
    %v1820 = vld [vmem:[%s1790 + $0xe8] sm:$0xff]
    %v1821 = vld [vmem:[%s1790 + $0xf0] sm:$0xff]
    %v1822 = vld [vmem:[%s1790 + $0xf8] sm:$0xff]
    %v1823 = vld [vmem:[%s1790 + $0x100] sm:$0xff]
    %v1824 = vld [vmem:[%s1790 + $0x108] sm:$0xff]
    %v1825 = vld [vmem:[%s1790 + $0x110] sm:$0xff]
    %v1826 = vld [vmem:[%s1790 + $0x118] sm:$0xff]
    %v1827 = vld [vmem:[%s1790 + $0x120] sm:$0xff]
    %v1828 = vld [vmem:[%s1790 + $0x128] sm:$0xff]
    %v1829 = vld [vmem:[%s1790 + $0x130] sm:$0xff]
    %v1830 = vld [vmem:[%s1790 + $0x138] sm:$0xff]
    %v1831 = vld [vmem:[%s1790 + $0x140] sm:$0x3]
    %v1832 = vld [vmem:[%s1790 + $0x148] sm:$0x3]
    %v1834 = vsel %vm660, %v1792, 0
    %v1837 = vsel %vm660, %v1794, 0
    %v1840 = vsel %vm660, %v1796, 0
    %v1843 = vsel %vm660, %v1798, 0
    %v1846 = vsel %vm660, %v1800, 0
    %v1849 = vsel %vm660, %v1802, 0
    %v1852 = vsel %vm660, %v1804, 0
    %v1855 = vsel %vm660, %v1806, 0
    %v1858 = vsel %vm660, %v1808, 0
    %v1861 = vsel %vm660, %v1810, 0
    %v1864 = vsel %vm660, %v1812, 0
    %v1867 = vsel %vm660, %v1814, 0
    %v1870 = vsel %vm660, %v1816, 0
    %v1873 = vsel %vm660, %v1818, 0
    %v1876 = vsel %vm660, %v1820, 0
    %v1879 = vsel %vm660, %v1822, 0
    %v1882 = vsel %vm660, %v1824, 0
    %v1885 = vsel %vm660, %v1826, 0
    %v1888 = vsel %vm660, %v1828, 0
    %v1891 = vsel %vm660, %v1830, 0
    %v1894 = vsel %vm660, %v1832, 0
    %v1897 = vsel %vm724, %v1787, 0
    %1899 = vmatprep.subr.mxu0 0.0
    %1900 = vmatpush1.msra.mxu0 %v1762
    %1901 = vmatprep.subr.mxu0 0.0
    %1902 = vmatpush1.msra.mxu0 %v1757
    %1903 = vmatprep.subr.mxu0 0.0
    %1904 = vmatpush1.msra.mxu0 %v1752
    %1905 = vmatprep.subr.mxu0 0.0
    %1906 = vmatpush1.msra.mxu0 %v1747
    %1907 = vmatprep.subr.mxu0 0.0
    %1908 = vmatpush1.msra.mxu0 %v1742
    %1909 = vmatprep.subr.mxu0 0.0
    %1910 = vmatpush1.msra.mxu0 %v1737
    %1911 = vmatprep.subr.mxu0 0.0
    %1912 = vmatpush1.msra.mxu0 %v1732
    %1913 = vmatprep.subr.mxu0 0.0
    %1914 = vmatpush1.msra.mxu0 %v1727
    %1915 = vmatprep.subr.mxu0 0.0
    %1916 = vmatpush1.msra.mxu0 %v1722
    %1917 = vmatprep.subr.mxu0 0.0
    %1918 = vmatpush1.msra.mxu0 %v1717
    %1919 = vmatprep.subr.mxu0 0.0
    %1920 = vmatpush1.msra.mxu0 %v1712
    %1921 = vmatprep.subr.mxu0 0.0
    %1922 = vmatpush1.msra.mxu0 %v1707
    %1923 = vmatprep.subr.mxu0 0.0
    %1924 = vmatpush1.msra.mxu0 %v1702
    %1925 = vmatprep.subr.mxu0 0.0
    %1926 = vmatpush1.msra.mxu0 %v1697
    %1927 = vmatprep.subr.mxu0 0.0
    %1928 = vmatpush1.msra.mxu0 %v1692
    %1929 = vmatprep.subr.mxu0 0.0
    %1930 = vmatpush1.msra.mxu0 %v1687
    %1931 = vmatprep.subr.mxu0 0.0
    %1932 = vmatpush2.msra.mxu0 0.0
    %1933 = vmatprep.subr.mxu0 0.0
    %1934 = vmatpush2.msra.mxu0 0.0
    %1935 = vmatprep.subr.mxu0 0.0
    %1936 = vmatpush2.msra.mxu0 0.0
    %1937 = vmatprep.subr.mxu0 0.0
    %1938 = vmatpush2.msra.mxu0 0.0
    %1939 = vmatprep.subr.mxu0 0.0
    %1940 = vmatpush2.msra.mxu0 0.0
    %1941 = vmatprep.subr.mxu0 0.0
    %1942 = vmatpush2.msra.mxu0 0.0
    %1943 = vmatprep.subr.mxu0 0.0
    %1944 = vmatpush2.msra.mxu0 0.0
    %1945 = vmatprep.subr.mxu0 0.0
    %1946 = vmatpush2.msra.mxu0 0.0
    %1947 = vmatprep.subr.mxu0 0.0
    %1948 = vmatpush2.msra.mxu0 0.0
    %1949 = vmatprep.subr.mxu0 0.0
    %1950 = vmatpush2.msra.mxu0 0.0
    %1951 = vmatprep.subr.mxu0 0.0
    %1952 = vmatpush2.msra.mxu0 0.0
    %1953 = vmatprep.subr.mxu0 0.0
    %1954 = vmatpush2.msra.mxu0 %v1897
    %1955 = vmatprep.subr.mxu0 0.0
    %1956 = vmatpush2.msra.mxu0 %v1782
    %1957 = vmatprep.subr.mxu0 0.0
    %1958 = vmatpush2.msra.mxu0 %v1777
    %1959 = vmatprep.subr.mxu0 0.0
    %1960 = vmatpush2.msra.mxu0 %v1772
    %1961 = vmatprep.subr.mxu0 0.0
    %1962 = vmatpush2.msra.mxu0 %v1767
    %1963 = vmatprep.mubr.f32.mxu0 %v1834
    %1964 = vmatmul.mubr.f32.gmra.mxu0 %v1791
    %v1965 = vpop.f32.mrf.mxu0
    %v1966 = vadd.f32 0.0, %v1965
    %v1967 = vpop.f32.mrf.mxu0
    %1968 = vmatprep.mubr.f32.mxu0 %v1837
    %1969 = vmatmul.mubr.f32.gmra.mxu0 %v1793
    %v1970 = vpop.f32.mrf.mxu0
    %v1971 = vadd.f32 0.0, %v1970
    %v1972 = vpop.f32.mrf.mxu0
    %1973 = vmatprep.mubr.f32.mxu0 %v1840
    %1974 = vmatmul.mubr.f32.gmra.mxu0 %v1795
    %v1975 = vpop.f32.mrf.mxu0
    %v1976 = vadd.f32 0.0, %v1975
    %v1977 = vpop.f32.mrf.mxu0
    %1978 = vmatprep.mubr.f32.mxu0 %v1843
    %1979 = vmatmul.mubr.f32.gmra.mxu0 %v1797
    %v1980 = vpop.f32.mrf.mxu0
    %v1981 = vadd.f32 0.0, %v1980
    %v1982 = vpop.f32.mrf.mxu0
    %1983 = vmatprep.mubr.f32.mxu0 %v1846
    %1984 = vmatmul.mubr.f32.gmra.mxu0 %v1799
    %v1985 = vpop.f32.mrf.mxu0
    %v1986 = vadd.f32 0.0, %v1985
    %v1987 = vpop.f32.mrf.mxu0
    %1988 = vmatprep.mubr.f32.mxu0 %v1849
    %1989 = vmatmul.mubr.f32.gmra.mxu0 %v1801
    %v1990 = vpop.f32.mrf.mxu0
    %v1991 = vadd.f32 0.0, %v1990
    %v1992 = vpop.f32.mrf.mxu0
    %1993 = vmatprep.mubr.f32.mxu0 %v1852
    %1994 = vmatmul.mubr.f32.gmra.mxu0 %v1803
    %v1995 = vpop.f32.mrf.mxu0
    %v1996 = vadd.f32 0.0, %v1995
    %v1997 = vpop.f32.mrf.mxu0
    %1998 = vmatprep.mubr.f32.mxu0 %v1855
    %1999 = vmatmul.mubr.f32.gmra.mxu0 %v1805
    %v2000 = vpop.f32.mrf.mxu0
    %v2001 = vadd.f32 0.0, %v2000
    %v2002 = vpop.f32.mrf.mxu0
    %2003 = vmatprep.mubr.f32.mxu0 %v1858
    %2004 = vmatmul.mubr.f32.gmra.mxu0 %v1807
    %v2005 = vpop.f32.mrf.mxu0
    %v2006 = vadd.f32 0.0, %v2005
    %v2007 = vpop.f32.mrf.mxu0
    %2008 = vmatprep.mubr.f32.mxu0 %v1861
    %2009 = vmatmul.mubr.f32.gmra.mxu0 %v1809
    %v2010 = vpop.f32.mrf.mxu0
    %v2011 = vadd.f32 0.0, %v2010
    %v2012 = vpop.f32.mrf.mxu0
    %2013 = vmatprep.mubr.f32.mxu0 %v1864
    %2014 = vmatmul.mubr.f32.gmra.mxu0 %v1811
    %v2015 = vpop.f32.mrf.mxu0
    %v2016 = vadd.f32 0.0, %v2015
    %v2017 = vpop.f32.mrf.mxu0
    %2018 = vmatprep.mubr.f32.mxu0 %v1867
    %2019 = vmatmul.mubr.f32.gmra.mxu0 %v1813
    %v2020 = vpop.f32.mrf.mxu0
    %v2021 = vadd.f32 0.0, %v2020
    %v2022 = vpop.f32.mrf.mxu0
    %2023 = vmatprep.mubr.f32.mxu0 %v1870
    %2024 = vmatmul.mubr.f32.gmra.mxu0 %v1815
    %v2025 = vpop.f32.mrf.mxu0
    %v2026 = vadd.f32 0.0, %v2025
    %v2027 = vpop.f32.mrf.mxu0
    %2028 = vmatprep.mubr.f32.mxu0 %v1873
    %2029 = vmatmul.mubr.f32.gmra.mxu0 %v1817
    %v2030 = vpop.f32.mrf.mxu0
    %v2031 = vadd.f32 0.0, %v2030
    %v2032 = vpop.f32.mrf.mxu0
    %2033 = vmatprep.mubr.f32.mxu0 %v1876
    %2034 = vmatmul.mubr.f32.gmra.mxu0 %v1819
    %v2035 = vpop.f32.mrf.mxu0
    %v2036 = vadd.f32 0.0, %v2035
    %v2037 = vpop.f32.mrf.mxu0
    %2038 = vmatprep.mubr.f32.mxu0 %v1879
    %2039 = vmatmul.mubr.f32.gmra.mxu0 %v1821
    %v2040 = vpop.f32.mrf.mxu0
    %v2041 = vadd.f32 0.0, %v2040
    %v2042 = vpop.f32.mrf.mxu0
    %2043 = vmatprep.mubr.f32.mxu0 %v1882
    %2044 = vmatmul.mubr.f32.gmra.mxu0 %v1823
    %v2045 = vpop.f32.mrf.mxu0
    %v2046 = vadd.f32 0.0, %v2045
    %v2047 = vpop.f32.mrf.mxu0
    %2048 = vmatprep.mubr.f32.mxu0 %v1885
    %2049 = vmatmul.mubr.f32.gmra.mxu0 %v1825
    %v2050 = vpop.f32.mrf.mxu0
    %v2051 = vadd.f32 0.0, %v2050
    %v2052 = vpop.f32.mrf.mxu0
    %2053 = vmatprep.mubr.f32.mxu0 %v1888
    %2054 = vmatmul.mubr.f32.gmra.mxu0 %v1827
    %v2055 = vpop.f32.mrf.mxu0
    %v2056 = vadd.f32 0.0, %v2055
    %v2057 = vpop.f32.mrf.mxu0
    %2058 = vmatprep.mubr.f32.mxu0 %v1891
    %2059 = vmatmul.mubr.f32.gmra.mxu0 %v1829
    %v2060 = vpop.f32.mrf.mxu0
    %v2061 = vadd.f32 0.0, %v2060
    %v2062 = vpop.f32.mrf.mxu0
    %2063 = vmatprep.mubr.f32.mxu0 %v1894
    %2064 = vmatmul.mubr.f32.gmra.mxu0 %v1831
    %v2065 = vpop.f32.mrf.mxu0
    %v2066 = vadd.f32 0.0, %v2065
    %v2067 = vpop.f32.mrf.mxu0
    %2068 = vdwg.mxu0
    %v2069 = vadd.f32 %v1591, %v1966
    %v2070 = vadd.f32 %v1592, %v1971
    %v2071 = vadd.f32 %v1593, %v1976
    %v2072 = vadd.f32 %v1594, %v1981
    %v2073 = vadd.f32 %v1595, %v1986
    %v2074 = vadd.f32 %v1596, %v1991
    %v2075 = vadd.f32 %v1597, %v1996
    %v2076 = vadd.f32 %v1598, %v2001
    %v2077 = vadd.f32 %v1599, %v2006
    %v2078 = vadd.f32 %v1600, %v2011
    %v2079 = vadd.f32 %v1601, %v2016
    %v2080 = vadd.f32 %v1602, %v2021
    %v2081 = vadd.f32 %v1603, %v2026
    %v2082 = vadd.f32 %v1604, %v2031
    %v2083 = vadd.f32 %v1605, %v2036
    %v2084 = vadd.f32 %v1606, %v2041
    %v2085 = vadd.f32 %v1607, %v2046
    %v2086 = vadd.f32 %v1608, %v2051
    %v2087 = vadd.f32 %v1609, %v2056
    %v2088 = vadd.f32 %v1610, %v2061
    %v2089 = vadd.f32 %v1611, %v2066
    %v2090 = vld [vmem:[#allocation5 + $0x100] sm:$0xff]
    %v2091 = vld [vmem:[#allocation5 + $0x108] sm:$0xff]
    %v2092 = vld [vmem:[#allocation5 + $0x110] sm:$0xff]
    %v2093 = vld [vmem:[#allocation5 + $0x118] sm:$0xff]
    %v2094 = vld [vmem:[#allocation5 + $0x120] sm:$0xff]
    %v2095 = vld [vmem:[#allocation5 + $0x128] sm:$0xff]
    %v2096 = vld [vmem:[#allocation5 + $0x130] sm:$0xff]
    %v2097 = vld [vmem:[#allocation5 + $0x138] sm:$0xff]
    %2098 = vmatprep.subr.mxu0 0.0
    %2099 = vmatpush1.msra.mxu0 0.0
    %2100 = vmatprep.subr.mxu0 0.0
    %2101 = vmatpush1.msra.mxu0 0.0
    %2102 = vmatprep.subr.mxu0 0.0
    %2103 = vmatpush1.msra.mxu0 0.0
    %2104 = vmatprep.subr.mxu0 0.0
    %2105 = vmatpush1.msra.mxu0 0.0
    %2106 = vmatprep.subr.mxu0 0.0
    %2107 = vmatpush1.msra.mxu0 0.0
    %2108 = vmatprep.subr.mxu0 0.0
    %2109 = vmatpush1.msra.mxu0 0.0
    %2110 = vmatprep.subr.mxu0 0.0
    %2111 = vmatpush1.msra.mxu0 0.0
    %2112 = vmatprep.subr.mxu0 0.0
    %2113 = vmatpush1.msra.mxu0 0.0
    %2114 = vmatprep.subr.mxu0 0.0
    %2115 = vmatpush1.msra.mxu0 %v2097
    %2116 = vmatprep.subr.mxu0 0.0
    %2117 = vmatpush1.msra.mxu0 %v2096
    %2118 = vmatprep.subr.mxu0 0.0
    %2119 = vmatpush1.msra.mxu0 %v2095
    %2120 = vmatprep.subr.mxu0 0.0
    %2121 = vmatpush1.msra.mxu0 %v2094
    %2122 = vmatprep.subr.mxu0 0.0
    %2123 = vmatpush1.msra.mxu0 %v2093
    %2124 = vmatprep.subr.mxu0 0.0
    %2125 = vmatpush1.msra.mxu0 %v2092
    %2126 = vmatprep.subr.mxu0 0.0
    %2127 = vmatpush1.msra.mxu0 %v2091
    %2128 = vmatprep.subr.mxu0 0.0
    %2129 = vmatpush1.msra.mxu0 %v2090
    %2130 = vmatprep.subr.mxu0 0.0
    %2131 = vmatpush2.msra.mxu0 0.0
    %2132 = vmatprep.subr.mxu0 0.0
    %2133 = vmatpush2.msra.mxu0 0.0
    %2134 = vmatprep.subr.mxu0 0.0
    %2135 = vmatpush2.msra.mxu0 0.0
    %2136 = vmatprep.subr.mxu0 0.0
    %2137 = vmatpush2.msra.mxu0 0.0
    %2138 = vmatprep.subr.mxu0 0.0
    %2139 = vmatpush2.msra.mxu0 0.0
    %2140 = vmatprep.subr.mxu0 0.0
    %2141 = vmatpush2.msra.mxu0 0.0
    %2142 = vmatprep.subr.mxu0 0.0
    %2143 = vmatpush2.msra.mxu0 0.0
    %2144 = vmatprep.subr.mxu0 0.0
    %2145 = vmatpush2.msra.mxu0 0.0
    %2146 = vmatprep.subr.mxu0 0.0
    %2147 = vmatpush2.msra.mxu0 0.0
    %2148 = vmatprep.subr.mxu0 0.0
    %2149 = vmatpush2.msra.mxu0 0.0
    %2150 = vmatprep.subr.mxu0 0.0
    %2151 = vmatpush2.msra.mxu0 0.0
    %2152 = vmatprep.subr.mxu0 0.0
    %2153 = vmatpush2.msra.mxu0 0.0
    %2154 = vmatprep.subr.mxu0 0.0
    %2155 = vmatpush2.msra.mxu0 0.0
    %2156 = vmatprep.subr.mxu0 0.0
    %2157 = vmatpush2.msra.mxu0 0.0
    %2158 = vmatprep.subr.mxu0 0.0
    %2159 = vmatpush2.msra.mxu0 0.0
    %2160 = vmatprep.subr.mxu0 0.0
    %2161 = vmatpush2.msra.mxu0 0.0
    %2162 = vmatprep.mubr.f32.mxu0 0.0
    %2163 = vmatmul.mubr.f32.gmra.mxu0 %v165
    %v2164 = vpop.f32.mrf.mxu0
    %v2165 = vadd.f32 0.0, %v2164
    %v2166 = vpop.f32.mrf.mxu0
    %2167 = vmatprep.mubr.f32.mxu0 0.0
    %2168 = vmatmul.mubr.f32.gmra.mxu0 %v168
    %v2169 = vpop.f32.mrf.mxu0
    %v2170 = vadd.f32 0.0, %v2169
    %v2171 = vpop.f32.mrf.mxu0
    %2172 = vmatprep.mubr.f32.mxu0 0.0
    %2173 = vmatmul.mubr.f32.gmra.mxu0 %v171
    %v2174 = vpop.f32.mrf.mxu0
    %v2175 = vadd.f32 0.0, %v2174
    %v2176 = vpop.f32.mrf.mxu0
    %2177 = vmatprep.mubr.f32.mxu0 0.0
    %2178 = vmatmul.mubr.f32.gmra.mxu0 %v174
    %v2179 = vpop.f32.mrf.mxu0
    %v2180 = vadd.f32 0.0, %v2179
    %v2181 = vpop.f32.mrf.mxu0
    %2182 = vmatprep.mubr.f32.mxu0 0.0
    %2183 = vmatmul.mubr.f32.gmra.mxu0 %v177
    %v2184 = vpop.f32.mrf.mxu0
    %v2185 = vadd.f32 0.0, %v2184
    %v2186 = vpop.f32.mrf.mxu0
    %2187 = vmatprep.mubr.f32.mxu0 0.0
    %2188 = vmatmul.mubr.f32.gmra.mxu0 %v180
    %v2189 = vpop.f32.mrf.mxu0
    %v2190 = vadd.f32 0.0, %v2189
    %v2191 = vpop.f32.mrf.mxu0
    %2192 = vmatprep.mubr.f32.mxu0 0.0
    %2193 = vmatmul.mubr.f32.gmra.mxu0 %v183
    %v2194 = vpop.f32.mrf.mxu0
    %v2195 = vadd.f32 0.0, %v2194
    %v2196 = vpop.f32.mrf.mxu0
    %2197 = vmatprep.mubr.f32.mxu0 0.0
    %2198 = vmatmul.mubr.f32.gmra.mxu0 %v186
    %v2199 = vpop.f32.mrf.mxu0
    %v2200 = vadd.f32 0.0, %v2199
    %v2201 = vpop.f32.mrf.mxu0
    %2202 = vmatprep.mubr.f32.mxu0 0.0
    %2203 = vmatmul.mubr.f32.gmra.mxu0 %v189
    %v2204 = vpop.f32.mrf.mxu0
    %v2205 = vadd.f32 0.0, %v2204
    %v2206 = vpop.f32.mrf.mxu0
    %2207 = vmatprep.mubr.f32.mxu0 0.0
    %2208 = vmatmul.mubr.f32.gmra.mxu0 %v192
    %v2209 = vpop.f32.mrf.mxu0
    %v2210 = vadd.f32 0.0, %v2209
    %v2211 = vpop.f32.mrf.mxu0
    %2212 = vmatprep.mubr.f32.mxu0 0.0
    %2213 = vmatmul.mubr.f32.gmra.mxu0 %v195
    %v2214 = vpop.f32.mrf.mxu0
    %v2215 = vadd.f32 0.0, %v2214
    %v2216 = vpop.f32.mrf.mxu0
    %2217 = vmatprep.mubr.f32.mxu0 0.0
    %2218 = vmatmul.mubr.f32.gmra.mxu0 %v198
    %v2219 = vpop.f32.mrf.mxu0
    %v2220 = vadd.f32 0.0, %v2219
    %v2221 = vpop.f32.mrf.mxu0
    %2222 = vmatprep.mubr.f32.mxu0 0.0
    %2223 = vmatmul.mubr.f32.gmra.mxu0 %v201
    %v2224 = vpop.f32.mrf.mxu0
    %v2225 = vadd.f32 0.0, %v2224
    %v2226 = vpop.f32.mrf.mxu0
    %2227 = vmatprep.mubr.f32.mxu0 0.0
    %2228 = vmatmul.mubr.f32.gmra.mxu0 %v204
    %v2229 = vpop.f32.mrf.mxu0
    %v2230 = vadd.f32 0.0, %v2229
    %v2231 = vpop.f32.mrf.mxu0
    %2232 = vmatprep.mubr.f32.mxu0 0.0
    %2233 = vmatmul.mubr.f32.gmra.mxu0 %v207
    %v2234 = vpop.f32.mrf.mxu0
    %v2235 = vadd.f32 0.0, %v2234
    %v2236 = vpop.f32.mrf.mxu0
    %2237 = vmatprep.mubr.f32.mxu0 0.0
    %2238 = vmatmul.mubr.f32.gmra.mxu0 %v210
    %v2239 = vpop.f32.mrf.mxu0
    %v2240 = vadd.f32 0.0, %v2239
    %v2241 = vpop.f32.mrf.mxu0
    %2242 = vmatprep.mubr.f32.mxu0 0.0
    %2243 = vmatmul.mubr.f32.gmra.mxu0 %v213
    %v2244 = vpop.f32.mrf.mxu0
    %v2245 = vadd.f32 0.0, %v2244
    %v2246 = vpop.f32.mrf.mxu0
    %2247 = vmatprep.mubr.f32.mxu0 0.0
    %2248 = vmatmul.mubr.f32.gmra.mxu0 %v216
    %v2249 = vpop.f32.mrf.mxu0
    %v2250 = vadd.f32 0.0, %v2249
    %v2251 = vpop.f32.mrf.mxu0
    %2252 = vmatprep.mubr.f32.mxu0 0.0
    %2253 = vmatmul.mubr.f32.gmra.mxu0 %v219
    %v2254 = vpop.f32.mrf.mxu0
    %v2255 = vadd.f32 0.0, %v2254
    %v2256 = vpop.f32.mrf.mxu0
    %2257 = vmatprep.mubr.f32.mxu0 0.0
    %2258 = vmatmul.mubr.f32.gmra.mxu0 %v222
    %v2259 = vpop.f32.mrf.mxu0
    %v2260 = vadd.f32 0.0, %v2259
    %v2261 = vpop.f32.mrf.mxu0
    %2262 = vmatprep.mubr.f32.mxu0 0.0
    %2263 = vmatmul.mubr.f32.gmra.mxu0 %v225
    %v2264 = vpop.f32.mrf.mxu0
    %v2265 = vadd.f32 0.0, %v2264
    %v2266 = vpop.f32.mrf.mxu0
    %2267 = vdwg.mxu0
    %s2268 = scalar_lea.vmem [#allocation2], 1344
    %v2269 = vld [vmem:[%s2268] sm:$0xff]
    %v2270 = vld [vmem:[%s2268 + $0x8] sm:$0xff]
    %v2271 = vld [vmem:[%s2268 + $0x10] sm:$0xff]
    %v2272 = vld [vmem:[%s2268 + $0x18] sm:$0xff]
    %v2273 = vld [vmem:[%s2268 + $0x20] sm:$0xff]
    %v2274 = vld [vmem:[%s2268 + $0x28] sm:$0xff]
    %v2275 = vld [vmem:[%s2268 + $0x30] sm:$0xff]
    %v2276 = vld [vmem:[%s2268 + $0x38] sm:$0xff]
    %v2277 = vld [vmem:[%s2268 + $0x40] sm:$0xff]
    %v2278 = vld [vmem:[%s2268 + $0x48] sm:$0xff]
    %v2279 = vld [vmem:[%s2268 + $0x50] sm:$0xff]
    %v2280 = vld [vmem:[%s2268 + $0x58] sm:$0xff]
    %v2281 = vld [vmem:[%s2268 + $0x60] sm:$0xff]
    %v2282 = vld [vmem:[%s2268 + $0x68] sm:$0xff]
    %v2283 = vld [vmem:[%s2268 + $0x70] sm:$0xff]
    %v2284 = vld [vmem:[%s2268 + $0x78] sm:$0xff]
    %v2285 = vld [vmem:[%s2268 + $0x80] sm:$0xff]
    %v2286 = vld [vmem:[%s2268 + $0x88] sm:$0xff]
    %v2287 = vld [vmem:[%s2268 + $0x90] sm:$0xff]
    %v2288 = vld [vmem:[%s2268 + $0x98] sm:$0xff]
    %v2289 = vld [vmem:[%s2268 + $0xa0] sm:$0xff]
    %v2290 = vld [vmem:[%s2268 + $0xa8] sm:$0xff]
    %v2291 = vld [vmem:[%s2268 + $0xb0] sm:$0xff]
    %v2292 = vld [vmem:[%s2268 + $0xb8] sm:$0xff]
    %v2293 = vld [vmem:[%s2268 + $0xc0] sm:$0xff]
    %v2294 = vld [vmem:[%s2268 + $0xc8] sm:$0xff]
    %v2295 = vld [vmem:[%s2268 + $0xd0] sm:$0xff]
    %v2296 = vld [vmem:[%s2268 + $0xd8] sm:$0xff]
    %v2297 = vld [vmem:[%s2268 + $0xe0] sm:$0xff]
    %v2298 = vld [vmem:[%s2268 + $0xe8] sm:$0xff]
    %v2299 = vld [vmem:[%s2268 + $0xf0] sm:$0xff]
    %v2300 = vld [vmem:[%s2268 + $0xf8] sm:$0xff]
    %v2301 = vld [vmem:[%s2268 + $0x100] sm:$0xff]
    %v2302 = vld [vmem:[%s2268 + $0x108] sm:$0xff]
    %v2303 = vld [vmem:[%s2268 + $0x110] sm:$0xff]
    %v2304 = vld [vmem:[%s2268 + $0x118] sm:$0xff]
    %v2305 = vld [vmem:[%s2268 + $0x120] sm:$0xff]
    %v2306 = vld [vmem:[%s2268 + $0x128] sm:$0xff]
    %v2307 = vld [vmem:[%s2268 + $0x130] sm:$0xff]
    %v2308 = vld [vmem:[%s2268 + $0x138] sm:$0xff]
    %v2309 = vld [vmem:[%s2268 + $0x140] sm:$0x3]
    %v2310 = vld [vmem:[%s2268 + $0x148] sm:$0x3]
    %v2312 = vsel %vm660, %v2270, 0
    %v2315 = vsel %vm660, %v2272, 0
    %v2318 = vsel %vm660, %v2274, 0
    %v2321 = vsel %vm660, %v2276, 0
    %v2324 = vsel %vm660, %v2278, 0
    %v2327 = vsel %vm660, %v2280, 0
    %v2330 = vsel %vm660, %v2282, 0
    %v2333 = vsel %vm660, %v2284, 0
    %v2336 = vsel %vm660, %v2286, 0
    %v2339 = vsel %vm660, %v2288, 0
    %v2342 = vsel %vm660, %v2290, 0
    %v2345 = vsel %vm660, %v2292, 0
    %v2348 = vsel %vm660, %v2294, 0
    %v2351 = vsel %vm660, %v2296, 0
    %v2354 = vsel %vm660, %v2298, 0
    %v2357 = vsel %vm660, %v2300, 0
    %v2360 = vsel %vm660, %v2302, 0
    %v2363 = vsel %vm660, %v2304, 0
    %v2366 = vsel %vm660, %v2306, 0
    %v2369 = vsel %vm660, %v2308, 0
    %v2372 = vsel %vm660, %v2310, 0
    %v2375 = vsel %vm724, %v2265, 0
    %2377 = vmatprep.subr.mxu0 0.0
    %2378 = vmatpush1.msra.mxu0 %v2240
    %2379 = vmatprep.subr.mxu0 0.0
    %2380 = vmatpush1.msra.mxu0 %v2235
    %2381 = vmatprep.subr.mxu0 0.0
    %2382 = vmatpush1.msra.mxu0 %v2230
    %2383 = vmatprep.subr.mxu0 0.0
    %2384 = vmatpush1.msra.mxu0 %v2225
    %2385 = vmatprep.subr.mxu0 0.0
    %2386 = vmatpush1.msra.mxu0 %v2220
    %2387 = vmatprep.subr.mxu0 0.0
    %2388 = vmatpush1.msra.mxu0 %v2215
    %2389 = vmatprep.subr.mxu0 0.0
    %2390 = vmatpush1.msra.mxu0 %v2210
    %2391 = vmatprep.subr.mxu0 0.0
    %2392 = vmatpush1.msra.mxu0 %v2205
    %2393 = vmatprep.subr.mxu0 0.0
    %2394 = vmatpush1.msra.mxu0 %v2200
    %2395 = vmatprep.subr.mxu0 0.0
    %2396 = vmatpush1.msra.mxu0 %v2195
    %2397 = vmatprep.subr.mxu0 0.0
    %2398 = vmatpush1.msra.mxu0 %v2190
    %2399 = vmatprep.subr.mxu0 0.0
    %2400 = vmatpush1.msra.mxu0 %v2185
    %2401 = vmatprep.subr.mxu0 0.0
    %2402 = vmatpush1.msra.mxu0 %v2180
    %2403 = vmatprep.subr.mxu0 0.0
    %2404 = vmatpush1.msra.mxu0 %v2175
    %2405 = vmatprep.subr.mxu0 0.0
    %2406 = vmatpush1.msra.mxu0 %v2170
    %2407 = vmatprep.subr.mxu0 0.0
    %2408 = vmatpush1.msra.mxu0 %v2165
    %2409 = vmatprep.subr.mxu0 0.0
    %2410 = vmatpush2.msra.mxu0 0.0
    %2411 = vmatprep.subr.mxu0 0.0
    %2412 = vmatpush2.msra.mxu0 0.0
    %2413 = vmatprep.subr.mxu0 0.0
    %2414 = vmatpush2.msra.mxu0 0.0
    %2415 = vmatprep.subr.mxu0 0.0
    %2416 = vmatpush2.msra.mxu0 0.0
    %2417 = vmatprep.subr.mxu0 0.0
    %2418 = vmatpush2.msra.mxu0 0.0
    %2419 = vmatprep.subr.mxu0 0.0
    %2420 = vmatpush2.msra.mxu0 0.0
    %2421 = vmatprep.subr.mxu0 0.0
    %2422 = vmatpush2.msra.mxu0 0.0
    %2423 = vmatprep.subr.mxu0 0.0
    %2424 = vmatpush2.msra.mxu0 0.0
    %2425 = vmatprep.subr.mxu0 0.0
    %2426 = vmatpush2.msra.mxu0 0.0
    %2427 = vmatprep.subr.mxu0 0.0
    %2428 = vmatpush2.msra.mxu0 0.0
    %2429 = vmatprep.subr.mxu0 0.0
    %2430 = vmatpush2.msra.mxu0 0.0
    %2431 = vmatprep.subr.mxu0 0.0
    %2432 = vmatpush2.msra.mxu0 %v2375
    %2433 = vmatprep.subr.mxu0 0.0
    %2434 = vmatpush2.msra.mxu0 %v2260
    %2435 = vmatprep.subr.mxu0 0.0
    %2436 = vmatpush2.msra.mxu0 %v2255
    %2437 = vmatprep.subr.mxu0 0.0
    %2438 = vmatpush2.msra.mxu0 %v2250
    %2439 = vmatprep.subr.mxu0 0.0
    %2440 = vmatpush2.msra.mxu0 %v2245
    %2441 = vmatprep.mubr.f32.mxu0 %v2312
    %2442 = vmatmul.mubr.f32.gmra.mxu0 %v2269
    %v2443 = vpop.f32.mrf.mxu0
    %v2444 = vadd.f32 0.0, %v2443
    %v2445 = vpop.f32.mrf.mxu0
    %2446 = vmatprep.mubr.f32.mxu0 %v2315
    %2447 = vmatmul.mubr.f32.gmra.mxu0 %v2271
    %v2448 = vpop.f32.mrf.mxu0
    %v2449 = vadd.f32 0.0, %v2448
    %v2450 = vpop.f32.mrf.mxu0
    %2451 = vmatprep.mubr.f32.mxu0 %v2318
    %2452 = vmatmul.mubr.f32.gmra.mxu0 %v2273
    %v2453 = vpop.f32.mrf.mxu0
    %v2454 = vadd.f32 0.0, %v2453
    %v2455 = vpop.f32.mrf.mxu0
    %2456 = vmatprep.mubr.f32.mxu0 %v2321
    %2457 = vmatmul.mubr.f32.gmra.mxu0 %v2275
    %v2458 = vpop.f32.mrf.mxu0
    %v2459 = vadd.f32 0.0, %v2458
    %v2460 = vpop.f32.mrf.mxu0
    %2461 = vmatprep.mubr.f32.mxu0 %v2324
    %2462 = vmatmul.mubr.f32.gmra.mxu0 %v2277
    %v2463 = vpop.f32.mrf.mxu0
    %v2464 = vadd.f32 0.0, %v2463
    %v2465 = vpop.f32.mrf.mxu0
    %2466 = vmatprep.mubr.f32.mxu0 %v2327
    %2467 = vmatmul.mubr.f32.gmra.mxu0 %v2279
    %v2468 = vpop.f32.mrf.mxu0
    %v2469 = vadd.f32 0.0, %v2468
    %v2470 = vpop.f32.mrf.mxu0
    %2471 = vmatprep.mubr.f32.mxu0 %v2330
    %2472 = vmatmul.mubr.f32.gmra.mxu0 %v2281
    %v2473 = vpop.f32.mrf.mxu0
    %v2474 = vadd.f32 0.0, %v2473
    %v2475 = vpop.f32.mrf.mxu0
    %2476 = vmatprep.mubr.f32.mxu0 %v2333
    %2477 = vmatmul.mubr.f32.gmra.mxu0 %v2283
    %v2478 = vpop.f32.mrf.mxu0
    %v2479 = vadd.f32 0.0, %v2478
    %v2480 = vpop.f32.mrf.mxu0
    %2481 = vmatprep.mubr.f32.mxu0 %v2336
    %2482 = vmatmul.mubr.f32.gmra.mxu0 %v2285
    %v2483 = vpop.f32.mrf.mxu0
    %v2484 = vadd.f32 0.0, %v2483
    %v2485 = vpop.f32.mrf.mxu0
    %2486 = vmatprep.mubr.f32.mxu0 %v2339
    %2487 = vmatmul.mubr.f32.gmra.mxu0 %v2287
    %v2488 = vpop.f32.mrf.mxu0
    %v2489 = vadd.f32 0.0, %v2488
    %v2490 = vpop.f32.mrf.mxu0
    %2491 = vmatprep.mubr.f32.mxu0 %v2342
    %2492 = vmatmul.mubr.f32.gmra.mxu0 %v2289
    %v2493 = vpop.f32.mrf.mxu0
    %v2494 = vadd.f32 0.0, %v2493
    %v2495 = vpop.f32.mrf.mxu0
    %2496 = vmatprep.mubr.f32.mxu0 %v2345
    %2497 = vmatmul.mubr.f32.gmra.mxu0 %v2291
    %v2498 = vpop.f32.mrf.mxu0
    %v2499 = vadd.f32 0.0, %v2498
    %v2500 = vpop.f32.mrf.mxu0
    %2501 = vmatprep.mubr.f32.mxu0 %v2348
    %2502 = vmatmul.mubr.f32.gmra.mxu0 %v2293
    %v2503 = vpop.f32.mrf.mxu0
    %v2504 = vadd.f32 0.0, %v2503
    %v2505 = vpop.f32.mrf.mxu0
    %2506 = vmatprep.mubr.f32.mxu0 %v2351
    %2507 = vmatmul.mubr.f32.gmra.mxu0 %v2295
    %v2508 = vpop.f32.mrf.mxu0
    %v2509 = vadd.f32 0.0, %v2508
    %v2510 = vpop.f32.mrf.mxu0
    %2511 = vmatprep.mubr.f32.mxu0 %v2354
    %2512 = vmatmul.mubr.f32.gmra.mxu0 %v2297
    %v2513 = vpop.f32.mrf.mxu0
    %v2514 = vadd.f32 0.0, %v2513
    %v2515 = vpop.f32.mrf.mxu0
    %2516 = vmatprep.mubr.f32.mxu0 %v2357
    %2517 = vmatmul.mubr.f32.gmra.mxu0 %v2299
    %v2518 = vpop.f32.mrf.mxu0
    %v2519 = vadd.f32 0.0, %v2518
    %v2520 = vpop.f32.mrf.mxu0
    %2521 = vmatprep.mubr.f32.mxu0 %v2360
    %2522 = vmatmul.mubr.f32.gmra.mxu0 %v2301
    %v2523 = vpop.f32.mrf.mxu0
    %v2524 = vadd.f32 0.0, %v2523
    %v2525 = vpop.f32.mrf.mxu0
    %2526 = vmatprep.mubr.f32.mxu0 %v2363
    %2527 = vmatmul.mubr.f32.gmra.mxu0 %v2303
    %v2528 = vpop.f32.mrf.mxu0
    %v2529 = vadd.f32 0.0, %v2528
    %v2530 = vpop.f32.mrf.mxu0
    %2531 = vmatprep.mubr.f32.mxu0 %v2366
    %2532 = vmatmul.mubr.f32.gmra.mxu0 %v2305
    %v2533 = vpop.f32.mrf.mxu0
    %v2534 = vadd.f32 0.0, %v2533
    %v2535 = vpop.f32.mrf.mxu0
    %2536 = vmatprep.mubr.f32.mxu0 %v2369
    %2537 = vmatmul.mubr.f32.gmra.mxu0 %v2307
    %v2538 = vpop.f32.mrf.mxu0
    %v2539 = vadd.f32 0.0, %v2538
    %v2540 = vpop.f32.mrf.mxu0
    %2541 = vmatprep.mubr.f32.mxu0 %v2372
    %2542 = vmatmul.mubr.f32.gmra.mxu0 %v2309
    %v2543 = vpop.f32.mrf.mxu0
    %v2544 = vadd.f32 0.0, %v2543
    %v2545 = vpop.f32.mrf.mxu0
    %2546 = vdwg.mxu0
    %v2547 = vadd.f32 %v2069, %v2444
    %v2548 = vadd.f32 %v2070, %v2449
    %v2549 = vadd.f32 %v2071, %v2454
    %v2550 = vadd.f32 %v2072, %v2459
    %v2551 = vadd.f32 %v2073, %v2464
    %v2552 = vadd.f32 %v2074, %v2469
    %v2553 = vadd.f32 %v2075, %v2474
    %v2554 = vadd.f32 %v2076, %v2479
    %v2555 = vadd.f32 %v2077, %v2484
    %v2556 = vadd.f32 %v2078, %v2489
    %v2557 = vadd.f32 %v2079, %v2494
    %v2558 = vadd.f32 %v2080, %v2499
    %v2559 = vadd.f32 %v2081, %v2504
    %v2560 = vadd.f32 %v2082, %v2509
    %v2561 = vadd.f32 %v2083, %v2514
    %v2562 = vadd.f32 %v2084, %v2519
    %v2563 = vadd.f32 %v2085, %v2524
    %v2564 = vadd.f32 %v2086, %v2529
    %v2565 = vadd.f32 %v2087, %v2534
    %v2566 = vadd.f32 %v2088, %v2539
    %v2567 = vadd.f32 %v2089, %v2544
    %v2568 = vld [vmem:[#allocation5 + $0x140] sm:$0xff]
    %v2569 = vld [vmem:[#allocation5 + $0x148] sm:$0xff]
    %v2570 = vld [vmem:[#allocation5 + $0x150] sm:$0xff]
    %v2571 = vld [vmem:[#allocation5 + $0x158] sm:$0xff]
    %v2572 = vld [vmem:[#allocation5 + $0x160] sm:$0xff]
    %v2573 = vld [vmem:[#allocation5 + $0x168] sm:$0xff]
    %v2574 = vld [vmem:[#allocation5 + $0x170] sm:$0xff]
    %v2575 = vld [vmem:[#allocation5 + $0x178] sm:$0xff]
    %2576 = vmatprep.subr.mxu0 0.0
    %2577 = vmatpush1.msra.mxu0 0.0
    %2578 = vmatprep.subr.mxu0 0.0
    %2579 = vmatpush1.msra.mxu0 0.0
    %2580 = vmatprep.subr.mxu0 0.0
    %2581 = vmatpush1.msra.mxu0 0.0
    %2582 = vmatprep.subr.mxu0 0.0
    %2583 = vmatpush1.msra.mxu0 0.0
    %2584 = vmatprep.subr.mxu0 0.0
    %2585 = vmatpush1.msra.mxu0 0.0
    %2586 = vmatprep.subr.mxu0 0.0
    %2587 = vmatpush1.msra.mxu0 0.0
    %2588 = vmatprep.subr.mxu0 0.0
    %2589 = vmatpush1.msra.mxu0 0.0
    %2590 = vmatprep.subr.mxu0 0.0
    %2591 = vmatpush1.msra.mxu0 0.0
    %2592 = vmatprep.subr.mxu0 0.0
    %2593 = vmatpush1.msra.mxu0 %v2575
    %2594 = vmatprep.subr.mxu0 0.0
    %2595 = vmatpush1.msra.mxu0 %v2574
    %2596 = vmatprep.subr.mxu0 0.0
    %2597 = vmatpush1.msra.mxu0 %v2573
    %2598 = vmatprep.subr.mxu0 0.0
    %2599 = vmatpush1.msra.mxu0 %v2572
    %2600 = vmatprep.subr.mxu0 0.0
    %2601 = vmatpush1.msra.mxu0 %v2571
    %2602 = vmatprep.subr.mxu0 0.0
    %2603 = vmatpush1.msra.mxu0 %v2570
    %2604 = vmatprep.subr.mxu0 0.0
    %2605 = vmatpush1.msra.mxu0 %v2569
    %2606 = vmatprep.subr.mxu0 0.0
    %2607 = vmatpush1.msra.mxu0 %v2568
    %2608 = vmatprep.subr.mxu0 0.0
    %2609 = vmatpush2.msra.mxu0 0.0
    %2610 = vmatprep.subr.mxu0 0.0
    %2611 = vmatpush2.msra.mxu0 0.0
    %2612 = vmatprep.subr.mxu0 0.0
    %2613 = vmatpush2.msra.mxu0 0.0
    %2614 = vmatprep.subr.mxu0 0.0
    %2615 = vmatpush2.msra.mxu0 0.0
    %2616 = vmatprep.subr.mxu0 0.0
    %2617 = vmatpush2.msra.mxu0 0.0
    %2618 = vmatprep.subr.mxu0 0.0
    %2619 = vmatpush2.msra.mxu0 0.0
    %2620 = vmatprep.subr.mxu0 0.0
    %2621 = vmatpush2.msra.mxu0 0.0
    %2622 = vmatprep.subr.mxu0 0.0
    %2623 = vmatpush2.msra.mxu0 0.0
    %2624 = vmatprep.subr.mxu0 0.0
    %2625 = vmatpush2.msra.mxu0 0.0
    %2626 = vmatprep.subr.mxu0 0.0
    %2627 = vmatpush2.msra.mxu0 0.0
    %2628 = vmatprep.subr.mxu0 0.0
    %2629 = vmatpush2.msra.mxu0 0.0
    %2630 = vmatprep.subr.mxu0 0.0
    %2631 = vmatpush2.msra.mxu0 0.0
    %2632 = vmatprep.subr.mxu0 0.0
    %2633 = vmatpush2.msra.mxu0 0.0
    %2634 = vmatprep.subr.mxu0 0.0
    %2635 = vmatpush2.msra.mxu0 0.0
    %2636 = vmatprep.subr.mxu0 0.0
    %2637 = vmatpush2.msra.mxu0 0.0
    %2638 = vmatprep.subr.mxu0 0.0
    %2639 = vmatpush2.msra.mxu0 0.0
    %2640 = vmatprep.mubr.f32.mxu0 0.0
    %2641 = vmatmul.mubr.f32.gmra.mxu0 %v165
    %v2642 = vpop.f32.mrf.mxu0
    %v2643 = vadd.f32 0.0, %v2642
    %v2644 = vpop.f32.mrf.mxu0
    %2645 = vmatprep.mubr.f32.mxu0 0.0
    %2646 = vmatmul.mubr.f32.gmra.mxu0 %v168
    %v2647 = vpop.f32.mrf.mxu0
    %v2648 = vadd.f32 0.0, %v2647
    %v2649 = vpop.f32.mrf.mxu0
    %2650 = vmatprep.mubr.f32.mxu0 0.0
    %2651 = vmatmul.mubr.f32.gmra.mxu0 %v171
    %v2652 = vpop.f32.mrf.mxu0
    %v2653 = vadd.f32 0.0, %v2652
    %v2654 = vpop.f32.mrf.mxu0
    %2655 = vmatprep.mubr.f32.mxu0 0.0
    %2656 = vmatmul.mubr.f32.gmra.mxu0 %v174
    %v2657 = vpop.f32.mrf.mxu0
    %v2658 = vadd.f32 0.0, %v2657
    %v2659 = vpop.f32.mrf.mxu0
    %2660 = vmatprep.mubr.f32.mxu0 0.0
    %2661 = vmatmul.mubr.f32.gmra.mxu0 %v177
    %v2662 = vpop.f32.mrf.mxu0
    %v2663 = vadd.f32 0.0, %v2662
    %v2664 = vpop.f32.mrf.mxu0
    %2665 = vmatprep.mubr.f32.mxu0 0.0
    %2666 = vmatmul.mubr.f32.gmra.mxu0 %v180
    %v2667 = vpop.f32.mrf.mxu0
    %v2668 = vadd.f32 0.0, %v2667
    %v2669 = vpop.f32.mrf.mxu0
    %2670 = vmatprep.mubr.f32.mxu0 0.0
    %2671 = vmatmul.mubr.f32.gmra.mxu0 %v183
    %v2672 = vpop.f32.mrf.mxu0
    %v2673 = vadd.f32 0.0, %v2672
    %v2674 = vpop.f32.mrf.mxu0
    %2675 = vmatprep.mubr.f32.mxu0 0.0
    %2676 = vmatmul.mubr.f32.gmra.mxu0 %v186
    %v2677 = vpop.f32.mrf.mxu0
    %v2678 = vadd.f32 0.0, %v2677
    %v2679 = vpop.f32.mrf.mxu0
    %2680 = vmatprep.mubr.f32.mxu0 0.0
    %2681 = vmatmul.mubr.f32.gmra.mxu0 %v189
    %v2682 = vpop.f32.mrf.mxu0
    %v2683 = vadd.f32 0.0, %v2682
    %v2684 = vpop.f32.mrf.mxu0
    %2685 = vmatprep.mubr.f32.mxu0 0.0
    %2686 = vmatmul.mubr.f32.gmra.mxu0 %v192
    %v2687 = vpop.f32.mrf.mxu0
    %v2688 = vadd.f32 0.0, %v2687
    %v2689 = vpop.f32.mrf.mxu0
    %2690 = vmatprep.mubr.f32.mxu0 0.0
    %2691 = vmatmul.mubr.f32.gmra.mxu0 %v195
    %v2692 = vpop.f32.mrf.mxu0
    %v2693 = vadd.f32 0.0, %v2692
    %v2694 = vpop.f32.mrf.mxu0
    %2695 = vmatprep.mubr.f32.mxu0 0.0
    %2696 = vmatmul.mubr.f32.gmra.mxu0 %v198
    %v2697 = vpop.f32.mrf.mxu0
    %v2698 = vadd.f32 0.0, %v2697
    %v2699 = vpop.f32.mrf.mxu0
    %2700 = vmatprep.mubr.f32.mxu0 0.0
    %2701 = vmatmul.mubr.f32.gmra.mxu0 %v201
    %v2702 = vpop.f32.mrf.mxu0
    %v2703 = vadd.f32 0.0, %v2702
    %v2704 = vpop.f32.mrf.mxu0
    %2705 = vmatprep.mubr.f32.mxu0 0.0
    %2706 = vmatmul.mubr.f32.gmra.mxu0 %v204
    %v2707 = vpop.f32.mrf.mxu0
    %v2708 = vadd.f32 0.0, %v2707
    %v2709 = vpop.f32.mrf.mxu0
    %2710 = vmatprep.mubr.f32.mxu0 0.0
    %2711 = vmatmul.mubr.f32.gmra.mxu0 %v207
    %v2712 = vpop.f32.mrf.mxu0
    %v2713 = vadd.f32 0.0, %v2712
    %v2714 = vpop.f32.mrf.mxu0
    %2715 = vmatprep.mubr.f32.mxu0 0.0
    %2716 = vmatmul.mubr.f32.gmra.mxu0 %v210
    %v2717 = vpop.f32.mrf.mxu0
    %v2718 = vadd.f32 0.0, %v2717
    %v2719 = vpop.f32.mrf.mxu0
    %2720 = vmatprep.mubr.f32.mxu0 0.0
    %2721 = vmatmul.mubr.f32.gmra.mxu0 %v213
    %v2722 = vpop.f32.mrf.mxu0
    %v2723 = vadd.f32 0.0, %v2722
    %v2724 = vpop.f32.mrf.mxu0
    %2725 = vmatprep.mubr.f32.mxu0 0.0
    %2726 = vmatmul.mubr.f32.gmra.mxu0 %v216
    %v2727 = vpop.f32.mrf.mxu0
    %v2728 = vadd.f32 0.0, %v2727
    %v2729 = vpop.f32.mrf.mxu0
    %2730 = vmatprep.mubr.f32.mxu0 0.0
    %2731 = vmatmul.mubr.f32.gmra.mxu0 %v219
    %v2732 = vpop.f32.mrf.mxu0
    %v2733 = vadd.f32 0.0, %v2732
    %v2734 = vpop.f32.mrf.mxu0
    %2735 = vmatprep.mubr.f32.mxu0 0.0
    %2736 = vmatmul.mubr.f32.gmra.mxu0 %v222
    %v2737 = vpop.f32.mrf.mxu0
    %v2738 = vadd.f32 0.0, %v2737
    %v2739 = vpop.f32.mrf.mxu0
    %2740 = vmatprep.mubr.f32.mxu0 0.0
    %2741 = vmatmul.mubr.f32.gmra.mxu0 %v225
    %v2742 = vpop.f32.mrf.mxu0
    %v2743 = vadd.f32 0.0, %v2742
    %v2744 = vpop.f32.mrf.mxu0
    %2745 = vdwg.mxu0
    %s2746 = scalar_lea.vmem [#allocation2], 1680
    %v2747 = vld [vmem:[%s2746] sm:$0xff]
    %v2748 = vld [vmem:[%s2746 + $0x8] sm:$0xff]
    %v2749 = vld [vmem:[%s2746 + $0x10] sm:$0xff]
    %v2750 = vld [vmem:[%s2746 + $0x18] sm:$0xff]
    %v2751 = vld [vmem:[%s2746 + $0x20] sm:$0xff]
    %v2752 = vld [vmem:[%s2746 + $0x28] sm:$0xff]
    %v2753 = vld [vmem:[%s2746 + $0x30] sm:$0xff]
    %v2754 = vld [vmem:[%s2746 + $0x38] sm:$0xff]
    %v2755 = vld [vmem:[%s2746 + $0x40] sm:$0xff]
    %v2756 = vld [vmem:[%s2746 + $0x48] sm:$0xff]
    %v2757 = vld [vmem:[%s2746 + $0x50] sm:$0xff]
    %v2758 = vld [vmem:[%s2746 + $0x58] sm:$0xff]
    %v2759 = vld [vmem:[%s2746 + $0x60] sm:$0xff]
    %v2760 = vld [vmem:[%s2746 + $0x68] sm:$0xff]
    %v2761 = vld [vmem:[%s2746 + $0x70] sm:$0xff]
    %v2762 = vld [vmem:[%s2746 + $0x78] sm:$0xff]
    %v2763 = vld [vmem:[%s2746 + $0x80] sm:$0xff]
    %v2764 = vld [vmem:[%s2746 + $0x88] sm:$0xff]
    %v2765 = vld [vmem:[%s2746 + $0x90] sm:$0xff]
    %v2766 = vld [vmem:[%s2746 + $0x98] sm:$0xff]
    %v2767 = vld [vmem:[%s2746 + $0xa0] sm:$0xff]
    %v2768 = vld [vmem:[%s2746 + $0xa8] sm:$0xff]
    %v2769 = vld [vmem:[%s2746 + $0xb0] sm:$0xff]
    %v2770 = vld [vmem:[%s2746 + $0xb8] sm:$0xff]
    %v2771 = vld [vmem:[%s2746 + $0xc0] sm:$0xff]
    %v2772 = vld [vmem:[%s2746 + $0xc8] sm:$0xff]
    %v2773 = vld [vmem:[%s2746 + $0xd0] sm:$0xff]
    %v2774 = vld [vmem:[%s2746 + $0xd8] sm:$0xff]
    %v2775 = vld [vmem:[%s2746 + $0xe0] sm:$0xff]
    %v2776 = vld [vmem:[%s2746 + $0xe8] sm:$0xff]
    %v2777 = vld [vmem:[%s2746 + $0xf0] sm:$0xff]
    %v2778 = vld [vmem:[%s2746 + $0xf8] sm:$0xff]
    %v2779 = vld [vmem:[%s2746 + $0x100] sm:$0xff]
    %v2780 = vld [vmem:[%s2746 + $0x108] sm:$0xff]
    %v2781 = vld [vmem:[%s2746 + $0x110] sm:$0xff]
    %v2782 = vld [vmem:[%s2746 + $0x118] sm:$0xff]
    %v2783 = vld [vmem:[%s2746 + $0x120] sm:$0xff]
    %v2784 = vld [vmem:[%s2746 + $0x128] sm:$0xff]
    %v2785 = vld [vmem:[%s2746 + $0x130] sm:$0xff]
    %v2786 = vld [vmem:[%s2746 + $0x138] sm:$0xff]
    %v2787 = vld [vmem:[%s2746 + $0x140] sm:$0x3]
    %v2788 = vld [vmem:[%s2746 + $0x148] sm:$0x3]
    %v2790 = vsel %vm660, %v2748, 0
    %v2793 = vsel %vm660, %v2750, 0
    %v2796 = vsel %vm660, %v2752, 0
    %v2799 = vsel %vm660, %v2754, 0
    %v2802 = vsel %vm660, %v2756, 0
    %v2805 = vsel %vm660, %v2758, 0
    %v2808 = vsel %vm660, %v2760, 0
    %v2811 = vsel %vm660, %v2762, 0
    %v2814 = vsel %vm660, %v2764, 0
    %v2817 = vsel %vm660, %v2766, 0
    %v2820 = vsel %vm660, %v2768, 0
    %v2823 = vsel %vm660, %v2770, 0
    %v2826 = vsel %vm660, %v2772, 0
    %v2829 = vsel %vm660, %v2774, 0
    %v2832 = vsel %vm660, %v2776, 0
    %v2835 = vsel %vm660, %v2778, 0
    %v2838 = vsel %vm660, %v2780, 0
    %v2841 = vsel %vm660, %v2782, 0
    %v2844 = vsel %vm660, %v2784, 0
    %v2847 = vsel %vm660, %v2786, 0
    %v2850 = vsel %vm660, %v2788, 0
    %v2853 = vsel %vm724, %v2743, 0
    %2855 = vmatprep.subr.mxu0 0.0
    %2856 = vmatpush1.msra.mxu0 %v2718
    %2857 = vmatprep.subr.mxu0 0.0
    %2858 = vmatpush1.msra.mxu0 %v2713
    %2859 = vmatprep.subr.mxu0 0.0
    %2860 = vmatpush1.msra.mxu0 %v2708
    %2861 = vmatprep.subr.mxu0 0.0
    %2862 = vmatpush1.msra.mxu0 %v2703
    %2863 = vmatprep.subr.mxu0 0.0
    %2864 = vmatpush1.msra.mxu0 %v2698
    %2865 = vmatprep.subr.mxu0 0.0
    %2866 = vmatpush1.msra.mxu0 %v2693
    %2867 = vmatprep.subr.mxu0 0.0
    %2868 = vmatpush1.msra.mxu0 %v2688
    %2869 = vmatprep.subr.mxu0 0.0
    %2870 = vmatpush1.msra.mxu0 %v2683
    %2871 = vmatprep.subr.mxu0 0.0
    %2872 = vmatpush1.msra.mxu0 %v2678
    %2873 = vmatprep.subr.mxu0 0.0
    %2874 = vmatpush1.msra.mxu0 %v2673
    %2875 = vmatprep.subr.mxu0 0.0
    %2876 = vmatpush1.msra.mxu0 %v2668
    %2877 = vmatprep.subr.mxu0 0.0
    %2878 = vmatpush1.msra.mxu0 %v2663
    %2879 = vmatprep.subr.mxu0 0.0
    %2880 = vmatpush1.msra.mxu0 %v2658
    %2881 = vmatprep.subr.mxu0 0.0
    %2882 = vmatpush1.msra.mxu0 %v2653
    %2883 = vmatprep.subr.mxu0 0.0
    %2884 = vmatpush1.msra.mxu0 %v2648
    %2885 = vmatprep.subr.mxu0 0.0
    %2886 = vmatpush1.msra.mxu0 %v2643
    %2887 = vmatprep.subr.mxu0 0.0
    %2888 = vmatpush2.msra.mxu0 0.0
    %2889 = vmatprep.subr.mxu0 0.0
    %2890 = vmatpush2.msra.mxu0 0.0
    %2891 = vmatprep.subr.mxu0 0.0
    %2892 = vmatpush2.msra.mxu0 0.0
    %2893 = vmatprep.subr.mxu0 0.0
    %2894 = vmatpush2.msra.mxu0 0.0
    %2895 = vmatprep.subr.mxu0 0.0
    %2896 = vmatpush2.msra.mxu0 0.0
    %2897 = vmatprep.subr.mxu0 0.0
    %2898 = vmatpush2.msra.mxu0 0.0
    %2899 = vmatprep.subr.mxu0 0.0
    %2900 = vmatpush2.msra.mxu0 0.0
    %2901 = vmatprep.subr.mxu0 0.0
    %2902 = vmatpush2.msra.mxu0 0.0
    %2903 = vmatprep.subr.mxu0 0.0
    %2904 = vmatpush2.msra.mxu0 0.0
    %2905 = vmatprep.subr.mxu0 0.0
    %2906 = vmatpush2.msra.mxu0 0.0
    %2907 = vmatprep.subr.mxu0 0.0
    %2908 = vmatpush2.msra.mxu0 0.0
    %2909 = vmatprep.subr.mxu0 0.0
    %2910 = vmatpush2.msra.mxu0 %v2853
    %2911 = vmatprep.subr.mxu0 0.0
    %2912 = vmatpush2.msra.mxu0 %v2738
    %2913 = vmatprep.subr.mxu0 0.0
    %2914 = vmatpush2.msra.mxu0 %v2733
    %2915 = vmatprep.subr.mxu0 0.0
    %2916 = vmatpush2.msra.mxu0 %v2728
    %2917 = vmatprep.subr.mxu0 0.0
    %2918 = vmatpush2.msra.mxu0 %v2723
    %2919 = vmatprep.mubr.f32.mxu0 %v2790
    %2920 = vmatmul.mubr.f32.gmra.mxu0 %v2747
    %v2921 = vpop.f32.mrf.mxu0
    %v2922 = vadd.f32 0.0, %v2921
    %v2923 = vpop.f32.mrf.mxu0
    %2924 = vmatprep.mubr.f32.mxu0 %v2793
    %2925 = vmatmul.mubr.f32.gmra.mxu0 %v2749
    %v2926 = vpop.f32.mrf.mxu0
    %v2927 = vadd.f32 0.0, %v2926
    %v2928 = vpop.f32.mrf.mxu0
    %2929 = vmatprep.mubr.f32.mxu0 %v2796
    %2930 = vmatmul.mubr.f32.gmra.mxu0 %v2751
    %v2931 = vpop.f32.mrf.mxu0
    %v2932 = vadd.f32 0.0, %v2931
    %v2933 = vpop.f32.mrf.mxu0
    %2934 = vmatprep.mubr.f32.mxu0 %v2799
    %2935 = vmatmul.mubr.f32.gmra.mxu0 %v2753
    %v2936 = vpop.f32.mrf.mxu0
    %v2937 = vadd.f32 0.0, %v2936
    %v2938 = vpop.f32.mrf.mxu0
    %2939 = vmatprep.mubr.f32.mxu0 %v2802
    %2940 = vmatmul.mubr.f32.gmra.mxu0 %v2755
    %v2941 = vpop.f32.mrf.mxu0
    %v2942 = vadd.f32 0.0, %v2941
    %v2943 = vpop.f32.mrf.mxu0
    %2944 = vmatprep.mubr.f32.mxu0 %v2805
    %2945 = vmatmul.mubr.f32.gmra.mxu0 %v2757
    %v2946 = vpop.f32.mrf.mxu0
    %v2947 = vadd.f32 0.0, %v2946
    %v2948 = vpop.f32.mrf.mxu0
    %2949 = vmatprep.mubr.f32.mxu0 %v2808
    %2950 = vmatmul.mubr.f32.gmra.mxu0 %v2759
    %v2951 = vpop.f32.mrf.mxu0
    %v2952 = vadd.f32 0.0, %v2951
    %v2953 = vpop.f32.mrf.mxu0
    %2954 = vmatprep.mubr.f32.mxu0 %v2811
    %2955 = vmatmul.mubr.f32.gmra.mxu0 %v2761
    %v2956 = vpop.f32.mrf.mxu0
    %v2957 = vadd.f32 0.0, %v2956
    %v2958 = vpop.f32.mrf.mxu0
    %2959 = vmatprep.mubr.f32.mxu0 %v2814
    %2960 = vmatmul.mubr.f32.gmra.mxu0 %v2763
    %v2961 = vpop.f32.mrf.mxu0
    %v2962 = vadd.f32 0.0, %v2961
    %v2963 = vpop.f32.mrf.mxu0
    %2964 = vmatprep.mubr.f32.mxu0 %v2817
    %2965 = vmatmul.mubr.f32.gmra.mxu0 %v2765
    %v2966 = vpop.f32.mrf.mxu0
    %v2967 = vadd.f32 0.0, %v2966
    %v2968 = vpop.f32.mrf.mxu0
    %2969 = vmatprep.mubr.f32.mxu0 %v2820
    %2970 = vmatmul.mubr.f32.gmra.mxu0 %v2767
    %v2971 = vpop.f32.mrf.mxu0
    %v2972 = vadd.f32 0.0, %v2971
    %v2973 = vpop.f32.mrf.mxu0
    %2974 = vmatprep.mubr.f32.mxu0 %v2823
    %2975 = vmatmul.mubr.f32.gmra.mxu0 %v2769
    %v2976 = vpop.f32.mrf.mxu0
    %v2977 = vadd.f32 0.0, %v2976
    %v2978 = vpop.f32.mrf.mxu0
    %2979 = vmatprep.mubr.f32.mxu0 %v2826
    %2980 = vmatmul.mubr.f32.gmra.mxu0 %v2771
    %v2981 = vpop.f32.mrf.mxu0
    %v2982 = vadd.f32 0.0, %v2981
    %v2983 = vpop.f32.mrf.mxu0
    %2984 = vmatprep.mubr.f32.mxu0 %v2829
    %2985 = vmatmul.mubr.f32.gmra.mxu0 %v2773
    %v2986 = vpop.f32.mrf.mxu0
    %v2987 = vadd.f32 0.0, %v2986
    %v2988 = vpop.f32.mrf.mxu0
    %2989 = vmatprep.mubr.f32.mxu0 %v2832
    %2990 = vmatmul.mubr.f32.gmra.mxu0 %v2775
    %v2991 = vpop.f32.mrf.mxu0
    %v2992 = vadd.f32 0.0, %v2991
    %v2993 = vpop.f32.mrf.mxu0
    %2994 = vmatprep.mubr.f32.mxu0 %v2835
    %2995 = vmatmul.mubr.f32.gmra.mxu0 %v2777
    %v2996 = vpop.f32.mrf.mxu0
    %v2997 = vadd.f32 0.0, %v2996
    %v2998 = vpop.f32.mrf.mxu0
    %2999 = vmatprep.mubr.f32.mxu0 %v2838
    %3000 = vmatmul.mubr.f32.gmra.mxu0 %v2779
    %v3001 = vpop.f32.mrf.mxu0
    %v3002 = vadd.f32 0.0, %v3001
    %v3003 = vpop.f32.mrf.mxu0
    %3004 = vmatprep.mubr.f32.mxu0 %v2841
    %3005 = vmatmul.mubr.f32.gmra.mxu0 %v2781
    %v3006 = vpop.f32.mrf.mxu0
    %v3007 = vadd.f32 0.0, %v3006
    %v3008 = vpop.f32.mrf.mxu0
    %3009 = vmatprep.mubr.f32.mxu0 %v2844
    %3010 = vmatmul.mubr.f32.gmra.mxu0 %v2783
    %v3011 = vpop.f32.mrf.mxu0
    %v3012 = vadd.f32 0.0, %v3011
    %v3013 = vpop.f32.mrf.mxu0
    %3014 = vmatprep.mubr.f32.mxu0 %v2847
    %3015 = vmatmul.mubr.f32.gmra.mxu0 %v2785
    %v3016 = vpop.f32.mrf.mxu0
    %v3017 = vadd.f32 0.0, %v3016
    %v3018 = vpop.f32.mrf.mxu0
    %3019 = vmatprep.mubr.f32.mxu0 %v2850
    %3020 = vmatmul.mubr.f32.gmra.mxu0 %v2787
    %v3021 = vpop.f32.mrf.mxu0
    %v3022 = vadd.f32 0.0, %v3021
    %v3023 = vpop.f32.mrf.mxu0
    %3024 = vdwg.mxu0
    %v3025 = vadd.f32 %v2547, %v2922
    %v3026 = vadd.f32 %v2548, %v2927
    %v3027 = vadd.f32 %v2549, %v2932
    %v3028 = vadd.f32 %v2550, %v2937
    %v3029 = vadd.f32 %v2551, %v2942
    %v3030 = vadd.f32 %v2552, %v2947
    %v3031 = vadd.f32 %v2553, %v2952
    %v3032 = vadd.f32 %v2554, %v2957
    %v3033 = vadd.f32 %v2555, %v2962
    %v3034 = vadd.f32 %v2556, %v2967
    %v3035 = vadd.f32 %v2557, %v2972
    %v3036 = vadd.f32 %v2558, %v2977
    %v3037 = vadd.f32 %v2559, %v2982
    %v3038 = vadd.f32 %v2560, %v2987
    %v3039 = vadd.f32 %v2561, %v2992
    %v3040 = vadd.f32 %v2562, %v2997
    %v3041 = vadd.f32 %v2563, %v3002
    %v3042 = vadd.f32 %v2564, %v3007
    %v3043 = vadd.f32 %v2565, %v3012
    %v3044 = vadd.f32 %v2566, %v3017
    %v3045 = vadd.f32 %v2567, %v3022
    %v3046 = vld [vmem:[#allocation5 + $0x180] sm:$0xff]
    %v3047 = vld [vmem:[#allocation5 + $0x188] sm:$0xff]
    %v3048 = vld [vmem:[#allocation5 + $0x190] sm:$0xff]
    %v3049 = vld [vmem:[#allocation5 + $0x198] sm:$0xff]
    %v3050 = vld [vmem:[#allocation5 + $0x1a0] sm:$0xff]
    %v3051 = vld [vmem:[#allocation5 + $0x1a8] sm:$0xff]
    %v3052 = vld [vmem:[#allocation5 + $0x1b0] sm:$0xff]
    %v3053 = vld [vmem:[#allocation5 + $0x1b8] sm:$0xff]
    %3054 = vmatprep.subr.mxu0 0.0
    %3055 = vmatpush1.msra.mxu0 0.0
    %3056 = vmatprep.subr.mxu0 0.0
    %3057 = vmatpush1.msra.mxu0 0.0
    %3058 = vmatprep.subr.mxu0 0.0
    %3059 = vmatpush1.msra.mxu0 0.0
    %3060 = vmatprep.subr.mxu0 0.0
    %3061 = vmatpush1.msra.mxu0 0.0
    %3062 = vmatprep.subr.mxu0 0.0
    %3063 = vmatpush1.msra.mxu0 0.0
    %3064 = vmatprep.subr.mxu0 0.0
    %3065 = vmatpush1.msra.mxu0 0.0
    %3066 = vmatprep.subr.mxu0 0.0
    %3067 = vmatpush1.msra.mxu0 0.0
    %3068 = vmatprep.subr.mxu0 0.0
    %3069 = vmatpush1.msra.mxu0 0.0
    %3070 = vmatprep.subr.mxu0 0.0
    %3071 = vmatpush1.msra.mxu0 %v3053
    %3072 = vmatprep.subr.mxu0 0.0
    %3073 = vmatpush1.msra.mxu0 %v3052
    %3074 = vmatprep.subr.mxu0 0.0
    %3075 = vmatpush1.msra.mxu0 %v3051
    %3076 = vmatprep.subr.mxu0 0.0
    %3077 = vmatpush1.msra.mxu0 %v3050
    %3078 = vmatprep.subr.mxu0 0.0
    %3079 = vmatpush1.msra.mxu0 %v3049
    %3080 = vmatprep.subr.mxu0 0.0
    %3081 = vmatpush1.msra.mxu0 %v3048
    %3082 = vmatprep.subr.mxu0 0.0
    %3083 = vmatpush1.msra.mxu0 %v3047
    %3084 = vmatprep.subr.mxu0 0.0
    %3085 = vmatpush1.msra.mxu0 %v3046
    %3086 = vmatprep.subr.mxu0 0.0
    %3087 = vmatpush2.msra.mxu0 0.0
    %3088 = vmatprep.subr.mxu0 0.0
    %3089 = vmatpush2.msra.mxu0 0.0
    %3090 = vmatprep.subr.mxu0 0.0
    %3091 = vmatpush2.msra.mxu0 0.0
    %3092 = vmatprep.subr.mxu0 0.0
    %3093 = vmatpush2.msra.mxu0 0.0
    %3094 = vmatprep.subr.mxu0 0.0
    %3095 = vmatpush2.msra.mxu0 0.0
    %3096 = vmatprep.subr.mxu0 0.0
    %3097 = vmatpush2.msra.mxu0 0.0
    %3098 = vmatprep.subr.mxu0 0.0
    %3099 = vmatpush2.msra.mxu0 0.0
    %3100 = vmatprep.subr.mxu0 0.0
    %3101 = vmatpush2.msra.mxu0 0.0
    %3102 = vmatprep.subr.mxu0 0.0
    %3103 = vmatpush2.msra.mxu0 0.0
    %3104 = vmatprep.subr.mxu0 0.0
    %3105 = vmatpush2.msra.mxu0 0.0
    %3106 = vmatprep.subr.mxu0 0.0
    %3107 = vmatpush2.msra.mxu0 0.0
    %3108 = vmatprep.subr.mxu0 0.0
    %3109 = vmatpush2.msra.mxu0 0.0
    %3110 = vmatprep.subr.mxu0 0.0
    %3111 = vmatpush2.msra.mxu0 0.0
    %3112 = vmatprep.subr.mxu0 0.0
    %3113 = vmatpush2.msra.mxu0 0.0
    %3114 = vmatprep.subr.mxu0 0.0
    %3115 = vmatpush2.msra.mxu0 0.0
    %3116 = vmatprep.subr.mxu0 0.0
    %3117 = vmatpush2.msra.mxu0 0.0
    %3118 = vmatprep.mubr.f32.mxu0 0.0
    %3119 = vmatmul.mubr.f32.gmra.mxu0 %v165
    %v3120 = vpop.f32.mrf.mxu0
    %v3121 = vadd.f32 0.0, %v3120
    %v3122 = vpop.f32.mrf.mxu0
    %3123 = vmatprep.mubr.f32.mxu0 0.0
    %3124 = vmatmul.mubr.f32.gmra.mxu0 %v168
    %v3125 = vpop.f32.mrf.mxu0
    %v3126 = vadd.f32 0.0, %v3125
    %v3127 = vpop.f32.mrf.mxu0
    %3128 = vmatprep.mubr.f32.mxu0 0.0
    %3129 = vmatmul.mubr.f32.gmra.mxu0 %v171
    %v3130 = vpop.f32.mrf.mxu0
    %v3131 = vadd.f32 0.0, %v3130
    %v3132 = vpop.f32.mrf.mxu0
    %3133 = vmatprep.mubr.f32.mxu0 0.0
    %3134 = vmatmul.mubr.f32.gmra.mxu0 %v174
    %v3135 = vpop.f32.mrf.mxu0
    %v3136 = vadd.f32 0.0, %v3135
    %v3137 = vpop.f32.mrf.mxu0
    %3138 = vmatprep.mubr.f32.mxu0 0.0
    %3139 = vmatmul.mubr.f32.gmra.mxu0 %v177
    %v3140 = vpop.f32.mrf.mxu0
    %v3141 = vadd.f32 0.0, %v3140
    %v3142 = vpop.f32.mrf.mxu0
    %3143 = vmatprep.mubr.f32.mxu0 0.0
    %3144 = vmatmul.mubr.f32.gmra.mxu0 %v180
    %v3145 = vpop.f32.mrf.mxu0
    %v3146 = vadd.f32 0.0, %v3145
    %v3147 = vpop.f32.mrf.mxu0
    %3148 = vmatprep.mubr.f32.mxu0 0.0
    %3149 = vmatmul.mubr.f32.gmra.mxu0 %v183
    %v3150 = vpop.f32.mrf.mxu0
    %v3151 = vadd.f32 0.0, %v3150
    %v3152 = vpop.f32.mrf.mxu0
    %3153 = vmatprep.mubr.f32.mxu0 0.0
    %3154 = vmatmul.mubr.f32.gmra.mxu0 %v186
    %v3155 = vpop.f32.mrf.mxu0
    %v3156 = vadd.f32 0.0, %v3155
    %v3157 = vpop.f32.mrf.mxu0
    %3158 = vmatprep.mubr.f32.mxu0 0.0
    %3159 = vmatmul.mubr.f32.gmra.mxu0 %v189
    %v3160 = vpop.f32.mrf.mxu0
    %v3161 = vadd.f32 0.0, %v3160
    %v3162 = vpop.f32.mrf.mxu0
    %3163 = vmatprep.mubr.f32.mxu0 0.0
    %3164 = vmatmul.mubr.f32.gmra.mxu0 %v192
    %v3165 = vpop.f32.mrf.mxu0
    %v3166 = vadd.f32 0.0, %v3165
    %v3167 = vpop.f32.mrf.mxu0
    %3168 = vmatprep.mubr.f32.mxu0 0.0
    %3169 = vmatmul.mubr.f32.gmra.mxu0 %v195
    %v3170 = vpop.f32.mrf.mxu0
    %v3171 = vadd.f32 0.0, %v3170
    %v3172 = vpop.f32.mrf.mxu0
    %3173 = vmatprep.mubr.f32.mxu0 0.0
    %3174 = vmatmul.mubr.f32.gmra.mxu0 %v198
    %v3175 = vpop.f32.mrf.mxu0
    %v3176 = vadd.f32 0.0, %v3175
    %v3177 = vpop.f32.mrf.mxu0
    %3178 = vmatprep.mubr.f32.mxu0 0.0
    %3179 = vmatmul.mubr.f32.gmra.mxu0 %v201
    %v3180 = vpop.f32.mrf.mxu0
    %v3181 = vadd.f32 0.0, %v3180
    %v3182 = vpop.f32.mrf.mxu0
    %3183 = vmatprep.mubr.f32.mxu0 0.0
    %3184 = vmatmul.mubr.f32.gmra.mxu0 %v204
    %v3185 = vpop.f32.mrf.mxu0
    %v3186 = vadd.f32 0.0, %v3185
    %v3187 = vpop.f32.mrf.mxu0
    %3188 = vmatprep.mubr.f32.mxu0 0.0
    %3189 = vmatmul.mubr.f32.gmra.mxu0 %v207
    %v3190 = vpop.f32.mrf.mxu0
    %v3191 = vadd.f32 0.0, %v3190
    %v3192 = vpop.f32.mrf.mxu0
    %3193 = vmatprep.mubr.f32.mxu0 0.0
    %3194 = vmatmul.mubr.f32.gmra.mxu0 %v210
    %v3195 = vpop.f32.mrf.mxu0
    %v3196 = vadd.f32 0.0, %v3195
    %v3197 = vpop.f32.mrf.mxu0
    %3198 = vmatprep.mubr.f32.mxu0 0.0
    %3199 = vmatmul.mubr.f32.gmra.mxu0 %v213
    %v3200 = vpop.f32.mrf.mxu0
    %v3201 = vadd.f32 0.0, %v3200
    %v3202 = vpop.f32.mrf.mxu0
    %3203 = vmatprep.mubr.f32.mxu0 0.0
    %3204 = vmatmul.mubr.f32.gmra.mxu0 %v216
    %v3205 = vpop.f32.mrf.mxu0
    %v3206 = vadd.f32 0.0, %v3205
    %v3207 = vpop.f32.mrf.mxu0
    %3208 = vmatprep.mubr.f32.mxu0 0.0
    %3209 = vmatmul.mubr.f32.gmra.mxu0 %v219
    %v3210 = vpop.f32.mrf.mxu0
    %v3211 = vadd.f32 0.0, %v3210
    %v3212 = vpop.f32.mrf.mxu0
    %3213 = vmatprep.mubr.f32.mxu0 0.0
    %3214 = vmatmul.mubr.f32.gmra.mxu0 %v222
    %v3215 = vpop.f32.mrf.mxu0
    %v3216 = vadd.f32 0.0, %v3215
    %v3217 = vpop.f32.mrf.mxu0
    %3218 = vmatprep.mubr.f32.mxu0 0.0
    %3219 = vmatmul.mubr.f32.gmra.mxu0 %v225
    %v3220 = vpop.f32.mrf.mxu0
    %v3221 = vadd.f32 0.0, %v3220
    %v3222 = vpop.f32.mrf.mxu0
    %3223 = vdwg.mxu0
    %s3224 = scalar_lea.vmem [#allocation2], 2016
    %v3225 = vld [vmem:[%s3224] sm:$0xff]
    %v3226 = vld [vmem:[%s3224 + $0x8] sm:$0xff]
    %v3227 = vld [vmem:[%s3224 + $0x10] sm:$0xff]
    %v3228 = vld [vmem:[%s3224 + $0x18] sm:$0xff]
    %v3229 = vld [vmem:[%s3224 + $0x20] sm:$0xff]
    %v3230 = vld [vmem:[%s3224 + $0x28] sm:$0xff]
    %v3231 = vld [vmem:[%s3224 + $0x30] sm:$0xff]
    %v3232 = vld [vmem:[%s3224 + $0x38] sm:$0xff]
    %v3233 = vld [vmem:[%s3224 + $0x40] sm:$0xff]
    %v3234 = vld [vmem:[%s3224 + $0x48] sm:$0xff]
    %v3235 = vld [vmem:[%s3224 + $0x50] sm:$0xff]
    %v3236 = vld [vmem:[%s3224 + $0x58] sm:$0xff]
    %v3237 = vld [vmem:[%s3224 + $0x60] sm:$0xff]
    %v3238 = vld [vmem:[%s3224 + $0x68] sm:$0xff]
    %v3239 = vld [vmem:[%s3224 + $0x70] sm:$0xff]
    %v3240 = vld [vmem:[%s3224 + $0x78] sm:$0xff]
    %v3241 = vld [vmem:[%s3224 + $0x80] sm:$0xff]
    %v3242 = vld [vmem:[%s3224 + $0x88] sm:$0xff]
    %v3243 = vld [vmem:[%s3224 + $0x90] sm:$0xff]
    %v3244 = vld [vmem:[%s3224 + $0x98] sm:$0xff]
    %v3245 = vld [vmem:[%s3224 + $0xa0] sm:$0xff]
    %v3246 = vld [vmem:[%s3224 + $0xa8] sm:$0xff]
    %v3247 = vld [vmem:[%s3224 + $0xb0] sm:$0xff]
    %v3248 = vld [vmem:[%s3224 + $0xb8] sm:$0xff]
    %v3249 = vld [vmem:[%s3224 + $0xc0] sm:$0xff]
    %v3250 = vld [vmem:[%s3224 + $0xc8] sm:$0xff]
    %v3251 = vld [vmem:[%s3224 + $0xd0] sm:$0xff]
    %v3252 = vld [vmem:[%s3224 + $0xd8] sm:$0xff]
    %v3253 = vld [vmem:[%s3224 + $0xe0] sm:$0xff]
    %v3254 = vld [vmem:[%s3224 + $0xe8] sm:$0xff]
    %v3255 = vld [vmem:[%s3224 + $0xf0] sm:$0xff]
    %v3256 = vld [vmem:[%s3224 + $0xf8] sm:$0xff]
    %v3257 = vld [vmem:[%s3224 + $0x100] sm:$0xff]
    %v3258 = vld [vmem:[%s3224 + $0x108] sm:$0xff]
    %v3259 = vld [vmem:[%s3224 + $0x110] sm:$0xff]
    %v3260 = vld [vmem:[%s3224 + $0x118] sm:$0xff]
    %v3261 = vld [vmem:[%s3224 + $0x120] sm:$0xff]
    %v3262 = vld [vmem:[%s3224 + $0x128] sm:$0xff]
    %v3263 = vld [vmem:[%s3224 + $0x130] sm:$0xff]
    %v3264 = vld [vmem:[%s3224 + $0x138] sm:$0xff]
    %v3265 = vld [vmem:[%s3224 + $0x140] sm:$0x3]
    %v3266 = vld [vmem:[%s3224 + $0x148] sm:$0x3]
    %v3268 = vsel %vm660, %v3226, 0
    %v3271 = vsel %vm660, %v3228, 0
    %v3274 = vsel %vm660, %v3230, 0
    %v3277 = vsel %vm660, %v3232, 0
    %v3280 = vsel %vm660, %v3234, 0
    %v3283 = vsel %vm660, %v3236, 0
    %v3286 = vsel %vm660, %v3238, 0
    %v3289 = vsel %vm660, %v3240, 0
    %v3292 = vsel %vm660, %v3242, 0
    %v3295 = vsel %vm660, %v3244, 0
    %v3298 = vsel %vm660, %v3246, 0
    %v3301 = vsel %vm660, %v3248, 0
    %v3304 = vsel %vm660, %v3250, 0
    %v3307 = vsel %vm660, %v3252, 0
    %v3310 = vsel %vm660, %v3254, 0
    %v3313 = vsel %vm660, %v3256, 0
    %v3316 = vsel %vm660, %v3258, 0
    %v3319 = vsel %vm660, %v3260, 0
    %v3322 = vsel %vm660, %v3262, 0
    %v3325 = vsel %vm660, %v3264, 0
    %v3328 = vsel %vm660, %v3266, 0
    %v3331 = vsel %vm724, %v3221, 0
    %3333 = vmatprep.subr.mxu0 0.0
    %3334 = vmatpush1.msra.mxu0 %v3196
    %3335 = vmatprep.subr.mxu0 0.0
    %3336 = vmatpush1.msra.mxu0 %v3191
    %3337 = vmatprep.subr.mxu0 0.0
    %3338 = vmatpush1.msra.mxu0 %v3186
    %3339 = vmatprep.subr.mxu0 0.0
    %3340 = vmatpush1.msra.mxu0 %v3181
    %3341 = vmatprep.subr.mxu0 0.0
    %3342 = vmatpush1.msra.mxu0 %v3176
    %3343 = vmatprep.subr.mxu0 0.0
    %3344 = vmatpush1.msra.mxu0 %v3171
    %3345 = vmatprep.subr.mxu0 0.0
    %3346 = vmatpush1.msra.mxu0 %v3166
    %3347 = vmatprep.subr.mxu0 0.0
    %3348 = vmatpush1.msra.mxu0 %v3161
    %3349 = vmatprep.subr.mxu0 0.0
    %3350 = vmatpush1.msra.mxu0 %v3156
    %3351 = vmatprep.subr.mxu0 0.0
    %3352 = vmatpush1.msra.mxu0 %v3151
    %3353 = vmatprep.subr.mxu0 0.0
    %3354 = vmatpush1.msra.mxu0 %v3146
    %3355 = vmatprep.subr.mxu0 0.0
    %3356 = vmatpush1.msra.mxu0 %v3141
    %3357 = vmatprep.subr.mxu0 0.0
    %3358 = vmatpush1.msra.mxu0 %v3136
    %3359 = vmatprep.subr.mxu0 0.0
    %3360 = vmatpush1.msra.mxu0 %v3131
    %3361 = vmatprep.subr.mxu0 0.0
    %3362 = vmatpush1.msra.mxu0 %v3126
    %3363 = vmatprep.subr.mxu0 0.0
    %3364 = vmatpush1.msra.mxu0 %v3121
    %3365 = vmatprep.subr.mxu0 0.0
    %3366 = vmatpush2.msra.mxu0 0.0
    %3367 = vmatprep.subr.mxu0 0.0
    %3368 = vmatpush2.msra.mxu0 0.0
    %3369 = vmatprep.subr.mxu0 0.0
    %3370 = vmatpush2.msra.mxu0 0.0
    %3371 = vmatprep.subr.mxu0 0.0
    %3372 = vmatpush2.msra.mxu0 0.0
    %3373 = vmatprep.subr.mxu0 0.0
    %3374 = vmatpush2.msra.mxu0 0.0
    %3375 = vmatprep.subr.mxu0 0.0
    %3376 = vmatpush2.msra.mxu0 0.0
    %3377 = vmatprep.subr.mxu0 0.0
    %3378 = vmatpush2.msra.mxu0 0.0
    %3379 = vmatprep.subr.mxu0 0.0
    %3380 = vmatpush2.msra.mxu0 0.0
    %3381 = vmatprep.subr.mxu0 0.0
    %3382 = vmatpush2.msra.mxu0 0.0
    %3383 = vmatprep.subr.mxu0 0.0
    %3384 = vmatpush2.msra.mxu0 0.0
    %3385 = vmatprep.subr.mxu0 0.0
    %3386 = vmatpush2.msra.mxu0 0.0
    %3387 = vmatprep.subr.mxu0 0.0
    %3388 = vmatpush2.msra.mxu0 %v3331
    %3389 = vmatprep.subr.mxu0 0.0
    %3390 = vmatpush2.msra.mxu0 %v3216
    %3391 = vmatprep.subr.mxu0 0.0
    %3392 = vmatpush2.msra.mxu0 %v3211
    %3393 = vmatprep.subr.mxu0 0.0
    %3394 = vmatpush2.msra.mxu0 %v3206
    %3395 = vmatprep.subr.mxu0 0.0
    %3396 = vmatpush2.msra.mxu0 %v3201
    %3397 = vmatprep.mubr.f32.mxu0 %v3268
    %3398 = vmatmul.mubr.f32.gmra.mxu0 %v3225
    %v3399 = vpop.f32.mrf.mxu0
    %v3400 = vadd.f32 0.0, %v3399
    %v3401 = vpop.f32.mrf.mxu0
    %3402 = vmatprep.mubr.f32.mxu0 %v3271
    %3403 = vmatmul.mubr.f32.gmra.mxu0 %v3227
    %v3404 = vpop.f32.mrf.mxu0
    %v3405 = vadd.f32 0.0, %v3404
    %v3406 = vpop.f32.mrf.mxu0
    %3407 = vmatprep.mubr.f32.mxu0 %v3274
    %3408 = vmatmul.mubr.f32.gmra.mxu0 %v3229
    %v3409 = vpop.f32.mrf.mxu0
    %v3410 = vadd.f32 0.0, %v3409
    %v3411 = vpop.f32.mrf.mxu0
    %3412 = vmatprep.mubr.f32.mxu0 %v3277
    %3413 = vmatmul.mubr.f32.gmra.mxu0 %v3231
    %v3414 = vpop.f32.mrf.mxu0
    %v3415 = vadd.f32 0.0, %v3414
    %v3416 = vpop.f32.mrf.mxu0
    %3417 = vmatprep.mubr.f32.mxu0 %v3280
    %3418 = vmatmul.mubr.f32.gmra.mxu0 %v3233
    %v3419 = vpop.f32.mrf.mxu0
    %v3420 = vadd.f32 0.0, %v3419
    %v3421 = vpop.f32.mrf.mxu0
    %3422 = vmatprep.mubr.f32.mxu0 %v3283
    %3423 = vmatmul.mubr.f32.gmra.mxu0 %v3235
    %v3424 = vpop.f32.mrf.mxu0
    %v3425 = vadd.f32 0.0, %v3424
    %v3426 = vpop.f32.mrf.mxu0
    %3427 = vmatprep.mubr.f32.mxu0 %v3286
    %3428 = vmatmul.mubr.f32.gmra.mxu0 %v3237
    %v3429 = vpop.f32.mrf.mxu0
    %v3430 = vadd.f32 0.0, %v3429
    %v3431 = vpop.f32.mrf.mxu0
    %3432 = vmatprep.mubr.f32.mxu0 %v3289
    %3433 = vmatmul.mubr.f32.gmra.mxu0 %v3239
    %v3434 = vpop.f32.mrf.mxu0
    %v3435 = vadd.f32 0.0, %v3434
    %v3436 = vpop.f32.mrf.mxu0
    %3437 = vmatprep.mubr.f32.mxu0 %v3292
    %3438 = vmatmul.mubr.f32.gmra.mxu0 %v3241
    %v3439 = vpop.f32.mrf.mxu0
    %v3440 = vadd.f32 0.0, %v3439
    %v3441 = vpop.f32.mrf.mxu0
    %3442 = vmatprep.mubr.f32.mxu0 %v3295
    %3443 = vmatmul.mubr.f32.gmra.mxu0 %v3243
    %v3444 = vpop.f32.mrf.mxu0
    %v3445 = vadd.f32 0.0, %v3444
    %v3446 = vpop.f32.mrf.mxu0
    %3447 = vmatprep.mubr.f32.mxu0 %v3298
    %3448 = vmatmul.mubr.f32.gmra.mxu0 %v3245
    %v3449 = vpop.f32.mrf.mxu0
    %v3450 = vadd.f32 0.0, %v3449
    %v3451 = vpop.f32.mrf.mxu0
    %3452 = vmatprep.mubr.f32.mxu0 %v3301
    %3453 = vmatmul.mubr.f32.gmra.mxu0 %v3247
    %v3454 = vpop.f32.mrf.mxu0
    %v3455 = vadd.f32 0.0, %v3454
    %v3456 = vpop.f32.mrf.mxu0
    %3457 = vmatprep.mubr.f32.mxu0 %v3304
    %3458 = vmatmul.mubr.f32.gmra.mxu0 %v3249
    %v3459 = vpop.f32.mrf.mxu0
    %v3460 = vadd.f32 0.0, %v3459
    %v3461 = vpop.f32.mrf.mxu0
    %3462 = vmatprep.mubr.f32.mxu0 %v3307
    %3463 = vmatmul.mubr.f32.gmra.mxu0 %v3251
    %v3464 = vpop.f32.mrf.mxu0
    %v3465 = vadd.f32 0.0, %v3464
    %v3466 = vpop.f32.mrf.mxu0
    %3467 = vmatprep.mubr.f32.mxu0 %v3310
    %3468 = vmatmul.mubr.f32.gmra.mxu0 %v3253
    %v3469 = vpop.f32.mrf.mxu0
    %v3470 = vadd.f32 0.0, %v3469
    %v3471 = vpop.f32.mrf.mxu0
    %3472 = vmatprep.mubr.f32.mxu0 %v3313
    %3473 = vmatmul.mubr.f32.gmra.mxu0 %v3255
    %v3474 = vpop.f32.mrf.mxu0
    %v3475 = vadd.f32 0.0, %v3474
    %v3476 = vpop.f32.mrf.mxu0
    %3477 = vmatprep.mubr.f32.mxu0 %v3316
    %3478 = vmatmul.mubr.f32.gmra.mxu0 %v3257
    %v3479 = vpop.f32.mrf.mxu0
    %v3480 = vadd.f32 0.0, %v3479
    %v3481 = vpop.f32.mrf.mxu0
    %3482 = vmatprep.mubr.f32.mxu0 %v3319
    %3483 = vmatmul.mubr.f32.gmra.mxu0 %v3259
    %v3484 = vpop.f32.mrf.mxu0
    %v3485 = vadd.f32 0.0, %v3484
    %v3486 = vpop.f32.mrf.mxu0
    %3487 = vmatprep.mubr.f32.mxu0 %v3322
    %3488 = vmatmul.mubr.f32.gmra.mxu0 %v3261
    %v3489 = vpop.f32.mrf.mxu0
    %v3490 = vadd.f32 0.0, %v3489
    %v3491 = vpop.f32.mrf.mxu0
    %3492 = vmatprep.mubr.f32.mxu0 %v3325
    %3493 = vmatmul.mubr.f32.gmra.mxu0 %v3263
    %v3494 = vpop.f32.mrf.mxu0
    %v3495 = vadd.f32 0.0, %v3494
    %v3496 = vpop.f32.mrf.mxu0
    %3497 = vmatprep.mubr.f32.mxu0 %v3328
    %3498 = vmatmul.mubr.f32.gmra.mxu0 %v3265
    %v3499 = vpop.f32.mrf.mxu0
    %v3500 = vadd.f32 0.0, %v3499
    %v3501 = vpop.f32.mrf.mxu0
    %3502 = vdwg.mxu0
    %v3503 = vadd.f32 %v3025, %v3400
    %v3504 = vadd.f32 %v3026, %v3405
    %v3505 = vadd.f32 %v3027, %v3410
    %v3506 = vadd.f32 %v3028, %v3415
    %v3507 = vadd.f32 %v3029, %v3420
    %v3508 = vadd.f32 %v3030, %v3425
    %v3509 = vadd.f32 %v3031, %v3430
    %v3510 = vadd.f32 %v3032, %v3435
    %v3511 = vadd.f32 %v3033, %v3440
    %v3512 = vadd.f32 %v3034, %v3445
    %v3513 = vadd.f32 %v3035, %v3450
    %v3514 = vadd.f32 %v3036, %v3455
    %v3515 = vadd.f32 %v3037, %v3460
    %v3516 = vadd.f32 %v3038, %v3465
    %v3517 = vadd.f32 %v3039, %v3470
    %v3518 = vadd.f32 %v3040, %v3475
    %v3519 = vadd.f32 %v3041, %v3480
    %v3520 = vadd.f32 %v3042, %v3485
    %v3521 = vadd.f32 %v3043, %v3490
    %v3522 = vadd.f32 %v3044, %v3495
    %v3523 = vadd.f32 %v3045, %v3500
    %v3524 = vadd.f32 %v3503, %v3504
    %v3525 = vadd.f32 %v3524, %v3505
    %v3526 = vadd.f32 %v3525, %v3506
    %v3527 = vadd.f32 %v3526, %v3507
    %v3528 = vadd.f32 %v3527, %v3508
    %v3529 = vadd.f32 %v3528, %v3509
    %v3530 = vadd.f32 %v3529, %v3510
    %v3531 = vadd.f32 %v3530, %v3511
    %v3532 = vadd.f32 %v3531, %v3512
    %v3533 = vadd.f32 %v3532, %v3513
    %v3534 = vadd.f32 %v3533, %v3514
    %v3535 = vadd.f32 %v3534, %v3515
    %v3536 = vadd.f32 %v3535, %v3516
    %v3537 = vadd.f32 %v3536, %v3517
    %v3538 = vadd.f32 %v3537, %v3518
    %v3539 = vadd.f32 %v3538, %v3519
    %v3540 = vadd.f32 %v3539, %v3520
    %v3541 = vadd.f32 %v3540, %v3521
    %v3542 = vadd.f32 %v3541, %v3522
    %v3543 = vsel %vm724, %v3523, 0.0
    %v3544 = vadd.f32 %v3542, %v3543
    %v3545 = vrot.slane %v3544, 4
    %v3546 = vadd.f32 %v3544, %v3545
    %v3547 = vrot.slane %v3546, 2
    %v3548 = vadd.f32 %v3546, %v3547
    %v3549 = vrot.slane %v3548, 1
    %v3550 = vadd.f32 %v3548, %v3549
    %v3551 = vrcp.pop 162.0
    %v3552 = vmul.f32 %v3550, %v3551
    %v3553 = vsub.f32 %v3503, %v3552
    %v3554 = vsub.f32 %v3504, %v3552
    %v3555 = vsub.f32 %v3505, %v3552
    %v3556 = vsub.f32 %v3506, %v3552
    %v3557 = vsub.f32 %v3507, %v3552
    %v3558 = vsub.f32 %v3508, %v3552
    %v3559 = vsub.f32 %v3509, %v3552
    %v3560 = vsub.f32 %v3510, %v3552
    %v3561 = vsub.f32 %v3511, %v3552
    %v3562 = vsub.f32 %v3512, %v3552
    %v3563 = vsub.f32 %v3513, %v3552
    %v3564 = vsub.f32 %v3514, %v3552
    %v3565 = vsub.f32 %v3515, %v3552
    %v3566 = vsub.f32 %v3516, %v3552
    %v3567 = vsub.f32 %v3517, %v3552
    %v3568 = vsub.f32 %v3518, %v3552
    %v3569 = vsub.f32 %v3519, %v3552
    %v3570 = vsub.f32 %v3520, %v3552
    %v3571 = vsub.f32 %v3521, %v3552
    %v3572 = vsub.f32 %v3522, %v3552
    %v3573 = vsub.f32 %v3523, %v3552
    %v3574 = vmul.f32 %v3553, %v3553
    %v3575 = vmul.f32 %v3554, %v3554
    %v3576 = vmul.f32 %v3555, %v3555
    %v3577 = vmul.f32 %v3556, %v3556
    %v3578 = vmul.f32 %v3557, %v3557
    %v3579 = vmul.f32 %v3558, %v3558
    %v3580 = vmul.f32 %v3559, %v3559
    %v3581 = vmul.f32 %v3560, %v3560
    %v3582 = vmul.f32 %v3561, %v3561
    %v3583 = vmul.f32 %v3562, %v3562
    %v3584 = vmul.f32 %v3563, %v3563
    %v3585 = vmul.f32 %v3564, %v3564
    %v3586 = vmul.f32 %v3565, %v3565
    %v3587 = vmul.f32 %v3566, %v3566
    %v3588 = vmul.f32 %v3567, %v3567
    %v3589 = vmul.f32 %v3568, %v3568
    %v3590 = vmul.f32 %v3569, %v3569
    %v3591 = vmul.f32 %v3570, %v3570
    %v3592 = vmul.f32 %v3571, %v3571
    %v3593 = vmul.f32 %v3572, %v3572
    %v3594 = vmul.f32 %v3573, %v3573
    %v3595 = vadd.f32 %v3574, %v3575
    %v3596 = vadd.f32 %v3595, %v3576
    %v3597 = vadd.f32 %v3596, %v3577
    %v3598 = vadd.f32 %v3597, %v3578
    %v3599 = vadd.f32 %v3598, %v3579
    %v3600 = vadd.f32 %v3599, %v3580
    %v3601 = vadd.f32 %v3600, %v3581
    %v3602 = vadd.f32 %v3601, %v3582
    %v3603 = vadd.f32 %v3602, %v3583
    %v3604 = vadd.f32 %v3603, %v3584
    %v3605 = vadd.f32 %v3604, %v3585
    %v3606 = vadd.f32 %v3605, %v3586
    %v3607 = vadd.f32 %v3606, %v3587
    %v3608 = vadd.f32 %v3607, %v3588
    %v3609 = vadd.f32 %v3608, %v3589
    %v3610 = vadd.f32 %v3609, %v3590
    %v3611 = vadd.f32 %v3610, %v3591
    %v3612 = vadd.f32 %v3611, %v3592
    %v3613 = vadd.f32 %v3612, %v3593
    %v3614 = vsel %vm724, %v3594, 0.0
    %v3615 = vadd.f32 %v3613, %v3614
    %v3616 = vrot.slane %v3615, 4
    %v3617 = vadd.f32 %v3615, %v3616
    %v3618 = vrot.slane %v3617, 2
    %v3619 = vadd.f32 %v3617, %v3618
    %v3620 = vrot.slane %v3619, 1
    %v3621 = vadd.f32 %v3619, %v3620
    %v3622 = vmul.f32 %v3621, %v3551
    %v3623 = vld [vmem:[#allocation10] sm:$0x1]
    %v3624 = vadd.f32 %v3622, 1e-05
    %v3625 = vrsqrt.pop %v3624
    %v3626 = vmul.f32 %v3623, %v3625
    %v3628 = vlaneseq
    %v3629 = vshrl.u32 %v3628, 7
    %v3630 = vsub.s32 0, %v3629
    %v3631 = vrot.slane %v3626, %v3630
    %v3633 = vmul.f32 %v3553, %v3631
    %v3634 = vmul.f32 %v3554, %v3631
    %v3635 = vmul.f32 %v3555, %v3631
    %v3636 = vmul.f32 %v3556, %v3631
    %v3637 = vmul.f32 %v3557, %v3631
    %v3638 = vmul.f32 %v3558, %v3631
    %v3639 = vmul.f32 %v3559, %v3631
    %v3640 = vmul.f32 %v3560, %v3631
    %v3641 = vmul.f32 %v3561, %v3631
    %v3642 = vmul.f32 %v3562, %v3631
    %v3643 = vmul.f32 %v3563, %v3631
    %v3644 = vmul.f32 %v3564, %v3631
    %v3645 = vmul.f32 %v3565, %v3631
    %v3646 = vmul.f32 %v3566, %v3631
    %v3647 = vmul.f32 %v3567, %v3631
    %v3648 = vmul.f32 %v3568, %v3631
    %v3649 = vmul.f32 %v3569, %v3631
    %v3650 = vmul.f32 %v3570, %v3631
    %v3651 = vmul.f32 %v3571, %v3631
    %v3652 = vmul.f32 %v3572, %v3631
    %v3653 = vmul.f32 %v3573, %v3631
    %v3654 = vld [vmem:[#allocation11] sm:$0x1]
    %v3656 = vlaneseq
    %v3657 = vshrl.u32 %v3656, 7
    %v3658 = vsub.s32 0, %v3657
    %v3659 = vrot.slane %v3654, %v3658
    %v3661 = vadd.f32 %v3633, %v3659
    %v3662 = vadd.f32 %v3634, %v3659
    %v3663 = vadd.f32 %v3635, %v3659
    %v3664 = vadd.f32 %v3636, %v3659
    %v3665 = vadd.f32 %v3637, %v3659
    %v3666 = vadd.f32 %v3638, %v3659
    %v3667 = vadd.f32 %v3639, %v3659
    %v3668 = vadd.f32 %v3640, %v3659
    %v3669 = vadd.f32 %v3641, %v3659
    %v3670 = vadd.f32 %v3642, %v3659
    %v3671 = vadd.f32 %v3643, %v3659
    %v3672 = vadd.f32 %v3644, %v3659
    %v3673 = vadd.f32 %v3645, %v3659
    %v3674 = vadd.f32 %v3646, %v3659
    %v3675 = vadd.f32 %v3647, %v3659
    %v3676 = vadd.f32 %v3648, %v3659
    %v3677 = vadd.f32 %v3649, %v3659
    %v3678 = vadd.f32 %v3650, %v3659
    %v3679 = vadd.f32 %v3651, %v3659
    %v3680 = vadd.f32 %v3652, %v3659
    %v3681 = vadd.f32 %v3653, %v3659
    %vm3682 = vcmp.ge.f32.partialorder %v3661, 0.0
    %vm3683 = vcmp.ge.f32.partialorder %v3662, 0.0
    %vm3684 = vcmp.ge.f32.partialorder %v3663, 0.0
    %vm3685 = vcmp.ge.f32.partialorder %v3664, 0.0
    %vm3686 = vcmp.ge.f32.partialorder %v3665, 0.0
    %vm3687 = vcmp.ge.f32.partialorder %v3666, 0.0
    %vm3688 = vcmp.ge.f32.partialorder %v3667, 0.0
    %vm3689 = vcmp.ge.f32.partialorder %v3668, 0.0
    %vm3690 = vcmp.ge.f32.partialorder %v3669, 0.0
    %vm3691 = vcmp.ge.f32.partialorder %v3670, 0.0
    %vm3692 = vcmp.ge.f32.partialorder %v3671, 0.0
    %vm3693 = vcmp.ge.f32.partialorder %v3672, 0.0
    %vm3694 = vcmp.ge.f32.partialorder %v3673, 0.0
    %vm3695 = vcmp.ge.f32.partialorder %v3674, 0.0
    %vm3696 = vcmp.ge.f32.partialorder %v3675, 0.0
    %vm3697 = vcmp.ge.f32.partialorder %v3676, 0.0
    %vm3698 = vcmp.ge.f32.partialorder %v3677, 0.0
    %vm3699 = vcmp.ge.f32.partialorder %v3678, 0.0
    %vm3700 = vcmp.ge.f32.partialorder %v3679, 0.0
    %vm3701 = vcmp.ge.f32.partialorder %v3680, 0.0
    %vm3702 = vcmp.ge.f32.partialorder %v3681, 0.0
    %v3703 = vmul.f32 %v3661, 0.2
    %v3704 = vmul.f32 %v3662, 0.2
    %v3705 = vmul.f32 %v3663, 0.2
    %v3706 = vmul.f32 %v3664, 0.2
    %v3707 = vmul.f32 %v3665, 0.2
    %v3708 = vmul.f32 %v3666, 0.2
    %v3709 = vmul.f32 %v3667, 0.2
    %v3710 = vmul.f32 %v3668, 0.2
    %v3711 = vmul.f32 %v3669, 0.2
    %v3712 = vmul.f32 %v3670, 0.2
    %v3713 = vmul.f32 %v3671, 0.2
    %v3714 = vmul.f32 %v3672, 0.2
    %v3715 = vmul.f32 %v3673, 0.2
    %v3716 = vmul.f32 %v3674, 0.2
    %v3717 = vmul.f32 %v3675, 0.2
    %v3718 = vmul.f32 %v3676, 0.2
    %v3719 = vmul.f32 %v3677, 0.2
    %v3720 = vmul.f32 %v3678, 0.2
    %v3721 = vmul.f32 %v3679, 0.2
    %v3722 = vmul.f32 %v3680, 0.2
    %v3723 = vmul.f32 %v3681, 0.2
    %v3724 = vsel %vm3682, %v3661, %v3703
    %v3725 = vsel %vm3683, %v3662, %v3704
    %v3726 = vsel %vm3684, %v3663, %v3705
    %v3727 = vsel %vm3685, %v3664, %v3706
    %v3728 = vsel %vm3686, %v3665, %v3707
    %v3729 = vsel %vm3687, %v3666, %v3708
    %v3730 = vsel %vm3688, %v3667, %v3709
    %v3731 = vsel %vm3689, %v3668, %v3710
    %v3732 = vsel %vm3690, %v3669, %v3711
    %v3733 = vsel %vm3691, %v3670, %v3712
    %v3734 = vsel %vm3692, %v3671, %v3713
    %v3735 = vsel %vm3693, %v3672, %v3714
    %v3736 = vsel %vm3694, %v3673, %v3715
    %v3737 = vsel %vm3695, %v3674, %v3716
    %v3738 = vsel %vm3696, %v3675, %v3717
    %v3739 = vsel %vm3697, %v3676, %v3718
    %v3740 = vsel %vm3698, %v3677, %v3719
    %v3741 = vsel %vm3699, %v3678, %v3720
    %v3742 = vsel %vm3700, %v3679, %v3721
    %v3743 = vsel %vm3701, %v3680, %v3722
    %v3744 = vsel %vm3702, %v3681, %v3723
    %v3745 = vld [vmem:[#allocation7] sm:$0xff]
    %v3746 = vld [vmem:[#allocation7 + $0x8] sm:$0xff]
    %v3747 = vld [vmem:[#allocation7 + $0x10] sm:$0xff]
    %v3748 = vld [vmem:[#allocation7 + $0x18] sm:$0xff]
    %v3749 = vld [vmem:[#allocation7 + $0x20] sm:$0xff]
    %v3750 = vld [vmem:[#allocation7 + $0x28] sm:$0xff]
    %v3751 = vld [vmem:[#allocation7 + $0x30] sm:$0xff]
    %v3752 = vld [vmem:[#allocation7 + $0x38] sm:$0xff]
    %v3753 = vld [vmem:[#allocation7 + $0x40] sm:$0xff]
    %v3754 = vld [vmem:[#allocation7 + $0x48] sm:$0xff]
    %v3755 = vld [vmem:[#allocation7 + $0x50] sm:$0xff]
    %v3756 = vld [vmem:[#allocation7 + $0x58] sm:$0xff]
    %v3757 = vld [vmem:[#allocation7 + $0x60] sm:$0xff]
    %v3758 = vld [vmem:[#allocation7 + $0x68] sm:$0xff]
    %v3759 = vld [vmem:[#allocation7 + $0x70] sm:$0xff]
    %v3760 = vld [vmem:[#allocation7 + $0x78] sm:$0xff]
    %3761 = vmatprep.subr.mxu0 0.0
    %3762 = vmatpush1.msra.mxu0 %v3760
    %3763 = vmatprep.subr.mxu0 0.0
    %3764 = vmatpush1.msra.mxu0 %v3759
    %3765 = vmatprep.subr.mxu0 0.0
    %3766 = vmatpush1.msra.mxu0 %v3758
    %3767 = vmatprep.subr.mxu0 0.0
    %3768 = vmatpush1.msra.mxu0 %v3757
    %3769 = vmatprep.subr.mxu0 0.0
    %3770 = vmatpush1.msra.mxu0 %v3756
    %3771 = vmatprep.subr.mxu0 0.0
    %3772 = vmatpush1.msra.mxu0 %v3755
    %3773 = vmatprep.subr.mxu0 0.0
    %3774 = vmatpush1.msra.mxu0 %v3754
    %3775 = vmatprep.subr.mxu0 0.0
    %3776 = vmatpush1.msra.mxu0 %v3753
    %3777 = vmatprep.subr.mxu0 0.0
    %3778 = vmatpush1.msra.mxu0 %v3752
    %3779 = vmatprep.subr.mxu0 0.0
    %3780 = vmatpush1.msra.mxu0 %v3751
    %3781 = vmatprep.subr.mxu0 0.0
    %3782 = vmatpush1.msra.mxu0 %v3750
    %3783 = vmatprep.subr.mxu0 0.0
    %3784 = vmatpush1.msra.mxu0 %v3749
    %3785 = vmatprep.subr.mxu0 0.0
    %3786 = vmatpush1.msra.mxu0 %v3748
    %3787 = vmatprep.subr.mxu0 0.0
    %3788 = vmatpush1.msra.mxu0 %v3747
    %3789 = vmatprep.subr.mxu0 0.0
    %3790 = vmatpush1.msra.mxu0 %v3746
    %3791 = vmatprep.subr.mxu0 0.0
    %3792 = vmatpush1.msra.mxu0 %v3745
    %3793 = vmatprep.subr.mxu0 0.0
    %3794 = vmatpush2.msra.mxu0 0.0
    %3795 = vmatprep.subr.mxu0 0.0
    %3796 = vmatpush2.msra.mxu0 0.0
    %3797 = vmatprep.subr.mxu0 0.0
    %3798 = vmatpush2.msra.mxu0 0.0
    %3799 = vmatprep.subr.mxu0 0.0
    %3800 = vmatpush2.msra.mxu0 0.0
    %3801 = vmatprep.subr.mxu0 0.0
    %3802 = vmatpush2.msra.mxu0 0.0
    %3803 = vmatprep.subr.mxu0 0.0
    %3804 = vmatpush2.msra.mxu0 0.0
    %3805 = vmatprep.subr.mxu0 0.0
    %3806 = vmatpush2.msra.mxu0 0.0
    %3807 = vmatprep.subr.mxu0 0.0
    %3808 = vmatpush2.msra.mxu0 0.0
    %3809 = vmatprep.subr.mxu0 0.0
    %3810 = vmatpush2.msra.mxu0 0.0
    %3811 = vmatprep.subr.mxu0 0.0
    %3812 = vmatpush2.msra.mxu0 0.0
    %3813 = vmatprep.subr.mxu0 0.0
    %3814 = vmatpush2.msra.mxu0 0.0
    %3815 = vmatprep.subr.mxu0 0.0
    %3816 = vmatpush2.msra.mxu0 0.0
    %3817 = vmatprep.subr.mxu0 0.0
    %3818 = vmatpush2.msra.mxu0 0.0
    %3819 = vmatprep.subr.mxu0 0.0
    %3820 = vmatpush2.msra.mxu0 0.0
    %3821 = vmatprep.subr.mxu0 0.0
    %3822 = vmatpush2.msra.mxu0 0.0
    %3823 = vmatprep.subr.mxu0 0.0
    %3824 = vmatpush2.msra.mxu0 0.0
    %3825 = vmatprep.mubr.f32.mxu0 0.0
    %3826 = vmatmul.mubr.f32.gmra.mxu0 %v3724
    %v3827 = vpop.f32.mrf.mxu0
    %v3828 = vadd.f32 0.0, %v3827
    %v3829 = vpop.f32.mrf.mxu0
    %3830 = vmatprep.mubr.f32.mxu0 0.0
    %3831 = vmatmul.mubr.f32.gmra.mxu0 %v3725
    %v3832 = vpop.f32.mrf.mxu0
    %v3833 = vadd.f32 0.0, %v3832
    %v3834 = vpop.f32.mrf.mxu0
    %3835 = vmatprep.mubr.f32.mxu0 0.0
    %3836 = vmatmul.mubr.f32.gmra.mxu0 %v3726
    %v3837 = vpop.f32.mrf.mxu0
    %v3838 = vadd.f32 0.0, %v3837
    %v3839 = vpop.f32.mrf.mxu0
    %3840 = vmatprep.mubr.f32.mxu0 0.0
    %3841 = vmatmul.mubr.f32.gmra.mxu0 %v3727
    %v3842 = vpop.f32.mrf.mxu0
    %v3843 = vadd.f32 0.0, %v3842
    %v3844 = vpop.f32.mrf.mxu0
    %3845 = vmatprep.mubr.f32.mxu0 0.0
    %3846 = vmatmul.mubr.f32.gmra.mxu0 %v3728
    %v3847 = vpop.f32.mrf.mxu0
    %v3848 = vadd.f32 0.0, %v3847
    %v3849 = vpop.f32.mrf.mxu0
    %3850 = vmatprep.mubr.f32.mxu0 0.0
    %3851 = vmatmul.mubr.f32.gmra.mxu0 %v3729
    %v3852 = vpop.f32.mrf.mxu0
    %v3853 = vadd.f32 0.0, %v3852
    %v3854 = vpop.f32.mrf.mxu0
    %3855 = vmatprep.mubr.f32.mxu0 0.0
    %3856 = vmatmul.mubr.f32.gmra.mxu0 %v3730
    %v3857 = vpop.f32.mrf.mxu0
    %v3858 = vadd.f32 0.0, %v3857
    %v3859 = vpop.f32.mrf.mxu0
    %3860 = vmatprep.mubr.f32.mxu0 0.0
    %3861 = vmatmul.mubr.f32.gmra.mxu0 %v3731
    %v3862 = vpop.f32.mrf.mxu0
    %v3863 = vadd.f32 0.0, %v3862
    %v3864 = vpop.f32.mrf.mxu0
    %3865 = vmatprep.mubr.f32.mxu0 0.0
    %3866 = vmatmul.mubr.f32.gmra.mxu0 %v3732
    %v3867 = vpop.f32.mrf.mxu0
    %v3868 = vadd.f32 0.0, %v3867
    %v3869 = vpop.f32.mrf.mxu0
    %3870 = vmatprep.mubr.f32.mxu0 0.0
    %3871 = vmatmul.mubr.f32.gmra.mxu0 %v3733
    %v3872 = vpop.f32.mrf.mxu0
    %v3873 = vadd.f32 0.0, %v3872
    %v3874 = vpop.f32.mrf.mxu0
    %3875 = vmatprep.mubr.f32.mxu0 0.0
    %3876 = vmatmul.mubr.f32.gmra.mxu0 %v3734
    %v3877 = vpop.f32.mrf.mxu0
    %v3878 = vadd.f32 0.0, %v3877
    %v3879 = vpop.f32.mrf.mxu0
    %3880 = vmatprep.mubr.f32.mxu0 0.0
    %3881 = vmatmul.mubr.f32.gmra.mxu0 %v3735
    %v3882 = vpop.f32.mrf.mxu0
    %v3883 = vadd.f32 0.0, %v3882
    %v3884 = vpop.f32.mrf.mxu0
    %3885 = vmatprep.mubr.f32.mxu0 0.0
    %3886 = vmatmul.mubr.f32.gmra.mxu0 %v3736
    %v3887 = vpop.f32.mrf.mxu0
    %v3888 = vadd.f32 0.0, %v3887
    %v3889 = vpop.f32.mrf.mxu0
    %3890 = vmatprep.mubr.f32.mxu0 0.0
    %3891 = vmatmul.mubr.f32.gmra.mxu0 %v3737
    %v3892 = vpop.f32.mrf.mxu0
    %v3893 = vadd.f32 0.0, %v3892
    %v3894 = vpop.f32.mrf.mxu0
    %3895 = vmatprep.mubr.f32.mxu0 0.0
    %3896 = vmatmul.mubr.f32.gmra.mxu0 %v3738
    %v3897 = vpop.f32.mrf.mxu0
    %v3898 = vadd.f32 0.0, %v3897
    %v3899 = vpop.f32.mrf.mxu0
    %3900 = vmatprep.mubr.f32.mxu0 0.0
    %3901 = vmatmul.mubr.f32.gmra.mxu0 %v3739
    %v3902 = vpop.f32.mrf.mxu0
    %v3903 = vadd.f32 0.0, %v3902
    %v3904 = vpop.f32.mrf.mxu0
    %3905 = vmatprep.mubr.f32.mxu0 0.0
    %3906 = vmatmul.mubr.f32.gmra.mxu0 %v3740
    %v3907 = vpop.f32.mrf.mxu0
    %v3908 = vadd.f32 0.0, %v3907
    %v3909 = vpop.f32.mrf.mxu0
    %3910 = vmatprep.mubr.f32.mxu0 0.0
    %3911 = vmatmul.mubr.f32.gmra.mxu0 %v3741
    %v3912 = vpop.f32.mrf.mxu0
    %v3913 = vadd.f32 0.0, %v3912
    %v3914 = vpop.f32.mrf.mxu0
    %3915 = vmatprep.mubr.f32.mxu0 0.0
    %3916 = vmatmul.mubr.f32.gmra.mxu0 %v3742
    %v3917 = vpop.f32.mrf.mxu0
    %v3918 = vadd.f32 0.0, %v3917
    %v3919 = vpop.f32.mrf.mxu0
    %3920 = vmatprep.mubr.f32.mxu0 0.0
    %3921 = vmatmul.mubr.f32.gmra.mxu0 %v3743
    %v3922 = vpop.f32.mrf.mxu0
    %v3923 = vadd.f32 0.0, %v3922
    %v3924 = vpop.f32.mrf.mxu0
    %3925 = vmatprep.mubr.f32.mxu0 0.0
    %3926 = vmatmul.mubr.f32.gmra.mxu0 %v3744
    %v3927 = vpop.f32.mrf.mxu0
    %v3928 = vadd.f32 0.0, %v3927
    %v3929 = vpop.f32.mrf.mxu0
    %3930 = vdwg.mxu0
    %v3931 = vld [vmem:[#allocation7 + $0x80] sm:$0xff]
    %v3932 = vld [vmem:[#allocation7 + $0x88] sm:$0xff]
    %v3933 = vld [vmem:[#allocation7 + $0x90] sm:$0xff]
    %v3934 = vld [vmem:[#allocation7 + $0x98] sm:$0xff]
    %v3935 = vld [vmem:[#allocation7 + $0xa0] sm:$0xff]
    %v3936 = vld [vmem:[#allocation7 + $0xa8] sm:$0xff]
    %v3937 = vld [vmem:[#allocation7 + $0xb0] sm:$0xff]
    %v3938 = vld [vmem:[#allocation7 + $0xb8] sm:$0xff]
    %v3939 = vld [vmem:[#allocation7 + $0xc0] sm:$0xff]
    %v3940 = vld [vmem:[#allocation7 + $0xc8] sm:$0xff]
    %v3941 = vld [vmem:[#allocation7 + $0xd0] sm:$0xff]
    %v3942 = vld [vmem:[#allocation7 + $0xd8] sm:$0xff]
    %v3943 = vld [vmem:[#allocation7 + $0xe0] sm:$0xff]
    %v3944 = vld [vmem:[#allocation7 + $0xe8] sm:$0xff]
    %v3945 = vld [vmem:[#allocation7 + $0xf0] sm:$0xff]
    %v3946 = vld [vmem:[#allocation7 + $0xf8] sm:$0xff]
    %3947 = vmatprep.subr.mxu0 0.0
    %3948 = vmatpush1.msra.mxu0 %v3946
    %3949 = vmatprep.subr.mxu0 0.0
    %3950 = vmatpush1.msra.mxu0 %v3945
    %3951 = vmatprep.subr.mxu0 0.0
    %3952 = vmatpush1.msra.mxu0 %v3944
    %3953 = vmatprep.subr.mxu0 0.0
    %3954 = vmatpush1.msra.mxu0 %v3943
    %3955 = vmatprep.subr.mxu0 0.0
    %3956 = vmatpush1.msra.mxu0 %v3942
    %3957 = vmatprep.subr.mxu0 0.0
    %3958 = vmatpush1.msra.mxu0 %v3941
    %3959 = vmatprep.subr.mxu0 0.0
    %3960 = vmatpush1.msra.mxu0 %v3940
    %3961 = vmatprep.subr.mxu0 0.0
    %3962 = vmatpush1.msra.mxu0 %v3939
    %3963 = vmatprep.subr.mxu0 0.0
    %3964 = vmatpush1.msra.mxu0 %v3938
    %3965 = vmatprep.subr.mxu0 0.0
    %3966 = vmatpush1.msra.mxu0 %v3937
    %3967 = vmatprep.subr.mxu0 0.0
    %3968 = vmatpush1.msra.mxu0 %v3936
    %3969 = vmatprep.subr.mxu0 0.0
    %3970 = vmatpush1.msra.mxu0 %v3935
    %3971 = vmatprep.subr.mxu0 0.0
    %3972 = vmatpush1.msra.mxu0 %v3934
    %3973 = vmatprep.subr.mxu0 0.0
    %3974 = vmatpush1.msra.mxu0 %v3933
    %3975 = vmatprep.subr.mxu0 0.0
    %3976 = vmatpush1.msra.mxu0 %v3932
    %3977 = vmatprep.subr.mxu0 0.0
    %3978 = vmatpush1.msra.mxu0 %v3931
    %3979 = vmatprep.subr.mxu0 0.0
    %3980 = vmatpush2.msra.mxu0 0.0
    %3981 = vmatprep.subr.mxu0 0.0
    %3982 = vmatpush2.msra.mxu0 0.0
    %3983 = vmatprep.subr.mxu0 0.0
    %3984 = vmatpush2.msra.mxu0 0.0
    %3985 = vmatprep.subr.mxu0 0.0
    %3986 = vmatpush2.msra.mxu0 0.0
    %3987 = vmatprep.subr.mxu0 0.0
    %3988 = vmatpush2.msra.mxu0 0.0
    %3989 = vmatprep.subr.mxu0 0.0
    %3990 = vmatpush2.msra.mxu0 0.0
    %3991 = vmatprep.subr.mxu0 0.0
    %3992 = vmatpush2.msra.mxu0 0.0
    %3993 = vmatprep.subr.mxu0 0.0
    %3994 = vmatpush2.msra.mxu0 0.0
    %3995 = vmatprep.subr.mxu0 0.0
    %3996 = vmatpush2.msra.mxu0 0.0
    %3997 = vmatprep.subr.mxu0 0.0
    %3998 = vmatpush2.msra.mxu0 0.0
    %3999 = vmatprep.subr.mxu0 0.0
    %4000 = vmatpush2.msra.mxu0 0.0
    %4001 = vmatprep.subr.mxu0 0.0
    %4002 = vmatpush2.msra.mxu0 0.0
    %4003 = vmatprep.subr.mxu0 0.0
    %4004 = vmatpush2.msra.mxu0 0.0
    %4005 = vmatprep.subr.mxu0 0.0
    %4006 = vmatpush2.msra.mxu0 0.0
    %4007 = vmatprep.subr.mxu0 0.0
    %4008 = vmatpush2.msra.mxu0 0.0
    %4009 = vmatprep.subr.mxu0 0.0
    %4010 = vmatpush2.msra.mxu0 0.0
    %4011 = vmatprep.mubr.f32.mxu0 0.0
    %4012 = vmatmul.mubr.f32.gmra.mxu0 %v3724
    %v4013 = vpop.f32.mrf.mxu0
    %v4014 = vadd.f32 0.0, %v4013
    %v4015 = vpop.f32.mrf.mxu0
    %4016 = vmatprep.mubr.f32.mxu0 0.0
    %4017 = vmatmul.mubr.f32.gmra.mxu0 %v3725
    %v4018 = vpop.f32.mrf.mxu0
    %v4019 = vadd.f32 0.0, %v4018
    %v4020 = vpop.f32.mrf.mxu0
    %4021 = vmatprep.mubr.f32.mxu0 0.0
    %4022 = vmatmul.mubr.f32.gmra.mxu0 %v3726
    %v4023 = vpop.f32.mrf.mxu0
    %v4024 = vadd.f32 0.0, %v4023
    %v4025 = vpop.f32.mrf.mxu0
    %4026 = vmatprep.mubr.f32.mxu0 0.0
    %4027 = vmatmul.mubr.f32.gmra.mxu0 %v3727
    %v4028 = vpop.f32.mrf.mxu0
    %v4029 = vadd.f32 0.0, %v4028
    %v4030 = vpop.f32.mrf.mxu0
    %4031 = vmatprep.mubr.f32.mxu0 0.0
    %4032 = vmatmul.mubr.f32.gmra.mxu0 %v3728
    %v4033 = vpop.f32.mrf.mxu0
    %v4034 = vadd.f32 0.0, %v4033
    %v4035 = vpop.f32.mrf.mxu0
    %4036 = vmatprep.mubr.f32.mxu0 0.0
    %4037 = vmatmul.mubr.f32.gmra.mxu0 %v3729
    %v4038 = vpop.f32.mrf.mxu0
    %v4039 = vadd.f32 0.0, %v4038
    %v4040 = vpop.f32.mrf.mxu0
    %4041 = vmatprep.mubr.f32.mxu0 0.0
    %4042 = vmatmul.mubr.f32.gmra.mxu0 %v3730
    %v4043 = vpop.f32.mrf.mxu0
    %v4044 = vadd.f32 0.0, %v4043
    %v4045 = vpop.f32.mrf.mxu0
    %4046 = vmatprep.mubr.f32.mxu0 0.0
    %4047 = vmatmul.mubr.f32.gmra.mxu0 %v3731
    %v4048 = vpop.f32.mrf.mxu0
    %v4049 = vadd.f32 0.0, %v4048
    %v4050 = vpop.f32.mrf.mxu0
    %4051 = vmatprep.mubr.f32.mxu0 0.0
    %4052 = vmatmul.mubr.f32.gmra.mxu0 %v3732
    %v4053 = vpop.f32.mrf.mxu0
    %v4054 = vadd.f32 0.0, %v4053
    %v4055 = vpop.f32.mrf.mxu0
    %4056 = vmatprep.mubr.f32.mxu0 0.0
    %4057 = vmatmul.mubr.f32.gmra.mxu0 %v3733
    %v4058 = vpop.f32.mrf.mxu0
    %v4059 = vadd.f32 0.0, %v4058
    %v4060 = vpop.f32.mrf.mxu0
    %4061 = vmatprep.mubr.f32.mxu0 0.0
    %4062 = vmatmul.mubr.f32.gmra.mxu0 %v3734
    %v4063 = vpop.f32.mrf.mxu0
    %v4064 = vadd.f32 0.0, %v4063
    %v4065 = vpop.f32.mrf.mxu0
    %4066 = vmatprep.mubr.f32.mxu0 0.0
    %4067 = vmatmul.mubr.f32.gmra.mxu0 %v3735
    %v4068 = vpop.f32.mrf.mxu0
    %v4069 = vadd.f32 0.0, %v4068
    %v4070 = vpop.f32.mrf.mxu0
    %4071 = vmatprep.mubr.f32.mxu0 0.0
    %4072 = vmatmul.mubr.f32.gmra.mxu0 %v3736
    %v4073 = vpop.f32.mrf.mxu0
    %v4074 = vadd.f32 0.0, %v4073
    %v4075 = vpop.f32.mrf.mxu0
    %4076 = vmatprep.mubr.f32.mxu0 0.0
    %4077 = vmatmul.mubr.f32.gmra.mxu0 %v3737
    %v4078 = vpop.f32.mrf.mxu0
    %v4079 = vadd.f32 0.0, %v4078
    %v4080 = vpop.f32.mrf.mxu0
    %4081 = vmatprep.mubr.f32.mxu0 0.0
    %4082 = vmatmul.mubr.f32.gmra.mxu0 %v3738
    %v4083 = vpop.f32.mrf.mxu0
    %v4084 = vadd.f32 0.0, %v4083
    %v4085 = vpop.f32.mrf.mxu0
    %4086 = vmatprep.mubr.f32.mxu0 0.0
    %4087 = vmatmul.mubr.f32.gmra.mxu0 %v3739
    %v4088 = vpop.f32.mrf.mxu0
    %v4089 = vadd.f32 0.0, %v4088
    %v4090 = vpop.f32.mrf.mxu0
    %4091 = vmatprep.mubr.f32.mxu0 0.0
    %4092 = vmatmul.mubr.f32.gmra.mxu0 %v3740
    %v4093 = vpop.f32.mrf.mxu0
    %v4094 = vadd.f32 0.0, %v4093
    %v4095 = vpop.f32.mrf.mxu0
    %4096 = vmatprep.mubr.f32.mxu0 0.0
    %4097 = vmatmul.mubr.f32.gmra.mxu0 %v3741
    %v4098 = vpop.f32.mrf.mxu0
    %v4099 = vadd.f32 0.0, %v4098
    %v4100 = vpop.f32.mrf.mxu0
    %4101 = vmatprep.mubr.f32.mxu0 0.0
    %4102 = vmatmul.mubr.f32.gmra.mxu0 %v3742
    %v4103 = vpop.f32.mrf.mxu0
    %v4104 = vadd.f32 0.0, %v4103
    %v4105 = vpop.f32.mrf.mxu0
    %4106 = vmatprep.mubr.f32.mxu0 0.0
    %4107 = vmatmul.mubr.f32.gmra.mxu0 %v3743
    %v4108 = vpop.f32.mrf.mxu0
    %v4109 = vadd.f32 0.0, %v4108
    %v4110 = vpop.f32.mrf.mxu0
    %4111 = vmatprep.mubr.f32.mxu0 0.0
    %4112 = vmatmul.mubr.f32.gmra.mxu0 %v3744
    %v4113 = vpop.f32.mrf.mxu0
    %v4114 = vadd.f32 0.0, %v4113
    %v4115 = vpop.f32.mrf.mxu0
    %4116 = vdwg.mxu0
    %v4118 = vsel %vm724, %v4114, 0
    %4120 = vmatprep.subr.mxu0 0.0
    %4121 = vmatpush1.msra.mxu0 %v4089
    %4122 = vmatprep.subr.mxu0 0.0
    %4123 = vmatpush1.msra.mxu0 %v4084
    %4124 = vmatprep.subr.mxu0 0.0
    %4125 = vmatpush1.msra.mxu0 %v4079
    %4126 = vmatprep.subr.mxu0 0.0
    %4127 = vmatpush1.msra.mxu0 %v4074
    %4128 = vmatprep.subr.mxu0 0.0
    %4129 = vmatpush1.msra.mxu0 %v4069
    %4130 = vmatprep.subr.mxu0 0.0
    %4131 = vmatpush1.msra.mxu0 %v4064
    %4132 = vmatprep.subr.mxu0 0.0
    %4133 = vmatpush1.msra.mxu0 %v4059
    %4134 = vmatprep.subr.mxu0 0.0
    %4135 = vmatpush1.msra.mxu0 %v4054
    %4136 = vmatprep.subr.mxu0 0.0
    %4137 = vmatpush1.msra.mxu0 %v4049
    %4138 = vmatprep.subr.mxu0 0.0
    %4139 = vmatpush1.msra.mxu0 %v4044
    %4140 = vmatprep.subr.mxu0 0.0
    %4141 = vmatpush1.msra.mxu0 %v4039
    %4142 = vmatprep.subr.mxu0 0.0
    %4143 = vmatpush1.msra.mxu0 %v4034
    %4144 = vmatprep.subr.mxu0 0.0
    %4145 = vmatpush1.msra.mxu0 %v4029
    %4146 = vmatprep.subr.mxu0 0.0
    %4147 = vmatpush1.msra.mxu0 %v4024
    %4148 = vmatprep.subr.mxu0 0.0
    %4149 = vmatpush1.msra.mxu0 %v4019
    %4150 = vmatprep.subr.mxu0 0.0
    %4151 = vmatpush1.msra.mxu0 %v4014
    %4152 = vmatprep.subr.mxu0 0.0
    %4153 = vmatpush2.msra.mxu0 0.0
    %4154 = vmatprep.subr.mxu0 0.0
    %4155 = vmatpush2.msra.mxu0 0.0
    %4156 = vmatprep.subr.mxu0 0.0
    %4157 = vmatpush2.msra.mxu0 0.0
    %4158 = vmatprep.subr.mxu0 0.0
    %4159 = vmatpush2.msra.mxu0 0.0
    %4160 = vmatprep.subr.mxu0 0.0
    %4161 = vmatpush2.msra.mxu0 0.0
    %4162 = vmatprep.subr.mxu0 0.0
    %4163 = vmatpush2.msra.mxu0 0.0
    %4164 = vmatprep.subr.mxu0 0.0
    %4165 = vmatpush2.msra.mxu0 0.0
    %4166 = vmatprep.subr.mxu0 0.0
    %4167 = vmatpush2.msra.mxu0 0.0
    %4168 = vmatprep.subr.mxu0 0.0
    %4169 = vmatpush2.msra.mxu0 0.0
    %4170 = vmatprep.subr.mxu0 0.0
    %4171 = vmatpush2.msra.mxu0 0.0
    %4172 = vmatprep.subr.mxu0 0.0
    %4173 = vmatpush2.msra.mxu0 0.0
    %4174 = vmatprep.subr.mxu0 0.0
    %4175 = vmatpush2.msra.mxu0 %v4118
    %4176 = vmatprep.subr.mxu0 0.0
    %4177 = vmatpush2.msra.mxu0 %v4109
    %4178 = vmatprep.subr.mxu0 0.0
    %4179 = vmatpush2.msra.mxu0 %v4104
    %4180 = vmatprep.subr.mxu0 0.0
    %4181 = vmatpush2.msra.mxu0 %v4099
    %4182 = vmatprep.subr.mxu0 0.0
    %4183 = vmatpush2.msra.mxu0 %v4094
    %4184 = vmatprep.mubr.f32.mxu0 %v662
    %4185 = vmatmul.mubr.f32.gmra.mxu0 %v618
    %v4186 = vpop.f32.mrf.mxu0
    %v4187 = vadd.f32 0.0, %v4186
    %v4188 = vpop.f32.mrf.mxu0
    %4189 = vmatprep.mubr.f32.mxu0 %v665
    %4190 = vmatmul.mubr.f32.gmra.mxu0 %v620
    %v4191 = vpop.f32.mrf.mxu0
    %v4192 = vadd.f32 0.0, %v4191
    %v4193 = vpop.f32.mrf.mxu0
    %4194 = vmatprep.mubr.f32.mxu0 %v668
    %4195 = vmatmul.mubr.f32.gmra.mxu0 %v622
    %v4196 = vpop.f32.mrf.mxu0
    %v4197 = vadd.f32 0.0, %v4196
    %v4198 = vpop.f32.mrf.mxu0
    %4199 = vmatprep.mubr.f32.mxu0 %v671
    %4200 = vmatmul.mubr.f32.gmra.mxu0 %v624
    %v4201 = vpop.f32.mrf.mxu0
    %v4202 = vadd.f32 0.0, %v4201
    %v4203 = vpop.f32.mrf.mxu0
    %4204 = vmatprep.mubr.f32.mxu0 %v674
    %4205 = vmatmul.mubr.f32.gmra.mxu0 %v626
    %v4206 = vpop.f32.mrf.mxu0
    %v4207 = vadd.f32 0.0, %v4206
    %v4208 = vpop.f32.mrf.mxu0
    %4209 = vmatprep.mubr.f32.mxu0 %v677
    %4210 = vmatmul.mubr.f32.gmra.mxu0 %v628
    %v4211 = vpop.f32.mrf.mxu0
    %v4212 = vadd.f32 0.0, %v4211
    %v4213 = vpop.f32.mrf.mxu0
    %4214 = vmatprep.mubr.f32.mxu0 %v680
    %4215 = vmatmul.mubr.f32.gmra.mxu0 %v630
    %v4216 = vpop.f32.mrf.mxu0
    %v4217 = vadd.f32 0.0, %v4216
    %v4218 = vpop.f32.mrf.mxu0
    %4219 = vmatprep.mubr.f32.mxu0 %v683
    %4220 = vmatmul.mubr.f32.gmra.mxu0 %v632
    %v4221 = vpop.f32.mrf.mxu0
    %v4222 = vadd.f32 0.0, %v4221
    %v4223 = vpop.f32.mrf.mxu0
    %4224 = vmatprep.mubr.f32.mxu0 %v686
    %4225 = vmatmul.mubr.f32.gmra.mxu0 %v634
    %v4226 = vpop.f32.mrf.mxu0
    %v4227 = vadd.f32 0.0, %v4226
    %v4228 = vpop.f32.mrf.mxu0
    %4229 = vmatprep.mubr.f32.mxu0 %v689
    %4230 = vmatmul.mubr.f32.gmra.mxu0 %v636
    %v4231 = vpop.f32.mrf.mxu0
    %v4232 = vadd.f32 0.0, %v4231
    %v4233 = vpop.f32.mrf.mxu0
    %4234 = vmatprep.mubr.f32.mxu0 %v692
    %4235 = vmatmul.mubr.f32.gmra.mxu0 %v638
    %v4236 = vpop.f32.mrf.mxu0
    %v4237 = vadd.f32 0.0, %v4236
    %v4238 = vpop.f32.mrf.mxu0
    %4239 = vmatprep.mubr.f32.mxu0 %v695
    %4240 = vmatmul.mubr.f32.gmra.mxu0 %v640
    %v4241 = vpop.f32.mrf.mxu0
    %v4242 = vadd.f32 0.0, %v4241
    %v4243 = vpop.f32.mrf.mxu0
    %4244 = vmatprep.mubr.f32.mxu0 %v698
    %4245 = vmatmul.mubr.f32.gmra.mxu0 %v642
    %v4246 = vpop.f32.mrf.mxu0
    %v4247 = vadd.f32 0.0, %v4246
    %v4248 = vpop.f32.mrf.mxu0
    %4249 = vmatprep.mubr.f32.mxu0 %v701
    %4250 = vmatmul.mubr.f32.gmra.mxu0 %v644
    %v4251 = vpop.f32.mrf.mxu0
    %v4252 = vadd.f32 0.0, %v4251
    %v4253 = vpop.f32.mrf.mxu0
    %4254 = vmatprep.mubr.f32.mxu0 %v704
    %4255 = vmatmul.mubr.f32.gmra.mxu0 %v646
    %v4256 = vpop.f32.mrf.mxu0
    %v4257 = vadd.f32 0.0, %v4256
    %v4258 = vpop.f32.mrf.mxu0
    %4259 = vmatprep.mubr.f32.mxu0 %v707
    %4260 = vmatmul.mubr.f32.gmra.mxu0 %v648
    %v4261 = vpop.f32.mrf.mxu0
    %v4262 = vadd.f32 0.0, %v4261
    %v4263 = vpop.f32.mrf.mxu0
    %4264 = vmatprep.mubr.f32.mxu0 %v710
    %4265 = vmatmul.mubr.f32.gmra.mxu0 %v650
    %v4266 = vpop.f32.mrf.mxu0
    %v4267 = vadd.f32 0.0, %v4266
    %v4268 = vpop.f32.mrf.mxu0
    %4269 = vmatprep.mubr.f32.mxu0 %v713
    %4270 = vmatmul.mubr.f32.gmra.mxu0 %v652
    %v4271 = vpop.f32.mrf.mxu0
    %v4272 = vadd.f32 0.0, %v4271
    %v4273 = vpop.f32.mrf.mxu0
    %4274 = vmatprep.mubr.f32.mxu0 %v716
    %4275 = vmatmul.mubr.f32.gmra.mxu0 %v654
    %v4276 = vpop.f32.mrf.mxu0
    %v4277 = vadd.f32 0.0, %v4276
    %v4278 = vpop.f32.mrf.mxu0
    %4279 = vmatprep.mubr.f32.mxu0 %v719
    %4280 = vmatmul.mubr.f32.gmra.mxu0 %v656
    %v4281 = vpop.f32.mrf.mxu0
    %v4282 = vadd.f32 0.0, %v4281
    %v4283 = vpop.f32.mrf.mxu0
    %4284 = vmatprep.mubr.f32.mxu0 %v722
    %4285 = vmatmul.mubr.f32.gmra.mxu0 %v658
    %v4286 = vpop.f32.mrf.mxu0
    %v4287 = vadd.f32 0.0, %v4286
    %v4288 = vpop.f32.mrf.mxu0
    %4289 = vdwg.mxu0
    %v4291 = vsel %vm724, %v3928, 0
    %4293 = vmatprep.subr.mxu0 0.0
    %4294 = vmatpush1.msra.mxu0 %v3903
    %4295 = vmatprep.subr.mxu0 0.0
    %4296 = vmatpush1.msra.mxu0 %v3898
    %4297 = vmatprep.subr.mxu0 0.0
    %4298 = vmatpush1.msra.mxu0 %v3893
    %4299 = vmatprep.subr.mxu0 0.0
    %4300 = vmatpush1.msra.mxu0 %v3888
    %4301 = vmatprep.subr.mxu0 0.0
    %4302 = vmatpush1.msra.mxu0 %v3883
    %4303 = vmatprep.subr.mxu0 0.0
    %4304 = vmatpush1.msra.mxu0 %v3878
    %4305 = vmatprep.subr.mxu0 0.0
    %4306 = vmatpush1.msra.mxu0 %v3873
    %4307 = vmatprep.subr.mxu0 0.0
    %4308 = vmatpush1.msra.mxu0 %v3868
    %4309 = vmatprep.subr.mxu0 0.0
    %4310 = vmatpush1.msra.mxu0 %v3863
    %4311 = vmatprep.subr.mxu0 0.0
    %4312 = vmatpush1.msra.mxu0 %v3858
    %4313 = vmatprep.subr.mxu0 0.0
    %4314 = vmatpush1.msra.mxu0 %v3853
    %4315 = vmatprep.subr.mxu0 0.0
    %4316 = vmatpush1.msra.mxu0 %v3848
    %4317 = vmatprep.subr.mxu0 0.0
    %4318 = vmatpush1.msra.mxu0 %v3843
    %4319 = vmatprep.subr.mxu0 0.0
    %4320 = vmatpush1.msra.mxu0 %v3838
    %4321 = vmatprep.subr.mxu0 0.0
    %4322 = vmatpush1.msra.mxu0 %v3833
    %4323 = vmatprep.subr.mxu0 0.0
    %4324 = vmatpush1.msra.mxu0 %v3828
    %4325 = vmatprep.subr.mxu0 0.0
    %4326 = vmatpush2.msra.mxu0 0.0
    %4327 = vmatprep.subr.mxu0 0.0
    %4328 = vmatpush2.msra.mxu0 0.0
    %4329 = vmatprep.subr.mxu0 0.0
    %4330 = vmatpush2.msra.mxu0 0.0
    %4331 = vmatprep.subr.mxu0 0.0
    %4332 = vmatpush2.msra.mxu0 0.0
    %4333 = vmatprep.subr.mxu0 0.0
    %4334 = vmatpush2.msra.mxu0 0.0
    %4335 = vmatprep.subr.mxu0 0.0
    %4336 = vmatpush2.msra.mxu0 0.0
    %4337 = vmatprep.subr.mxu0 0.0
    %4338 = vmatpush2.msra.mxu0 0.0
    %4339 = vmatprep.subr.mxu0 0.0
    %4340 = vmatpush2.msra.mxu0 0.0
    %4341 = vmatprep.subr.mxu0 0.0
    %4342 = vmatpush2.msra.mxu0 0.0
    %4343 = vmatprep.subr.mxu0 0.0
    %4344 = vmatpush2.msra.mxu0 0.0
    %4345 = vmatprep.subr.mxu0 0.0
    %4346 = vmatpush2.msra.mxu0 0.0
    %4347 = vmatprep.subr.mxu0 0.0
    %4348 = vmatpush2.msra.mxu0 %v4291
    %4349 = vmatprep.subr.mxu0 0.0
    %4350 = vmatpush2.msra.mxu0 %v3923
    %4351 = vmatprep.subr.mxu0 0.0
    %4352 = vmatpush2.msra.mxu0 %v3918
    %4353 = vmatprep.subr.mxu0 0.0
    %4354 = vmatpush2.msra.mxu0 %v3913
    %4355 = vmatprep.subr.mxu0 0.0
    %4356 = vmatpush2.msra.mxu0 %v3908
    %4357 = vmatprep.mubr.f32.mxu0 %v899
    %4358 = vmatmul.mubr.f32.gmra.mxu0 %v397
    %v4359 = vpop.f32.mrf.mxu0
    %v4360 = vadd.f32 %v4187, %v4359
    %v4361 = vpop.f32.mrf.mxu0
    %4362 = vmatprep.mubr.f32.mxu0 %v902
    %4363 = vmatmul.mubr.f32.gmra.mxu0 %v399
    %v4364 = vpop.f32.mrf.mxu0
    %v4365 = vadd.f32 %v4192, %v4364
    %v4366 = vpop.f32.mrf.mxu0
    %4367 = vmatprep.mubr.f32.mxu0 %v905
    %4368 = vmatmul.mubr.f32.gmra.mxu0 %v401
    %v4369 = vpop.f32.mrf.mxu0
    %v4370 = vadd.f32 %v4197, %v4369
    %v4371 = vpop.f32.mrf.mxu0
    %4372 = vmatprep.mubr.f32.mxu0 %v908
    %4373 = vmatmul.mubr.f32.gmra.mxu0 %v403
    %v4374 = vpop.f32.mrf.mxu0
    %v4375 = vadd.f32 %v4202, %v4374
    %v4376 = vpop.f32.mrf.mxu0
    %4377 = vmatprep.mubr.f32.mxu0 %v911
    %4378 = vmatmul.mubr.f32.gmra.mxu0 %v405
    %v4379 = vpop.f32.mrf.mxu0
    %v4380 = vadd.f32 %v4207, %v4379
    %v4381 = vpop.f32.mrf.mxu0
    %4382 = vmatprep.mubr.f32.mxu0 %v914
    %4383 = vmatmul.mubr.f32.gmra.mxu0 %v407
    %v4384 = vpop.f32.mrf.mxu0
    %v4385 = vadd.f32 %v4212, %v4384
    %v4386 = vpop.f32.mrf.mxu0
    %4387 = vmatprep.mubr.f32.mxu0 %v917
    %4388 = vmatmul.mubr.f32.gmra.mxu0 %v409
    %v4389 = vpop.f32.mrf.mxu0
    %v4390 = vadd.f32 %v4217, %v4389
    %v4391 = vpop.f32.mrf.mxu0
    %4392 = vmatprep.mubr.f32.mxu0 %v920
    %4393 = vmatmul.mubr.f32.gmra.mxu0 %v411
    %v4394 = vpop.f32.mrf.mxu0
    %v4395 = vadd.f32 %v4222, %v4394
    %v4396 = vpop.f32.mrf.mxu0
    %4397 = vmatprep.mubr.f32.mxu0 %v923
    %4398 = vmatmul.mubr.f32.gmra.mxu0 %v413
    %v4399 = vpop.f32.mrf.mxu0
    %v4400 = vadd.f32 %v4227, %v4399
    %v4401 = vpop.f32.mrf.mxu0
    %4402 = vmatprep.mubr.f32.mxu0 %v926
    %4403 = vmatmul.mubr.f32.gmra.mxu0 %v415
    %v4404 = vpop.f32.mrf.mxu0
    %v4405 = vadd.f32 %v4232, %v4404
    %v4406 = vpop.f32.mrf.mxu0
    %4407 = vmatprep.mubr.f32.mxu0 %v929
    %4408 = vmatmul.mubr.f32.gmra.mxu0 %v417
    %v4409 = vpop.f32.mrf.mxu0
    %v4410 = vadd.f32 %v4237, %v4409
    %v4411 = vpop.f32.mrf.mxu0
    %4412 = vmatprep.mubr.f32.mxu0 %v932
    %4413 = vmatmul.mubr.f32.gmra.mxu0 %v419
    %v4414 = vpop.f32.mrf.mxu0
    %v4415 = vadd.f32 %v4242, %v4414
    %v4416 = vpop.f32.mrf.mxu0
    %4417 = vmatprep.mubr.f32.mxu0 %v935
    %4418 = vmatmul.mubr.f32.gmra.mxu0 %v421
    %v4419 = vpop.f32.mrf.mxu0
    %v4420 = vadd.f32 %v4247, %v4419
    %v4421 = vpop.f32.mrf.mxu0
    %4422 = vmatprep.mubr.f32.mxu0 %v938
    %4423 = vmatmul.mubr.f32.gmra.mxu0 %v423
    %v4424 = vpop.f32.mrf.mxu0
    %v4425 = vadd.f32 %v4252, %v4424
    %v4426 = vpop.f32.mrf.mxu0
    %4427 = vmatprep.mubr.f32.mxu0 %v941
    %4428 = vmatmul.mubr.f32.gmra.mxu0 %v425
    %v4429 = vpop.f32.mrf.mxu0
    %v4430 = vadd.f32 %v4257, %v4429
    %v4431 = vpop.f32.mrf.mxu0
    %4432 = vmatprep.mubr.f32.mxu0 %v944
    %4433 = vmatmul.mubr.f32.gmra.mxu0 %v427
    %v4434 = vpop.f32.mrf.mxu0
    %v4435 = vadd.f32 %v4262, %v4434
    %v4436 = vpop.f32.mrf.mxu0
    %4437 = vmatprep.mubr.f32.mxu0 %v947
    %4438 = vmatmul.mubr.f32.gmra.mxu0 %v429
    %v4439 = vpop.f32.mrf.mxu0
    %v4440 = vadd.f32 %v4267, %v4439
    %v4441 = vpop.f32.mrf.mxu0
    %4442 = vmatprep.mubr.f32.mxu0 %v950
    %4443 = vmatmul.mubr.f32.gmra.mxu0 %v431
    %v4444 = vpop.f32.mrf.mxu0
    %v4445 = vadd.f32 %v4272, %v4444
    %v4446 = vpop.f32.mrf.mxu0
    %4447 = vmatprep.mubr.f32.mxu0 %v953
    %4448 = vmatmul.mubr.f32.gmra.mxu0 %v433
    %v4449 = vpop.f32.mrf.mxu0
    %v4450 = vadd.f32 %v4277, %v4449
    %v4451 = vpop.f32.mrf.mxu0
    %4452 = vmatprep.mubr.f32.mxu0 %v956
    %4453 = vmatmul.mubr.f32.gmra.mxu0 %v435
    %v4454 = vpop.f32.mrf.mxu0
    %v4455 = vadd.f32 %v4282, %v4454
    %v4456 = vpop.f32.mrf.mxu0
    %4457 = vmatprep.mubr.f32.mxu0 %v959
    %4458 = vmatmul.mubr.f32.gmra.mxu0 %v437
    %v4459 = vpop.f32.mrf.mxu0
    %v4460 = vadd.f32 %v4287, %v4459
    %v4461 = vpop.f32.mrf.mxu0
    %4462 = vdwg.mxu0
    %v4463 = vld [vmem:[#allocation7 + $0x100] sm:$0xff]
    %v4464 = vld [vmem:[#allocation7 + $0x108] sm:$0xff]
    %v4465 = vld [vmem:[#allocation7 + $0x110] sm:$0xff]
    %v4466 = vld [vmem:[#allocation7 + $0x118] sm:$0xff]
    %v4467 = vld [vmem:[#allocation7 + $0x120] sm:$0xff]
    %v4468 = vld [vmem:[#allocation7 + $0x128] sm:$0xff]
    %v4469 = vld [vmem:[#allocation7 + $0x130] sm:$0xff]
    %v4470 = vld [vmem:[#allocation7 + $0x138] sm:$0xff]
    %v4471 = vld [vmem:[#allocation7 + $0x140] sm:$0xff]
    %v4472 = vld [vmem:[#allocation7 + $0x148] sm:$0xff]
    %v4473 = vld [vmem:[#allocation7 + $0x150] sm:$0xff]
    %v4474 = vld [vmem:[#allocation7 + $0x158] sm:$0xff]
    %v4475 = vld [vmem:[#allocation7 + $0x160] sm:$0xff]
    %v4476 = vld [vmem:[#allocation7 + $0x168] sm:$0xff]
    %v4477 = vld [vmem:[#allocation7 + $0x170] sm:$0xff]
    %v4478 = vld [vmem:[#allocation7 + $0x178] sm:$0xff]
    %4479 = vmatprep.subr.mxu0 0.0
    %4480 = vmatpush1.msra.mxu0 %v4478
    %4481 = vmatprep.subr.mxu0 0.0
    %4482 = vmatpush1.msra.mxu0 %v4477
    %4483 = vmatprep.subr.mxu0 0.0
    %4484 = vmatpush1.msra.mxu0 %v4476
    %4485 = vmatprep.subr.mxu0 0.0
    %4486 = vmatpush1.msra.mxu0 %v4475
    %4487 = vmatprep.subr.mxu0 0.0
    %4488 = vmatpush1.msra.mxu0 %v4474
    %4489 = vmatprep.subr.mxu0 0.0
    %4490 = vmatpush1.msra.mxu0 %v4473
    %4491 = vmatprep.subr.mxu0 0.0
    %4492 = vmatpush1.msra.mxu0 %v4472
    %4493 = vmatprep.subr.mxu0 0.0
    %4494 = vmatpush1.msra.mxu0 %v4471
    %4495 = vmatprep.subr.mxu0 0.0
    %4496 = vmatpush1.msra.mxu0 %v4470
    %4497 = vmatprep.subr.mxu0 0.0
    %4498 = vmatpush1.msra.mxu0 %v4469
    %4499 = vmatprep.subr.mxu0 0.0
    %4500 = vmatpush1.msra.mxu0 %v4468
    %4501 = vmatprep.subr.mxu0 0.0
    %4502 = vmatpush1.msra.mxu0 %v4467
    %4503 = vmatprep.subr.mxu0 0.0
    %4504 = vmatpush1.msra.mxu0 %v4466
    %4505 = vmatprep.subr.mxu0 0.0
    %4506 = vmatpush1.msra.mxu0 %v4465
    %4507 = vmatprep.subr.mxu0 0.0
    %4508 = vmatpush1.msra.mxu0 %v4464
    %4509 = vmatprep.subr.mxu0 0.0
    %4510 = vmatpush1.msra.mxu0 %v4463
    %4511 = vmatprep.subr.mxu0 0.0
    %4512 = vmatpush2.msra.mxu0 0.0
    %4513 = vmatprep.subr.mxu0 0.0
    %4514 = vmatpush2.msra.mxu0 0.0
    %4515 = vmatprep.subr.mxu0 0.0
    %4516 = vmatpush2.msra.mxu0 0.0
    %4517 = vmatprep.subr.mxu0 0.0
    %4518 = vmatpush2.msra.mxu0 0.0
    %4519 = vmatprep.subr.mxu0 0.0
    %4520 = vmatpush2.msra.mxu0 0.0
    %4521 = vmatprep.subr.mxu0 0.0
    %4522 = vmatpush2.msra.mxu0 0.0
    %4523 = vmatprep.subr.mxu0 0.0
    %4524 = vmatpush2.msra.mxu0 0.0
    %4525 = vmatprep.subr.mxu0 0.0
    %4526 = vmatpush2.msra.mxu0 0.0
    %4527 = vmatprep.subr.mxu0 0.0
    %4528 = vmatpush2.msra.mxu0 0.0
    %4529 = vmatprep.subr.mxu0 0.0
    %4530 = vmatpush2.msra.mxu0 0.0
    %4531 = vmatprep.subr.mxu0 0.0
    %4532 = vmatpush2.msra.mxu0 0.0
    %4533 = vmatprep.subr.mxu0 0.0
    %4534 = vmatpush2.msra.mxu0 0.0
    %4535 = vmatprep.subr.mxu0 0.0
    %4536 = vmatpush2.msra.mxu0 0.0
    %4537 = vmatprep.subr.mxu0 0.0
    %4538 = vmatpush2.msra.mxu0 0.0
    %4539 = vmatprep.subr.mxu0 0.0
    %4540 = vmatpush2.msra.mxu0 0.0
    %4541 = vmatprep.subr.mxu0 0.0
    %4542 = vmatpush2.msra.mxu0 0.0
    %4543 = vmatprep.mubr.f32.mxu0 0.0
    %4544 = vmatmul.mubr.f32.gmra.mxu0 %v3724
    %v4545 = vpop.f32.mrf.mxu0
    %v4546 = vadd.f32 0.0, %v4545
    %v4547 = vpop.f32.mrf.mxu0
    %4548 = vmatprep.mubr.f32.mxu0 0.0
    %4549 = vmatmul.mubr.f32.gmra.mxu0 %v3725
    %v4550 = vpop.f32.mrf.mxu0
    %v4551 = vadd.f32 0.0, %v4550
    %v4552 = vpop.f32.mrf.mxu0
    %4553 = vmatprep.mubr.f32.mxu0 0.0
    %4554 = vmatmul.mubr.f32.gmra.mxu0 %v3726
    %v4555 = vpop.f32.mrf.mxu0
    %v4556 = vadd.f32 0.0, %v4555
    %v4557 = vpop.f32.mrf.mxu0
    %4558 = vmatprep.mubr.f32.mxu0 0.0
    %4559 = vmatmul.mubr.f32.gmra.mxu0 %v3727
    %v4560 = vpop.f32.mrf.mxu0
    %v4561 = vadd.f32 0.0, %v4560
    %v4562 = vpop.f32.mrf.mxu0
    %4563 = vmatprep.mubr.f32.mxu0 0.0
    %4564 = vmatmul.mubr.f32.gmra.mxu0 %v3728
    %v4565 = vpop.f32.mrf.mxu0
    %v4566 = vadd.f32 0.0, %v4565
    %v4567 = vpop.f32.mrf.mxu0
    %4568 = vmatprep.mubr.f32.mxu0 0.0
    %4569 = vmatmul.mubr.f32.gmra.mxu0 %v3729
    %v4570 = vpop.f32.mrf.mxu0
    %v4571 = vadd.f32 0.0, %v4570
    %v4572 = vpop.f32.mrf.mxu0
    %4573 = vmatprep.mubr.f32.mxu0 0.0
    %4574 = vmatmul.mubr.f32.gmra.mxu0 %v3730
    %v4575 = vpop.f32.mrf.mxu0
    %v4576 = vadd.f32 0.0, %v4575
    %v4577 = vpop.f32.mrf.mxu0
    %4578 = vmatprep.mubr.f32.mxu0 0.0
    %4579 = vmatmul.mubr.f32.gmra.mxu0 %v3731
    %v4580 = vpop.f32.mrf.mxu0
    %v4581 = vadd.f32 0.0, %v4580
    %v4582 = vpop.f32.mrf.mxu0
    %4583 = vmatprep.mubr.f32.mxu0 0.0
    %4584 = vmatmul.mubr.f32.gmra.mxu0 %v3732
    %v4585 = vpop.f32.mrf.mxu0
    %v4586 = vadd.f32 0.0, %v4585
    %v4587 = vpop.f32.mrf.mxu0
    %4588 = vmatprep.mubr.f32.mxu0 0.0
    %4589 = vmatmul.mubr.f32.gmra.mxu0 %v3733
    %v4590 = vpop.f32.mrf.mxu0
    %v4591 = vadd.f32 0.0, %v4590
    %v4592 = vpop.f32.mrf.mxu0
    %4593 = vmatprep.mubr.f32.mxu0 0.0
    %4594 = vmatmul.mubr.f32.gmra.mxu0 %v3734
    %v4595 = vpop.f32.mrf.mxu0
    %v4596 = vadd.f32 0.0, %v4595
    %v4597 = vpop.f32.mrf.mxu0
    %4598 = vmatprep.mubr.f32.mxu0 0.0
    %4599 = vmatmul.mubr.f32.gmra.mxu0 %v3735
    %v4600 = vpop.f32.mrf.mxu0
    %v4601 = vadd.f32 0.0, %v4600
    %v4602 = vpop.f32.mrf.mxu0
    %4603 = vmatprep.mubr.f32.mxu0 0.0
    %4604 = vmatmul.mubr.f32.gmra.mxu0 %v3736
    %v4605 = vpop.f32.mrf.mxu0
    %v4606 = vadd.f32 0.0, %v4605
    %v4607 = vpop.f32.mrf.mxu0
    %4608 = vmatprep.mubr.f32.mxu0 0.0
    %4609 = vmatmul.mubr.f32.gmra.mxu0 %v3737
    %v4610 = vpop.f32.mrf.mxu0
    %v4611 = vadd.f32 0.0, %v4610
    %v4612 = vpop.f32.mrf.mxu0
    %4613 = vmatprep.mubr.f32.mxu0 0.0
    %4614 = vmatmul.mubr.f32.gmra.mxu0 %v3738
    %v4615 = vpop.f32.mrf.mxu0
    %v4616 = vadd.f32 0.0, %v4615
    %v4617 = vpop.f32.mrf.mxu0
    %4618 = vmatprep.mubr.f32.mxu0 0.0
    %4619 = vmatmul.mubr.f32.gmra.mxu0 %v3739
    %v4620 = vpop.f32.mrf.mxu0
    %v4621 = vadd.f32 0.0, %v4620
    %v4622 = vpop.f32.mrf.mxu0
    %4623 = vmatprep.mubr.f32.mxu0 0.0
    %4624 = vmatmul.mubr.f32.gmra.mxu0 %v3740
    %v4625 = vpop.f32.mrf.mxu0
    %v4626 = vadd.f32 0.0, %v4625
    %v4627 = vpop.f32.mrf.mxu0
    %4628 = vmatprep.mubr.f32.mxu0 0.0
    %4629 = vmatmul.mubr.f32.gmra.mxu0 %v3741
    %v4630 = vpop.f32.mrf.mxu0
    %v4631 = vadd.f32 0.0, %v4630
    %v4632 = vpop.f32.mrf.mxu0
    %4633 = vmatprep.mubr.f32.mxu0 0.0
    %4634 = vmatmul.mubr.f32.gmra.mxu0 %v3742
    %v4635 = vpop.f32.mrf.mxu0
    %v4636 = vadd.f32 0.0, %v4635
    %v4637 = vpop.f32.mrf.mxu0
    %4638 = vmatprep.mubr.f32.mxu0 0.0
    %4639 = vmatmul.mubr.f32.gmra.mxu0 %v3743
    %v4640 = vpop.f32.mrf.mxu0
    %v4641 = vadd.f32 0.0, %v4640
    %v4642 = vpop.f32.mrf.mxu0
    %4643 = vmatprep.mubr.f32.mxu0 0.0
    %4644 = vmatmul.mubr.f32.gmra.mxu0 %v3744
    %v4645 = vpop.f32.mrf.mxu0
    %v4646 = vadd.f32 0.0, %v4645
    %v4647 = vpop.f32.mrf.mxu0
    %4648 = vdwg.mxu0
    %v4650 = vsel %vm724, %v4646, 0
    %4652 = vmatprep.subr.mxu0 0.0
    %4653 = vmatpush1.msra.mxu0 %v4621
    %4654 = vmatprep.subr.mxu0 0.0
    %4655 = vmatpush1.msra.mxu0 %v4616
    %4656 = vmatprep.subr.mxu0 0.0
    %4657 = vmatpush1.msra.mxu0 %v4611
    %4658 = vmatprep.subr.mxu0 0.0
    %4659 = vmatpush1.msra.mxu0 %v4606
    %4660 = vmatprep.subr.mxu0 0.0
    %4661 = vmatpush1.msra.mxu0 %v4601
    %4662 = vmatprep.subr.mxu0 0.0
    %4663 = vmatpush1.msra.mxu0 %v4596
    %4664 = vmatprep.subr.mxu0 0.0
    %4665 = vmatpush1.msra.mxu0 %v4591
    %4666 = vmatprep.subr.mxu0 0.0
    %4667 = vmatpush1.msra.mxu0 %v4586
    %4668 = vmatprep.subr.mxu0 0.0
    %4669 = vmatpush1.msra.mxu0 %v4581
    %4670 = vmatprep.subr.mxu0 0.0
    %4671 = vmatpush1.msra.mxu0 %v4576
    %4672 = vmatprep.subr.mxu0 0.0
    %4673 = vmatpush1.msra.mxu0 %v4571
    %4674 = vmatprep.subr.mxu0 0.0
    %4675 = vmatpush1.msra.mxu0 %v4566
    %4676 = vmatprep.subr.mxu0 0.0
    %4677 = vmatpush1.msra.mxu0 %v4561
    %4678 = vmatprep.subr.mxu0 0.0
    %4679 = vmatpush1.msra.mxu0 %v4556
    %4680 = vmatprep.subr.mxu0 0.0
    %4681 = vmatpush1.msra.mxu0 %v4551
    %4682 = vmatprep.subr.mxu0 0.0
    %4683 = vmatpush1.msra.mxu0 %v4546
    %4684 = vmatprep.subr.mxu0 0.0
    %4685 = vmatpush2.msra.mxu0 0.0
    %4686 = vmatprep.subr.mxu0 0.0
    %4687 = vmatpush2.msra.mxu0 0.0
    %4688 = vmatprep.subr.mxu0 0.0
    %4689 = vmatpush2.msra.mxu0 0.0
    %4690 = vmatprep.subr.mxu0 0.0
    %4691 = vmatpush2.msra.mxu0 0.0
    %4692 = vmatprep.subr.mxu0 0.0
    %4693 = vmatpush2.msra.mxu0 0.0
    %4694 = vmatprep.subr.mxu0 0.0
    %4695 = vmatpush2.msra.mxu0 0.0
    %4696 = vmatprep.subr.mxu0 0.0
    %4697 = vmatpush2.msra.mxu0 0.0
    %4698 = vmatprep.subr.mxu0 0.0
    %4699 = vmatpush2.msra.mxu0 0.0
    %4700 = vmatprep.subr.mxu0 0.0
    %4701 = vmatpush2.msra.mxu0 0.0
    %4702 = vmatprep.subr.mxu0 0.0
    %4703 = vmatpush2.msra.mxu0 0.0
    %4704 = vmatprep.subr.mxu0 0.0
    %4705 = vmatpush2.msra.mxu0 0.0
    %4706 = vmatprep.subr.mxu0 0.0
    %4707 = vmatpush2.msra.mxu0 %v4650
    %4708 = vmatprep.subr.mxu0 0.0
    %4709 = vmatpush2.msra.mxu0 %v4641
    %4710 = vmatprep.subr.mxu0 0.0
    %4711 = vmatpush2.msra.mxu0 %v4636
    %4712 = vmatprep.subr.mxu0 0.0
    %4713 = vmatpush2.msra.mxu0 %v4631
    %4714 = vmatprep.subr.mxu0 0.0
    %4715 = vmatpush2.msra.mxu0 %v4626
    %4716 = vmatprep.mubr.f32.mxu0 %v1356
    %4717 = vmatmul.mubr.f32.gmra.mxu0 %v1313
    %v4718 = vpop.f32.mrf.mxu0
    %v4719 = vadd.f32 0.0, %v4718
    %v4720 = vpop.f32.mrf.mxu0
    %4721 = vmatprep.mubr.f32.mxu0 %v1359
    %4722 = vmatmul.mubr.f32.gmra.mxu0 %v1315
    %v4723 = vpop.f32.mrf.mxu0
    %v4724 = vadd.f32 0.0, %v4723
    %v4725 = vpop.f32.mrf.mxu0
    %4726 = vmatprep.mubr.f32.mxu0 %v1362
    %4727 = vmatmul.mubr.f32.gmra.mxu0 %v1317
    %v4728 = vpop.f32.mrf.mxu0
    %v4729 = vadd.f32 0.0, %v4728
    %v4730 = vpop.f32.mrf.mxu0
    %4731 = vmatprep.mubr.f32.mxu0 %v1365
    %4732 = vmatmul.mubr.f32.gmra.mxu0 %v1319
    %v4733 = vpop.f32.mrf.mxu0
    %v4734 = vadd.f32 0.0, %v4733
    %v4735 = vpop.f32.mrf.mxu0
    %4736 = vmatprep.mubr.f32.mxu0 %v1368
    %4737 = vmatmul.mubr.f32.gmra.mxu0 %v1321
    %v4738 = vpop.f32.mrf.mxu0
    %v4739 = vadd.f32 0.0, %v4738
    %v4740 = vpop.f32.mrf.mxu0
    %4741 = vmatprep.mubr.f32.mxu0 %v1371
    %4742 = vmatmul.mubr.f32.gmra.mxu0 %v1323
    %v4743 = vpop.f32.mrf.mxu0
    %v4744 = vadd.f32 0.0, %v4743
    %v4745 = vpop.f32.mrf.mxu0
    %4746 = vmatprep.mubr.f32.mxu0 %v1374
    %4747 = vmatmul.mubr.f32.gmra.mxu0 %v1325
    %v4748 = vpop.f32.mrf.mxu0
    %v4749 = vadd.f32 0.0, %v4748
    %v4750 = vpop.f32.mrf.mxu0
    %4751 = vmatprep.mubr.f32.mxu0 %v1377
    %4752 = vmatmul.mubr.f32.gmra.mxu0 %v1327
    %v4753 = vpop.f32.mrf.mxu0
    %v4754 = vadd.f32 0.0, %v4753
    %v4755 = vpop.f32.mrf.mxu0
    %4756 = vmatprep.mubr.f32.mxu0 %v1380
    %4757 = vmatmul.mubr.f32.gmra.mxu0 %v1329
    %v4758 = vpop.f32.mrf.mxu0
    %v4759 = vadd.f32 0.0, %v4758
    %v4760 = vpop.f32.mrf.mxu0
    %4761 = vmatprep.mubr.f32.mxu0 %v1383
    %4762 = vmatmul.mubr.f32.gmra.mxu0 %v1331
    %v4763 = vpop.f32.mrf.mxu0
    %v4764 = vadd.f32 0.0, %v4763
    %v4765 = vpop.f32.mrf.mxu0
    %4766 = vmatprep.mubr.f32.mxu0 %v1386
    %4767 = vmatmul.mubr.f32.gmra.mxu0 %v1333
    %v4768 = vpop.f32.mrf.mxu0
    %v4769 = vadd.f32 0.0, %v4768
    %v4770 = vpop.f32.mrf.mxu0
    %4771 = vmatprep.mubr.f32.mxu0 %v1389
    %4772 = vmatmul.mubr.f32.gmra.mxu0 %v1335
    %v4773 = vpop.f32.mrf.mxu0
    %v4774 = vadd.f32 0.0, %v4773
    %v4775 = vpop.f32.mrf.mxu0
    %4776 = vmatprep.mubr.f32.mxu0 %v1392
    %4777 = vmatmul.mubr.f32.gmra.mxu0 %v1337
    %v4778 = vpop.f32.mrf.mxu0
    %v4779 = vadd.f32 0.0, %v4778
    %v4780 = vpop.f32.mrf.mxu0
    %4781 = vmatprep.mubr.f32.mxu0 %v1395
    %4782 = vmatmul.mubr.f32.gmra.mxu0 %v1339
    %v4783 = vpop.f32.mrf.mxu0
    %v4784 = vadd.f32 0.0, %v4783
    %v4785 = vpop.f32.mrf.mxu0
    %4786 = vmatprep.mubr.f32.mxu0 %v1398
    %4787 = vmatmul.mubr.f32.gmra.mxu0 %v1341
    %v4788 = vpop.f32.mrf.mxu0
    %v4789 = vadd.f32 0.0, %v4788
    %v4790 = vpop.f32.mrf.mxu0
    %4791 = vmatprep.mubr.f32.mxu0 %v1401
    %4792 = vmatmul.mubr.f32.gmra.mxu0 %v1343
    %v4793 = vpop.f32.mrf.mxu0
    %v4794 = vadd.f32 0.0, %v4793
    %v4795 = vpop.f32.mrf.mxu0
    %4796 = vmatprep.mubr.f32.mxu0 %v1404
    %4797 = vmatmul.mubr.f32.gmra.mxu0 %v1345
    %v4798 = vpop.f32.mrf.mxu0
    %v4799 = vadd.f32 0.0, %v4798
    %v4800 = vpop.f32.mrf.mxu0
    %4801 = vmatprep.mubr.f32.mxu0 %v1407
    %4802 = vmatmul.mubr.f32.gmra.mxu0 %v1347
    %v4803 = vpop.f32.mrf.mxu0
    %v4804 = vadd.f32 0.0, %v4803
    %v4805 = vpop.f32.mrf.mxu0
    %4806 = vmatprep.mubr.f32.mxu0 %v1410
    %4807 = vmatmul.mubr.f32.gmra.mxu0 %v1349
    %v4808 = vpop.f32.mrf.mxu0
    %v4809 = vadd.f32 0.0, %v4808
    %v4810 = vpop.f32.mrf.mxu0
    %4811 = vmatprep.mubr.f32.mxu0 %v1413
    %4812 = vmatmul.mubr.f32.gmra.mxu0 %v1351
    %v4813 = vpop.f32.mrf.mxu0
    %v4814 = vadd.f32 0.0, %v4813
    %v4815 = vpop.f32.mrf.mxu0
    %4816 = vmatprep.mubr.f32.mxu0 %v1416
    %4817 = vmatmul.mubr.f32.gmra.mxu0 %v1353
    %v4818 = vpop.f32.mrf.mxu0
    %v4819 = vadd.f32 0.0, %v4818
    %v4820 = vpop.f32.mrf.mxu0
    %4821 = vdwg.mxu0
    %v4822 = vadd.f32 %v4360, %v4719
    %v4823 = vadd.f32 %v4365, %v4724
    %v4824 = vadd.f32 %v4370, %v4729
    %v4825 = vadd.f32 %v4375, %v4734
    %v4826 = vadd.f32 %v4380, %v4739
    %v4827 = vadd.f32 %v4385, %v4744
    %v4828 = vadd.f32 %v4390, %v4749
    %v4829 = vadd.f32 %v4395, %v4754
    %v4830 = vadd.f32 %v4400, %v4759
    %v4831 = vadd.f32 %v4405, %v4764
    %v4832 = vadd.f32 %v4410, %v4769
    %v4833 = vadd.f32 %v4415, %v4774
    %v4834 = vadd.f32 %v4420, %v4779
    %v4835 = vadd.f32 %v4425, %v4784
    %v4836 = vadd.f32 %v4430, %v4789
    %v4837 = vadd.f32 %v4435, %v4794
    %v4838 = vadd.f32 %v4440, %v4799
    %v4839 = vadd.f32 %v4445, %v4804
    %v4840 = vadd.f32 %v4450, %v4809
    %v4841 = vadd.f32 %v4455, %v4814
    %v4842 = vadd.f32 %v4460, %v4819
    %v4843 = vld [vmem:[#allocation7 + $0x180] sm:$0xff]
    %v4844 = vld [vmem:[#allocation7 + $0x188] sm:$0xff]
    %v4845 = vld [vmem:[#allocation7 + $0x190] sm:$0xff]
    %v4846 = vld [vmem:[#allocation7 + $0x198] sm:$0xff]
    %v4847 = vld [vmem:[#allocation7 + $0x1a0] sm:$0xff]
    %v4848 = vld [vmem:[#allocation7 + $0x1a8] sm:$0xff]
    %v4849 = vld [vmem:[#allocation7 + $0x1b0] sm:$0xff]
    %v4850 = vld [vmem:[#allocation7 + $0x1b8] sm:$0xff]
    %v4851 = vld [vmem:[#allocation7 + $0x1c0] sm:$0xff]
    %v4852 = vld [vmem:[#allocation7 + $0x1c8] sm:$0xff]
    %v4853 = vld [vmem:[#allocation7 + $0x1d0] sm:$0xff]
    %v4854 = vld [vmem:[#allocation7 + $0x1d8] sm:$0xff]
    %v4855 = vld [vmem:[#allocation7 + $0x1e0] sm:$0xff]
    %v4856 = vld [vmem:[#allocation7 + $0x1e8] sm:$0xff]
    %v4857 = vld [vmem:[#allocation7 + $0x1f0] sm:$0xff]
    %v4858 = vld [vmem:[#allocation7 + $0x1f8] sm:$0xff]
    %4859 = vmatprep.subr.mxu0 0.0
    %4860 = vmatpush1.msra.mxu0 %v4858
    %4861 = vmatprep.subr.mxu0 0.0
    %4862 = vmatpush1.msra.mxu0 %v4857
    %4863 = vmatprep.subr.mxu0 0.0
    %4864 = vmatpush1.msra.mxu0 %v4856
    %4865 = vmatprep.subr.mxu0 0.0
    %4866 = vmatpush1.msra.mxu0 %v4855
    %4867 = vmatprep.subr.mxu0 0.0
    %4868 = vmatpush1.msra.mxu0 %v4854
    %4869 = vmatprep.subr.mxu0 0.0
    %4870 = vmatpush1.msra.mxu0 %v4853
    %4871 = vmatprep.subr.mxu0 0.0
    %4872 = vmatpush1.msra.mxu0 %v4852
    %4873 = vmatprep.subr.mxu0 0.0
    %4874 = vmatpush1.msra.mxu0 %v4851
    %4875 = vmatprep.subr.mxu0 0.0
    %4876 = vmatpush1.msra.mxu0 %v4850
    %4877 = vmatprep.subr.mxu0 0.0
    %4878 = vmatpush1.msra.mxu0 %v4849
    %4879 = vmatprep.subr.mxu0 0.0
    %4880 = vmatpush1.msra.mxu0 %v4848
    %4881 = vmatprep.subr.mxu0 0.0
    %4882 = vmatpush1.msra.mxu0 %v4847
    %4883 = vmatprep.subr.mxu0 0.0
    %4884 = vmatpush1.msra.mxu0 %v4846
    %4885 = vmatprep.subr.mxu0 0.0
    %4886 = vmatpush1.msra.mxu0 %v4845
    %4887 = vmatprep.subr.mxu0 0.0
    %4888 = vmatpush1.msra.mxu0 %v4844
    %4889 = vmatprep.subr.mxu0 0.0
    %4890 = vmatpush1.msra.mxu0 %v4843
    %4891 = vmatprep.subr.mxu0 0.0
    %4892 = vmatpush2.msra.mxu0 0.0
    %4893 = vmatprep.subr.mxu0 0.0
    %4894 = vmatpush2.msra.mxu0 0.0
    %4895 = vmatprep.subr.mxu0 0.0
    %4896 = vmatpush2.msra.mxu0 0.0
    %4897 = vmatprep.subr.mxu0 0.0
    %4898 = vmatpush2.msra.mxu0 0.0
    %4899 = vmatprep.subr.mxu0 0.0
    %4900 = vmatpush2.msra.mxu0 0.0
    %4901 = vmatprep.subr.mxu0 0.0
    %4902 = vmatpush2.msra.mxu0 0.0
    %4903 = vmatprep.subr.mxu0 0.0
    %4904 = vmatpush2.msra.mxu0 0.0
    %4905 = vmatprep.subr.mxu0 0.0
    %4906 = vmatpush2.msra.mxu0 0.0
    %4907 = vmatprep.subr.mxu0 0.0
    %4908 = vmatpush2.msra.mxu0 0.0
    %4909 = vmatprep.subr.mxu0 0.0
    %4910 = vmatpush2.msra.mxu0 0.0
    %4911 = vmatprep.subr.mxu0 0.0
    %4912 = vmatpush2.msra.mxu0 0.0
    %4913 = vmatprep.subr.mxu0 0.0
    %4914 = vmatpush2.msra.mxu0 0.0
    %4915 = vmatprep.subr.mxu0 0.0
    %4916 = vmatpush2.msra.mxu0 0.0
    %4917 = vmatprep.subr.mxu0 0.0
    %4918 = vmatpush2.msra.mxu0 0.0
    %4919 = vmatprep.subr.mxu0 0.0
    %4920 = vmatpush2.msra.mxu0 0.0
    %4921 = vmatprep.subr.mxu0 0.0
    %4922 = vmatpush2.msra.mxu0 0.0
    %4923 = vmatprep.mubr.f32.mxu0 0.0
    %4924 = vmatmul.mubr.f32.gmra.mxu0 %v3724
    %v4925 = vpop.f32.mrf.mxu0
    %v4926 = vadd.f32 0.0, %v4925
    %v4927 = vpop.f32.mrf.mxu0
    %4928 = vmatprep.mubr.f32.mxu0 0.0
    %4929 = vmatmul.mubr.f32.gmra.mxu0 %v3725
    %v4930 = vpop.f32.mrf.mxu0
    %v4931 = vadd.f32 0.0, %v4930
    %v4932 = vpop.f32.mrf.mxu0
    %4933 = vmatprep.mubr.f32.mxu0 0.0
    %4934 = vmatmul.mubr.f32.gmra.mxu0 %v3726
    %v4935 = vpop.f32.mrf.mxu0
    %v4936 = vadd.f32 0.0, %v4935
    %v4937 = vpop.f32.mrf.mxu0
    %4938 = vmatprep.mubr.f32.mxu0 0.0
    %4939 = vmatmul.mubr.f32.gmra.mxu0 %v3727
    %v4940 = vpop.f32.mrf.mxu0
    %v4941 = vadd.f32 0.0, %v4940
    %v4942 = vpop.f32.mrf.mxu0
    %4943 = vmatprep.mubr.f32.mxu0 0.0
    %4944 = vmatmul.mubr.f32.gmra.mxu0 %v3728
    %v4945 = vpop.f32.mrf.mxu0
    %v4946 = vadd.f32 0.0, %v4945
    %v4947 = vpop.f32.mrf.mxu0
    %4948 = vmatprep.mubr.f32.mxu0 0.0
    %4949 = vmatmul.mubr.f32.gmra.mxu0 %v3729
    %v4950 = vpop.f32.mrf.mxu0
    %v4951 = vadd.f32 0.0, %v4950
    %v4952 = vpop.f32.mrf.mxu0
    %4953 = vmatprep.mubr.f32.mxu0 0.0
    %4954 = vmatmul.mubr.f32.gmra.mxu0 %v3730
    %v4955 = vpop.f32.mrf.mxu0
    %v4956 = vadd.f32 0.0, %v4955
    %v4957 = vpop.f32.mrf.mxu0
    %4958 = vmatprep.mubr.f32.mxu0 0.0
    %4959 = vmatmul.mubr.f32.gmra.mxu0 %v3731
    %v4960 = vpop.f32.mrf.mxu0
    %v4961 = vadd.f32 0.0, %v4960
    %v4962 = vpop.f32.mrf.mxu0
    %4963 = vmatprep.mubr.f32.mxu0 0.0
    %4964 = vmatmul.mubr.f32.gmra.mxu0 %v3732
    %v4965 = vpop.f32.mrf.mxu0
    %v4966 = vadd.f32 0.0, %v4965
    %v4967 = vpop.f32.mrf.mxu0
    %4968 = vmatprep.mubr.f32.mxu0 0.0
    %4969 = vmatmul.mubr.f32.gmra.mxu0 %v3733
    %v4970 = vpop.f32.mrf.mxu0
    %v4971 = vadd.f32 0.0, %v4970
    %v4972 = vpop.f32.mrf.mxu0
    %4973 = vmatprep.mubr.f32.mxu0 0.0
    %4974 = vmatmul.mubr.f32.gmra.mxu0 %v3734
    %v4975 = vpop.f32.mrf.mxu0
    %v4976 = vadd.f32 0.0, %v4975
    %v4977 = vpop.f32.mrf.mxu0
    %4978 = vmatprep.mubr.f32.mxu0 0.0
    %4979 = vmatmul.mubr.f32.gmra.mxu0 %v3735
    %v4980 = vpop.f32.mrf.mxu0
    %v4981 = vadd.f32 0.0, %v4980
    %v4982 = vpop.f32.mrf.mxu0
    %4983 = vmatprep.mubr.f32.mxu0 0.0
    %4984 = vmatmul.mubr.f32.gmra.mxu0 %v3736
    %v4985 = vpop.f32.mrf.mxu0
    %v4986 = vadd.f32 0.0, %v4985
    %v4987 = vpop.f32.mrf.mxu0
    %4988 = vmatprep.mubr.f32.mxu0 0.0
    %4989 = vmatmul.mubr.f32.gmra.mxu0 %v3737
    %v4990 = vpop.f32.mrf.mxu0
    %v4991 = vadd.f32 0.0, %v4990
    %v4992 = vpop.f32.mrf.mxu0
    %4993 = vmatprep.mubr.f32.mxu0 0.0
    %4994 = vmatmul.mubr.f32.gmra.mxu0 %v3738
    %v4995 = vpop.f32.mrf.mxu0
    %v4996 = vadd.f32 0.0, %v4995
    %v4997 = vpop.f32.mrf.mxu0
    %4998 = vmatprep.mubr.f32.mxu0 0.0
    %4999 = vmatmul.mubr.f32.gmra.mxu0 %v3739
    %v5000 = vpop.f32.mrf.mxu0
    %v5001 = vadd.f32 0.0, %v5000
    %v5002 = vpop.f32.mrf.mxu0
    %5003 = vmatprep.mubr.f32.mxu0 0.0
    %5004 = vmatmul.mubr.f32.gmra.mxu0 %v3740
    %v5005 = vpop.f32.mrf.mxu0
    %v5006 = vadd.f32 0.0, %v5005
    %v5007 = vpop.f32.mrf.mxu0
    %5008 = vmatprep.mubr.f32.mxu0 0.0
    %5009 = vmatmul.mubr.f32.gmra.mxu0 %v3741
    %v5010 = vpop.f32.mrf.mxu0
    %v5011 = vadd.f32 0.0, %v5010
    %v5012 = vpop.f32.mrf.mxu0
    %5013 = vmatprep.mubr.f32.mxu0 0.0
    %5014 = vmatmul.mubr.f32.gmra.mxu0 %v3742
    %v5015 = vpop.f32.mrf.mxu0
    %v5016 = vadd.f32 0.0, %v5015
    %v5017 = vpop.f32.mrf.mxu0
    %5018 = vmatprep.mubr.f32.mxu0 0.0
    %5019 = vmatmul.mubr.f32.gmra.mxu0 %v3743
    %v5020 = vpop.f32.mrf.mxu0
    %v5021 = vadd.f32 0.0, %v5020
    %v5022 = vpop.f32.mrf.mxu0
    %5023 = vmatprep.mubr.f32.mxu0 0.0
    %5024 = vmatmul.mubr.f32.gmra.mxu0 %v3744
    %v5025 = vpop.f32.mrf.mxu0
    %v5026 = vadd.f32 0.0, %v5025
    %v5027 = vpop.f32.mrf.mxu0
    %5028 = vdwg.mxu0
    %v5030 = vsel %vm724, %v5026, 0
    %5032 = vmatprep.subr.mxu0 0.0
    %5033 = vmatpush1.msra.mxu0 %v5001
    %5034 = vmatprep.subr.mxu0 0.0
    %5035 = vmatpush1.msra.mxu0 %v4996
    %5036 = vmatprep.subr.mxu0 0.0
    %5037 = vmatpush1.msra.mxu0 %v4991
    %5038 = vmatprep.subr.mxu0 0.0
    %5039 = vmatpush1.msra.mxu0 %v4986
    %5040 = vmatprep.subr.mxu0 0.0
    %5041 = vmatpush1.msra.mxu0 %v4981
    %5042 = vmatprep.subr.mxu0 0.0
    %5043 = vmatpush1.msra.mxu0 %v4976
    %5044 = vmatprep.subr.mxu0 0.0
    %5045 = vmatpush1.msra.mxu0 %v4971
    %5046 = vmatprep.subr.mxu0 0.0
    %5047 = vmatpush1.msra.mxu0 %v4966
    %5048 = vmatprep.subr.mxu0 0.0
    %5049 = vmatpush1.msra.mxu0 %v4961
    %5050 = vmatprep.subr.mxu0 0.0
    %5051 = vmatpush1.msra.mxu0 %v4956
    %5052 = vmatprep.subr.mxu0 0.0
    %5053 = vmatpush1.msra.mxu0 %v4951
    %5054 = vmatprep.subr.mxu0 0.0
    %5055 = vmatpush1.msra.mxu0 %v4946
    %5056 = vmatprep.subr.mxu0 0.0
    %5057 = vmatpush1.msra.mxu0 %v4941
    %5058 = vmatprep.subr.mxu0 0.0
    %5059 = vmatpush1.msra.mxu0 %v4936
    %5060 = vmatprep.subr.mxu0 0.0
    %5061 = vmatpush1.msra.mxu0 %v4931
    %5062 = vmatprep.subr.mxu0 0.0
    %5063 = vmatpush1.msra.mxu0 %v4926
    %5064 = vmatprep.subr.mxu0 0.0
    %5065 = vmatpush2.msra.mxu0 0.0
    %5066 = vmatprep.subr.mxu0 0.0
    %5067 = vmatpush2.msra.mxu0 0.0
    %5068 = vmatprep.subr.mxu0 0.0
    %5069 = vmatpush2.msra.mxu0 0.0
    %5070 = vmatprep.subr.mxu0 0.0
    %5071 = vmatpush2.msra.mxu0 0.0
    %5072 = vmatprep.subr.mxu0 0.0
    %5073 = vmatpush2.msra.mxu0 0.0
    %5074 = vmatprep.subr.mxu0 0.0
    %5075 = vmatpush2.msra.mxu0 0.0
    %5076 = vmatprep.subr.mxu0 0.0
    %5077 = vmatpush2.msra.mxu0 0.0
    %5078 = vmatprep.subr.mxu0 0.0
    %5079 = vmatpush2.msra.mxu0 0.0
    %5080 = vmatprep.subr.mxu0 0.0
    %5081 = vmatpush2.msra.mxu0 0.0
    %5082 = vmatprep.subr.mxu0 0.0
    %5083 = vmatpush2.msra.mxu0 0.0
    %5084 = vmatprep.subr.mxu0 0.0
    %5085 = vmatpush2.msra.mxu0 0.0
    %5086 = vmatprep.subr.mxu0 0.0
    %5087 = vmatpush2.msra.mxu0 %v5030
    %5088 = vmatprep.subr.mxu0 0.0
    %5089 = vmatpush2.msra.mxu0 %v5021
    %5090 = vmatprep.subr.mxu0 0.0
    %5091 = vmatpush2.msra.mxu0 %v5016
    %5092 = vmatprep.subr.mxu0 0.0
    %5093 = vmatpush2.msra.mxu0 %v5011
    %5094 = vmatprep.subr.mxu0 0.0
    %5095 = vmatpush2.msra.mxu0 %v5006
    %5096 = vmatprep.mubr.f32.mxu0 %v1834
    %5097 = vmatmul.mubr.f32.gmra.mxu0 %v1791
    %v5098 = vpop.f32.mrf.mxu0
    %v5099 = vadd.f32 0.0, %v5098
    %v5100 = vpop.f32.mrf.mxu0
    %5101 = vmatprep.mubr.f32.mxu0 %v1837
    %5102 = vmatmul.mubr.f32.gmra.mxu0 %v1793
    %v5103 = vpop.f32.mrf.mxu0
    %v5104 = vadd.f32 0.0, %v5103
    %v5105 = vpop.f32.mrf.mxu0
    %5106 = vmatprep.mubr.f32.mxu0 %v1840
    %5107 = vmatmul.mubr.f32.gmra.mxu0 %v1795
    %v5108 = vpop.f32.mrf.mxu0
    %v5109 = vadd.f32 0.0, %v5108
    %v5110 = vpop.f32.mrf.mxu0
    %5111 = vmatprep.mubr.f32.mxu0 %v1843
    %5112 = vmatmul.mubr.f32.gmra.mxu0 %v1797
    %v5113 = vpop.f32.mrf.mxu0
    %v5114 = vadd.f32 0.0, %v5113
    %v5115 = vpop.f32.mrf.mxu0
    %5116 = vmatprep.mubr.f32.mxu0 %v1846
    %5117 = vmatmul.mubr.f32.gmra.mxu0 %v1799
    %v5118 = vpop.f32.mrf.mxu0
    %v5119 = vadd.f32 0.0, %v5118
    %v5120 = vpop.f32.mrf.mxu0
    %5121 = vmatprep.mubr.f32.mxu0 %v1849
    %5122 = vmatmul.mubr.f32.gmra.mxu0 %v1801
    %v5123 = vpop.f32.mrf.mxu0
    %v5124 = vadd.f32 0.0, %v5123
    %v5125 = vpop.f32.mrf.mxu0
    %5126 = vmatprep.mubr.f32.mxu0 %v1852
    %5127 = vmatmul.mubr.f32.gmra.mxu0 %v1803
    %v5128 = vpop.f32.mrf.mxu0
    %v5129 = vadd.f32 0.0, %v5128
    %v5130 = vpop.f32.mrf.mxu0
    %5131 = vmatprep.mubr.f32.mxu0 %v1855
    %5132 = vmatmul.mubr.f32.gmra.mxu0 %v1805
    %v5133 = vpop.f32.mrf.mxu0
    %v5134 = vadd.f32 0.0, %v5133
    %v5135 = vpop.f32.mrf.mxu0
    %5136 = vmatprep.mubr.f32.mxu0 %v1858
    %5137 = vmatmul.mubr.f32.gmra.mxu0 %v1807
    %v5138 = vpop.f32.mrf.mxu0
    %v5139 = vadd.f32 0.0, %v5138
    %v5140 = vpop.f32.mrf.mxu0
    %5141 = vmatprep.mubr.f32.mxu0 %v1861
    %5142 = vmatmul.mubr.f32.gmra.mxu0 %v1809
    %v5143 = vpop.f32.mrf.mxu0
    %v5144 = vadd.f32 0.0, %v5143
    %v5145 = vpop.f32.mrf.mxu0
    %5146 = vmatprep.mubr.f32.mxu0 %v1864
    %5147 = vmatmul.mubr.f32.gmra.mxu0 %v1811
    %v5148 = vpop.f32.mrf.mxu0
    %v5149 = vadd.f32 0.0, %v5148
    %v5150 = vpop.f32.mrf.mxu0
    %5151 = vmatprep.mubr.f32.mxu0 %v1867
    %5152 = vmatmul.mubr.f32.gmra.mxu0 %v1813
    %v5153 = vpop.f32.mrf.mxu0
    %v5154 = vadd.f32 0.0, %v5153
    %v5155 = vpop.f32.mrf.mxu0
    %5156 = vmatprep.mubr.f32.mxu0 %v1870
    %5157 = vmatmul.mubr.f32.gmra.mxu0 %v1815
    %v5158 = vpop.f32.mrf.mxu0
    %v5159 = vadd.f32 0.0, %v5158
    %v5160 = vpop.f32.mrf.mxu0
    %5161 = vmatprep.mubr.f32.mxu0 %v1873
    %5162 = vmatmul.mubr.f32.gmra.mxu0 %v1817
    %v5163 = vpop.f32.mrf.mxu0
    %v5164 = vadd.f32 0.0, %v5163
    %v5165 = vpop.f32.mrf.mxu0
    %5166 = vmatprep.mubr.f32.mxu0 %v1876
    %5167 = vmatmul.mubr.f32.gmra.mxu0 %v1819
    %v5168 = vpop.f32.mrf.mxu0
    %v5169 = vadd.f32 0.0, %v5168
    %v5170 = vpop.f32.mrf.mxu0
    %5171 = vmatprep.mubr.f32.mxu0 %v1879
    %5172 = vmatmul.mubr.f32.gmra.mxu0 %v1821
    %v5173 = vpop.f32.mrf.mxu0
    %v5174 = vadd.f32 0.0, %v5173
    %v5175 = vpop.f32.mrf.mxu0
    %5176 = vmatprep.mubr.f32.mxu0 %v1882
    %5177 = vmatmul.mubr.f32.gmra.mxu0 %v1823
    %v5178 = vpop.f32.mrf.mxu0
    %v5179 = vadd.f32 0.0, %v5178
    %v5180 = vpop.f32.mrf.mxu0
    %5181 = vmatprep.mubr.f32.mxu0 %v1885
    %5182 = vmatmul.mubr.f32.gmra.mxu0 %v1825
    %v5183 = vpop.f32.mrf.mxu0
    %v5184 = vadd.f32 0.0, %v5183
    %v5185 = vpop.f32.mrf.mxu0
    %5186 = vmatprep.mubr.f32.mxu0 %v1888
    %5187 = vmatmul.mubr.f32.gmra.mxu0 %v1827
    %v5188 = vpop.f32.mrf.mxu0
    %v5189 = vadd.f32 0.0, %v5188
    %v5190 = vpop.f32.mrf.mxu0
    %5191 = vmatprep.mubr.f32.mxu0 %v1891
    %5192 = vmatmul.mubr.f32.gmra.mxu0 %v1829
    %v5193 = vpop.f32.mrf.mxu0
    %v5194 = vadd.f32 0.0, %v5193
    %v5195 = vpop.f32.mrf.mxu0
    %5196 = vmatprep.mubr.f32.mxu0 %v1894
    %5197 = vmatmul.mubr.f32.gmra.mxu0 %v1831
    %v5198 = vpop.f32.mrf.mxu0
    %v5199 = vadd.f32 0.0, %v5198
    %v5200 = vpop.f32.mrf.mxu0
    %5201 = vdwg.mxu0
    %v5202 = vadd.f32 %v4822, %v5099
    %v5203 = vadd.f32 %v4823, %v5104
    %v5204 = vadd.f32 %v4824, %v5109
    %v5205 = vadd.f32 %v4825, %v5114
    %v5206 = vadd.f32 %v4826, %v5119
    %v5207 = vadd.f32 %v4827, %v5124
    %v5208 = vadd.f32 %v4828, %v5129
    %v5209 = vadd.f32 %v4829, %v5134
    %v5210 = vadd.f32 %v4830, %v5139
    %v5211 = vadd.f32 %v4831, %v5144
    %v5212 = vadd.f32 %v4832, %v5149
    %v5213 = vadd.f32 %v4833, %v5154
    %v5214 = vadd.f32 %v4834, %v5159
    %v5215 = vadd.f32 %v4835, %v5164
    %v5216 = vadd.f32 %v4836, %v5169
    %v5217 = vadd.f32 %v4837, %v5174
    %v5218 = vadd.f32 %v4838, %v5179
    %v5219 = vadd.f32 %v4839, %v5184
    %v5220 = vadd.f32 %v4840, %v5189
    %v5221 = vadd.f32 %v4841, %v5194
    %v5222 = vadd.f32 %v4842, %v5199
    %v5223 = vld [vmem:[#allocation7 + $0x200] sm:$0xff]
    %v5224 = vld [vmem:[#allocation7 + $0x208] sm:$0xff]
    %v5225 = vld [vmem:[#allocation7 + $0x210] sm:$0xff]
    %v5226 = vld [vmem:[#allocation7 + $0x218] sm:$0xff]
    %v5227 = vld [vmem:[#allocation7 + $0x220] sm:$0xff]
    %v5228 = vld [vmem:[#allocation7 + $0x228] sm:$0xff]
    %v5229 = vld [vmem:[#allocation7 + $0x230] sm:$0xff]
    %v5230 = vld [vmem:[#allocation7 + $0x238] sm:$0xff]
    %v5231 = vld [vmem:[#allocation7 + $0x240] sm:$0xff]
    %v5232 = vld [vmem:[#allocation7 + $0x248] sm:$0xff]
    %v5233 = vld [vmem:[#allocation7 + $0x250] sm:$0xff]
    %v5234 = vld [vmem:[#allocation7 + $0x258] sm:$0xff]
    %v5235 = vld [vmem:[#allocation7 + $0x260] sm:$0xff]
    %v5236 = vld [vmem:[#allocation7 + $0x268] sm:$0xff]
    %v5237 = vld [vmem:[#allocation7 + $0x270] sm:$0xff]
    %v5238 = vld [vmem:[#allocation7 + $0x278] sm:$0xff]
    %5239 = vmatprep.subr.mxu0 0.0
    %5240 = vmatpush1.msra.mxu0 %v5238
    %5241 = vmatprep.subr.mxu0 0.0
    %5242 = vmatpush1.msra.mxu0 %v5237
    %5243 = vmatprep.subr.mxu0 0.0
    %5244 = vmatpush1.msra.mxu0 %v5236
    %5245 = vmatprep.subr.mxu0 0.0
    %5246 = vmatpush1.msra.mxu0 %v5235
    %5247 = vmatprep.subr.mxu0 0.0
    %5248 = vmatpush1.msra.mxu0 %v5234
    %5249 = vmatprep.subr.mxu0 0.0
    %5250 = vmatpush1.msra.mxu0 %v5233
    %5251 = vmatprep.subr.mxu0 0.0
    %5252 = vmatpush1.msra.mxu0 %v5232
    %5253 = vmatprep.subr.mxu0 0.0
    %5254 = vmatpush1.msra.mxu0 %v5231
    %5255 = vmatprep.subr.mxu0 0.0
    %5256 = vmatpush1.msra.mxu0 %v5230
    %5257 = vmatprep.subr.mxu0 0.0
    %5258 = vmatpush1.msra.mxu0 %v5229
    %5259 = vmatprep.subr.mxu0 0.0
    %5260 = vmatpush1.msra.mxu0 %v5228
    %5261 = vmatprep.subr.mxu0 0.0
    %5262 = vmatpush1.msra.mxu0 %v5227
    %5263 = vmatprep.subr.mxu0 0.0
    %5264 = vmatpush1.msra.mxu0 %v5226
    %5265 = vmatprep.subr.mxu0 0.0
    %5266 = vmatpush1.msra.mxu0 %v5225
    %5267 = vmatprep.subr.mxu0 0.0
    %5268 = vmatpush1.msra.mxu0 %v5224
    %5269 = vmatprep.subr.mxu0 0.0
    %5270 = vmatpush1.msra.mxu0 %v5223
    %5271 = vmatprep.subr.mxu0 0.0
    %5272 = vmatpush2.msra.mxu0 0.0
    %5273 = vmatprep.subr.mxu0 0.0
    %5274 = vmatpush2.msra.mxu0 0.0
    %5275 = vmatprep.subr.mxu0 0.0
    %5276 = vmatpush2.msra.mxu0 0.0
    %5277 = vmatprep.subr.mxu0 0.0
    %5278 = vmatpush2.msra.mxu0 0.0
    %5279 = vmatprep.subr.mxu0 0.0
    %5280 = vmatpush2.msra.mxu0 0.0
    %5281 = vmatprep.subr.mxu0 0.0
    %5282 = vmatpush2.msra.mxu0 0.0
    %5283 = vmatprep.subr.mxu0 0.0
    %5284 = vmatpush2.msra.mxu0 0.0
    %5285 = vmatprep.subr.mxu0 0.0
    %5286 = vmatpush2.msra.mxu0 0.0
    %5287 = vmatprep.subr.mxu0 0.0
    %5288 = vmatpush2.msra.mxu0 0.0
    %5289 = vmatprep.subr.mxu0 0.0
    %5290 = vmatpush2.msra.mxu0 0.0
    %5291 = vmatprep.subr.mxu0 0.0
    %5292 = vmatpush2.msra.mxu0 0.0
    %5293 = vmatprep.subr.mxu0 0.0
    %5294 = vmatpush2.msra.mxu0 0.0
    %5295 = vmatprep.subr.mxu0 0.0
    %5296 = vmatpush2.msra.mxu0 0.0
    %5297 = vmatprep.subr.mxu0 0.0
    %5298 = vmatpush2.msra.mxu0 0.0
    %5299 = vmatprep.subr.mxu0 0.0
    %5300 = vmatpush2.msra.mxu0 0.0
    %5301 = vmatprep.subr.mxu0 0.0
    %5302 = vmatpush2.msra.mxu0 0.0
    %5303 = vmatprep.mubr.f32.mxu0 0.0
    %5304 = vmatmul.mubr.f32.gmra.mxu0 %v3724
    %v5305 = vpop.f32.mrf.mxu0
    %v5306 = vadd.f32 0.0, %v5305
    %v5307 = vpop.f32.mrf.mxu0
    %5308 = vmatprep.mubr.f32.mxu0 0.0
    %5309 = vmatmul.mubr.f32.gmra.mxu0 %v3725
    %v5310 = vpop.f32.mrf.mxu0
    %v5311 = vadd.f32 0.0, %v5310
    %v5312 = vpop.f32.mrf.mxu0
    %5313 = vmatprep.mubr.f32.mxu0 0.0
    %5314 = vmatmul.mubr.f32.gmra.mxu0 %v3726
    %v5315 = vpop.f32.mrf.mxu0
    %v5316 = vadd.f32 0.0, %v5315
    %v5317 = vpop.f32.mrf.mxu0
    %5318 = vmatprep.mubr.f32.mxu0 0.0
    %5319 = vmatmul.mubr.f32.gmra.mxu0 %v3727
    %v5320 = vpop.f32.mrf.mxu0
    %v5321 = vadd.f32 0.0, %v5320
    %v5322 = vpop.f32.mrf.mxu0
    %5323 = vmatprep.mubr.f32.mxu0 0.0
    %5324 = vmatmul.mubr.f32.gmra.mxu0 %v3728
    %v5325 = vpop.f32.mrf.mxu0
    %v5326 = vadd.f32 0.0, %v5325
    %v5327 = vpop.f32.mrf.mxu0
    %5328 = vmatprep.mubr.f32.mxu0 0.0
    %5329 = vmatmul.mubr.f32.gmra.mxu0 %v3729
    %v5330 = vpop.f32.mrf.mxu0
    %v5331 = vadd.f32 0.0, %v5330
    %v5332 = vpop.f32.mrf.mxu0
    %5333 = vmatprep.mubr.f32.mxu0 0.0
    %5334 = vmatmul.mubr.f32.gmra.mxu0 %v3730
    %v5335 = vpop.f32.mrf.mxu0
    %v5336 = vadd.f32 0.0, %v5335
    %v5337 = vpop.f32.mrf.mxu0
    %5338 = vmatprep.mubr.f32.mxu0 0.0
    %5339 = vmatmul.mubr.f32.gmra.mxu0 %v3731
    %v5340 = vpop.f32.mrf.mxu0
    %v5341 = vadd.f32 0.0, %v5340
    %v5342 = vpop.f32.mrf.mxu0
    %5343 = vmatprep.mubr.f32.mxu0 0.0
    %5344 = vmatmul.mubr.f32.gmra.mxu0 %v3732
    %v5345 = vpop.f32.mrf.mxu0
    %v5346 = vadd.f32 0.0, %v5345
    %v5347 = vpop.f32.mrf.mxu0
    %5348 = vmatprep.mubr.f32.mxu0 0.0
    %5349 = vmatmul.mubr.f32.gmra.mxu0 %v3733
    %v5350 = vpop.f32.mrf.mxu0
    %v5351 = vadd.f32 0.0, %v5350
    %v5352 = vpop.f32.mrf.mxu0
    %5353 = vmatprep.mubr.f32.mxu0 0.0
    %5354 = vmatmul.mubr.f32.gmra.mxu0 %v3734
    %v5355 = vpop.f32.mrf.mxu0
    %v5356 = vadd.f32 0.0, %v5355
    %v5357 = vpop.f32.mrf.mxu0
    %5358 = vmatprep.mubr.f32.mxu0 0.0
    %5359 = vmatmul.mubr.f32.gmra.mxu0 %v3735
    %v5360 = vpop.f32.mrf.mxu0
    %v5361 = vadd.f32 0.0, %v5360
    %v5362 = vpop.f32.mrf.mxu0
    %5363 = vmatprep.mubr.f32.mxu0 0.0
    %5364 = vmatmul.mubr.f32.gmra.mxu0 %v3736
    %v5365 = vpop.f32.mrf.mxu0
    %v5366 = vadd.f32 0.0, %v5365
    %v5367 = vpop.f32.mrf.mxu0
    %5368 = vmatprep.mubr.f32.mxu0 0.0
    %5369 = vmatmul.mubr.f32.gmra.mxu0 %v3737
    %v5370 = vpop.f32.mrf.mxu0
    %v5371 = vadd.f32 0.0, %v5370
    %v5372 = vpop.f32.mrf.mxu0
    %5373 = vmatprep.mubr.f32.mxu0 0.0
    %5374 = vmatmul.mubr.f32.gmra.mxu0 %v3738
    %v5375 = vpop.f32.mrf.mxu0
    %v5376 = vadd.f32 0.0, %v5375
    %v5377 = vpop.f32.mrf.mxu0
    %5378 = vmatprep.mubr.f32.mxu0 0.0
    %5379 = vmatmul.mubr.f32.gmra.mxu0 %v3739
    %v5380 = vpop.f32.mrf.mxu0
    %v5381 = vadd.f32 0.0, %v5380
    %v5382 = vpop.f32.mrf.mxu0
    %5383 = vmatprep.mubr.f32.mxu0 0.0
    %5384 = vmatmul.mubr.f32.gmra.mxu0 %v3740
    %v5385 = vpop.f32.mrf.mxu0
    %v5386 = vadd.f32 0.0, %v5385
    %v5387 = vpop.f32.mrf.mxu0
    %5388 = vmatprep.mubr.f32.mxu0 0.0
    %5389 = vmatmul.mubr.f32.gmra.mxu0 %v3741
    %v5390 = vpop.f32.mrf.mxu0
    %v5391 = vadd.f32 0.0, %v5390
    %v5392 = vpop.f32.mrf.mxu0
    %5393 = vmatprep.mubr.f32.mxu0 0.0
    %5394 = vmatmul.mubr.f32.gmra.mxu0 %v3742
    %v5395 = vpop.f32.mrf.mxu0
    %v5396 = vadd.f32 0.0, %v5395
    %v5397 = vpop.f32.mrf.mxu0
    %5398 = vmatprep.mubr.f32.mxu0 0.0
    %5399 = vmatmul.mubr.f32.gmra.mxu0 %v3743
    %v5400 = vpop.f32.mrf.mxu0
    %v5401 = vadd.f32 0.0, %v5400
    %v5402 = vpop.f32.mrf.mxu0
    %5403 = vmatprep.mubr.f32.mxu0 0.0
    %5404 = vmatmul.mubr.f32.gmra.mxu0 %v3744
    %v5405 = vpop.f32.mrf.mxu0
    %v5406 = vadd.f32 0.0, %v5405
    %v5407 = vpop.f32.mrf.mxu0
    %5408 = vdwg.mxu0
    %v5410 = vsel %vm724, %v5406, 0
    %5412 = vmatprep.subr.mxu0 0.0
    %5413 = vmatpush1.msra.mxu0 %v5381
    %5414 = vmatprep.subr.mxu0 0.0
    %5415 = vmatpush1.msra.mxu0 %v5376
    %5416 = vmatprep.subr.mxu0 0.0
    %5417 = vmatpush1.msra.mxu0 %v5371
    %5418 = vmatprep.subr.mxu0 0.0
    %5419 = vmatpush1.msra.mxu0 %v5366
    %5420 = vmatprep.subr.mxu0 0.0
    %5421 = vmatpush1.msra.mxu0 %v5361
    %5422 = vmatprep.subr.mxu0 0.0
    %5423 = vmatpush1.msra.mxu0 %v5356
    %5424 = vmatprep.subr.mxu0 0.0
    %5425 = vmatpush1.msra.mxu0 %v5351
    %5426 = vmatprep.subr.mxu0 0.0
    %5427 = vmatpush1.msra.mxu0 %v5346
    %5428 = vmatprep.subr.mxu0 0.0
    %5429 = vmatpush1.msra.mxu0 %v5341
    %5430 = vmatprep.subr.mxu0 0.0
    %5431 = vmatpush1.msra.mxu0 %v5336
    %5432 = vmatprep.subr.mxu0 0.0
    %5433 = vmatpush1.msra.mxu0 %v5331
    %5434 = vmatprep.subr.mxu0 0.0
    %5435 = vmatpush1.msra.mxu0 %v5326
    %5436 = vmatprep.subr.mxu0 0.0
    %5437 = vmatpush1.msra.mxu0 %v5321
    %5438 = vmatprep.subr.mxu0 0.0
    %5439 = vmatpush1.msra.mxu0 %v5316
    %5440 = vmatprep.subr.mxu0 0.0
    %5441 = vmatpush1.msra.mxu0 %v5311
    %5442 = vmatprep.subr.mxu0 0.0
    %5443 = vmatpush1.msra.mxu0 %v5306
    %5444 = vmatprep.subr.mxu0 0.0
    %5445 = vmatpush2.msra.mxu0 0.0
    %5446 = vmatprep.subr.mxu0 0.0
    %5447 = vmatpush2.msra.mxu0 0.0
    %5448 = vmatprep.subr.mxu0 0.0
    %5449 = vmatpush2.msra.mxu0 0.0
    %5450 = vmatprep.subr.mxu0 0.0
    %5451 = vmatpush2.msra.mxu0 0.0
    %5452 = vmatprep.subr.mxu0 0.0
    %5453 = vmatpush2.msra.mxu0 0.0
    %5454 = vmatprep.subr.mxu0 0.0
    %5455 = vmatpush2.msra.mxu0 0.0
    %5456 = vmatprep.subr.mxu0 0.0
    %5457 = vmatpush2.msra.mxu0 0.0
    %5458 = vmatprep.subr.mxu0 0.0
    %5459 = vmatpush2.msra.mxu0 0.0
    %5460 = vmatprep.subr.mxu0 0.0
    %5461 = vmatpush2.msra.mxu0 0.0
    %5462 = vmatprep.subr.mxu0 0.0
    %5463 = vmatpush2.msra.mxu0 0.0
    %5464 = vmatprep.subr.mxu0 0.0
    %5465 = vmatpush2.msra.mxu0 0.0
    %5466 = vmatprep.subr.mxu0 0.0
    %5467 = vmatpush2.msra.mxu0 %v5410
    %5468 = vmatprep.subr.mxu0 0.0
    %5469 = vmatpush2.msra.mxu0 %v5401
    %5470 = vmatprep.subr.mxu0 0.0
    %5471 = vmatpush2.msra.mxu0 %v5396
    %5472 = vmatprep.subr.mxu0 0.0
    %5473 = vmatpush2.msra.mxu0 %v5391
    %5474 = vmatprep.subr.mxu0 0.0
    %5475 = vmatpush2.msra.mxu0 %v5386
    %5476 = vmatprep.mubr.f32.mxu0 %v2312
    %5477 = vmatmul.mubr.f32.gmra.mxu0 %v2269
    %v5478 = vpop.f32.mrf.mxu0
    %v5479 = vadd.f32 0.0, %v5478
    %v5480 = vpop.f32.mrf.mxu0
    %5481 = vmatprep.mubr.f32.mxu0 %v2315
    %5482 = vmatmul.mubr.f32.gmra.mxu0 %v2271
    %v5483 = vpop.f32.mrf.mxu0
    %v5484 = vadd.f32 0.0, %v5483
    %v5485 = vpop.f32.mrf.mxu0
    %5486 = vmatprep.mubr.f32.mxu0 %v2318
    %5487 = vmatmul.mubr.f32.gmra.mxu0 %v2273
    %v5488 = vpop.f32.mrf.mxu0
    %v5489 = vadd.f32 0.0, %v5488
    %v5490 = vpop.f32.mrf.mxu0
    %5491 = vmatprep.mubr.f32.mxu0 %v2321
    %5492 = vmatmul.mubr.f32.gmra.mxu0 %v2275
    %v5493 = vpop.f32.mrf.mxu0
    %v5494 = vadd.f32 0.0, %v5493
    %v5495 = vpop.f32.mrf.mxu0
    %5496 = vmatprep.mubr.f32.mxu0 %v2324
    %5497 = vmatmul.mubr.f32.gmra.mxu0 %v2277
    %v5498 = vpop.f32.mrf.mxu0
    %v5499 = vadd.f32 0.0, %v5498
    %v5500 = vpop.f32.mrf.mxu0
    %5501 = vmatprep.mubr.f32.mxu0 %v2327
    %5502 = vmatmul.mubr.f32.gmra.mxu0 %v2279
    %v5503 = vpop.f32.mrf.mxu0
    %v5504 = vadd.f32 0.0, %v5503
    %v5505 = vpop.f32.mrf.mxu0
    %5506 = vmatprep.mubr.f32.mxu0 %v2330
    %5507 = vmatmul.mubr.f32.gmra.mxu0 %v2281
    %v5508 = vpop.f32.mrf.mxu0
    %v5509 = vadd.f32 0.0, %v5508
    %v5510 = vpop.f32.mrf.mxu0
    %5511 = vmatprep.mubr.f32.mxu0 %v2333
    %5512 = vmatmul.mubr.f32.gmra.mxu0 %v2283
    %v5513 = vpop.f32.mrf.mxu0
    %v5514 = vadd.f32 0.0, %v5513
    %v5515 = vpop.f32.mrf.mxu0
    %5516 = vmatprep.mubr.f32.mxu0 %v2336
    %5517 = vmatmul.mubr.f32.gmra.mxu0 %v2285
    %v5518 = vpop.f32.mrf.mxu0
    %v5519 = vadd.f32 0.0, %v5518
    %v5520 = vpop.f32.mrf.mxu0
    %5521 = vmatprep.mubr.f32.mxu0 %v2339
    %5522 = vmatmul.mubr.f32.gmra.mxu0 %v2287
    %v5523 = vpop.f32.mrf.mxu0
    %v5524 = vadd.f32 0.0, %v5523
    %v5525 = vpop.f32.mrf.mxu0
    %5526 = vmatprep.mubr.f32.mxu0 %v2342
    %5527 = vmatmul.mubr.f32.gmra.mxu0 %v2289
    %v5528 = vpop.f32.mrf.mxu0
    %v5529 = vadd.f32 0.0, %v5528
    %v5530 = vpop.f32.mrf.mxu0
    %5531 = vmatprep.mubr.f32.mxu0 %v2345
    %5532 = vmatmul.mubr.f32.gmra.mxu0 %v2291
    %v5533 = vpop.f32.mrf.mxu0
    %v5534 = vadd.f32 0.0, %v5533
    %v5535 = vpop.f32.mrf.mxu0
    %5536 = vmatprep.mubr.f32.mxu0 %v2348
    %5537 = vmatmul.mubr.f32.gmra.mxu0 %v2293
    %v5538 = vpop.f32.mrf.mxu0
    %v5539 = vadd.f32 0.0, %v5538
    %v5540 = vpop.f32.mrf.mxu0
    %5541 = vmatprep.mubr.f32.mxu0 %v2351
    %5542 = vmatmul.mubr.f32.gmra.mxu0 %v2295
    %v5543 = vpop.f32.mrf.mxu0
    %v5544 = vadd.f32 0.0, %v5543
    %v5545 = vpop.f32.mrf.mxu0
    %5546 = vmatprep.mubr.f32.mxu0 %v2354
    %5547 = vmatmul.mubr.f32.gmra.mxu0 %v2297
    %v5548 = vpop.f32.mrf.mxu0
    %v5549 = vadd.f32 0.0, %v5548
    %v5550 = vpop.f32.mrf.mxu0
    %5551 = vmatprep.mubr.f32.mxu0 %v2357
    %5552 = vmatmul.mubr.f32.gmra.mxu0 %v2299
    %v5553 = vpop.f32.mrf.mxu0
    %v5554 = vadd.f32 0.0, %v5553
    %v5555 = vpop.f32.mrf.mxu0
    %5556 = vmatprep.mubr.f32.mxu0 %v2360
    %5557 = vmatmul.mubr.f32.gmra.mxu0 %v2301
    %v5558 = vpop.f32.mrf.mxu0
    %v5559 = vadd.f32 0.0, %v5558
    %v5560 = vpop.f32.mrf.mxu0
    %5561 = vmatprep.mubr.f32.mxu0 %v2363
    %5562 = vmatmul.mubr.f32.gmra.mxu0 %v2303
    %v5563 = vpop.f32.mrf.mxu0
    %v5564 = vadd.f32 0.0, %v5563
    %v5565 = vpop.f32.mrf.mxu0
    %5566 = vmatprep.mubr.f32.mxu0 %v2366
    %5567 = vmatmul.mubr.f32.gmra.mxu0 %v2305
    %v5568 = vpop.f32.mrf.mxu0
    %v5569 = vadd.f32 0.0, %v5568
    %v5570 = vpop.f32.mrf.mxu0
    %5571 = vmatprep.mubr.f32.mxu0 %v2369
    %5572 = vmatmul.mubr.f32.gmra.mxu0 %v2307
    %v5573 = vpop.f32.mrf.mxu0
    %v5574 = vadd.f32 0.0, %v5573
    %v5575 = vpop.f32.mrf.mxu0
    %5576 = vmatprep.mubr.f32.mxu0 %v2372
    %5577 = vmatmul.mubr.f32.gmra.mxu0 %v2309
    %v5578 = vpop.f32.mrf.mxu0
    %v5579 = vadd.f32 0.0, %v5578
    %v5580 = vpop.f32.mrf.mxu0
    %5581 = vdwg.mxu0
    %v5582 = vadd.f32 %v5202, %v5479
    %v5583 = vadd.f32 %v5203, %v5484
    %v5584 = vadd.f32 %v5204, %v5489
    %v5585 = vadd.f32 %v5205, %v5494
    %v5586 = vadd.f32 %v5206, %v5499
    %v5587 = vadd.f32 %v5207, %v5504
    %v5588 = vadd.f32 %v5208, %v5509
    %v5589 = vadd.f32 %v5209, %v5514
    %v5590 = vadd.f32 %v5210, %v5519
    %v5591 = vadd.f32 %v5211, %v5524
    %v5592 = vadd.f32 %v5212, %v5529
    %v5593 = vadd.f32 %v5213, %v5534
    %v5594 = vadd.f32 %v5214, %v5539
    %v5595 = vadd.f32 %v5215, %v5544
    %v5596 = vadd.f32 %v5216, %v5549
    %v5597 = vadd.f32 %v5217, %v5554
    %v5598 = vadd.f32 %v5218, %v5559
    %v5599 = vadd.f32 %v5219, %v5564
    %v5600 = vadd.f32 %v5220, %v5569
    %v5601 = vadd.f32 %v5221, %v5574
    %v5602 = vadd.f32 %v5222, %v5579
    %v5603 = vld [vmem:[#allocation7 + $0x280] sm:$0xff]
    %v5604 = vld [vmem:[#allocation7 + $0x288] sm:$0xff]
    %v5605 = vld [vmem:[#allocation7 + $0x290] sm:$0xff]
    %v5606 = vld [vmem:[#allocation7 + $0x298] sm:$0xff]
    %v5607 = vld [vmem:[#allocation7 + $0x2a0] sm:$0xff]
    %v5608 = vld [vmem:[#allocation7 + $0x2a8] sm:$0xff]
    %v5609 = vld [vmem:[#allocation7 + $0x2b0] sm:$0xff]
    %v5610 = vld [vmem:[#allocation7 + $0x2b8] sm:$0xff]
    %v5611 = vld [vmem:[#allocation7 + $0x2c0] sm:$0xff]
    %v5612 = vld [vmem:[#allocation7 + $0x2c8] sm:$0xff]
    %v5613 = vld [vmem:[#allocation7 + $0x2d0] sm:$0xff]
    %v5614 = vld [vmem:[#allocation7 + $0x2d8] sm:$0xff]
    %v5615 = vld [vmem:[#allocation7 + $0x2e0] sm:$0xff]
    %v5616 = vld [vmem:[#allocation7 + $0x2e8] sm:$0xff]
    %v5617 = vld [vmem:[#allocation7 + $0x2f0] sm:$0xff]
    %v5618 = vld [vmem:[#allocation7 + $0x2f8] sm:$0xff]
    %5619 = vmatprep.subr.mxu0 0.0
    %5620 = vmatpush1.msra.mxu0 %v5618
    %5621 = vmatprep.subr.mxu0 0.0
    %5622 = vmatpush1.msra.mxu0 %v5617
    %5623 = vmatprep.subr.mxu0 0.0
    %5624 = vmatpush1.msra.mxu0 %v5616
    %5625 = vmatprep.subr.mxu0 0.0
    %5626 = vmatpush1.msra.mxu0 %v5615
    %5627 = vmatprep.subr.mxu0 0.0
    %5628 = vmatpush1.msra.mxu0 %v5614
    %5629 = vmatprep.subr.mxu0 0.0
    %5630 = vmatpush1.msra.mxu0 %v5613
    %5631 = vmatprep.subr.mxu0 0.0
    %5632 = vmatpush1.msra.mxu0 %v5612
    %5633 = vmatprep.subr.mxu0 0.0
    %5634 = vmatpush1.msra.mxu0 %v5611
    %5635 = vmatprep.subr.mxu0 0.0
    %5636 = vmatpush1.msra.mxu0 %v5610
    %5637 = vmatprep.subr.mxu0 0.0
    %5638 = vmatpush1.msra.mxu0 %v5609
    %5639 = vmatprep.subr.mxu0 0.0
    %5640 = vmatpush1.msra.mxu0 %v5608
    %5641 = vmatprep.subr.mxu0 0.0
    %5642 = vmatpush1.msra.mxu0 %v5607
    %5643 = vmatprep.subr.mxu0 0.0
    %5644 = vmatpush1.msra.mxu0 %v5606
    %5645 = vmatprep.subr.mxu0 0.0
    %5646 = vmatpush1.msra.mxu0 %v5605
    %5647 = vmatprep.subr.mxu0 0.0
    %5648 = vmatpush1.msra.mxu0 %v5604
    %5649 = vmatprep.subr.mxu0 0.0
    %5650 = vmatpush1.msra.mxu0 %v5603
    %5651 = vmatprep.subr.mxu0 0.0
    %5652 = vmatpush2.msra.mxu0 0.0
    %5653 = vmatprep.subr.mxu0 0.0
    %5654 = vmatpush2.msra.mxu0 0.0
    %5655 = vmatprep.subr.mxu0 0.0
    %5656 = vmatpush2.msra.mxu0 0.0
    %5657 = vmatprep.subr.mxu0 0.0
    %5658 = vmatpush2.msra.mxu0 0.0
    %5659 = vmatprep.subr.mxu0 0.0
    %5660 = vmatpush2.msra.mxu0 0.0
    %5661 = vmatprep.subr.mxu0 0.0
    %5662 = vmatpush2.msra.mxu0 0.0
    %5663 = vmatprep.subr.mxu0 0.0
    %5664 = vmatpush2.msra.mxu0 0.0
    %5665 = vmatprep.subr.mxu0 0.0
    %5666 = vmatpush2.msra.mxu0 0.0
    %5667 = vmatprep.subr.mxu0 0.0
    %5668 = vmatpush2.msra.mxu0 0.0
    %5669 = vmatprep.subr.mxu0 0.0
    %5670 = vmatpush2.msra.mxu0 0.0
    %5671 = vmatprep.subr.mxu0 0.0
    %5672 = vmatpush2.msra.mxu0 0.0
    %5673 = vmatprep.subr.mxu0 0.0
    %5674 = vmatpush2.msra.mxu0 0.0
    %5675 = vmatprep.subr.mxu0 0.0
    %5676 = vmatpush2.msra.mxu0 0.0
    %5677 = vmatprep.subr.mxu0 0.0
    %5678 = vmatpush2.msra.mxu0 0.0
    %5679 = vmatprep.subr.mxu0 0.0
    %5680 = vmatpush2.msra.mxu0 0.0
    %5681 = vmatprep.subr.mxu0 0.0
    %5682 = vmatpush2.msra.mxu0 0.0
    %5683 = vmatprep.mubr.f32.mxu0 0.0
    %5684 = vmatmul.mubr.f32.gmra.mxu0 %v3724
    %v5685 = vpop.f32.mrf.mxu0
    %v5686 = vadd.f32 0.0, %v5685
    %v5687 = vpop.f32.mrf.mxu0
    %5688 = vmatprep.mubr.f32.mxu0 0.0
    %5689 = vmatmul.mubr.f32.gmra.mxu0 %v3725
    %v5690 = vpop.f32.mrf.mxu0
    %v5691 = vadd.f32 0.0, %v5690
    %v5692 = vpop.f32.mrf.mxu0
    %5693 = vmatprep.mubr.f32.mxu0 0.0
    %5694 = vmatmul.mubr.f32.gmra.mxu0 %v3726
    %v5695 = vpop.f32.mrf.mxu0
    %v5696 = vadd.f32 0.0, %v5695
    %v5697 = vpop.f32.mrf.mxu0
    %5698 = vmatprep.mubr.f32.mxu0 0.0
    %5699 = vmatmul.mubr.f32.gmra.mxu0 %v3727
    %v5700 = vpop.f32.mrf.mxu0
    %v5701 = vadd.f32 0.0, %v5700
    %v5702 = vpop.f32.mrf.mxu0
    %5703 = vmatprep.mubr.f32.mxu0 0.0
    %5704 = vmatmul.mubr.f32.gmra.mxu0 %v3728
    %v5705 = vpop.f32.mrf.mxu0
    %v5706 = vadd.f32 0.0, %v5705
    %v5707 = vpop.f32.mrf.mxu0
    %5708 = vmatprep.mubr.f32.mxu0 0.0
    %5709 = vmatmul.mubr.f32.gmra.mxu0 %v3729
    %v5710 = vpop.f32.mrf.mxu0
    %v5711 = vadd.f32 0.0, %v5710
    %v5712 = vpop.f32.mrf.mxu0
    %5713 = vmatprep.mubr.f32.mxu0 0.0
    %5714 = vmatmul.mubr.f32.gmra.mxu0 %v3730
    %v5715 = vpop.f32.mrf.mxu0
    %v5716 = vadd.f32 0.0, %v5715
    %v5717 = vpop.f32.mrf.mxu0
    %5718 = vmatprep.mubr.f32.mxu0 0.0
    %5719 = vmatmul.mubr.f32.gmra.mxu0 %v3731
    %v5720 = vpop.f32.mrf.mxu0
    %v5721 = vadd.f32 0.0, %v5720
    %v5722 = vpop.f32.mrf.mxu0
    %5723 = vmatprep.mubr.f32.mxu0 0.0
    %5724 = vmatmul.mubr.f32.gmra.mxu0 %v3732
    %v5725 = vpop.f32.mrf.mxu0
    %v5726 = vadd.f32 0.0, %v5725
    %v5727 = vpop.f32.mrf.mxu0
    %5728 = vmatprep.mubr.f32.mxu0 0.0
    %5729 = vmatmul.mubr.f32.gmra.mxu0 %v3733
    %v5730 = vpop.f32.mrf.mxu0
    %v5731 = vadd.f32 0.0, %v5730
    %v5732 = vpop.f32.mrf.mxu0
    %5733 = vmatprep.mubr.f32.mxu0 0.0
    %5734 = vmatmul.mubr.f32.gmra.mxu0 %v3734
    %v5735 = vpop.f32.mrf.mxu0
    %v5736 = vadd.f32 0.0, %v5735
    %v5737 = vpop.f32.mrf.mxu0
    %5738 = vmatprep.mubr.f32.mxu0 0.0
    %5739 = vmatmul.mubr.f32.gmra.mxu0 %v3735
    %v5740 = vpop.f32.mrf.mxu0
    %v5741 = vadd.f32 0.0, %v5740
    %v5742 = vpop.f32.mrf.mxu0
    %5743 = vmatprep.mubr.f32.mxu0 0.0
    %5744 = vmatmul.mubr.f32.gmra.mxu0 %v3736
    %v5745 = vpop.f32.mrf.mxu0
    %v5746 = vadd.f32 0.0, %v5745
    %v5747 = vpop.f32.mrf.mxu0
    %5748 = vmatprep.mubr.f32.mxu0 0.0
    %5749 = vmatmul.mubr.f32.gmra.mxu0 %v3737
    %v5750 = vpop.f32.mrf.mxu0
    %v5751 = vadd.f32 0.0, %v5750
    %v5752 = vpop.f32.mrf.mxu0
    %5753 = vmatprep.mubr.f32.mxu0 0.0
    %5754 = vmatmul.mubr.f32.gmra.mxu0 %v3738
    %v5755 = vpop.f32.mrf.mxu0
    %v5756 = vadd.f32 0.0, %v5755
    %v5757 = vpop.f32.mrf.mxu0
    %5758 = vmatprep.mubr.f32.mxu0 0.0
    %5759 = vmatmul.mubr.f32.gmra.mxu0 %v3739
    %v5760 = vpop.f32.mrf.mxu0
    %v5761 = vadd.f32 0.0, %v5760
    %v5762 = vpop.f32.mrf.mxu0
    %5763 = vmatprep.mubr.f32.mxu0 0.0
    %5764 = vmatmul.mubr.f32.gmra.mxu0 %v3740
    %v5765 = vpop.f32.mrf.mxu0
    %v5766 = vadd.f32 0.0, %v5765
    %v5767 = vpop.f32.mrf.mxu0
    %5768 = vmatprep.mubr.f32.mxu0 0.0
    %5769 = vmatmul.mubr.f32.gmra.mxu0 %v3741
    %v5770 = vpop.f32.mrf.mxu0
    %v5771 = vadd.f32 0.0, %v5770
    %v5772 = vpop.f32.mrf.mxu0
    %5773 = vmatprep.mubr.f32.mxu0 0.0
    %5774 = vmatmul.mubr.f32.gmra.mxu0 %v3742
    %v5775 = vpop.f32.mrf.mxu0
    %v5776 = vadd.f32 0.0, %v5775
    %v5777 = vpop.f32.mrf.mxu0
    %5778 = vmatprep.mubr.f32.mxu0 0.0
    %5779 = vmatmul.mubr.f32.gmra.mxu0 %v3743
    %v5780 = vpop.f32.mrf.mxu0
    %v5781 = vadd.f32 0.0, %v5780
    %v5782 = vpop.f32.mrf.mxu0
    %5783 = vmatprep.mubr.f32.mxu0 0.0
    %5784 = vmatmul.mubr.f32.gmra.mxu0 %v3744
    %v5785 = vpop.f32.mrf.mxu0
    %v5786 = vadd.f32 0.0, %v5785
    %v5787 = vpop.f32.mrf.mxu0
    %5788 = vdwg.mxu0
    %v5790 = vsel %vm724, %v5786, 0
    %5792 = vmatprep.subr.mxu0 0.0
    %5793 = vmatpush1.msra.mxu0 %v5761
    %5794 = vmatprep.subr.mxu0 0.0
    %5795 = vmatpush1.msra.mxu0 %v5756
    %5796 = vmatprep.subr.mxu0 0.0
    %5797 = vmatpush1.msra.mxu0 %v5751
    %5798 = vmatprep.subr.mxu0 0.0
    %5799 = vmatpush1.msra.mxu0 %v5746
    %5800 = vmatprep.subr.mxu0 0.0
    %5801 = vmatpush1.msra.mxu0 %v5741
    %5802 = vmatprep.subr.mxu0 0.0
    %5803 = vmatpush1.msra.mxu0 %v5736
    %5804 = vmatprep.subr.mxu0 0.0
    %5805 = vmatpush1.msra.mxu0 %v5731
    %5806 = vmatprep.subr.mxu0 0.0
    %5807 = vmatpush1.msra.mxu0 %v5726
    %5808 = vmatprep.subr.mxu0 0.0
    %5809 = vmatpush1.msra.mxu0 %v5721
    %5810 = vmatprep.subr.mxu0 0.0
    %5811 = vmatpush1.msra.mxu0 %v5716
    %5812 = vmatprep.subr.mxu0 0.0
    %5813 = vmatpush1.msra.mxu0 %v5711
    %5814 = vmatprep.subr.mxu0 0.0
    %5815 = vmatpush1.msra.mxu0 %v5706
    %5816 = vmatprep.subr.mxu0 0.0
    %5817 = vmatpush1.msra.mxu0 %v5701
    %5818 = vmatprep.subr.mxu0 0.0
    %5819 = vmatpush1.msra.mxu0 %v5696
    %5820 = vmatprep.subr.mxu0 0.0
    %5821 = vmatpush1.msra.mxu0 %v5691
    %5822 = vmatprep.subr.mxu0 0.0
    %5823 = vmatpush1.msra.mxu0 %v5686
    %5824 = vmatprep.subr.mxu0 0.0
    %5825 = vmatpush2.msra.mxu0 0.0
    %5826 = vmatprep.subr.mxu0 0.0
    %5827 = vmatpush2.msra.mxu0 0.0
    %5828 = vmatprep.subr.mxu0 0.0
    %5829 = vmatpush2.msra.mxu0 0.0
    %5830 = vmatprep.subr.mxu0 0.0
    %5831 = vmatpush2.msra.mxu0 0.0
    %5832 = vmatprep.subr.mxu0 0.0
    %5833 = vmatpush2.msra.mxu0 0.0
    %5834 = vmatprep.subr.mxu0 0.0
    %5835 = vmatpush2.msra.mxu0 0.0
    %5836 = vmatprep.subr.mxu0 0.0
    %5837 = vmatpush2.msra.mxu0 0.0
    %5838 = vmatprep.subr.mxu0 0.0
    %5839 = vmatpush2.msra.mxu0 0.0
    %5840 = vmatprep.subr.mxu0 0.0
    %5841 = vmatpush2.msra.mxu0 0.0
    %5842 = vmatprep.subr.mxu0 0.0
    %5843 = vmatpush2.msra.mxu0 0.0
    %5844 = vmatprep.subr.mxu0 0.0
    %5845 = vmatpush2.msra.mxu0 0.0
    %5846 = vmatprep.subr.mxu0 0.0
    %5847 = vmatpush2.msra.mxu0 %v5790
    %5848 = vmatprep.subr.mxu0 0.0
    %5849 = vmatpush2.msra.mxu0 %v5781
    %5850 = vmatprep.subr.mxu0 0.0
    %5851 = vmatpush2.msra.mxu0 %v5776
    %5852 = vmatprep.subr.mxu0 0.0
    %5853 = vmatpush2.msra.mxu0 %v5771
    %5854 = vmatprep.subr.mxu0 0.0
    %5855 = vmatpush2.msra.mxu0 %v5766
    %5856 = vmatprep.mubr.f32.mxu0 %v2790
    %5857 = vmatmul.mubr.f32.gmra.mxu0 %v2747
    %v5858 = vpop.f32.mrf.mxu0
    %v5859 = vadd.f32 0.0, %v5858
    %v5860 = vpop.f32.mrf.mxu0
    %5861 = vmatprep.mubr.f32.mxu0 %v2793
    %5862 = vmatmul.mubr.f32.gmra.mxu0 %v2749
    %v5863 = vpop.f32.mrf.mxu0
    %v5864 = vadd.f32 0.0, %v5863
    %v5865 = vpop.f32.mrf.mxu0
    %5866 = vmatprep.mubr.f32.mxu0 %v2796
    %5867 = vmatmul.mubr.f32.gmra.mxu0 %v2751
    %v5868 = vpop.f32.mrf.mxu0
    %v5869 = vadd.f32 0.0, %v5868
    %v5870 = vpop.f32.mrf.mxu0
    %5871 = vmatprep.mubr.f32.mxu0 %v2799
    %5872 = vmatmul.mubr.f32.gmra.mxu0 %v2753
    %v5873 = vpop.f32.mrf.mxu0
    %v5874 = vadd.f32 0.0, %v5873
    %v5875 = vpop.f32.mrf.mxu0
    %5876 = vmatprep.mubr.f32.mxu0 %v2802
    %5877 = vmatmul.mubr.f32.gmra.mxu0 %v2755
    %v5878 = vpop.f32.mrf.mxu0
    %v5879 = vadd.f32 0.0, %v5878
    %v5880 = vpop.f32.mrf.mxu0
    %5881 = vmatprep.mubr.f32.mxu0 %v2805
    %5882 = vmatmul.mubr.f32.gmra.mxu0 %v2757
    %v5883 = vpop.f32.mrf.mxu0
    %v5884 = vadd.f32 0.0, %v5883
    %v5885 = vpop.f32.mrf.mxu0
    %5886 = vmatprep.mubr.f32.mxu0 %v2808
    %5887 = vmatmul.mubr.f32.gmra.mxu0 %v2759
    %v5888 = vpop.f32.mrf.mxu0
    %v5889 = vadd.f32 0.0, %v5888
    %v5890 = vpop.f32.mrf.mxu0
    %5891 = vmatprep.mubr.f32.mxu0 %v2811
    %5892 = vmatmul.mubr.f32.gmra.mxu0 %v2761
    %v5893 = vpop.f32.mrf.mxu0
    %v5894 = vadd.f32 0.0, %v5893
    %v5895 = vpop.f32.mrf.mxu0
    %5896 = vmatprep.mubr.f32.mxu0 %v2814
    %5897 = vmatmul.mubr.f32.gmra.mxu0 %v2763
    %v5898 = vpop.f32.mrf.mxu0
    %v5899 = vadd.f32 0.0, %v5898
    %v5900 = vpop.f32.mrf.mxu0
    %5901 = vmatprep.mubr.f32.mxu0 %v2817
    %5902 = vmatmul.mubr.f32.gmra.mxu0 %v2765
    %v5903 = vpop.f32.mrf.mxu0
    %v5904 = vadd.f32 0.0, %v5903
    %v5905 = vpop.f32.mrf.mxu0
    %5906 = vmatprep.mubr.f32.mxu0 %v2820
    %5907 = vmatmul.mubr.f32.gmra.mxu0 %v2767
    %v5908 = vpop.f32.mrf.mxu0
    %v5909 = vadd.f32 0.0, %v5908
    %v5910 = vpop.f32.mrf.mxu0
    %5911 = vmatprep.mubr.f32.mxu0 %v2823
    %5912 = vmatmul.mubr.f32.gmra.mxu0 %v2769
    %v5913 = vpop.f32.mrf.mxu0
    %v5914 = vadd.f32 0.0, %v5913
    %v5915 = vpop.f32.mrf.mxu0
    %5916 = vmatprep.mubr.f32.mxu0 %v2826
    %5917 = vmatmul.mubr.f32.gmra.mxu0 %v2771
    %v5918 = vpop.f32.mrf.mxu0
    %v5919 = vadd.f32 0.0, %v5918
    %v5920 = vpop.f32.mrf.mxu0
    %5921 = vmatprep.mubr.f32.mxu0 %v2829
    %5922 = vmatmul.mubr.f32.gmra.mxu0 %v2773
    %v5923 = vpop.f32.mrf.mxu0
    %v5924 = vadd.f32 0.0, %v5923
    %v5925 = vpop.f32.mrf.mxu0
    %5926 = vmatprep.mubr.f32.mxu0 %v2832
    %5927 = vmatmul.mubr.f32.gmra.mxu0 %v2775
    %v5928 = vpop.f32.mrf.mxu0
    %v5929 = vadd.f32 0.0, %v5928
    %v5930 = vpop.f32.mrf.mxu0
    %5931 = vmatprep.mubr.f32.mxu0 %v2835
    %5932 = vmatmul.mubr.f32.gmra.mxu0 %v2777
    %v5933 = vpop.f32.mrf.mxu0
    %v5934 = vadd.f32 0.0, %v5933
    %v5935 = vpop.f32.mrf.mxu0
    %5936 = vmatprep.mubr.f32.mxu0 %v2838
    %5937 = vmatmul.mubr.f32.gmra.mxu0 %v2779
    %v5938 = vpop.f32.mrf.mxu0
    %v5939 = vadd.f32 0.0, %v5938
    %v5940 = vpop.f32.mrf.mxu0
    %5941 = vmatprep.mubr.f32.mxu0 %v2841
    %5942 = vmatmul.mubr.f32.gmra.mxu0 %v2781
    %v5943 = vpop.f32.mrf.mxu0
    %v5944 = vadd.f32 0.0, %v5943
    %v5945 = vpop.f32.mrf.mxu0
    %5946 = vmatprep.mubr.f32.mxu0 %v2844
    %5947 = vmatmul.mubr.f32.gmra.mxu0 %v2783
    %v5948 = vpop.f32.mrf.mxu0
    %v5949 = vadd.f32 0.0, %v5948
    %v5950 = vpop.f32.mrf.mxu0
    %5951 = vmatprep.mubr.f32.mxu0 %v2847
    %5952 = vmatmul.mubr.f32.gmra.mxu0 %v2785
    %v5953 = vpop.f32.mrf.mxu0
    %v5954 = vadd.f32 0.0, %v5953
    %v5955 = vpop.f32.mrf.mxu0
    %5956 = vmatprep.mubr.f32.mxu0 %v2850
    %5957 = vmatmul.mubr.f32.gmra.mxu0 %v2787
    %v5958 = vpop.f32.mrf.mxu0
    %v5959 = vadd.f32 0.0, %v5958
    %v5960 = vpop.f32.mrf.mxu0
    %5961 = vdwg.mxu0
    %v5962 = vadd.f32 %v5582, %v5859
    %v5963 = vadd.f32 %v5583, %v5864
    %v5964 = vadd.f32 %v5584, %v5869
    %v5965 = vadd.f32 %v5585, %v5874
    %v5966 = vadd.f32 %v5586, %v5879
    %v5967 = vadd.f32 %v5587, %v5884
    %v5968 = vadd.f32 %v5588, %v5889
    %v5969 = vadd.f32 %v5589, %v5894
    %v5970 = vadd.f32 %v5590, %v5899
    %v5971 = vadd.f32 %v5591, %v5904
    %v5972 = vadd.f32 %v5592, %v5909
    %v5973 = vadd.f32 %v5593, %v5914
    %v5974 = vadd.f32 %v5594, %v5919
    %v5975 = vadd.f32 %v5595, %v5924
    %v5976 = vadd.f32 %v5596, %v5929
    %v5977 = vadd.f32 %v5597, %v5934
    %v5978 = vadd.f32 %v5598, %v5939
    %v5979 = vadd.f32 %v5599, %v5944
    %v5980 = vadd.f32 %v5600, %v5949
    %v5981 = vadd.f32 %v5601, %v5954
    %v5982 = vadd.f32 %v5602, %v5959
    %v5983 = vld [vmem:[#allocation7 + $0x300] sm:$0xff]
    %v5984 = vld [vmem:[#allocation7 + $0x308] sm:$0xff]
    %v5985 = vld [vmem:[#allocation7 + $0x310] sm:$0xff]
    %v5986 = vld [vmem:[#allocation7 + $0x318] sm:$0xff]
    %v5987 = vld [vmem:[#allocation7 + $0x320] sm:$0xff]
    %v5988 = vld [vmem:[#allocation7 + $0x328] sm:$0xff]
    %v5989 = vld [vmem:[#allocation7 + $0x330] sm:$0xff]
    %v5990 = vld [vmem:[#allocation7 + $0x338] sm:$0xff]
    %v5991 = vld [vmem:[#allocation7 + $0x340] sm:$0xff]
    %v5992 = vld [vmem:[#allocation7 + $0x348] sm:$0xff]
    %v5993 = vld [vmem:[#allocation7 + $0x350] sm:$0xff]
    %v5994 = vld [vmem:[#allocation7 + $0x358] sm:$0xff]
    %v5995 = vld [vmem:[#allocation7 + $0x360] sm:$0xff]
    %v5996 = vld [vmem:[#allocation7 + $0x368] sm:$0xff]
    %v5997 = vld [vmem:[#allocation7 + $0x370] sm:$0xff]
    %v5998 = vld [vmem:[#allocation7 + $0x378] sm:$0xff]
    %5999 = vmatprep.subr.mxu0 0.0
    %6000 = vmatpush1.msra.mxu0 %v5998
    %6001 = vmatprep.subr.mxu0 0.0
    %6002 = vmatpush1.msra.mxu0 %v5997
    %6003 = vmatprep.subr.mxu0 0.0
    %6004 = vmatpush1.msra.mxu0 %v5996
    %6005 = vmatprep.subr.mxu0 0.0
    %6006 = vmatpush1.msra.mxu0 %v5995
    %6007 = vmatprep.subr.mxu0 0.0
    %6008 = vmatpush1.msra.mxu0 %v5994
    %6009 = vmatprep.subr.mxu0 0.0
    %6010 = vmatpush1.msra.mxu0 %v5993
    %6011 = vmatprep.subr.mxu0 0.0
    %6012 = vmatpush1.msra.mxu0 %v5992
    %6013 = vmatprep.subr.mxu0 0.0
    %6014 = vmatpush1.msra.mxu0 %v5991
    %6015 = vmatprep.subr.mxu0 0.0
    %6016 = vmatpush1.msra.mxu0 %v5990
    %6017 = vmatprep.subr.mxu0 0.0
    %6018 = vmatpush1.msra.mxu0 %v5989
    %6019 = vmatprep.subr.mxu0 0.0
    %6020 = vmatpush1.msra.mxu0 %v5988
    %6021 = vmatprep.subr.mxu0 0.0
    %6022 = vmatpush1.msra.mxu0 %v5987
    %6023 = vmatprep.subr.mxu0 0.0
    %6024 = vmatpush1.msra.mxu0 %v5986
    %6025 = vmatprep.subr.mxu0 0.0
    %6026 = vmatpush1.msra.mxu0 %v5985
    %6027 = vmatprep.subr.mxu0 0.0
    %6028 = vmatpush1.msra.mxu0 %v5984
    %6029 = vmatprep.subr.mxu0 0.0
    %6030 = vmatpush1.msra.mxu0 %v5983
    %6031 = vmatprep.subr.mxu0 0.0
    %6032 = vmatpush2.msra.mxu0 0.0
    %6033 = vmatprep.subr.mxu0 0.0
    %6034 = vmatpush2.msra.mxu0 0.0
    %6035 = vmatprep.subr.mxu0 0.0
    %6036 = vmatpush2.msra.mxu0 0.0
    %6037 = vmatprep.subr.mxu0 0.0
    %6038 = vmatpush2.msra.mxu0 0.0
    %6039 = vmatprep.subr.mxu0 0.0
    %6040 = vmatpush2.msra.mxu0 0.0
    %6041 = vmatprep.subr.mxu0 0.0
    %6042 = vmatpush2.msra.mxu0 0.0
    %6043 = vmatprep.subr.mxu0 0.0
    %6044 = vmatpush2.msra.mxu0 0.0
    %6045 = vmatprep.subr.mxu0 0.0
    %6046 = vmatpush2.msra.mxu0 0.0
    %6047 = vmatprep.subr.mxu0 0.0
    %6048 = vmatpush2.msra.mxu0 0.0
    %6049 = vmatprep.subr.mxu0 0.0
    %6050 = vmatpush2.msra.mxu0 0.0
    %6051 = vmatprep.subr.mxu0 0.0
    %6052 = vmatpush2.msra.mxu0 0.0
    %6053 = vmatprep.subr.mxu0 0.0
    %6054 = vmatpush2.msra.mxu0 0.0
    %6055 = vmatprep.subr.mxu0 0.0
    %6056 = vmatpush2.msra.mxu0 0.0
    %6057 = vmatprep.subr.mxu0 0.0
    %6058 = vmatpush2.msra.mxu0 0.0
    %6059 = vmatprep.subr.mxu0 0.0
    %6060 = vmatpush2.msra.mxu0 0.0
    %6061 = vmatprep.subr.mxu0 0.0
    %6062 = vmatpush2.msra.mxu0 0.0
    %6063 = vmatprep.mubr.f32.mxu0 0.0
    %6064 = vmatmul.mubr.f32.gmra.mxu0 %v3724
    %v6065 = vpop.f32.mrf.mxu0
    %v6066 = vadd.f32 0.0, %v6065
    %v6067 = vpop.f32.mrf.mxu0
    %6068 = vmatprep.mubr.f32.mxu0 0.0
    %6069 = vmatmul.mubr.f32.gmra.mxu0 %v3725
    %v6070 = vpop.f32.mrf.mxu0
    %v6071 = vadd.f32 0.0, %v6070
    %v6072 = vpop.f32.mrf.mxu0
    %6073 = vmatprep.mubr.f32.mxu0 0.0
    %6074 = vmatmul.mubr.f32.gmra.mxu0 %v3726
    %v6075 = vpop.f32.mrf.mxu0
    %v6076 = vadd.f32 0.0, %v6075
    %v6077 = vpop.f32.mrf.mxu0
    %6078 = vmatprep.mubr.f32.mxu0 0.0
    %6079 = vmatmul.mubr.f32.gmra.mxu0 %v3727
    %v6080 = vpop.f32.mrf.mxu0
    %v6081 = vadd.f32 0.0, %v6080
    %v6082 = vpop.f32.mrf.mxu0
    %6083 = vmatprep.mubr.f32.mxu0 0.0
    %6084 = vmatmul.mubr.f32.gmra.mxu0 %v3728
    %v6085 = vpop.f32.mrf.mxu0
    %v6086 = vadd.f32 0.0, %v6085
    %v6087 = vpop.f32.mrf.mxu0
    %6088 = vmatprep.mubr.f32.mxu0 0.0
    %6089 = vmatmul.mubr.f32.gmra.mxu0 %v3729
    %v6090 = vpop.f32.mrf.mxu0
    %v6091 = vadd.f32 0.0, %v6090
    %v6092 = vpop.f32.mrf.mxu0
    %6093 = vmatprep.mubr.f32.mxu0 0.0
    %6094 = vmatmul.mubr.f32.gmra.mxu0 %v3730
    %v6095 = vpop.f32.mrf.mxu0
    %v6096 = vadd.f32 0.0, %v6095
    %v6097 = vpop.f32.mrf.mxu0
    %6098 = vmatprep.mubr.f32.mxu0 0.0
    %6099 = vmatmul.mubr.f32.gmra.mxu0 %v3731
    %v6100 = vpop.f32.mrf.mxu0
    %v6101 = vadd.f32 0.0, %v6100
    %v6102 = vpop.f32.mrf.mxu0
    %6103 = vmatprep.mubr.f32.mxu0 0.0
    %6104 = vmatmul.mubr.f32.gmra.mxu0 %v3732
    %v6105 = vpop.f32.mrf.mxu0
    %v6106 = vadd.f32 0.0, %v6105
    %v6107 = vpop.f32.mrf.mxu0
    %6108 = vmatprep.mubr.f32.mxu0 0.0
    %6109 = vmatmul.mubr.f32.gmra.mxu0 %v3733
    %v6110 = vpop.f32.mrf.mxu0
    %v6111 = vadd.f32 0.0, %v6110
    %v6112 = vpop.f32.mrf.mxu0
    %6113 = vmatprep.mubr.f32.mxu0 0.0
    %6114 = vmatmul.mubr.f32.gmra.mxu0 %v3734
    %v6115 = vpop.f32.mrf.mxu0
    %v6116 = vadd.f32 0.0, %v6115
    %v6117 = vpop.f32.mrf.mxu0
    %6118 = vmatprep.mubr.f32.mxu0 0.0
    %6119 = vmatmul.mubr.f32.gmra.mxu0 %v3735
    %v6120 = vpop.f32.mrf.mxu0
    %v6121 = vadd.f32 0.0, %v6120
    %v6122 = vpop.f32.mrf.mxu0
    %6123 = vmatprep.mubr.f32.mxu0 0.0
    %6124 = vmatmul.mubr.f32.gmra.mxu0 %v3736
    %v6125 = vpop.f32.mrf.mxu0
    %v6126 = vadd.f32 0.0, %v6125
    %v6127 = vpop.f32.mrf.mxu0
    %6128 = vmatprep.mubr.f32.mxu0 0.0
    %6129 = vmatmul.mubr.f32.gmra.mxu0 %v3737
    %v6130 = vpop.f32.mrf.mxu0
    %v6131 = vadd.f32 0.0, %v6130
    %v6132 = vpop.f32.mrf.mxu0
    %6133 = vmatprep.mubr.f32.mxu0 0.0
    %6134 = vmatmul.mubr.f32.gmra.mxu0 %v3738
    %v6135 = vpop.f32.mrf.mxu0
    %v6136 = vadd.f32 0.0, %v6135
    %v6137 = vpop.f32.mrf.mxu0
    %6138 = vmatprep.mubr.f32.mxu0 0.0
    %6139 = vmatmul.mubr.f32.gmra.mxu0 %v3739
    %v6140 = vpop.f32.mrf.mxu0
    %v6141 = vadd.f32 0.0, %v6140
    %v6142 = vpop.f32.mrf.mxu0
    %6143 = vmatprep.mubr.f32.mxu0 0.0
    %6144 = vmatmul.mubr.f32.gmra.mxu0 %v3740
    %v6145 = vpop.f32.mrf.mxu0
    %v6146 = vadd.f32 0.0, %v6145
    %v6147 = vpop.f32.mrf.mxu0
    %6148 = vmatprep.mubr.f32.mxu0 0.0
    %6149 = vmatmul.mubr.f32.gmra.mxu0 %v3741
    %v6150 = vpop.f32.mrf.mxu0
    %v6151 = vadd.f32 0.0, %v6150
    %v6152 = vpop.f32.mrf.mxu0
    %6153 = vmatprep.mubr.f32.mxu0 0.0
    %6154 = vmatmul.mubr.f32.gmra.mxu0 %v3742
    %v6155 = vpop.f32.mrf.mxu0
    %v6156 = vadd.f32 0.0, %v6155
    %v6157 = vpop.f32.mrf.mxu0
    %6158 = vmatprep.mubr.f32.mxu0 0.0
    %6159 = vmatmul.mubr.f32.gmra.mxu0 %v3743
    %v6160 = vpop.f32.mrf.mxu0
    %v6161 = vadd.f32 0.0, %v6160
    %v6162 = vpop.f32.mrf.mxu0
    %6163 = vmatprep.mubr.f32.mxu0 0.0
    %6164 = vmatmul.mubr.f32.gmra.mxu0 %v3744
    %v6165 = vpop.f32.mrf.mxu0
    %v6166 = vadd.f32 0.0, %v6165
    %v6167 = vpop.f32.mrf.mxu0
    %6168 = vdwg.mxu0
    %v6170 = vsel %vm724, %v6166, 0
    %6172 = vmatprep.subr.mxu0 0.0
    %6173 = vmatpush1.msra.mxu0 %v6141
    %6174 = vmatprep.subr.mxu0 0.0
    %6175 = vmatpush1.msra.mxu0 %v6136
    %6176 = vmatprep.subr.mxu0 0.0
    %6177 = vmatpush1.msra.mxu0 %v6131
    %6178 = vmatprep.subr.mxu0 0.0
    %6179 = vmatpush1.msra.mxu0 %v6126
    %6180 = vmatprep.subr.mxu0 0.0
    %6181 = vmatpush1.msra.mxu0 %v6121
    %6182 = vmatprep.subr.mxu0 0.0
    %6183 = vmatpush1.msra.mxu0 %v6116
    %6184 = vmatprep.subr.mxu0 0.0
    %6185 = vmatpush1.msra.mxu0 %v6111
    %6186 = vmatprep.subr.mxu0 0.0
    %6187 = vmatpush1.msra.mxu0 %v6106
    %6188 = vmatprep.subr.mxu0 0.0
    %6189 = vmatpush1.msra.mxu0 %v6101
    %6190 = vmatprep.subr.mxu0 0.0
    %6191 = vmatpush1.msra.mxu0 %v6096
    %6192 = vmatprep.subr.mxu0 0.0
    %6193 = vmatpush1.msra.mxu0 %v6091
    %6194 = vmatprep.subr.mxu0 0.0
    %6195 = vmatpush1.msra.mxu0 %v6086
    %6196 = vmatprep.subr.mxu0 0.0
    %6197 = vmatpush1.msra.mxu0 %v6081
    %6198 = vmatprep.subr.mxu0 0.0
    %6199 = vmatpush1.msra.mxu0 %v6076
    %6200 = vmatprep.subr.mxu0 0.0
    %6201 = vmatpush1.msra.mxu0 %v6071
    %6202 = vmatprep.subr.mxu0 0.0
    %6203 = vmatpush1.msra.mxu0 %v6066
    %6204 = vmatprep.subr.mxu0 0.0
    %6205 = vmatpush2.msra.mxu0 0.0
    %6206 = vmatprep.subr.mxu0 0.0
    %6207 = vmatpush2.msra.mxu0 0.0
    %6208 = vmatprep.subr.mxu0 0.0
    %6209 = vmatpush2.msra.mxu0 0.0
    %6210 = vmatprep.subr.mxu0 0.0
    %6211 = vmatpush2.msra.mxu0 0.0
    %6212 = vmatprep.subr.mxu0 0.0
    %6213 = vmatpush2.msra.mxu0 0.0
    %6214 = vmatprep.subr.mxu0 0.0
    %6215 = vmatpush2.msra.mxu0 0.0
    %6216 = vmatprep.subr.mxu0 0.0
    %6217 = vmatpush2.msra.mxu0 0.0
    %6218 = vmatprep.subr.mxu0 0.0
    %6219 = vmatpush2.msra.mxu0 0.0
    %6220 = vmatprep.subr.mxu0 0.0
    %6221 = vmatpush2.msra.mxu0 0.0
    %6222 = vmatprep.subr.mxu0 0.0
    %6223 = vmatpush2.msra.mxu0 0.0
    %6224 = vmatprep.subr.mxu0 0.0
    %6225 = vmatpush2.msra.mxu0 0.0
    %6226 = vmatprep.subr.mxu0 0.0
    %6227 = vmatpush2.msra.mxu0 %v6170
    %6228 = vmatprep.subr.mxu0 0.0
    %6229 = vmatpush2.msra.mxu0 %v6161
    %6230 = vmatprep.subr.mxu0 0.0
    %6231 = vmatpush2.msra.mxu0 %v6156
    %6232 = vmatprep.subr.mxu0 0.0
    %6233 = vmatpush2.msra.mxu0 %v6151
    %6234 = vmatprep.subr.mxu0 0.0
    %6235 = vmatpush2.msra.mxu0 %v6146
    %6236 = vmatprep.mubr.f32.mxu0 %v3268
    %6237 = vmatmul.mubr.f32.gmra.mxu0 %v3225
    %v6238 = vpop.f32.mrf.mxu0
    %v6239 = vadd.f32 0.0, %v6238
    %v6240 = vpop.f32.mrf.mxu0
    %6241 = vmatprep.mubr.f32.mxu0 %v3271
    %6242 = vmatmul.mubr.f32.gmra.mxu0 %v3227
    %v6243 = vpop.f32.mrf.mxu0
    %v6244 = vadd.f32 0.0, %v6243
    %v6245 = vpop.f32.mrf.mxu0
    %6246 = vmatprep.mubr.f32.mxu0 %v3274
    %6247 = vmatmul.mubr.f32.gmra.mxu0 %v3229
    %v6248 = vpop.f32.mrf.mxu0
    %v6249 = vadd.f32 0.0, %v6248
    %v6250 = vpop.f32.mrf.mxu0
    %6251 = vmatprep.mubr.f32.mxu0 %v3277
    %6252 = vmatmul.mubr.f32.gmra.mxu0 %v3231
    %v6253 = vpop.f32.mrf.mxu0
    %v6254 = vadd.f32 0.0, %v6253
    %v6255 = vpop.f32.mrf.mxu0
    %6256 = vmatprep.mubr.f32.mxu0 %v3280
    %6257 = vmatmul.mubr.f32.gmra.mxu0 %v3233
    %v6258 = vpop.f32.mrf.mxu0
    %v6259 = vadd.f32 0.0, %v6258
    %v6260 = vpop.f32.mrf.mxu0
    %6261 = vmatprep.mubr.f32.mxu0 %v3283
    %6262 = vmatmul.mubr.f32.gmra.mxu0 %v3235
    %v6263 = vpop.f32.mrf.mxu0
    %v6264 = vadd.f32 0.0, %v6263
    %v6265 = vpop.f32.mrf.mxu0
    %6266 = vmatprep.mubr.f32.mxu0 %v3286
    %6267 = vmatmul.mubr.f32.gmra.mxu0 %v3237
    %v6268 = vpop.f32.mrf.mxu0
    %v6269 = vadd.f32 0.0, %v6268
    %v6270 = vpop.f32.mrf.mxu0
    %6271 = vmatprep.mubr.f32.mxu0 %v3289
    %6272 = vmatmul.mubr.f32.gmra.mxu0 %v3239
    %v6273 = vpop.f32.mrf.mxu0
    %v6274 = vadd.f32 0.0, %v6273
    %v6275 = vpop.f32.mrf.mxu0
    %6276 = vmatprep.mubr.f32.mxu0 %v3292
    %6277 = vmatmul.mubr.f32.gmra.mxu0 %v3241
    %v6278 = vpop.f32.mrf.mxu0
    %v6279 = vadd.f32 0.0, %v6278
    %v6280 = vpop.f32.mrf.mxu0
    %6281 = vmatprep.mubr.f32.mxu0 %v3295
    %6282 = vmatmul.mubr.f32.gmra.mxu0 %v3243
    %v6283 = vpop.f32.mrf.mxu0
    %v6284 = vadd.f32 0.0, %v6283
    %v6285 = vpop.f32.mrf.mxu0
    %6286 = vmatprep.mubr.f32.mxu0 %v3298
    %6287 = vmatmul.mubr.f32.gmra.mxu0 %v3245
    %v6288 = vpop.f32.mrf.mxu0
    %v6289 = vadd.f32 0.0, %v6288
    %v6290 = vpop.f32.mrf.mxu0
    %6291 = vmatprep.mubr.f32.mxu0 %v3301
    %6292 = vmatmul.mubr.f32.gmra.mxu0 %v3247
    %v6293 = vpop.f32.mrf.mxu0
    %v6294 = vadd.f32 0.0, %v6293
    %v6295 = vpop.f32.mrf.mxu0
    %6296 = vmatprep.mubr.f32.mxu0 %v3304
    %6297 = vmatmul.mubr.f32.gmra.mxu0 %v3249
    %v6298 = vpop.f32.mrf.mxu0
    %v6299 = vadd.f32 0.0, %v6298
    %v6300 = vpop.f32.mrf.mxu0
    %6301 = vmatprep.mubr.f32.mxu0 %v3307
    %6302 = vmatmul.mubr.f32.gmra.mxu0 %v3251
    %v6303 = vpop.f32.mrf.mxu0
    %v6304 = vadd.f32 0.0, %v6303
    %v6305 = vpop.f32.mrf.mxu0
    %6306 = vmatprep.mubr.f32.mxu0 %v3310
    %6307 = vmatmul.mubr.f32.gmra.mxu0 %v3253
    %v6308 = vpop.f32.mrf.mxu0
    %v6309 = vadd.f32 0.0, %v6308
    %v6310 = vpop.f32.mrf.mxu0
    %6311 = vmatprep.mubr.f32.mxu0 %v3313
    %6312 = vmatmul.mubr.f32.gmra.mxu0 %v3255
    %v6313 = vpop.f32.mrf.mxu0
    %v6314 = vadd.f32 0.0, %v6313
    %v6315 = vpop.f32.mrf.mxu0
    %6316 = vmatprep.mubr.f32.mxu0 %v3316
    %6317 = vmatmul.mubr.f32.gmra.mxu0 %v3257
    %v6318 = vpop.f32.mrf.mxu0
    %v6319 = vadd.f32 0.0, %v6318
    %v6320 = vpop.f32.mrf.mxu0
    %6321 = vmatprep.mubr.f32.mxu0 %v3319
    %6322 = vmatmul.mubr.f32.gmra.mxu0 %v3259
    %v6323 = vpop.f32.mrf.mxu0
    %v6324 = vadd.f32 0.0, %v6323
    %v6325 = vpop.f32.mrf.mxu0
    %6326 = vmatprep.mubr.f32.mxu0 %v3322
    %6327 = vmatmul.mubr.f32.gmra.mxu0 %v3261
    %v6328 = vpop.f32.mrf.mxu0
    %v6329 = vadd.f32 0.0, %v6328
    %v6330 = vpop.f32.mrf.mxu0
    %6331 = vmatprep.mubr.f32.mxu0 %v3325
    %6332 = vmatmul.mubr.f32.gmra.mxu0 %v3263
    %v6333 = vpop.f32.mrf.mxu0
    %v6334 = vadd.f32 0.0, %v6333
    %v6335 = vpop.f32.mrf.mxu0
    %6336 = vmatprep.mubr.f32.mxu0 %v3328
    %6337 = vmatmul.mubr.f32.gmra.mxu0 %v3265
    %v6338 = vpop.f32.mrf.mxu0
    %v6339 = vadd.f32 0.0, %v6338
    %v6340 = vpop.f32.mrf.mxu0
    %6341 = vdwg.mxu0
    %v6342 = vadd.f32 %v5962, %v6239
    %v6343 = vadd.f32 %v5963, %v6244
    %v6344 = vadd.f32 %v5964, %v6249
    %v6345 = vadd.f32 %v5965, %v6254
    %v6346 = vadd.f32 %v5966, %v6259
    %v6347 = vadd.f32 %v5967, %v6264
    %v6348 = vadd.f32 %v5968, %v6269
    %v6349 = vadd.f32 %v5969, %v6274
    %v6350 = vadd.f32 %v5970, %v6279
    %v6351 = vadd.f32 %v5971, %v6284
    %v6352 = vadd.f32 %v5972, %v6289
    %v6353 = vadd.f32 %v5973, %v6294
    %v6354 = vadd.f32 %v5974, %v6299
    %v6355 = vadd.f32 %v5975, %v6304
    %v6356 = vadd.f32 %v5976, %v6309
    %v6357 = vadd.f32 %v5977, %v6314
    %v6358 = vadd.f32 %v5978, %v6319
    %v6359 = vadd.f32 %v5979, %v6324
    %v6360 = vadd.f32 %v5980, %v6329
    %v6361 = vadd.f32 %v5981, %v6334
    %v6362 = vadd.f32 %v5982, %v6339
    %v6363 = vadd.f32 %v6342, %v6343
    %v6364 = vadd.f32 %v6363, %v6344
    %v6365 = vadd.f32 %v6364, %v6345
    %v6366 = vadd.f32 %v6365, %v6346
    %v6367 = vadd.f32 %v6366, %v6347
    %v6368 = vadd.f32 %v6367, %v6348
    %v6369 = vadd.f32 %v6368, %v6349
    %v6370 = vadd.f32 %v6369, %v6350
    %v6371 = vadd.f32 %v6370, %v6351
    %v6372 = vadd.f32 %v6371, %v6352
    %v6373 = vadd.f32 %v6372, %v6353
    %v6374 = vadd.f32 %v6373, %v6354
    %v6375 = vadd.f32 %v6374, %v6355
    %v6376 = vadd.f32 %v6375, %v6356
    %v6377 = vadd.f32 %v6376, %v6357
    %v6378 = vadd.f32 %v6377, %v6358
    %v6379 = vadd.f32 %v6378, %v6359
    %v6380 = vadd.f32 %v6379, %v6360
    %v6381 = vadd.f32 %v6380, %v6361
    %v6382 = vsel %vm724, %v6362, 0.0
    %v6383 = vadd.f32 %v6381, %v6382
    %v6384 = vrot.slane %v6383, 4
    %v6385 = vadd.f32 %v6383, %v6384
    %v6386 = vrot.slane %v6385, 2
    %v6387 = vadd.f32 %v6385, %v6386
    %v6388 = vrot.slane %v6387, 1
    %v6389 = vadd.f32 %v6387, %v6388
    %v6390 = vmul.f32 %v6389, %v3551
    %v6391 = vsub.f32 %v6342, %v6390
    %v6392 = vsub.f32 %v6343, %v6390
    %v6393 = vsub.f32 %v6344, %v6390
    %v6394 = vsub.f32 %v6345, %v6390
    %v6395 = vsub.f32 %v6346, %v6390
    %v6396 = vsub.f32 %v6347, %v6390
    %v6397 = vsub.f32 %v6348, %v6390
    %v6398 = vsub.f32 %v6349, %v6390
    %v6399 = vsub.f32 %v6350, %v6390
    %v6400 = vsub.f32 %v6351, %v6390
    %v6401 = vsub.f32 %v6352, %v6390
    %v6402 = vsub.f32 %v6353, %v6390
    %v6403 = vsub.f32 %v6354, %v6390
    %v6404 = vsub.f32 %v6355, %v6390
    %v6405 = vsub.f32 %v6356, %v6390
    %v6406 = vsub.f32 %v6357, %v6390
    %v6407 = vsub.f32 %v6358, %v6390
    %v6408 = vsub.f32 %v6359, %v6390
    %v6409 = vsub.f32 %v6360, %v6390
    %v6410 = vsub.f32 %v6361, %v6390
    %v6411 = vsub.f32 %v6362, %v6390
    %v6412 = vmul.f32 %v6391, %v6391
    %v6413 = vmul.f32 %v6392, %v6392
    %v6414 = vmul.f32 %v6393, %v6393
    %v6415 = vmul.f32 %v6394, %v6394
    %v6416 = vmul.f32 %v6395, %v6395
    %v6417 = vmul.f32 %v6396, %v6396
    %v6418 = vmul.f32 %v6397, %v6397
    %v6419 = vmul.f32 %v6398, %v6398
    %v6420 = vmul.f32 %v6399, %v6399
    %v6421 = vmul.f32 %v6400, %v6400
    %v6422 = vmul.f32 %v6401, %v6401
    %v6423 = vmul.f32 %v6402, %v6402
    %v6424 = vmul.f32 %v6403, %v6403
    %v6425 = vmul.f32 %v6404, %v6404
    %v6426 = vmul.f32 %v6405, %v6405
    %v6427 = vmul.f32 %v6406, %v6406
    %v6428 = vmul.f32 %v6407, %v6407
    %v6429 = vmul.f32 %v6408, %v6408
    %v6430 = vmul.f32 %v6409, %v6409
    %v6431 = vmul.f32 %v6410, %v6410
    %v6432 = vmul.f32 %v6411, %v6411
    %v6433 = vadd.f32 %v6412, %v6413
    %v6434 = vadd.f32 %v6433, %v6414
    %v6435 = vadd.f32 %v6434, %v6415
    %v6436 = vadd.f32 %v6435, %v6416
    %v6437 = vadd.f32 %v6436, %v6417
    %v6438 = vadd.f32 %v6437, %v6418
    %v6439 = vadd.f32 %v6438, %v6419
    %v6440 = vadd.f32 %v6439, %v6420
    %v6441 = vadd.f32 %v6440, %v6421
    %v6442 = vadd.f32 %v6441, %v6422
    %v6443 = vadd.f32 %v6442, %v6423
    %v6444 = vadd.f32 %v6443, %v6424
    %v6445 = vadd.f32 %v6444, %v6425
    %v6446 = vadd.f32 %v6445, %v6426
    %v6447 = vadd.f32 %v6446, %v6427
    %v6448 = vadd.f32 %v6447, %v6428
    %v6449 = vadd.f32 %v6448, %v6429
    %v6450 = vadd.f32 %v6449, %v6430
    %v6451 = vadd.f32 %v6450, %v6431
    %v6452 = vsel %vm724, %v6432, 0.0
    %v6453 = vadd.f32 %v6451, %v6452
    %v6454 = vrot.slane %v6453, 4
    %v6455 = vadd.f32 %v6453, %v6454
    %v6456 = vrot.slane %v6455, 2
    %v6457 = vadd.f32 %v6455, %v6456
    %v6458 = vrot.slane %v6457, 1
    %v6459 = vadd.f32 %v6457, %v6458
    %v6460 = vmul.f32 %v6459, %v3551
    %v6461 = vld [vmem:[#allocation13] sm:$0x1]
    %v6462 = vadd.f32 %v6460, 1e-05
    %v6463 = vrsqrt.pop %v6462
    %v6464 = vmul.f32 %v6461, %v6463
    %v6466 = vlaneseq
    %v6467 = vshrl.u32 %v6466, 7
    %v6468 = vsub.s32 0, %v6467
    %v6469 = vrot.slane %v6464, %v6468
    %v6471 = vmul.f32 %v6391, %v6469
    %v6472 = vmul.f32 %v6392, %v6469
    %v6473 = vmul.f32 %v6393, %v6469
    %v6474 = vmul.f32 %v6394, %v6469
    %v6475 = vmul.f32 %v6395, %v6469
    %v6476 = vmul.f32 %v6396, %v6469
    %v6477 = vmul.f32 %v6397, %v6469
    %v6478 = vmul.f32 %v6398, %v6469
    %v6479 = vmul.f32 %v6399, %v6469
    %v6480 = vmul.f32 %v6400, %v6469
    %v6481 = vmul.f32 %v6401, %v6469
    %v6482 = vmul.f32 %v6402, %v6469
    %v6483 = vmul.f32 %v6403, %v6469
    %v6484 = vmul.f32 %v6404, %v6469
    %v6485 = vmul.f32 %v6405, %v6469
    %v6486 = vmul.f32 %v6406, %v6469
    %v6487 = vmul.f32 %v6407, %v6469
    %v6488 = vmul.f32 %v6408, %v6469
    %v6489 = vmul.f32 %v6409, %v6469
    %v6490 = vmul.f32 %v6410, %v6469
    %v6491 = vmul.f32 %v6411, %v6469
    %v6492 = vld [vmem:[#allocation14] sm:$0x1]
    %v6494 = vlaneseq
    %v6495 = vshrl.u32 %v6494, 7
    %v6496 = vsub.s32 0, %v6495
    %v6497 = vrot.slane %v6492, %v6496
    %v6499 = vadd.f32 %v6471, %v6497
    %v6500 = vadd.f32 %v6472, %v6497
    %v6501 = vadd.f32 %v6473, %v6497
    %v6502 = vadd.f32 %v6474, %v6497
    %v6503 = vadd.f32 %v6475, %v6497
    %v6504 = vadd.f32 %v6476, %v6497
    %v6505 = vadd.f32 %v6477, %v6497
    %v6506 = vadd.f32 %v6478, %v6497
    %v6507 = vadd.f32 %v6479, %v6497
    %v6508 = vadd.f32 %v6480, %v6497
    %v6509 = vadd.f32 %v6481, %v6497
    %v6510 = vadd.f32 %v6482, %v6497
    %v6511 = vadd.f32 %v6483, %v6497
    %v6512 = vadd.f32 %v6484, %v6497
    %v6513 = vadd.f32 %v6485, %v6497
    %v6514 = vadd.f32 %v6486, %v6497
    %v6515 = vadd.f32 %v6487, %v6497
    %v6516 = vadd.f32 %v6488, %v6497
    %v6517 = vadd.f32 %v6489, %v6497
    %v6518 = vadd.f32 %v6490, %v6497
    %v6519 = vadd.f32 %v6491, %v6497
    %v6520 = vld [vmem:[#allocation8] sm:$0xff]
    %v6521 = vld [vmem:[#allocation8 + $0x8] sm:$0xff]
    %v6522 = vld [vmem:[#allocation8 + $0x10] sm:$0xff]
    %v6523 = vld [vmem:[#allocation8 + $0x18] sm:$0xff]
    %v6524 = vld [vmem:[#allocation8 + $0x20] sm:$0xff]
    %v6525 = vld [vmem:[#allocation8 + $0x28] sm:$0xff]
    %v6526 = vld [vmem:[#allocation8 + $0x30] sm:$0xff]
    %v6527 = vld [vmem:[#allocation8 + $0x38] sm:$0xff]
    %6528 = vmatprep.subr.mxu0 0.0
    %6529 = vmatpush1.msra.mxu0 0.0
    %6530 = vmatprep.subr.mxu0 0.0
    %6531 = vmatpush1.msra.mxu0 0.0
    %6532 = vmatprep.subr.mxu0 0.0
    %6533 = vmatpush1.msra.mxu0 0.0
    %6534 = vmatprep.subr.mxu0 0.0
    %6535 = vmatpush1.msra.mxu0 0.0
    %6536 = vmatprep.subr.mxu0 0.0
    %6537 = vmatpush1.msra.mxu0 0.0
    %6538 = vmatprep.subr.mxu0 0.0
    %6539 = vmatpush1.msra.mxu0 0.0
    %6540 = vmatprep.subr.mxu0 0.0
    %6541 = vmatpush1.msra.mxu0 0.0
    %6542 = vmatprep.subr.mxu0 0.0
    %6543 = vmatpush1.msra.mxu0 0.0
    %6544 = vmatprep.subr.mxu0 0.0
    %6545 = vmatpush1.msra.mxu0 %v6527
    %6546 = vmatprep.subr.mxu0 0.0
    %6547 = vmatpush1.msra.mxu0 %v6526
    %6548 = vmatprep.subr.mxu0 0.0
    %6549 = vmatpush1.msra.mxu0 %v6525
    %6550 = vmatprep.subr.mxu0 0.0
    %6551 = vmatpush1.msra.mxu0 %v6524
    %6552 = vmatprep.subr.mxu0 0.0
    %6553 = vmatpush1.msra.mxu0 %v6523
    %6554 = vmatprep.subr.mxu0 0.0
    %6555 = vmatpush1.msra.mxu0 %v6522
    %6556 = vmatprep.subr.mxu0 0.0
    %6557 = vmatpush1.msra.mxu0 %v6521
    %6558 = vmatprep.subr.mxu0 0.0
    %6559 = vmatpush1.msra.mxu0 %v6520
    %6560 = vmatprep.subr.mxu0 0.0
    %6561 = vmatpush2.msra.mxu0 0.0
    %6562 = vmatprep.subr.mxu0 0.0
    %6563 = vmatpush2.msra.mxu0 0.0
    %6564 = vmatprep.subr.mxu0 0.0
    %6565 = vmatpush2.msra.mxu0 0.0
    %6566 = vmatprep.subr.mxu0 0.0
    %6567 = vmatpush2.msra.mxu0 0.0
    %6568 = vmatprep.subr.mxu0 0.0
    %6569 = vmatpush2.msra.mxu0 0.0
    %6570 = vmatprep.subr.mxu0 0.0
    %6571 = vmatpush2.msra.mxu0 0.0
    %6572 = vmatprep.subr.mxu0 0.0
    %6573 = vmatpush2.msra.mxu0 0.0
    %6574 = vmatprep.subr.mxu0 0.0
    %6575 = vmatpush2.msra.mxu0 0.0
    %6576 = vmatprep.subr.mxu0 0.0
    %6577 = vmatpush2.msra.mxu0 0.0
    %6578 = vmatprep.subr.mxu0 0.0
    %6579 = vmatpush2.msra.mxu0 0.0
    %6580 = vmatprep.subr.mxu0 0.0
    %6581 = vmatpush2.msra.mxu0 0.0
    %6582 = vmatprep.subr.mxu0 0.0
    %6583 = vmatpush2.msra.mxu0 0.0
    %6584 = vmatprep.subr.mxu0 0.0
    %6585 = vmatpush2.msra.mxu0 0.0
    %6586 = vmatprep.subr.mxu0 0.0
    %6587 = vmatpush2.msra.mxu0 0.0
    %6588 = vmatprep.subr.mxu0 0.0
    %6589 = vmatpush2.msra.mxu0 0.0
    %6590 = vmatprep.subr.mxu0 0.0
    %6591 = vmatpush2.msra.mxu0 0.0
    %6592 = vmatprep.mubr.f32.mxu0 0.0
    %6593 = vmatmul.mubr.f32.gmra.mxu0 %v165
    %v6594 = vpop.f32.mrf.mxu0
    %v6595 = vadd.f32 0.0, %v6594
    %v6596 = vpop.f32.mrf.mxu0
    %6597 = vmatprep.mubr.f32.mxu0 0.0
    %6598 = vmatmul.mubr.f32.gmra.mxu0 %v168
    %v6599 = vpop.f32.mrf.mxu0
    %v6600 = vadd.f32 0.0, %v6599
    %v6601 = vpop.f32.mrf.mxu0
    %6602 = vmatprep.mubr.f32.mxu0 0.0
    %6603 = vmatmul.mubr.f32.gmra.mxu0 %v171
    %v6604 = vpop.f32.mrf.mxu0
    %v6605 = vadd.f32 0.0, %v6604
    %v6606 = vpop.f32.mrf.mxu0
    %6607 = vmatprep.mubr.f32.mxu0 0.0
    %6608 = vmatmul.mubr.f32.gmra.mxu0 %v174
    %v6609 = vpop.f32.mrf.mxu0
    %v6610 = vadd.f32 0.0, %v6609
    %v6611 = vpop.f32.mrf.mxu0
    %6612 = vmatprep.mubr.f32.mxu0 0.0
    %6613 = vmatmul.mubr.f32.gmra.mxu0 %v177
    %v6614 = vpop.f32.mrf.mxu0
    %v6615 = vadd.f32 0.0, %v6614
    %v6616 = vpop.f32.mrf.mxu0
    %6617 = vmatprep.mubr.f32.mxu0 0.0
    %6618 = vmatmul.mubr.f32.gmra.mxu0 %v180
    %v6619 = vpop.f32.mrf.mxu0
    %v6620 = vadd.f32 0.0, %v6619
    %v6621 = vpop.f32.mrf.mxu0
    %6622 = vmatprep.mubr.f32.mxu0 0.0
    %6623 = vmatmul.mubr.f32.gmra.mxu0 %v183
    %v6624 = vpop.f32.mrf.mxu0
    %v6625 = vadd.f32 0.0, %v6624
    %v6626 = vpop.f32.mrf.mxu0
    %6627 = vmatprep.mubr.f32.mxu0 0.0
    %6628 = vmatmul.mubr.f32.gmra.mxu0 %v186
    %v6629 = vpop.f32.mrf.mxu0
    %v6630 = vadd.f32 0.0, %v6629
    %v6631 = vpop.f32.mrf.mxu0
    %6632 = vmatprep.mubr.f32.mxu0 0.0
    %6633 = vmatmul.mubr.f32.gmra.mxu0 %v189
    %v6634 = vpop.f32.mrf.mxu0
    %v6635 = vadd.f32 0.0, %v6634
    %v6636 = vpop.f32.mrf.mxu0
    %6637 = vmatprep.mubr.f32.mxu0 0.0
    %6638 = vmatmul.mubr.f32.gmra.mxu0 %v192
    %v6639 = vpop.f32.mrf.mxu0
    %v6640 = vadd.f32 0.0, %v6639
    %v6641 = vpop.f32.mrf.mxu0
    %6642 = vmatprep.mubr.f32.mxu0 0.0
    %6643 = vmatmul.mubr.f32.gmra.mxu0 %v195
    %v6644 = vpop.f32.mrf.mxu0
    %v6645 = vadd.f32 0.0, %v6644
    %v6646 = vpop.f32.mrf.mxu0
    %6647 = vmatprep.mubr.f32.mxu0 0.0
    %6648 = vmatmul.mubr.f32.gmra.mxu0 %v198
    %v6649 = vpop.f32.mrf.mxu0
    %v6650 = vadd.f32 0.0, %v6649
    %v6651 = vpop.f32.mrf.mxu0
    %6652 = vmatprep.mubr.f32.mxu0 0.0
    %6653 = vmatmul.mubr.f32.gmra.mxu0 %v201
    %v6654 = vpop.f32.mrf.mxu0
    %v6655 = vadd.f32 0.0, %v6654
    %v6656 = vpop.f32.mrf.mxu0
    %6657 = vmatprep.mubr.f32.mxu0 0.0
    %6658 = vmatmul.mubr.f32.gmra.mxu0 %v204
    %v6659 = vpop.f32.mrf.mxu0
    %v6660 = vadd.f32 0.0, %v6659
    %v6661 = vpop.f32.mrf.mxu0
    %6662 = vmatprep.mubr.f32.mxu0 0.0
    %6663 = vmatmul.mubr.f32.gmra.mxu0 %v207
    %v6664 = vpop.f32.mrf.mxu0
    %v6665 = vadd.f32 0.0, %v6664
    %v6666 = vpop.f32.mrf.mxu0
    %6667 = vmatprep.mubr.f32.mxu0 0.0
    %6668 = vmatmul.mubr.f32.gmra.mxu0 %v210
    %v6669 = vpop.f32.mrf.mxu0
    %v6670 = vadd.f32 0.0, %v6669
    %v6671 = vpop.f32.mrf.mxu0
    %6672 = vmatprep.mubr.f32.mxu0 0.0
    %6673 = vmatmul.mubr.f32.gmra.mxu0 %v213
    %v6674 = vpop.f32.mrf.mxu0
    %v6675 = vadd.f32 0.0, %v6674
    %v6676 = vpop.f32.mrf.mxu0
    %6677 = vmatprep.mubr.f32.mxu0 0.0
    %6678 = vmatmul.mubr.f32.gmra.mxu0 %v216
    %v6679 = vpop.f32.mrf.mxu0
    %v6680 = vadd.f32 0.0, %v6679
    %v6681 = vpop.f32.mrf.mxu0
    %6682 = vmatprep.mubr.f32.mxu0 0.0
    %6683 = vmatmul.mubr.f32.gmra.mxu0 %v219
    %v6684 = vpop.f32.mrf.mxu0
    %v6685 = vadd.f32 0.0, %v6684
    %v6686 = vpop.f32.mrf.mxu0
    %6687 = vmatprep.mubr.f32.mxu0 0.0
    %6688 = vmatmul.mubr.f32.gmra.mxu0 %v222
    %v6689 = vpop.f32.mrf.mxu0
    %v6690 = vadd.f32 0.0, %v6689
    %v6691 = vpop.f32.mrf.mxu0
    %6692 = vmatprep.mubr.f32.mxu0 0.0
    %6693 = vmatmul.mubr.f32.gmra.mxu0 %v225
    %v6694 = vpop.f32.mrf.mxu0
    %v6695 = vadd.f32 0.0, %v6694
    %v6696 = vpop.f32.mrf.mxu0
    %6697 = vdwg.mxu0
    %v6698 = vadd.f32 %v6499, %v6595
    %v6699 = vadd.f32 %v6500, %v6600
    %v6700 = vadd.f32 %v6501, %v6605
    %v6701 = vadd.f32 %v6502, %v6610
    %v6702 = vadd.f32 %v6503, %v6615
    %v6703 = vadd.f32 %v6504, %v6620
    %v6704 = vadd.f32 %v6505, %v6625
    %v6705 = vadd.f32 %v6506, %v6630
    %v6706 = vadd.f32 %v6507, %v6635
    %v6707 = vadd.f32 %v6508, %v6640
    %v6708 = vadd.f32 %v6509, %v6645
    %v6709 = vadd.f32 %v6510, %v6650
    %v6710 = vadd.f32 %v6511, %v6655
    %v6711 = vadd.f32 %v6512, %v6660
    %v6712 = vadd.f32 %v6513, %v6665
    %v6713 = vadd.f32 %v6514, %v6670
    %v6714 = vadd.f32 %v6515, %v6675
    %v6715 = vadd.f32 %v6516, %v6680
    %v6716 = vadd.f32 %v6517, %v6685
    %v6717 = vadd.f32 %v6518, %v6690
    %v6718 = vadd.f32 %v6519, %v6695
    %vm6719 = vcmp.ge.f32.partialorder %v6698, 0.0
    %vm6720 = vcmp.ge.f32.partialorder %v6699, 0.0
    %vm6721 = vcmp.ge.f32.partialorder %v6700, 0.0
    %vm6722 = vcmp.ge.f32.partialorder %v6701, 0.0
    %vm6723 = vcmp.ge.f32.partialorder %v6702, 0.0
    %vm6724 = vcmp.ge.f32.partialorder %v6703, 0.0
    %vm6725 = vcmp.ge.f32.partialorder %v6704, 0.0
    %vm6726 = vcmp.ge.f32.partialorder %v6705, 0.0
    %vm6727 = vcmp.ge.f32.partialorder %v6706, 0.0
    %vm6728 = vcmp.ge.f32.partialorder %v6707, 0.0
    %vm6729 = vcmp.ge.f32.partialorder %v6708, 0.0
    %vm6730 = vcmp.ge.f32.partialorder %v6709, 0.0
    %vm6731 = vcmp.ge.f32.partialorder %v6710, 0.0
    %vm6732 = vcmp.ge.f32.partialorder %v6711, 0.0
    %vm6733 = vcmp.ge.f32.partialorder %v6712, 0.0
    %vm6734 = vcmp.ge.f32.partialorder %v6713, 0.0
    %vm6735 = vcmp.ge.f32.partialorder %v6714, 0.0
    %vm6736 = vcmp.ge.f32.partialorder %v6715, 0.0
    %vm6737 = vcmp.ge.f32.partialorder %v6716, 0.0
    %vm6738 = vcmp.ge.f32.partialorder %v6717, 0.0
    %vm6739 = vcmp.ge.f32.partialorder %v6718, 0.0
    %v6740 = vmul.f32 %v6698, 0.2
    %v6741 = vmul.f32 %v6699, 0.2
    %v6742 = vmul.f32 %v6700, 0.2
    %v6743 = vmul.f32 %v6701, 0.2
    %v6744 = vmul.f32 %v6702, 0.2
    %v6745 = vmul.f32 %v6703, 0.2
    %v6746 = vmul.f32 %v6704, 0.2
    %v6747 = vmul.f32 %v6705, 0.2
    %v6748 = vmul.f32 %v6706, 0.2
    %v6749 = vmul.f32 %v6707, 0.2
    %v6750 = vmul.f32 %v6708, 0.2
    %v6751 = vmul.f32 %v6709, 0.2
    %v6752 = vmul.f32 %v6710, 0.2
    %v6753 = vmul.f32 %v6711, 0.2
    %v6754 = vmul.f32 %v6712, 0.2
    %v6755 = vmul.f32 %v6713, 0.2
    %v6756 = vmul.f32 %v6714, 0.2
    %v6757 = vmul.f32 %v6715, 0.2
    %v6758 = vmul.f32 %v6716, 0.2
    %v6759 = vmul.f32 %v6717, 0.2
    %v6760 = vmul.f32 %v6718, 0.2
    %v6761 = vsel %vm6719, %v6698, %v6740
    %v6762 = vsel %vm6720, %v6699, %v6741
    %v6763 = vsel %vm6721, %v6700, %v6742
    %v6764 = vsel %vm6722, %v6701, %v6743
    %v6765 = vsel %vm6723, %v6702, %v6744
    %v6766 = vsel %vm6724, %v6703, %v6745
    %v6767 = vsel %vm6725, %v6704, %v6746
    %v6768 = vsel %vm6726, %v6705, %v6747
    %v6769 = vsel %vm6727, %v6706, %v6748
    %v6770 = vsel %vm6728, %v6707, %v6749
    %v6771 = vsel %vm6729, %v6708, %v6750
    %v6772 = vsel %vm6730, %v6709, %v6751
    %v6773 = vsel %vm6731, %v6710, %v6752
    %v6774 = vsel %vm6732, %v6711, %v6753
    %v6775 = vsel %vm6733, %v6712, %v6754
    %v6776 = vsel %vm6734, %v6713, %v6755
    %v6777 = vsel %vm6735, %v6714, %v6756
    %v6778 = vsel %vm6736, %v6715, %v6757
    %v6779 = vsel %vm6737, %v6716, %v6758
    %v6780 = vsel %vm6738, %v6717, %v6759
    %v6781 = vsel %vm6739, %v6718, %v6760
    %6782 = vst [vmem:[#allocation16] sm:$0xff] %v6761
    %6783 = vst [vmem:[#allocation16 + $0x8] sm:$0xff] %v6762
    %6784 = vst [vmem:[#allocation16 + $0x10] sm:$0xff] %v6763
    %6785 = vst [vmem:[#allocation16 + $0x18] sm:$0xff] %v6764
    %6786 = vst [vmem:[#allocation16 + $0x20] sm:$0xff] %v6765
    %6787 = vst [vmem:[#allocation16 + $0x28] sm:$0xff] %v6766
    %6788 = vst [vmem:[#allocation16 + $0x30] sm:$0xff] %v6767
    %6789 = vst [vmem:[#allocation16 + $0x38] sm:$0xff] %v6768
    %6790 = vst [vmem:[#allocation16 + $0x40] sm:$0xff] %v6769
    %6791 = vst [vmem:[#allocation16 + $0x48] sm:$0xff] %v6770
    %6792 = vst [vmem:[#allocation16 + $0x50] sm:$0xff] %v6771
    %6793 = vst [vmem:[#allocation16 + $0x58] sm:$0xff] %v6772
    %6794 = vst [vmem:[#allocation16 + $0x60] sm:$0xff] %v6773
    %6795 = vst [vmem:[#allocation16 + $0x68] sm:$0xff] %v6774
    %6796 = vst [vmem:[#allocation16 + $0x70] sm:$0xff] %v6775
    %6797 = vst [vmem:[#allocation16 + $0x78] sm:$0xff] %v6776
    %6798 = vst [vmem:[#allocation16 + $0x80] sm:$0xff] %v6777
    %6799 = vst [vmem:[#allocation16 + $0x88] sm:$0xff] %v6778
    %6800 = vst [vmem:[#allocation16 + $0x90] sm:$0xff] %v6779
    %6801 = vst [vmem:[#allocation16 + $0x98] sm:$0xff] %v6780
    %6802 = vst [vmem:[#allocation16 + $0xa0] sm:$0x3] %v6781
    // Predicated region
    $region70: #{tpu_custom_call.1} parent=1 // pred_check
      _
    $region71: #{tpu_custom_call.1} parent=1 // pred_check_branch
      %6804 = sbr.rel (0) target = $region73
    $region72: #{tpu_custom_call.1} parent=1 // pred_region
      %s6806 = ssub.s32 2688, 2688
      %6807 = vsyncadd [#allocation4], %s6806
      %s6808 = sshll.u32 [#allocation16], 4
      %s6809 = int_to_ptr.vmem [resolvable:$true] %s6808
      %6814 = dma.vmem_to_hbm [thread:$0]  %s6809, 2688, %s9, [#allocation4], 128, 128, 8
    $region73: #{tpu_custom_call.1} parent=1 // pred_fallthru
      _
    // Predicated region
    $region74: #{tpu_custom_call.1} parent=1 // pred_check
      _
    $region75: #{tpu_custom_call.1} parent=1 // pred_check_branch
      %6816 = sbr.rel (0) target = $region77
    $region76: #{tpu_custom_call.1} parent=1 // pred_region
      %6817 = dma.done [#allocation4], 2688
    $region77: #{tpu_custom_call.1} parent=1 // pred_fallthru
      _
    %6818 = vsyncpa [#allocation3], 1
    %6819 = vsyncpa [#allocation6], 1
    %6820 = vsyncpa [#allocation9], 1
    %6821 = vsyncpa [#allocation12], 1
    %6822 = vsyncpa [#allocation15], 1
    %6823 = vsyncpa [#allocation4], 1

</llo_original>
